<compile_context>
chip_gen: v6e
topology: v6e:2x2x1
jax: 0.10.0
libtpu: 0.0.40
codegen_flags: <defaults>
</compile_context>

<pallas_src>
import functools

import jax
import jax.numpy as jnp
import numpy as np
from jax import lax
from jax.experimental import pallas as pl
from jax.experimental.pallas import tpu as pltpu

# ---- model dimensions ------------------------------------------------------
IMG_HW = 28
K5 = 5
C1 = 20                      # conv1 output channels
C2 = 50                      # conv2 output channels (real)
C2P = 64                     # conv2 output channels (lane-padded)
CONV1_W = 24                 # conv1 spatial out (28-5+1)
POOL1_HW = 12                # after 2x2 pool
CONV2_W = 8                  # conv2 spatial out (12-5+1)
POOL2_HW = 4                 # after 2x2 pool
HALF1 = 256                  # conv1 folded lanes per column-parity half (12*20 -> 256)
HALF2 = 256                  # conv2 folded lanes per column-parity half (4*64 = 256)
FC1_IN_P = 4 * HALF2         # 1024 lane-dense flatten (4*4*64)
FC1_OUT = 500
FC1_OUT_P = 512
NUM_CLASSES = 10
CLS_P = 128
NEG_INF = -1e30
VMEM_LIMIT = 32 << 20


# ---- the single fused Pallas kernel ----------------------------------------
def _cnn_fused_kernel(x_ref, w1_ref, b1_ref, w2_ref, b2_ref,
                      wf1_ref, bf1_ref, wf2_ref, bf2_ref,
                      o_ref, y1_ref, p1_ref, y2_ref):
    bb = x_ref.shape[0]

    # ---- conv1 (1->20, 5x5) as 5 width-folded GEMMs + bias + ReLU ----------
    # y1 lanes: q*256 + jh*20 + co   (output column j = 2*jh + q)
    y1 = jnp.dot(x_ref[:, 0:CONV1_W, :].reshape(bb * CONV1_W, IMG_HW),
                 w1_ref[0], preferred_element_type=jnp.float32)
    for dy in range(1, K5):
        y1 = y1 + jnp.dot(
            x_ref[:, dy:dy + CONV1_W, :].reshape(bb * CONV1_W, IMG_HW),
            w1_ref[dy], preferred_element_type=jnp.float32)
    y1 = jnp.maximum(y1 + b1_ref[...], 0.0)                    # (bb*24, 512)

    # maxpool over columns: the two lane halves are the two column parities
    y1 = jnp.maximum(y1[:, :HALF1], y1[:, HALF1:])             # (bb*24, 256)
    y1_ref[...] = y1.reshape(bb, CONV1_W, HALF1)

    # maxpool over rows -> p1 (bb, 12, 256), lanes = jh*20 + ci
    for t in range(POOL1_HW):
        p1_ref[:, t:t + 1, :] = jnp.maximum(y1_ref[:, 2 * t:2 * t + 1, :],
                                            y1_ref[:, 2 * t + 1:2 * t + 2, :])

    # ---- conv2 (20->64, 5x5) as 5 width-folded GEMMs + bias + ReLU ---------
    # y2 lanes: q*256 + jh2*64 + co  (output column j2 = 2*jh2 + q)
    y2 = jnp.dot(p1_ref[:, 0:CONV2_W, :].reshape(bb * CONV2_W, HALF1),
                 w2_ref[0], preferred_element_type=jnp.float32)
    for dy in range(1, K5):
        y2 = y2 + jnp.dot(
            p1_ref[:, dy:dy + CONV2_W, :].reshape(bb * CONV2_W, HALF1),
            w2_ref[dy], preferred_element_type=jnp.float32)
    y2 = jnp.maximum(y2 + b2_ref[...], 0.0)                    # (bb*8, 512)

    y2 = jnp.maximum(y2[:, :HALF2], y2[:, HALF2:])             # (bb*8, 256)
    y2_ref[...] = y2.reshape(bb, CONV2_W, HALF2)

    # maxpool over rows + flatten to the lane-dense (bb, 1024) feature slab
    feat = jnp.concatenate(
        [jnp.maximum(y2_ref[:, 2 * t:2 * t + 1, :],
                     y2_ref[:, 2 * t + 1:2 * t + 2, :])
         for t in range(POOL2_HW)], axis=2)                    # (bb, 1, 1024)
    feat = feat.reshape(bb, FC1_IN_P)

    # ---- fc1 + ReLU + fc2 + log_softmax ------------------------------------
    h = jnp.maximum(
        jnp.dot(feat, wf1_ref[...], preferred_element_type=jnp.float32)
        + bf1_ref[...], 0.0)
    logits = jnp.dot(h, wf2_ref[...], preferred_element_type=jnp.float32) + bf2_ref[...]
    m = jnp.max(logits, axis=-1, keepdims=True)
    e = jnp.exp(logits - m)                 # padded cols: exp(-1e30 - m) == 0
    o_ref[...] = logits - m - jnp.log(jnp.sum(e, axis=-1, keepdims=True))


# ---- pallas_call wrapper ----------------------------------------------------
def _fused_call(x, prepared, block_b):
    bp = x.shape[0]
    w1, b1, w2, b2, wf1, bf1, wf2, bf2 = prepared
    return pl.pallas_call(
        _cnn_fused_kernel,
        out_shape=jax.ShapeDtypeStruct((bp, CLS_P), jnp.float32),
        grid=(bp // block_b,),
        in_specs=[
            pl.BlockSpec((block_b, IMG_HW, IMG_HW), lambda t: (t, 0, 0)),
            pl.BlockSpec((K5, IMG_HW, 2 * HALF1), lambda t: (0, 0, 0)),   # resident
            pl.BlockSpec((1, 2 * HALF1), lambda t: (0, 0)),
            pl.BlockSpec((K5, HALF1, 2 * HALF2), lambda t: (0, 0, 0)),    # resident
            pl.BlockSpec((1, 2 * HALF2), lambda t: (0, 0)),
            pl.BlockSpec((FC1_IN_P, FC1_OUT_P), lambda t: (0, 0)),        # resident
            pl.BlockSpec((1, FC1_OUT_P), lambda t: (0, 0)),
            pl.BlockSpec((FC1_OUT_P, CLS_P), lambda t: (0, 0)),           # resident
            pl.BlockSpec((1, CLS_P), lambda t: (0, 0)),
        ],
        out_specs=pl.BlockSpec((block_b, CLS_P), lambda t: (t, 0)),
        scratch_shapes=[
            pltpu.VMEM((block_b, CONV1_W, HALF1), jnp.float32),   # conv1 col-pooled
            pltpu.VMEM((block_b, POOL1_HW, HALF1), jnp.float32),  # pooled1
            pltpu.VMEM((block_b, CONV2_W, HALF2), jnp.float32),   # conv2 col-pooled
        ],
        compiler_params=pltpu.CompilerParams(
            dimension_semantics=("parallel",),
            vmem_limit_bytes=VMEM_LIMIT),
    )(x, w1, b1, w2, b2, wf1, bf1, wf2, bf2)


def cnn_forward(x, prepared, block_b=8):
    """x: (B, 1, 28, 28) or (B, 28, 28).  Returns (B, 10) log-probabilities."""
    x = x.reshape(-1, IMG_HW, IMG_HW).astype(jnp.float32)
    b = x.shape[0]
    bp = int(np.ceil(b / block_b) * block_b)
    if bp != b:
        x = jnp.pad(x, ((0, bp - b), (0, 0), (0, 0)))
    out = _fused_call(x, prepared, block_b)
    return out[:b, :NUM_CLASSES]


# ---- parameter construction (torch layouts) & one-time kernel prep ----------
def init_params(key):
    """Synthetic params in PyTorch layouts (Conv2d: (out,in,kh,kw); Linear: (out,in))."""
    ks = jax.random.split(key, 8)

    def u(k, shape, fan_in):
        bound = 1.0 / np.sqrt(fan_in)
        return jax.random.uniform(k, shape, jnp.float32, -bound, bound)

    w_c1 = u(ks[0], (C1, 1, K5, K5), K5 * K5)
    b_c1 = u(ks[1], (C1,), K5 * K5)
    w_c2 = u(ks[2], (C2, C1, K5, K5), C1 * K5 * K5)
    b_c2 = u(ks[3], (C2,), C1 * K5 * K5)
    w_f1 = u(ks[4], (FC1_OUT, POOL2_HW * POOL2_HW * C2), POOL2_HW * POOL2_HW * C2)
    b_f1 = u(ks[5], (FC1_OUT,), POOL2_HW * POOL2_HW * C2)
    w_f2 = u(ks[6], (NUM_CLASSES, FC1_OUT), FC1_OUT)
    b_f2 = u(ks[7], (NUM_CLASSES,), FC1_OUT)
    return (w_c1, b_c1, w_c2, b_c2, w_f1, b_f1, w_f2, b_f2)


def prepare_params(params):
    """One-time reshape/fold/pad of torch-layout params into kernel layouts."""
    w_c1, b_c1, w_c2, b_c2, w_f1, b_f1, w_f2, b_f2 = [
        np.asarray(p, np.float32) for p in params]

    # conv1 width-folded: w1big[dy, c, q*256 + jh*20 + co] = w_c1[co,0,dy, c-(2jh+q)]
    w1big = np.zeros((K5, IMG_HW, 2 * HALF1), np.float32)
    b1big = np.zeros((1, 2 * HALF1), np.float32)
    for q in range(2):
        for jh in range(POOL1_HW):
            j = 2 * jh + q
            base = q * HALF1 + jh * C1
            b1big[0, base:base + C1] = b_c1
            for dy in range(K5):
                for dx in range(K5):
                    w1big[dy, j + dx, base:base + C1] = w_c1[:, 0, dy, dx]

    # conv2 width-folded: w2big[dy, jin*20+ci, q*256 + jh2*64 + co] = w_c2[co,ci,dy,dx]
    w2big = np.zeros((K5, HALF1, 2 * HALF2), np.float32)
    b2big = np.zeros((1, 2 * HALF2), np.float32)
    for q in range(2):
        for jh2 in range(POOL2_HW):
            j2 = 2 * jh2 + q
            base = q * HALF2 + jh2 * C2P
            b2big[0, base:base + C2] = b_c2
            for dy in range(K5):
                for dx in range(K5):
                    j_in = j2 + dx
                    w2big[dy, j_in * C1:(j_in + 1) * C1, base:base + C2] = \
                        w_c2[:, :, dy, dx].T                    # (ci, co)

    # fc1: our flatten lane = ih2*256 + jh2*64 + co; torch flatten = co*16 + ih2*4 + jh2
    wf1 = np.zeros((FC1_IN_P, FC1_OUT_P), np.float32)
    bf1 = np.zeros((1, FC1_OUT_P), np.float32)
    bf1[0, :FC1_OUT] = b_f1
    for co in range(C2):
        for ih2 in range(POOL2_HW):
            for jh2 in range(POOL2_HW):
                wf1[ih2 * HALF2 + jh2 * C2P + co, :FC1_OUT] = \
                    w_f1[:, co * 16 + ih2 * 4 + jh2]

    # fc2: pad rows 500->512 (zero) and cols 10->128; -1e30 baked into pad bias cols.
    wf2 = np.zeros((FC1_OUT_P, CLS_P), np.float32)
    wf2[:FC1_OUT, :NUM_CLASSES] = w_f2.T
    bf2 = np.full((1, CLS_P), NEG_INF, np.float32)
    bf2[0, :NUM_CLASSES] = b_f2

    return tuple(jnp.asarray(a) for a in
                 (w1big, b1big, w2big, b2big, wf1, bf1, wf2, bf2))


# ---- pure-JAX reference (mirrors the torch module exactly) -------------------
def _reference(x, params):
    w_c1, b_c1, w_c2, b_c2, w_f1, b_f1, w_f2, b_f2 = params
    x = x.reshape(-1, 1, IMG_HW, IMG_HW).astype(jnp.float32)
    dn = ("NCHW", "OIHW", "NCHW")
    hi = lax.Precision.HIGHEST

    y = lax.conv_general_dilated(x, w_c1, (1, 1), "VALID",
                                 dimension_numbers=dn, precision=hi)
    y = jnp.maximum(y + b_c1[None, :, None, None], 0.0)
    y = lax.reduce_window(y, -jnp.inf, lax.max, (1, 1, 2, 2), (1, 1, 2, 2), "VALID")

    y = lax.conv_general_dilated(y, w_c2, (1, 1), "VALID",
                                 dimension_numbers=dn, precision=hi)
    y = jnp.maximum(y + b_c2[None, :, None, None], 0.0)
    y = lax.reduce_window(y, -jnp.inf, lax.max, (1, 1, 2, 2), (1, 1, 2, 2), "VALID")

    y = y.reshape(y.shape[0], -1)                               # NCHW flatten
    h = jnp.maximum(jnp.dot(y, w_f1.T, precision=hi) + b_f1, 0.0)
    logits = jnp.dot(h, w_f2.T, precision=hi) + b_f2
    return jax.nn.log_softmax(logits, axis=1)


if __name__ == "__main__":
    key = jax.random.PRNGKey(0)
    kp, kx = jax.random.split(key)

    params = init_params(kp)
    prepared = prepare_params(params)          # one-time weight folding (cached)

    # small MNIST-like batch; 16 imgs / block_b=8 -> grid of 2 (both v7x TCs busy)
    x = jax.random.normal(kx, (16, 1, IMG_HW, IMG_HW), jnp.float32)

    fwd = jax.jit(functools.partial(cnn_forward, block_b=8))
    out = jax.block_until_ready(fwd(x, prepared))

    ref = _reference(x, params)
    # tolerance absorbs MXU multi-pass f32 vs XLA HIGHEST-precision differences
    np.testing.assert_allclose(np.asarray(out), np.asarray(ref), rtol=5e-3, atol=5e-3)
    assert out.shape == (16, NUM_CLASSES)

    print("KERNEL_OK")
</pallas_src>

<mosaic_0001>
module attributes {stable_mosaic.version = 11 : i64} {
  func.func @_cnn_fused_kernel(%arg0: i32, %arg1: memref<8x28x28xf32, #tpu.memory_space<vmem>>, %arg2: memref<5x28x512xf32, #tpu.memory_space<vmem>>, %arg3: memref<1x512xf32, #tpu.memory_space<vmem>>, %arg4: memref<5x256x512xf32, #tpu.memory_space<vmem>>, %arg5: memref<1x512xf32, #tpu.memory_space<vmem>>, %arg6: memref<1024x512xf32, #tpu.memory_space<vmem>>, %arg7: memref<1x512xf32, #tpu.memory_space<vmem>>, %arg8: memref<512x128xf32, #tpu.memory_space<vmem>>, %arg9: memref<1x128xf32, #tpu.memory_space<vmem>>, %arg10: memref<8x128xf32, #tpu.memory_space<vmem>>, %arg11: memref<8x24x256xf32, #tpu.memory_space<vmem>>, %arg12: memref<8x12x256xf32, #tpu.memory_space<vmem>>, %arg13: memref<8x8x256xf32, #tpu.memory_space<vmem>>) attributes {dimension_semantics = [#tpu.dimension_semantics<parallel>], iteration_bounds = array<i64: 2>, scalar_prefetch = 0 : i64, scratch_operands = 3 : i64, tpu.core_type = #tpu.core_type<tc>, window_params = [{transform_indices = @transform_0, window_bounds = array<i64: 8, 28, 28>}, {pipeline_mode = #tpu.pipeline_mode<synchronous>, transform_indices = @transform_1, window_bounds = array<i64: 5, 28, 512>}, {pipeline_mode = #tpu.pipeline_mode<synchronous>, transform_indices = @transform_2, window_bounds = array<i64: 1, 512>}, {pipeline_mode = #tpu.pipeline_mode<synchronous>, transform_indices = @transform_3, window_bounds = array<i64: 5, 256, 512>}, {pipeline_mode = #tpu.pipeline_mode<synchronous>, transform_indices = @transform_4, window_bounds = array<i64: 1, 512>}, {pipeline_mode = #tpu.pipeline_mode<synchronous>, transform_indices = @transform_5, window_bounds = array<i64: 1024, 512>}, {pipeline_mode = #tpu.pipeline_mode<synchronous>, transform_indices = @transform_6, window_bounds = array<i64: 1, 512>}, {pipeline_mode = #tpu.pipeline_mode<synchronous>, transform_indices = @transform_7, window_bounds = array<i64: 512, 128>}, {pipeline_mode = #tpu.pipeline_mode<synchronous>, transform_indices = @transform_8, window_bounds = array<i64: 1, 128>}, {transform_indices = @transform_9, window_bounds = array<i64: 8, 128>}]} {
    %c0 = arith.constant 0 : index
    %c0_0 = arith.constant 0 : index
    %c0_1 = arith.constant 0 : index
    %0 = vector.load %arg1[%c0, %c0_0, %c0_1] : memref<8x28x28xf32, #tpu.memory_space<vmem>>, vector<8x24x28xf32>
    %1 = vector.shape_cast %0 : vector<8x24x28xf32> to vector<192x28xf32>
    %c0_2 = arith.constant 0 : index
    %c0_3 = arith.constant 0 : index
    %c0_4 = arith.constant 0 : index
    %2 = vector.load %arg2[%c0_2, %c0_3, %c0_4] : memref<5x28x512xf32, #tpu.memory_space<vmem>>, vector<1x28x512xf32>
    %3 = vector.shape_cast %2 : vector<1x28x512xf32> to vector<28x512xf32>
    %cst = arith.constant dense<0.000000e+00> : vector<192x512xf32>
    %4 = tpu.matmul %1, %3, %cst {dimension_numbers = #tpu.dot_dimension_numbers<[1], [0], [0], [1], [0, 0, 1, 1], [], []>} : vector<192x28xf32>, vector<28x512xf32>, vector<192x512xf32> -> vector<192x512xf32>
    %c0_5 = arith.constant 0 : index
    %c1 = arith.constant 1 : index
    %c0_6 = arith.constant 0 : index
    %5 = vector.load %arg1[%c0_5, %c1, %c0_6] : memref<8x28x28xf32, #tpu.memory_space<vmem>>, vector<8x24x28xf32>
    %6 = vector.shape_cast %5 : vector<8x24x28xf32> to vector<192x28xf32>
    %c1_7 = arith.constant 1 : index
    %c0_8 = arith.constant 0 : index
    %c0_9 = arith.constant 0 : index
    %7 = vector.load %arg2[%c1_7, %c0_8, %c0_9] : memref<5x28x512xf32, #tpu.memory_space<vmem>>, vector<1x28x512xf32>
    %8 = vector.shape_cast %7 : vector<1x28x512xf32> to vector<28x512xf32>
    %cst_10 = arith.constant dense<0.000000e+00> : vector<192x512xf32>
    %9 = tpu.matmul %6, %8, %cst_10 {dimension_numbers = #tpu.dot_dimension_numbers<[1], [0], [0], [1], [0, 0, 1, 1], [], []>} : vector<192x28xf32>, vector<28x512xf32>, vector<192x512xf32> -> vector<192x512xf32>
    %10 = arith.addf %4, %9 : vector<192x512xf32>
    %c0_11 = arith.constant 0 : index
    %c2 = arith.constant 2 : index
    %c0_12 = arith.constant 0 : index
    %11 = vector.load %arg1[%c0_11, %c2, %c0_12] : memref<8x28x28xf32, #tpu.memory_space<vmem>>, vector<8x24x28xf32>
    %12 = vector.shape_cast %11 : vector<8x24x28xf32> to vector<192x28xf32>
    %c2_13 = arith.constant 2 : index
    %c0_14 = arith.constant 0 : index
    %c0_15 = arith.constant 0 : index
    %13 = vector.load %arg2[%c2_13, %c0_14, %c0_15] : memref<5x28x512xf32, #tpu.memory_space<vmem>>, vector<1x28x512xf32>
    %14 = vector.shape_cast %13 : vector<1x28x512xf32> to vector<28x512xf32>
    %cst_16 = arith.constant dense<0.000000e+00> : vector<192x512xf32>
    %15 = tpu.matmul %12, %14, %cst_16 {dimension_numbers = #tpu.dot_dimension_numbers<[1], [0], [0], [1], [0, 0, 1, 1], [], []>} : vector<192x28xf32>, vector<28x512xf32>, vector<192x512xf32> -> vector<192x512xf32>
    %16 = arith.addf %10, %15 : vector<192x512xf32>
    %c0_17 = arith.constant 0 : index
    %c3 = arith.constant 3 : index
    %c0_18 = arith.constant 0 : index
    %17 = vector.load %arg1[%c0_17, %c3, %c0_18] : memref<8x28x28xf32, #tpu.memory_space<vmem>>, vector<8x24x28xf32>
    %18 = vector.shape_cast %17 : vector<8x24x28xf32> to vector<192x28xf32>
    %c3_19 = arith.constant 3 : index
    %c0_20 = arith.constant 0 : index
    %c0_21 = arith.constant 0 : index
    %19 = vector.load %arg2[%c3_19, %c0_20, %c0_21] : memref<5x28x512xf32, #tpu.memory_space<vmem>>, vector<1x28x512xf32>
    %20 = vector.shape_cast %19 : vector<1x28x512xf32> to vector<28x512xf32>
    %cst_22 = arith.constant dense<0.000000e+00> : vector<192x512xf32>
    %21 = tpu.matmul %18, %20, %cst_22 {dimension_numbers = #tpu.dot_dimension_numbers<[1], [0], [0], [1], [0, 0, 1, 1], [], []>} : vector<192x28xf32>, vector<28x512xf32>, vector<192x512xf32> -> vector<192x512xf32>
    %22 = arith.addf %16, %21 : vector<192x512xf32>
    %c0_23 = arith.constant 0 : index
    %c4 = arith.constant 4 : index
    %c0_24 = arith.constant 0 : index
    %23 = vector.load %arg1[%c0_23, %c4, %c0_24] : memref<8x28x28xf32, #tpu.memory_space<vmem>>, vector<8x24x28xf32>
    %24 = vector.shape_cast %23 : vector<8x24x28xf32> to vector<192x28xf32>
    %c4_25 = arith.constant 4 : index
    %c0_26 = arith.constant 0 : index
    %c0_27 = arith.constant 0 : index
    %25 = vector.load %arg2[%c4_25, %c0_26, %c0_27] : memref<5x28x512xf32, #tpu.memory_space<vmem>>, vector<1x28x512xf32>
    %26 = vector.shape_cast %25 : vector<1x28x512xf32> to vector<28x512xf32>
    %cst_28 = arith.constant dense<0.000000e+00> : vector<192x512xf32>
    %27 = tpu.matmul %24, %26, %cst_28 {dimension_numbers = #tpu.dot_dimension_numbers<[1], [0], [0], [1], [0, 0, 1, 1], [], []>} : vector<192x28xf32>, vector<28x512xf32>, vector<192x512xf32> -> vector<192x512xf32>
    %28 = arith.addf %22, %27 : vector<192x512xf32>
    %c0_29 = arith.constant 0 : index
    %c0_30 = arith.constant 0 : index
    %29 = vector.load %arg3[%c0_29, %c0_30] : memref<1x512xf32, #tpu.memory_space<vmem>>, vector<1x512xf32>
    %30 = vector.broadcast %29 : vector<1x512xf32> to vector<192x512xf32>
    %31 = arith.addf %28, %30 : vector<192x512xf32>
    %cst_31 = arith.constant 0.000000e+00 : f32
    %32 = vector.broadcast %cst_31 : f32 to vector<192x512xf32>
    %33 = arith.maximumf %31, %32 : vector<192x512xf32>
    %34 = vector.extract_strided_slice %33 {offsets = [0, 0], sizes = [192, 256], strides = [1, 1]} : vector<192x512xf32> to vector<192x256xf32>
    %35 = vector.extract_strided_slice %33 {offsets = [0, 256], sizes = [192, 256], strides = [1, 1]} : vector<192x512xf32> to vector<192x256xf32>
    %36 = arith.maximumf %34, %35 : vector<192x256xf32>
    %37 = vector.shape_cast %36 : vector<192x256xf32> to vector<8x24x256xf32>
    %c0_32 = arith.constant 0 : index
    %c0_33 = arith.constant 0 : index
    %c0_34 = arith.constant 0 : index
    %38 = vector.load %arg11[%c0_32, %c0_33, %c0_34] : memref<8x24x256xf32, #tpu.memory_space<vmem>>, vector<8x24x256xf32>
    tpu.vector_store %arg11[%c0_32, %c0_33, %c0_34], %37 {strides = array<i32>} : memref<8x24x256xf32, #tpu.memory_space<vmem>>, vector<8x24x256xf32>,
    %c0_35 = arith.constant 0 : index
    %c0_36 = arith.constant 0 : index
    %c0_37 = arith.constant 0 : index
    %39 = vector.load %arg11[%c0_35, %c0_36, %c0_37] : memref<8x24x256xf32, #tpu.memory_space<vmem>>, vector<8x1x256xf32>
    %c0_38 = arith.constant 0 : index
    %c1_39 = arith.constant 1 : index
    %c0_40 = arith.constant 0 : index
    %40 = vector.load %arg11[%c0_38, %c1_39, %c0_40] : memref<8x24x256xf32, #tpu.memory_space<vmem>>, vector<8x1x256xf32>
    %41 = arith.maximumf %39, %40 : vector<8x1x256xf32>
    %c0_41 = arith.constant 0 : index
    %c0_42 = arith.constant 0 : index
    %c0_43 = arith.constant 0 : index
    %42 = vector.load %arg12[%c0_41, %c0_42, %c0_43] : memref<8x12x256xf32, #tpu.memory_space<vmem>>, vector<8x1x256xf32>
    tpu.vector_store %arg12[%c0_41, %c0_42, %c0_43], %41 {strides = array<i32>} : memref<8x12x256xf32, #tpu.memory_space<vmem>>, vector<8x1x256xf32>,
    %c0_44 = arith.constant 0 : index
    %c2_45 = arith.constant 2 : index
    %c0_46 = arith.constant 0 : index
    %43 = vector.load %arg11[%c0_44, %c2_45, %c0_46] : memref<8x24x256xf32, #tpu.memory_space<vmem>>, vector<8x1x256xf32>
    %c0_47 = arith.constant 0 : index
    %c3_48 = arith.constant 3 : index
    %c0_49 = arith.constant 0 : index
    %44 = vector.load %arg11[%c0_47, %c3_48, %c0_49] : memref<8x24x256xf32, #tpu.memory_space<vmem>>, vector<8x1x256xf32>
    %45 = arith.maximumf %43, %44 : vector<8x1x256xf32>
    %c0_50 = arith.constant 0 : index
    %c1_51 = arith.constant 1 : index
    %c0_52 = arith.constant 0 : index
    %46 = vector.load %arg12[%c0_50, %c1_51, %c0_52] : memref<8x12x256xf32, #tpu.memory_space<vmem>>, vector<8x1x256xf32>
    tpu.vector_store %arg12[%c0_50, %c1_51, %c0_52], %45 {strides = array<i32>} : memref<8x12x256xf32, #tpu.memory_space<vmem>>, vector<8x1x256xf32>,
    %c0_53 = arith.constant 0 : index
    %c4_54 = arith.constant 4 : index
    %c0_55 = arith.constant 0 : index
    %47 = vector.load %arg11[%c0_53, %c4_54, %c0_55] : memref<8x24x256xf32, #tpu.memory_space<vmem>>, vector<8x1x256xf32>
    %c0_56 = arith.constant 0 : index
    %c5 = arith.constant 5 : index
    %c0_57 = arith.constant 0 : index
    %48 = vector.load %arg11[%c0_56, %c5, %c0_57] : memref<8x24x256xf32, #tpu.memory_space<vmem>>, vector<8x1x256xf32>
    %49 = arith.maximumf %47, %48 : vector<8x1x256xf32>
    %c0_58 = arith.constant 0 : index
    %c2_59 = arith.constant 2 : index
    %c0_60 = arith.constant 0 : index
    %50 = vector.load %arg12[%c0_58, %c2_59, %c0_60] : memref<8x12x256xf32, #tpu.memory_space<vmem>>, vector<8x1x256xf32>
    tpu.vector_store %arg12[%c0_58, %c2_59, %c0_60], %49 {strides = array<i32>} : memref<8x12x256xf32, #tpu.memory_space<vmem>>, vector<8x1x256xf32>,
    %c0_61 = arith.constant 0 : index
    %c6 = arith.constant 6 : index
    %c0_62 = arith.constant 0 : index
    %51 = vector.load %arg11[%c0_61, %c6, %c0_62] : memref<8x24x256xf32, #tpu.memory_space<vmem>>, vector<8x1x256xf32>
    %c0_63 = arith.constant 0 : index
    %c7 = arith.constant 7 : index
    %c0_64 = arith.constant 0 : index
    %52 = vector.load %arg11[%c0_63, %c7, %c0_64] : memref<8x24x256xf32, #tpu.memory_space<vmem>>, vector<8x1x256xf32>
    %53 = arith.maximumf %51, %52 : vector<8x1x256xf32>
    %c0_65 = arith.constant 0 : index
    %c3_66 = arith.constant 3 : index
    %c0_67 = arith.constant 0 : index
    %54 = vector.load %arg12[%c0_65, %c3_66, %c0_67] : memref<8x12x256xf32, #tpu.memory_space<vmem>>, vector<8x1x256xf32>
    tpu.vector_store %arg12[%c0_65, %c3_66, %c0_67], %53 {strides = array<i32>} : memref<8x12x256xf32, #tpu.memory_space<vmem>>, vector<8x1x256xf32>,
    %c0_68 = arith.constant 0 : index
    %c8 = arith.constant 8 : index
    %c0_69 = arith.constant 0 : index
    %55 = vector.load %arg11[%c0_68, %c8, %c0_69] : memref<8x24x256xf32, #tpu.memory_space<vmem>>, vector<8x1x256xf32>
    %c0_70 = arith.constant 0 : index
    %c9 = arith.constant 9 : index
    %c0_71 = arith.constant 0 : index
    %56 = vector.load %arg11[%c0_70, %c9, %c0_71] : memref<8x24x256xf32, #tpu.memory_space<vmem>>, vector<8x1x256xf32>
    %57 = arith.maximumf %55, %56 : vector<8x1x256xf32>
    %c0_72 = arith.constant 0 : index
    %c4_73 = arith.constant 4 : index
    %c0_74 = arith.constant 0 : index
    %58 = vector.load %arg12[%c0_72, %c4_73, %c0_74] : memref<8x12x256xf32, #tpu.memory_space<vmem>>, vector<8x1x256xf32>
    tpu.vector_store %arg12[%c0_72, %c4_73, %c0_74], %57 {strides = array<i32>} : memref<8x12x256xf32, #tpu.memory_space<vmem>>, vector<8x1x256xf32>,
    %c0_75 = arith.constant 0 : index
    %c10 = arith.constant 10 : index
    %c0_76 = arith.constant 0 : index
    %59 = vector.load %arg11[%c0_75, %c10, %c0_76] : memref<8x24x256xf32, #tpu.memory_space<vmem>>, vector<8x1x256xf32>
    %c0_77 = arith.constant 0 : index
    %c11 = arith.constant 11 : index
    %c0_78 = arith.constant 0 : index
    %60 = vector.load %arg11[%c0_77, %c11, %c0_78] : memref<8x24x256xf32, #tpu.memory_space<vmem>>, vector<8x1x256xf32>
    %61 = arith.maximumf %59, %60 : vector<8x1x256xf32>
    %c0_79 = arith.constant 0 : index
    %c5_80 = arith.constant 5 : index
    %c0_81 = arith.constant 0 : index
    %62 = vector.load %arg12[%c0_79, %c5_80, %c0_81] : memref<8x12x256xf32, #tpu.memory_space<vmem>>, vector<8x1x256xf32>
    tpu.vector_store %arg12[%c0_79, %c5_80, %c0_81], %61 {strides = array<i32>} : memref<8x12x256xf32, #tpu.memory_space<vmem>>, vector<8x1x256xf32>,
    %c0_82 = arith.constant 0 : index
    %c12 = arith.constant 12 : index
    %c0_83 = arith.constant 0 : index
    %63 = vector.load %arg11[%c0_82, %c12, %c0_83] : memref<8x24x256xf32, #tpu.memory_space<vmem>>, vector<8x1x256xf32>
    %c0_84 = arith.constant 0 : index
    %c13 = arith.constant 13 : index
    %c0_85 = arith.constant 0 : index
    %64 = vector.load %arg11[%c0_84, %c13, %c0_85] : memref<8x24x256xf32, #tpu.memory_space<vmem>>, vector<8x1x256xf32>
    %65 = arith.maximumf %63, %64 : vector<8x1x256xf32>
    %c0_86 = arith.constant 0 : index
    %c6_87 = arith.constant 6 : index
    %c0_88 = arith.constant 0 : index
    %66 = vector.load %arg12[%c0_86, %c6_87, %c0_88] : memref<8x12x256xf32, #tpu.memory_space<vmem>>, vector<8x1x256xf32>
    tpu.vector_store %arg12[%c0_86, %c6_87, %c0_88], %65 {strides = array<i32>} : memref<8x12x256xf32, #tpu.memory_space<vmem>>, vector<8x1x256xf32>,
    %c0_89 = arith.constant 0 : index
    %c14 = arith.constant 14 : index
    %c0_90 = arith.constant 0 : index
    %67 = vector.load %arg11[%c0_89, %c14, %c0_90] : memref<8x24x256xf32, #tpu.memory_space<vmem>>, vector<8x1x256xf32>
    %c0_91 = arith.constant 0 : index
    %c15 = arith.constant 15 : index
    %c0_92 = arith.constant 0 : index
    %68 = vector.load %arg11[%c0_91, %c15, %c0_92] : memref<8x24x256xf32, #tpu.memory_space<vmem>>, vector<8x1x256xf32>
    %69 = arith.maximumf %67, %68 : vector<8x1x256xf32>
    %c0_93 = arith.constant 0 : index
    %c7_94 = arith.constant 7 : index
    %c0_95 = arith.constant 0 : index
    %70 = vector.load %arg12[%c0_93, %c7_94, %c0_95] : memref<8x12x256xf32, #tpu.memory_space<vmem>>, vector<8x1x256xf32>
    tpu.vector_store %arg12[%c0_93, %c7_94, %c0_95], %69 {strides = array<i32>} : memref<8x12x256xf32, #tpu.memory_space<vmem>>, vector<8x1x256xf32>,
    %c0_96 = arith.constant 0 : index
    %c16 = arith.constant 16 : index
    %c0_97 = arith.constant 0 : index
    %71 = vector.load %arg11[%c0_96, %c16, %c0_97] : memref<8x24x256xf32, #tpu.memory_space<vmem>>, vector<8x1x256xf32>
    %c0_98 = arith.constant 0 : index
    %c17 = arith.constant 17 : index
    %c0_99 = arith.constant 0 : index
    %72 = vector.load %arg11[%c0_98, %c17, %c0_99] : memref<8x24x256xf32, #tpu.memory_space<vmem>>, vector<8x1x256xf32>
    %73 = arith.maximumf %71, %72 : vector<8x1x256xf32>
    %c0_100 = arith.constant 0 : index
    %c8_101 = arith.constant 8 : index
    %c0_102 = arith.constant 0 : index
    %74 = vector.load %arg12[%c0_100, %c8_101, %c0_102] : memref<8x12x256xf32, #tpu.memory_space<vmem>>, vector<8x1x256xf32>
    tpu.vector_store %arg12[%c0_100, %c8_101, %c0_102], %73 {strides = array<i32>} : memref<8x12x256xf32, #tpu.memory_space<vmem>>, vector<8x1x256xf32>,
    %c0_103 = arith.constant 0 : index
    %c18 = arith.constant 18 : index
    %c0_104 = arith.constant 0 : index
    %75 = vector.load %arg11[%c0_103, %c18, %c0_104] : memref<8x24x256xf32, #tpu.memory_space<vmem>>, vector<8x1x256xf32>
    %c0_105 = arith.constant 0 : index
    %c19 = arith.constant 19 : index
    %c0_106 = arith.constant 0 : index
    %76 = vector.load %arg11[%c0_105, %c19, %c0_106] : memref<8x24x256xf32, #tpu.memory_space<vmem>>, vector<8x1x256xf32>
    %77 = arith.maximumf %75, %76 : vector<8x1x256xf32>
    %c0_107 = arith.constant 0 : index
    %c9_108 = arith.constant 9 : index
    %c0_109 = arith.constant 0 : index
    %78 = vector.load %arg12[%c0_107, %c9_108, %c0_109] : memref<8x12x256xf32, #tpu.memory_space<vmem>>, vector<8x1x256xf32>
    tpu.vector_store %arg12[%c0_107, %c9_108, %c0_109], %77 {strides = array<i32>} : memref<8x12x256xf32, #tpu.memory_space<vmem>>, vector<8x1x256xf32>,
    %c0_110 = arith.constant 0 : index
    %c20 = arith.constant 20 : index
    %c0_111 = arith.constant 0 : index
    %79 = vector.load %arg11[%c0_110, %c20, %c0_111] : memref<8x24x256xf32, #tpu.memory_space<vmem>>, vector<8x1x256xf32>
    %c0_112 = arith.constant 0 : index
    %c21 = arith.constant 21 : index
    %c0_113 = arith.constant 0 : index
    %80 = vector.load %arg11[%c0_112, %c21, %c0_113] : memref<8x24x256xf32, #tpu.memory_space<vmem>>, vector<8x1x256xf32>
    %81 = arith.maximumf %79, %80 : vector<8x1x256xf32>
    %c0_114 = arith.constant 0 : index
    %c10_115 = arith.constant 10 : index
    %c0_116 = arith.constant 0 : index
    %82 = vector.load %arg12[%c0_114, %c10_115, %c0_116] : memref<8x12x256xf32, #tpu.memory_space<vmem>>, vector<8x1x256xf32>
    tpu.vector_store %arg12[%c0_114, %c10_115, %c0_116], %81 {strides = array<i32>} : memref<8x12x256xf32, #tpu.memory_space<vmem>>, vector<8x1x256xf32>,
    %c0_117 = arith.constant 0 : index
    %c22 = arith.constant 22 : index
    %c0_118 = arith.constant 0 : index
    %83 = vector.load %arg11[%c0_117, %c22, %c0_118] : memref<8x24x256xf32, #tpu.memory_space<vmem>>, vector<8x1x256xf32>
    %c0_119 = arith.constant 0 : index
    %c23 = arith.constant 23 : index
    %c0_120 = arith.constant 0 : index
    %84 = vector.load %arg11[%c0_119, %c23, %c0_120] : memref<8x24x256xf32, #tpu.memory_space<vmem>>, vector<8x1x256xf32>
    %85 = arith.maximumf %83, %84 : vector<8x1x256xf32>
    %c0_121 = arith.constant 0 : index
    %c11_122 = arith.constant 11 : index
    %c0_123 = arith.constant 0 : index
    %86 = vector.load %arg12[%c0_121, %c11_122, %c0_123] : memref<8x12x256xf32, #tpu.memory_space<vmem>>, vector<8x1x256xf32>
    tpu.vector_store %arg12[%c0_121, %c11_122, %c0_123], %85 {strides = array<i32>} : memref<8x12x256xf32, #tpu.memory_space<vmem>>, vector<8x1x256xf32>,
    %c0_124 = arith.constant 0 : index
    %c0_125 = arith.constant 0 : index
    %c0_126 = arith.constant 0 : index
    %87 = vector.load %arg12[%c0_124, %c0_125, %c0_126] : memref<8x12x256xf32, #tpu.memory_space<vmem>>, vector<8x8x256xf32>
    %88 = vector.shape_cast %87 : vector<8x8x256xf32> to vector<64x256xf32>
    %c0_127 = arith.constant 0 : index
    %c0_128 = arith.constant 0 : index
    %c0_129 = arith.constant 0 : index
    %89 = vector.load %arg4[%c0_127, %c0_128, %c0_129] : memref<5x256x512xf32, #tpu.memory_space<vmem>>, vector<1x256x512xf32>
    %90 = vector.shape_cast %89 : vector<1x256x512xf32> to vector<256x512xf32>
    %cst_130 = arith.constant dense<0.000000e+00> : vector<64x512xf32>
    %91 = tpu.matmul %88, %90, %cst_130 {dimension_numbers = #tpu.dot_dimension_numbers<[1], [0], [0], [1], [0, 0, 1, 1], [], []>} : vector<64x256xf32>, vector<256x512xf32>, vector<64x512xf32> -> vector<64x512xf32>
    %c0_131 = arith.constant 0 : index
    %c1_132 = arith.constant 1 : index
    %c0_133 = arith.constant 0 : index
    %92 = vector.load %arg12[%c0_131, %c1_132, %c0_133] : memref<8x12x256xf32, #tpu.memory_space<vmem>>, vector<8x8x256xf32>
    %93 = vector.shape_cast %92 : vector<8x8x256xf32> to vector<64x256xf32>
    %c1_134 = arith.constant 1 : index
    %c0_135 = arith.constant 0 : index
    %c0_136 = arith.constant 0 : index
    %94 = vector.load %arg4[%c1_134, %c0_135, %c0_136] : memref<5x256x512xf32, #tpu.memory_space<vmem>>, vector<1x256x512xf32>
    %95 = vector.shape_cast %94 : vector<1x256x512xf32> to vector<256x512xf32>
    %cst_137 = arith.constant dense<0.000000e+00> : vector<64x512xf32>
    %96 = tpu.matmul %93, %95, %cst_137 {dimension_numbers = #tpu.dot_dimension_numbers<[1], [0], [0], [1], [0, 0, 1, 1], [], []>} : vector<64x256xf32>, vector<256x512xf32>, vector<64x512xf32> -> vector<64x512xf32>
    %97 = arith.addf %91, %96 : vector<64x512xf32>
    %c0_138 = arith.constant 0 : index
    %c2_139 = arith.constant 2 : index
    %c0_140 = arith.constant 0 : index
    %98 = vector.load %arg12[%c0_138, %c2_139, %c0_140] : memref<8x12x256xf32, #tpu.memory_space<vmem>>, vector<8x8x256xf32>
    %99 = vector.shape_cast %98 : vector<8x8x256xf32> to vector<64x256xf32>
    %c2_141 = arith.constant 2 : index
    %c0_142 = arith.constant 0 : index
    %c0_143 = arith.constant 0 : index
    %100 = vector.load %arg4[%c2_141, %c0_142, %c0_143] : memref<5x256x512xf32, #tpu.memory_space<vmem>>, vector<1x256x512xf32>
    %101 = vector.shape_cast %100 : vector<1x256x512xf32> to vector<256x512xf32>
    %cst_144 = arith.constant dense<0.000000e+00> : vector<64x512xf32>
    %102 = tpu.matmul %99, %101, %cst_144 {dimension_numbers = #tpu.dot_dimension_numbers<[1], [0], [0], [1], [0, 0, 1, 1], [], []>} : vector<64x256xf32>, vector<256x512xf32>, vector<64x512xf32> -> vector<64x512xf32>
    %103 = arith.addf %97, %102 : vector<64x512xf32>
    %c0_145 = arith.constant 0 : index
    %c3_146 = arith.constant 3 : index
    %c0_147 = arith.constant 0 : index
    %104 = vector.load %arg12[%c0_145, %c3_146, %c0_147] : memref<8x12x256xf32, #tpu.memory_space<vmem>>, vector<8x8x256xf32>
    %105 = vector.shape_cast %104 : vector<8x8x256xf32> to vector<64x256xf32>
    %c3_148 = arith.constant 3 : index
    %c0_149 = arith.constant 0 : index
    %c0_150 = arith.constant 0 : index
    %106 = vector.load %arg4[%c3_148, %c0_149, %c0_150] : memref<5x256x512xf32, #tpu.memory_space<vmem>>, vector<1x256x512xf32>
    %107 = vector.shape_cast %106 : vector<1x256x512xf32> to vector<256x512xf32>
    %cst_151 = arith.constant dense<0.000000e+00> : vector<64x512xf32>
    %108 = tpu.matmul %105, %107, %cst_151 {dimension_numbers = #tpu.dot_dimension_numbers<[1], [0], [0], [1], [0, 0, 1, 1], [], []>} : vector<64x256xf32>, vector<256x512xf32>, vector<64x512xf32> -> vector<64x512xf32>
    %109 = arith.addf %103, %108 : vector<64x512xf32>
    %c0_152 = arith.constant 0 : index
    %c4_153 = arith.constant 4 : index
    %c0_154 = arith.constant 0 : index
    %110 = vector.load %arg12[%c0_152, %c4_153, %c0_154] : memref<8x12x256xf32, #tpu.memory_space<vmem>>, vector<8x8x256xf32>
    %111 = vector.shape_cast %110 : vector<8x8x256xf32> to vector<64x256xf32>
    %c4_155 = arith.constant 4 : index
    %c0_156 = arith.constant 0 : index
    %c0_157 = arith.constant 0 : index
    %112 = vector.load %arg4[%c4_155, %c0_156, %c0_157] : memref<5x256x512xf32, #tpu.memory_space<vmem>>, vector<1x256x512xf32>
    %113 = vector.shape_cast %112 : vector<1x256x512xf32> to vector<256x512xf32>
    %cst_158 = arith.constant dense<0.000000e+00> : vector<64x512xf32>
    %114 = tpu.matmul %111, %113, %cst_158 {dimension_numbers = #tpu.dot_dimension_numbers<[1], [0], [0], [1], [0, 0, 1, 1], [], []>} : vector<64x256xf32>, vector<256x512xf32>, vector<64x512xf32> -> vector<64x512xf32>
    %115 = arith.addf %109, %114 : vector<64x512xf32>
    %c0_159 = arith.constant 0 : index
    %c0_160 = arith.constant 0 : index
    %116 = vector.load %arg5[%c0_159, %c0_160] : memref<1x512xf32, #tpu.memory_space<vmem>>, vector<1x512xf32>
    %117 = vector.broadcast %116 : vector<1x512xf32> to vector<64x512xf32>
    %118 = arith.addf %115, %117 : vector<64x512xf32>
    %cst_161 = arith.constant 0.000000e+00 : f32
    %119 = vector.broadcast %cst_161 : f32 to vector<64x512xf32>
    %120 = arith.maximumf %118, %119 : vector<64x512xf32>
    %121 = vector.extract_strided_slice %120 {offsets = [0, 0], sizes = [64, 256], strides = [1, 1]} : vector<64x512xf32> to vector<64x256xf32>
    %122 = vector.extract_strided_slice %120 {offsets = [0, 256], sizes = [64, 256], strides = [1, 1]} : vector<64x512xf32> to vector<64x256xf32>
    %123 = arith.maximumf %121, %122 : vector<64x256xf32>
    %124 = vector.shape_cast %123 : vector<64x256xf32> to vector<8x8x256xf32>
    %c0_162 = arith.constant 0 : index
    %c0_163 = arith.constant 0 : index
    %c0_164 = arith.constant 0 : index
    %125 = vector.load %arg13[%c0_162, %c0_163, %c0_164] : memref<8x8x256xf32, #tpu.memory_space<vmem>>, vector<8x8x256xf32>
    tpu.vector_store %arg13[%c0_162, %c0_163, %c0_164], %124 {strides = array<i32>} : memref<8x8x256xf32, #tpu.memory_space<vmem>>, vector<8x8x256xf32>,
    %c0_165 = arith.constant 0 : index
    %c0_166 = arith.constant 0 : index
    %c0_167 = arith.constant 0 : index
    %126 = vector.load %arg13[%c0_165, %c0_166, %c0_167] : memref<8x8x256xf32, #tpu.memory_space<vmem>>, vector<8x1x256xf32>
    %c0_168 = arith.constant 0 : index
    %c1_169 = arith.constant 1 : index
    %c0_170 = arith.constant 0 : index
    %127 = vector.load %arg13[%c0_168, %c1_169, %c0_170] : memref<8x8x256xf32, #tpu.memory_space<vmem>>, vector<8x1x256xf32>
    %128 = arith.maximumf %126, %127 : vector<8x1x256xf32>
    %c0_171 = arith.constant 0 : index
    %c2_172 = arith.constant 2 : index
    %c0_173 = arith.constant 0 : index
    %129 = vector.load %arg13[%c0_171, %c2_172, %c0_173] : memref<8x8x256xf32, #tpu.memory_space<vmem>>, vector<8x1x256xf32>
    %c0_174 = arith.constant 0 : index
    %c3_175 = arith.constant 3 : index
    %c0_176 = arith.constant 0 : index
    %130 = vector.load %arg13[%c0_174, %c3_175, %c0_176] : memref<8x8x256xf32, #tpu.memory_space<vmem>>, vector<8x1x256xf32>
    %131 = arith.maximumf %129, %130 : vector<8x1x256xf32>
    %c0_177 = arith.constant 0 : index
    %c4_178 = arith.constant 4 : index
    %c0_179 = arith.constant 0 : index
    %132 = vector.load %arg13[%c0_177, %c4_178, %c0_179] : memref<8x8x256xf32, #tpu.memory_space<vmem>>, vector<8x1x256xf32>
    %c0_180 = arith.constant 0 : index
    %c5_181 = arith.constant 5 : index
    %c0_182 = arith.constant 0 : index
    %133 = vector.load %arg13[%c0_180, %c5_181, %c0_182] : memref<8x8x256xf32, #tpu.memory_space<vmem>>, vector<8x1x256xf32>
    %134 = arith.maximumf %132, %133 : vector<8x1x256xf32>
    %c0_183 = arith.constant 0 : index
    %c6_184 = arith.constant 6 : index
    %c0_185 = arith.constant 0 : index
    %135 = vector.load %arg13[%c0_183, %c6_184, %c0_185] : memref<8x8x256xf32, #tpu.memory_space<vmem>>, vector<8x1x256xf32>
    %c0_186 = arith.constant 0 : index
    %c7_187 = arith.constant 7 : index
    %c0_188 = arith.constant 0 : index
    %136 = vector.load %arg13[%c0_186, %c7_187, %c0_188] : memref<8x8x256xf32, #tpu.memory_space<vmem>>, vector<8x1x256xf32>
    %137 = arith.maximumf %135, %136 : vector<8x1x256xf32>
    %138 = tpu.concatenate %128, %131, %134, %137 in 2 : vector<8x1x256xf32>, vector<8x1x256xf32>, vector<8x1x256xf32>, vector<8x1x256xf32> -> vector<8x1x1024xf32>
    %139 = vector.shape_cast %138 : vector<8x1x1024xf32> to vector<8x1024xf32>
    %c0_189 = arith.constant 0 : index
    %c0_190 = arith.constant 0 : index
    %140 = vector.load %arg6[%c0_189, %c0_190] : memref<1024x512xf32, #tpu.memory_space<vmem>>, vector<1024x512xf32>
    %cst_191 = arith.constant dense<0.000000e+00> : vector<8x512xf32>
    %141 = tpu.matmul %139, %140, %cst_191 {dimension_numbers = #tpu.dot_dimension_numbers<[1], [0], [0], [1], [0, 0, 1, 1], [], []>} : vector<8x1024xf32>, vector<1024x512xf32>, vector<8x512xf32> -> vector<8x512xf32>
    %c0_192 = arith.constant 0 : index
    %c0_193 = arith.constant 0 : index
    %142 = vector.load %arg7[%c0_192, %c0_193] : memref<1x512xf32, #tpu.memory_space<vmem>>, vector<1x512xf32>
    %143 = vector.broadcast %142 : vector<1x512xf32> to vector<8x512xf32>
    %144 = arith.addf %141, %143 : vector<8x512xf32>
    %cst_194 = arith.constant 0.000000e+00 : f32
    %145 = vector.broadcast %cst_194 : f32 to vector<8x512xf32>
    %146 = arith.maximumf %144, %145 : vector<8x512xf32>
    %c0_195 = arith.constant 0 : index
    %c0_196 = arith.constant 0 : index
    %147 = vector.load %arg8[%c0_195, %c0_196] : memref<512x128xf32, #tpu.memory_space<vmem>>, vector<512x128xf32>
    %cst_197 = arith.constant dense<0.000000e+00> : vector<8x128xf32>
    %148 = tpu.matmul %146, %147, %cst_197 {dimension_numbers = #tpu.dot_dimension_numbers<[1], [0], [0], [1], [0, 0, 1, 1], [], []>} : vector<8x512xf32>, vector<512x128xf32>, vector<8x128xf32> -> vector<8x128xf32>
    %c0_198 = arith.constant 0 : index
    %c0_199 = arith.constant 0 : index
    %149 = vector.load %arg9[%c0_198, %c0_199] : memref<1x128xf32, #tpu.memory_space<vmem>>, vector<1x128xf32>
    %150 = vector.broadcast %149 : vector<1x128xf32> to vector<8x128xf32>
    %151 = arith.addf %148, %150 : vector<8x128xf32>
    %cst_200 = arith.constant dense<0xFF800000> : vector<8xf32>
    %152 = vector.multi_reduction <maximumf>, %151, %cst_200 [1] : vector<8x128xf32> to vector<8xf32>
    %153 = vector.shape_cast %152 : vector<8xf32> to vector<8x1xf32>
    %154 = vector.broadcast %153 : vector<8x1xf32> to vector<8x128xf32>
    %155 = arith.subf %151, %154 : vector<8x128xf32>
    %156 = math.exp %155 : vector<8x128xf32>
    %157 = vector.broadcast %153 : vector<8x1xf32> to vector<8x128xf32>
    %158 = arith.subf %151, %157 : vector<8x128xf32>
    %cst_201 = arith.constant dense<0.000000e+00> : vector<8xf32>
    %159 = vector.multi_reduction <add>, %156, %cst_201 [1] : vector<8x128xf32> to vector<8xf32>
    %160 = vector.shape_cast %159 : vector<8xf32> to vector<8x1xf32>
    %161 = math.log %160 : vector<8x1xf32>
    %162 = vector.broadcast %161 : vector<8x1xf32> to vector<8x128xf32>
    %163 = arith.subf %158, %162 : vector<8x128xf32>
    %c0_202 = arith.constant 0 : index
    %c0_203 = arith.constant 0 : index
    %164 = vector.load %arg10[%c0_202, %c0_203] : memref<8x128xf32, #tpu.memory_space<vmem>>, vector<8x128xf32>
    tpu.vector_store %arg10[%c0_202, %c0_203], %163 {strides = array<i32>} : memref<8x128xf32, #tpu.memory_space<vmem>>, vector<8x128xf32>,
    return
  }
  func.func @transform_0(%arg0: i32) -> (i32, i32, i32) {
    %c0_i32 = arith.constant 0 : i32
    %c0_i32_0 = arith.constant 0 : i32
    %c0_i32_1 = arith.constant 0 : i32
    return %arg0, %c0_i32, %c0_i32_0 : i32, i32, i32
  }
  func.func @transform_1(%arg0: i32) -> (i32, i32, i32) {
    %c0_i32 = arith.constant 0 : i32
    %c0_i32_0 = arith.constant 0 : i32
    %c0_i32_1 = arith.constant 0 : i32
    %c0_i32_2 = arith.constant 0 : i32
    return %c0_i32, %c0_i32_0, %c0_i32_1 : i32, i32, i32
  }
  func.func @transform_2(%arg0: i32) -> (i32, i32) {
    %c0_i32 = arith.constant 0 : i32
    %c0_i32_0 = arith.constant 0 : i32
    %c0_i32_1 = arith.constant 0 : i32
    return %c0_i32, %c0_i32_0 : i32, i32
  }
  func.func @transform_3(%arg0: i32) -> (i32, i32, i32) {
    %c0_i32 = arith.constant 0 : i32
    %c0_i32_0 = arith.constant 0 : i32
    %c0_i32_1 = arith.constant 0 : i32
    %c0_i32_2 = arith.constant 0 : i32
    return %c0_i32, %c0_i32_0, %c0_i32_1 : i32, i32, i32
  }
  func.func @transform_4(%arg0: i32) -> (i32, i32) {
    %c0_i32 = arith.constant 0 : i32
    %c0_i32_0 = arith.constant 0 : i32
    %c0_i32_1 = arith.constant 0 : i32
    return %c0_i32, %c0_i32_0 : i32, i32
  }
  func.func @transform_5(%arg0: i32) -> (i32, i32) {
    %c0_i32 = arith.constant 0 : i32
    %c0_i32_0 = arith.constant 0 : i32
    %c0_i32_1 = arith.constant 0 : i32
    return %c0_i32, %c0_i32_0 : i32, i32
  }
  func.func @transform_6(%arg0: i32) -> (i32, i32) {
    %c0_i32 = arith.constant 0 : i32
    %c0_i32_0 = arith.constant 0 : i32
    %c0_i32_1 = arith.constant 0 : i32
    return %c0_i32, %c0_i32_0 : i32, i32
  }
  func.func @transform_7(%arg0: i32) -> (i32, i32) {
    %c0_i32 = arith.constant 0 : i32
    %c0_i32_0 = arith.constant 0 : i32
    %c0_i32_1 = arith.constant 0 : i32
    return %c0_i32, %c0_i32_0 : i32, i32
  }
  func.func @transform_8(%arg0: i32) -> (i32, i32) {
    %c0_i32 = arith.constant 0 : i32
    %c0_i32_0 = arith.constant 0 : i32
    %c0_i32_1 = arith.constant 0 : i32
    return %c0_i32, %c0_i32_0 : i32, i32
  }
  func.func @transform_9(%arg0: i32) -> (i32, i32) {
    %c0_i32 = arith.constant 0 : i32
    %c0_i32_0 = arith.constant 0 : i32
    return %arg0, %c0_i32 : i32, i32
  }
}

</mosaic_0001>

<llo_original>
// kernel: cnn_forward.1
$region0: #{cnn_forward.1}
  #allocation0 [shape = 'u32[]', space=smem, size = 0x4, offset = 0x4, fixed_abs, tag = 'smem constant byte address 0x4 - core index']
  #allocation1 [shape = 'u32[144,128]{1,0:T(1,128)}', space=vmem, size = 0x12000, scoped, tag = 'internal scratch']
  #allocation2 [shape = 'f32[8,24,256]{2,1,0:T(8,128)}', space=vmem, size = 0x30000, scoped, tag = 'scratch operand']
  #allocation3 [shape = 'f32[8,12,256]{2,1,0:T(8,128)}', space=vmem, size = 0x20000, scoped, tag = 'scratch operand']
  #allocation4 [shape = 'f32[8,8,256]{2,1,0:T(8,128)}', space=vmem, size = 0x10000, scoped, tag = 'scratch operand']
  %s0 = inlined_call_operand.vmem [shape: f32[16,28,28], index: 0, kind: input, shape index: {}]
  %s1 = inlined_call_operand.hbm [shape: f32[5,28,512], index: 1, kind: input, shape index: {}]
  %s2 = inlined_call_operand.hbm [shape: f32[1,512], index: 2, kind: input, shape index: {}]
  %s3 = inlined_call_operand.hbm [shape: f32[5,256,512], index: 3, kind: input, shape index: {}]
  %s4 = inlined_call_operand.hbm [shape: f32[1,512], index: 4, kind: input, shape index: {}]
  %s5 = inlined_call_operand.hbm [shape: f32[1024,512], index: 5, kind: input, shape index: {}]
  %s6 = inlined_call_operand.hbm [shape: f32[1,512], index: 6, kind: input, shape index: {}]
  %s7 = inlined_call_operand.hbm [shape: f32[512,128], index: 7, kind: input, shape index: {}]
  %s8 = inlined_call_operand.hbm [shape: f32[1,128], index: 8, kind: input, shape index: {}]
  %s9 = inlined_call_operand.hbm [shape: f32[16,128], index: 9, kind: output, shape index: {}]
  %s10 = sld [smem:[#allocation0]]
  $region101: #{cnn_forward.1} parent=0
    _
  %s12 = ssub.s32 1, %s10
  %s13 = scalar_select 0, %s12, %s10
  $region1: #{cnn_forward.1} parent=0
    #allocation5 [shape = 'u8[327680]{0}', space=vmem, size = 0x50000, scoped, tag = 'input window, operand 1, single buffered']
    #allocation6 [shape = 's32[2]{0}', space=sflag, size = 0x8, scoped, tag = 'scoped memory for cnn_forward.1']
    #allocation7 [shape = 's32[2]{0}', space=sflag, size = 0x8, scoped, tag = 'scoped memory for cnn_forward.1']
    #allocation8 [shape = 'u8[2048]{0}', space=vmem, size = 0x800, scoped, tag = 'input window, operand 2, single buffered']
    #allocation9 [shape = 's32[1]{0}', space=sflag, size = 0x4, scoped, tag = 'scoped memory for cnn_forward.1']
    #allocation10 [shape = 'u8[2621440]{0}', space=vmem, size = 0x280000, scoped, tag = 'input window, operand 3, single buffered']
    #allocation11 [shape = 'u8[2048]{0}', space=vmem, size = 0x800, scoped, tag = 'input window, operand 4, single buffered']
    #allocation12 [shape = 's32[1]{0}', space=sflag, size = 0x4, scoped, tag = 'scoped memory for cnn_forward.1']
    #allocation13 [shape = 'u8[2097152]{0}', space=vmem, size = 0x200000, scoped, tag = 'input window, operand 5, single buffered']
    #allocation14 [shape = 'u8[2048]{0}', space=vmem, size = 0x800, scoped, tag = 'input window, operand 6, single buffered']
    #allocation15 [shape = 's32[1]{0}', space=sflag, size = 0x4, scoped, tag = 'scoped memory for cnn_forward.1']
    #allocation16 [shape = 'u8[262144]{0}', space=vmem, size = 0x40000, scoped, tag = 'input window, operand 7, single buffered']
    #allocation17 [shape = 'u8[512]{0}', space=vmem, size = 0x400, scoped, tag = 'input window, operand 8, single buffered']
    #allocation18 [shape = 's32[1]{0}', space=sflag, size = 0x4, scoped, tag = 'scoped memory for cnn_forward.1']
    #allocation19 [shape = 'u8[8192]{0}', space=vmem, size = 0x2000, scoped, tag = 'output window, operand 0']
    %14 = vsyncpa [#allocation6], 0
    %15 = vsyncpa [#allocation9], 0
    %16 = vsyncpa [#allocation12], 0
    %17 = vsyncpa [#allocation15], 0
    %18 = vsyncpa [#allocation18], 0
    %19 = vsyncpa [#allocation7], 0
    %s20 = scalar_lea.sflag [#allocation7], 1
    %21 = vsyncpa %s20, 0
    loop: start=0, step=1, limit=4
    $region2: #{cnn_forward.1} parent=1 // loop_pre_header
      _
    $region3: #{cnn_forward.1} parent=1 // loop_header
      %s23 = sphi 0, %s27
      %p24 = scmp.ge.s32.totalorder %s23, 4
      %s33 = sphi 0, %s35
      %s36 = sphi 0, %s33
      %s37 = sphi 0, %s36
      %s53 = sphi 0, %s37
      %s57 = sphi 0, %s57
      %s59 = sphi 0, %s57
      %s60 = sphi 0, %s59
      %s74 = sphi 0, %s60
      %s78 = sphi 0, %s78
      %s80 = sphi 0, %s78
      %s81 = sphi 0, %s80
      %s95 = sphi 0, %s81
      %s99 = sphi 0, %s99
      %s101 = sphi 0, %s99
      %s102 = sphi 0, %s101
      %s116 = sphi 0, %s102
      %s120 = sphi 0, %s120
      %s122 = sphi 0, %s120
      %s123 = sphi 0, %s122
      %s137 = sphi 0, %s123
      %s141 = sphi 0, %s141
      %s143 = sphi 0, %s141
      %s144 = sphi 0, %s143
      %s158 = sphi 0, %s144
      %s162 = sphi 0, %s162
      %s164 = sphi 0, %s162
      %s165 = sphi 0, %s164
      %s179 = sphi 0, %s165
      %s183 = sphi 0, %s183
      %s185 = sphi 0, %s183
      %s186 = sphi 0, %s185
      %s200 = sphi 0, %s186
      %s204 = sphi 0, %s204
      %s206 = sphi 0, %s204
      %s207 = sphi 0, %s206
      %s221 = sphi 0, %s207
      %s227 = sphi 0, %s229
      %s230 = sphi 0, %s227
      %s231 = sphi 0, %s230
      %s247 = sphi 0, %s231
    $region4: #{cnn_forward.1} parent=1 // loop_header_branch
      %26 = sbr.rel (%p24) target = $region8
    $region5: #{cnn_forward.1} parent=1 // loop_body
      %s28 = ssub.s32 %s23, 1
      %s29 = ssub.s32 %s23, 2
      %s30 = sadd.s32 %s23, 1
      %s31 = ssub.s32 %s23, %s30
      %p32 = scmp.eq.s32.totalorder %s31, 0
      %s34 = sadd.s32 %s33, 1
      %s35 = scalar_select %p32, %s33, %s34
      %p38 = pneg %p32
      %p39 = scmp.eq.s32.totalorder %s23, 1
      %p40 = por %p38, %p39
      %p41 = scmp.ne.s32.totalorder %s33, %s36
      %p42 = scmp.eq.s32.totalorder %s23, 0
      %p43 = por %p41, %p42
      %p44 = scmp.ne.s32.totalorder %s33, %s36
      %p45 = scmp.eq.s32.totalorder %s28, 1
      %p46 = por %p44, %p45
      %p47 = scmp.ne.s32.totalorder %s36, %s37
      %p48 = scmp.eq.s32.totalorder %s28, 0
      %p49 = por %p47, %p48
      %p50 = scmp.ne.s32.totalorder %s36, %s37
      %p51 = scmp.eq.s32.totalorder %s29, 1
      %p52 = por %p50, %p51
      %p54 = scmp.ne.s32.totalorder %s37, %s53
      %p55 = scmp.eq.s32.totalorder %s29, 0
      %p56 = por %p54, %p55
      %s58 = sadd.s32 %s57, 1
      %p61 = scmp.eq.s32.totalorder %s23, 1
      %p62 = scmp.ne.s32.totalorder %s57, %s59
      %p63 = scmp.eq.s32.totalorder %s23, 0
      %p64 = por %p62, %p63
      %p65 = scmp.ne.s32.totalorder %s57, %s59
      %p66 = scmp.eq.s32.totalorder %s28, 1
      %p67 = por %p65, %p66
      %p68 = scmp.ne.s32.totalorder %s59, %s60
      %p69 = scmp.eq.s32.totalorder %s28, 0
      %p70 = por %p68, %p69
      %p71 = scmp.ne.s32.totalorder %s59, %s60
      %p72 = scmp.eq.s32.totalorder %s29, 1
      %p73 = por %p71, %p72
      %p75 = scmp.ne.s32.totalorder %s60, %s74
      %p76 = scmp.eq.s32.totalorder %s29, 0
      %p77 = por %p75, %p76
      %s79 = sadd.s32 %s78, 1
      %p82 = scmp.eq.s32.totalorder %s23, 1
      %p83 = scmp.ne.s32.totalorder %s78, %s80
      %p84 = scmp.eq.s32.totalorder %s23, 0
      %p85 = por %p83, %p84
      %p86 = scmp.ne.s32.totalorder %s78, %s80
      %p87 = scmp.eq.s32.totalorder %s28, 1
      %p88 = por %p86, %p87
      %p89 = scmp.ne.s32.totalorder %s80, %s81
      %p90 = scmp.eq.s32.totalorder %s28, 0
      %p91 = por %p89, %p90
      %p92 = scmp.ne.s32.totalorder %s80, %s81
      %p93 = scmp.eq.s32.totalorder %s29, 1
      %p94 = por %p92, %p93
      %p96 = scmp.ne.s32.totalorder %s81, %s95
      %p97 = scmp.eq.s32.totalorder %s29, 0
      %p98 = por %p96, %p97
      %s100 = sadd.s32 %s99, 1
      %p103 = scmp.eq.s32.totalorder %s23, 1
      %p104 = scmp.ne.s32.totalorder %s99, %s101
      %p105 = scmp.eq.s32.totalorder %s23, 0
      %p106 = por %p104, %p105
      %p107 = scmp.ne.s32.totalorder %s99, %s101
      %p108 = scmp.eq.s32.totalorder %s28, 1
      %p109 = por %p107, %p108
      %p110 = scmp.ne.s32.totalorder %s101, %s102
      %p111 = scmp.eq.s32.totalorder %s28, 0
      %p112 = por %p110, %p111
      %p113 = scmp.ne.s32.totalorder %s101, %s102
      %p114 = scmp.eq.s32.totalorder %s29, 1
      %p115 = por %p113, %p114
      %p117 = scmp.ne.s32.totalorder %s102, %s116
      %p118 = scmp.eq.s32.totalorder %s29, 0
      %p119 = por %p117, %p118
      %s121 = sadd.s32 %s120, 1
      %p124 = scmp.eq.s32.totalorder %s23, 1
      %p125 = scmp.ne.s32.totalorder %s120, %s122
      %p126 = scmp.eq.s32.totalorder %s23, 0
      %p127 = por %p125, %p126
      %p128 = scmp.ne.s32.totalorder %s120, %s122
      %p129 = scmp.eq.s32.totalorder %s28, 1
      %p130 = por %p128, %p129
      %p131 = scmp.ne.s32.totalorder %s122, %s123
      %p132 = scmp.eq.s32.totalorder %s28, 0
      %p133 = por %p131, %p132
      %p134 = scmp.ne.s32.totalorder %s122, %s123
      %p135 = scmp.eq.s32.totalorder %s29, 1
      %p136 = por %p134, %p135
      %p138 = scmp.ne.s32.totalorder %s123, %s137
      %p139 = scmp.eq.s32.totalorder %s29, 0
      %p140 = por %p138, %p139
      %s142 = sadd.s32 %s141, 1
      %p145 = scmp.eq.s32.totalorder %s23, 1
      %p146 = scmp.ne.s32.totalorder %s141, %s143
      %p147 = scmp.eq.s32.totalorder %s23, 0
      %p148 = por %p146, %p147
      %p149 = scmp.ne.s32.totalorder %s141, %s143
      %p150 = scmp.eq.s32.totalorder %s28, 1
      %p151 = por %p149, %p150
      %p152 = scmp.ne.s32.totalorder %s143, %s144
      %p153 = scmp.eq.s32.totalorder %s28, 0
      %p154 = por %p152, %p153
      %p155 = scmp.ne.s32.totalorder %s143, %s144
      %p156 = scmp.eq.s32.totalorder %s29, 1
      %p157 = por %p155, %p156
      %p159 = scmp.ne.s32.totalorder %s144, %s158
      %p160 = scmp.eq.s32.totalorder %s29, 0
      %p161 = por %p159, %p160
      %s163 = sadd.s32 %s162, 1
      %p166 = scmp.eq.s32.totalorder %s23, 1
      %p167 = scmp.ne.s32.totalorder %s162, %s164
      %p168 = scmp.eq.s32.totalorder %s23, 0
      %p169 = por %p167, %p168
      %p170 = scmp.ne.s32.totalorder %s162, %s164
      %p171 = scmp.eq.s32.totalorder %s28, 1
      %p172 = por %p170, %p171
      %p173 = scmp.ne.s32.totalorder %s164, %s165
      %p174 = scmp.eq.s32.totalorder %s28, 0
      %p175 = por %p173, %p174
      %p176 = scmp.ne.s32.totalorder %s164, %s165
      %p177 = scmp.eq.s32.totalorder %s29, 1
      %p178 = por %p176, %p177
      %p180 = scmp.ne.s32.totalorder %s165, %s179
      %p181 = scmp.eq.s32.totalorder %s29, 0
      %p182 = por %p180, %p181
      %s184 = sadd.s32 %s183, 1
      %p187 = scmp.eq.s32.totalorder %s23, 1
      %p188 = scmp.ne.s32.totalorder %s183, %s185
      %p189 = scmp.eq.s32.totalorder %s23, 0
      %p190 = por %p188, %p189
      %p191 = scmp.ne.s32.totalorder %s183, %s185
      %p192 = scmp.eq.s32.totalorder %s28, 1
      %p193 = por %p191, %p192
      %p194 = scmp.ne.s32.totalorder %s185, %s186
      %p195 = scmp.eq.s32.totalorder %s28, 0
      %p196 = por %p194, %p195
      %p197 = scmp.ne.s32.totalorder %s185, %s186
      %p198 = scmp.eq.s32.totalorder %s29, 1
      %p199 = por %p197, %p198
      %p201 = scmp.ne.s32.totalorder %s186, %s200
      %p202 = scmp.eq.s32.totalorder %s29, 0
      %p203 = por %p201, %p202
      %s205 = sadd.s32 %s204, 1
      %p208 = scmp.eq.s32.totalorder %s23, 1
      %p209 = scmp.ne.s32.totalorder %s204, %s206
      %p210 = scmp.eq.s32.totalorder %s23, 0
      %p211 = por %p209, %p210
      %p212 = scmp.ne.s32.totalorder %s204, %s206
      %p213 = scmp.eq.s32.totalorder %s28, 1
      %p214 = por %p212, %p213
      %p215 = scmp.ne.s32.totalorder %s206, %s207
      %p216 = scmp.eq.s32.totalorder %s28, 0
      %p217 = por %p215, %p216
      %p218 = scmp.ne.s32.totalorder %s206, %s207
      %p219 = scmp.eq.s32.totalorder %s29, 1
      %p220 = por %p218, %p219
      %p222 = scmp.ne.s32.totalorder %s207, %s221
      %p223 = scmp.eq.s32.totalorder %s29, 0
      %p224 = por %p222, %p223
      %s225 = ssub.s32 %s23, %s30
      %p226 = scmp.eq.s32.totalorder %s225, 0
      %s228 = sadd.s32 %s227, 1
      %s229 = scalar_select %p226, %s227, %s228
      %p232 = pneg %p226
      %p233 = scmp.eq.s32.totalorder %s23, 1
      %p234 = por %p232, %p233
      %p235 = scmp.ne.s32.totalorder %s227, %s230
      %p236 = scmp.eq.s32.totalorder %s23, 0
      %p237 = por %p235, %p236
      %p238 = scmp.ne.s32.totalorder %s227, %s230
      %p239 = scmp.eq.s32.totalorder %s28, 1
      %p240 = por %p238, %p239
      %p241 = scmp.ne.s32.totalorder %s230, %s231
      %p242 = scmp.eq.s32.totalorder %s28, 0
      %p243 = por %p241, %p242
      %p244 = scmp.ne.s32.totalorder %s230, %s231
      %p245 = scmp.eq.s32.totalorder %s29, 1
      %p246 = por %p244, %p245
      %p248 = scmp.ne.s32.totalorder %s231, %s247
      %p249 = scmp.eq.s32.totalorder %s29, 0
      %p250 = por %p248, %p249
      %p251 = scmp.le.s32.totalorder 1, %s23
      %p252 = scmp.lt.s32.totalorder %s23, 3
      %p253 = pnand %p251, %p252
      %p254 = pneg %p253
      // Predicated region
      $region9: #{cnn_forward.1} parent=5 // pred_check
        _
      $region10: #{cnn_forward.1} parent=5 // pred_check_branch
        %256 = sbr.rel (%p253) target = $region12
      $region11: #{cnn_forward.1} parent=5 // pred_region
        %s257 = ssub.s32 %s23, 1
        // Predicated region
        $region13: #{cnn_forward.1} parent=11 // pred_check
          %p258 = pneg %p70
        $region14: #{cnn_forward.1} parent=11 // pred_check_branch
          %260 = sbr.rel (%p258) target = $region16
        $region15: #{cnn_forward.1} parent=11 // pred_region
          %s262 = ssub.s32 10240, 10240
          %263 = vsyncadd [#allocation6], %s262
          %s264 = sshll.u32 [#allocation5], 4
          %s265 = int_to_ptr.vmem [resolvable:$true] %s264
          %270 = dma.hbm_to_vmem [thread:$0]  %s1, 10240, %s265, [#allocation6], 512, 512, 32
        $region16: #{cnn_forward.1} parent=11 // pred_fallthru
          _
        // Predicated region
        $region17: #{cnn_forward.1} parent=11 // pred_check
          %p271 = pneg %p91
        $region18: #{cnn_forward.1} parent=11 // pred_check_branch
          %273 = sbr.rel (%p271) target = $region20
        $region19: #{cnn_forward.1} parent=11 // pred_region
          %s275 = ssub.s32 64, 64
          %276 = vsyncadd [#allocation9], %s275
          %s278 = sshll.u32 [#allocation8], 4
          %s279 = int_to_ptr.vmem [resolvable:$true] %s278
          %281 = dma.hbm_to_vmem [thread:$0]  %s2, 64, %s279, [#allocation9]
        $region20: #{cnn_forward.1} parent=11 // pred_fallthru
          _
        // Predicated region
        $region21: #{cnn_forward.1} parent=11 // pred_check
          %p282 = pneg %p112
        $region22: #{cnn_forward.1} parent=11 // pred_check_branch
          %284 = sbr.rel (%p282) target = $region24
        $region23: #{cnn_forward.1} parent=11 // pred_region
          %s286 = ssub.s32 81920, 81920
          %287 = vsyncadd [#allocation9], %s286
          %s288 = sshll.u32 [#allocation10], 4
          %s289 = int_to_ptr.vmem [resolvable:$true] %s288
          %294 = dma.hbm_to_vmem [thread:$0]  %s3, 81920, %s289, [#allocation9], 512, 512, 32
        $region24: #{cnn_forward.1} parent=11 // pred_fallthru
          _
        // Predicated region
        $region25: #{cnn_forward.1} parent=11 // pred_check
          %p295 = pneg %p133
        $region26: #{cnn_forward.1} parent=11 // pred_check_branch
          %297 = sbr.rel (%p295) target = $region28
        $region27: #{cnn_forward.1} parent=11 // pred_region
          %s299 = ssub.s32 64, 64
          %300 = vsyncadd [#allocation12], %s299
          %s302 = sshll.u32 [#allocation11], 4
          %s303 = int_to_ptr.vmem [resolvable:$true] %s302
          %305 = dma.hbm_to_vmem [thread:$0]  %s4, 64, %s303, [#allocation12]
        $region28: #{cnn_forward.1} parent=11 // pred_fallthru
          _
        // Predicated region
        $region29: #{cnn_forward.1} parent=11 // pred_check
          %p306 = pneg %p154
        $region30: #{cnn_forward.1} parent=11 // pred_check_branch
          %308 = sbr.rel (%p306) target = $region32
        $region31: #{cnn_forward.1} parent=11 // pred_region
          %s310 = ssub.s32 65536, 65536
          %311 = vsyncadd [#allocation12], %s310
          %s312 = sshll.u32 [#allocation13], 4
          %s313 = int_to_ptr.vmem [resolvable:$true] %s312
          %318 = dma.hbm_to_vmem [thread:$0]  %s5, 65536, %s313, [#allocation12], 512, 512, 32
        $region32: #{cnn_forward.1} parent=11 // pred_fallthru
          _
        // Predicated region
        $region33: #{cnn_forward.1} parent=11 // pred_check
          %p319 = pneg %p175
        $region34: #{cnn_forward.1} parent=11 // pred_check_branch
          %321 = sbr.rel (%p319) target = $region36
        $region35: #{cnn_forward.1} parent=11 // pred_region
          %s323 = ssub.s32 64, 64
          %324 = vsyncadd [#allocation15], %s323
          %s326 = sshll.u32 [#allocation14], 4
          %s327 = int_to_ptr.vmem [resolvable:$true] %s326
          %329 = dma.hbm_to_vmem [thread:$0]  %s6, 64, %s327, [#allocation15]
        $region36: #{cnn_forward.1} parent=11 // pred_fallthru
          _
        // Predicated region
        $region37: #{cnn_forward.1} parent=11 // pred_check
          %p330 = pneg %p196
        $region38: #{cnn_forward.1} parent=11 // pred_check_branch
          %332 = sbr.rel (%p330) target = $region40
        $region39: #{cnn_forward.1} parent=11 // pred_region
          %s334 = ssub.s32 8192, 8192
          %335 = vsyncadd [#allocation15], %s334
          %s336 = sshll.u32 [#allocation16], 4
          %s337 = int_to_ptr.vmem [resolvable:$true] %s336
          %342 = dma.hbm_to_vmem [thread:$0]  %s7, 8192, %s337, [#allocation15], 128, 128, 8
        $region40: #{cnn_forward.1} parent=11 // pred_fallthru
          _
        // Predicated region
        $region41: #{cnn_forward.1} parent=11 // pred_check
          %p343 = pneg %p217
        $region42: #{cnn_forward.1} parent=11 // pred_check_branch
          %345 = sbr.rel (%p343) target = $region44
        $region43: #{cnn_forward.1} parent=11 // pred_region
          %s347 = ssub.s32 16, 16
          %348 = vsyncadd [#allocation18], %s347
          %s350 = sshll.u32 [#allocation17], 4
          %s351 = int_to_ptr.vmem [resolvable:$true] %s350
          %353 = dma.hbm_to_vmem [thread:$0]  %s8, 16, %s351, [#allocation18]
        $region44: #{cnn_forward.1} parent=11 // pred_fallthru
          _
      $region12: #{cnn_forward.1} parent=5 // pred_fallthru
        _
      %p354 = scmp.lt.s32.totalorder %s23, 2
      // Predicated region
      $region45: #{cnn_forward.1} parent=5 // pred_check
        %p355 = pneg %p354
      $region46: #{cnn_forward.1} parent=5 // pred_check_branch
        %357 = sbr.rel (%p355) target = $region48
      $region47: #{cnn_forward.1} parent=5 // pred_region
        // Predicated region
        $region49: #{cnn_forward.1} parent=47 // pred_check
          %p358 = pneg %p43
        $region50: #{cnn_forward.1} parent=47 // pred_check_branch
          %360 = sbr.rel (%p358) target = $region52
        $region51: #{cnn_forward.1} parent=47 // pred_region
          %s361 = smul.u32 8, %s23
          %p362 = scmp.lt.s32.totalorder %s361, 15
          %s363 = scalar_select %p362, %s361, 15
          %s364 = smul.addr %s363, 4
          %s365 = smul.addr %s364, 8
          %s366 = scalar_lea.vmem %s0, %s365
          %s367 = smul.u32 8, %s23
        $region52: #{cnn_forward.1} parent=47 // pred_fallthru
          _
      $region48: #{cnn_forward.1} parent=5 // pred_fallthru
        _
      %p368 = scmp.le.s32.totalorder 1, %s23
      %p369 = scmp.lt.s32.totalorder %s23, 3
      %p370 = pnand %p368, %p369
      %p371 = pneg %p370
      // Predicated region
      $region53: #{cnn_forward.1} parent=5 // pred_check
        _
      $region54: #{cnn_forward.1} parent=5 // pred_check_branch
        %373 = sbr.rel (%p370) target = $region56
      $region55: #{cnn_forward.1} parent=5 // pred_region
        %s374 = ssub.s32 %s23, 1
        // Predicated region
        $region57: #{cnn_forward.1} parent=55 // pred_check
          %p375 = pneg %p70
        $region58: #{cnn_forward.1} parent=55 // pred_check_branch
          %377 = sbr.rel (%p375) target = $region60
        $region59: #{cnn_forward.1} parent=55 // pred_region
          %378 = dma.done [#allocation6], 10240
        $region60: #{cnn_forward.1} parent=55 // pred_fallthru
          _
        // Predicated region
        $region61: #{cnn_forward.1} parent=55 // pred_check
          %p379 = pneg %p91
        $region62: #{cnn_forward.1} parent=55 // pred_check_branch
          %381 = sbr.rel (%p379) target = $region64
        $region63: #{cnn_forward.1} parent=55 // pred_region
          %382 = dma.done [#allocation9], 64
        $region64: #{cnn_forward.1} parent=55 // pred_fallthru
          _
        // Predicated region
        $region65: #{cnn_forward.1} parent=55 // pred_check
          %p383 = pneg %p112
        $region66: #{cnn_forward.1} parent=55 // pred_check_branch
          %385 = sbr.rel (%p383) target = $region68
        $region67: #{cnn_forward.1} parent=55 // pred_region
          %386 = dma.done [#allocation9], 81920
        $region68: #{cnn_forward.1} parent=55 // pred_fallthru
          _
        // Predicated region
        $region69: #{cnn_forward.1} parent=55 // pred_check
          %p387 = pneg %p133
        $region70: #{cnn_forward.1} parent=55 // pred_check_branch
          %389 = sbr.rel (%p387) target = $region72
        $region71: #{cnn_forward.1} parent=55 // pred_region
          %390 = dma.done [#allocation12], 64
        $region72: #{cnn_forward.1} parent=55 // pred_fallthru
          _
        // Predicated region
        $region73: #{cnn_forward.1} parent=55 // pred_check
          %p391 = pneg %p154
        $region74: #{cnn_forward.1} parent=55 // pred_check_branch
          %393 = sbr.rel (%p391) target = $region76
        $region75: #{cnn_forward.1} parent=55 // pred_region
          %394 = dma.done [#allocation12], 65536
        $region76: #{cnn_forward.1} parent=55 // pred_fallthru
          _
        // Predicated region
        $region77: #{cnn_forward.1} parent=55 // pred_check
          %p395 = pneg %p175
        $region78: #{cnn_forward.1} parent=55 // pred_check_branch
          %397 = sbr.rel (%p395) target = $region80
        $region79: #{cnn_forward.1} parent=55 // pred_region
          %398 = dma.done [#allocation15], 64
        $region80: #{cnn_forward.1} parent=55 // pred_fallthru
          _
        // Predicated region
        $region81: #{cnn_forward.1} parent=55 // pred_check
          %p399 = pneg %p196
        $region82: #{cnn_forward.1} parent=55 // pred_check_branch
          %401 = sbr.rel (%p399) target = $region84
        $region83: #{cnn_forward.1} parent=55 // pred_region
          %402 = dma.done [#allocation15], 8192
        $region84: #{cnn_forward.1} parent=55 // pred_fallthru
          _
        // Predicated region
        $region85: #{cnn_forward.1} parent=55 // pred_check
          %p403 = pneg %p217
        $region86: #{cnn_forward.1} parent=55 // pred_check_branch
          %405 = sbr.rel (%p403) target = $region88
        $region87: #{cnn_forward.1} parent=55 // pred_region
          %406 = dma.done [#allocation18], 16
        $region88: #{cnn_forward.1} parent=55 // pred_fallthru
          _
        %s407 = smul.u32 8, %s28
        %p408 = scmp.lt.s32.totalorder %s407, 15
        %s409 = scalar_select %p408, %s407, 15
        %s410 = smul.addr %s409, 4
        %s411 = smul.addr %s410, 8
        %s412 = scalar_lea.vmem %s0, %s411
        %p413 = pneg %p49
        %p414 = pneg %p46
        %p415 = pneg %p70
        %p416 = pneg %p67
        %p417 = pneg %p91
        %p418 = pneg %p88
        %p419 = pneg %p112
        %p420 = pneg %p109
        %p421 = pneg %p133
        %p422 = pneg %p130
        %p423 = pneg %p154
        %p424 = pneg %p151
        %p425 = pneg %p175
        %p426 = pneg %p172
        %p427 = pneg %p196
        %p428 = pneg %p193
        %p429 = pneg %p217
        %p430 = pneg %p214
        %p431 = pneg %p243
        %p432 = pneg %p240
        %s433 = sand.u32 %s230, 1
        %s434 = scalar_lea.sflag [#allocation7], %s433
        %s435 = sand.u32 %s230, 1
        %s436 = smul.addr %s435, 8
        %s437 = scalar_lea.vmem [#allocation19], %s436
        %s438 = smul.u32 8, %s28
        %p439 = scmp.lt.s32.totalorder %s438, 15
        %s440 = scalar_select %p439, %s438, 15
        %s441 = smul.addr %s440, 4
        %s442 = smul.addr %s441, 8
        %s443 = scalar_lea.vmem %s0, %s442
        %s444 = smul.u32 8, %s28
        %v445 = vld [vmem:[%s443] sm:$0xff]
        %v446 = vld [vmem:[%s443 + $0x8] sm:$0xff]
        %v447 = vld [vmem:[%s443 + $0x10] sm:$0xff]
        %v448 = vld [vmem:[%s443 + $0x20] sm:$0xff]
        %v449 = vld [vmem:[%s443 + $0x28] sm:$0xff]
        %v450 = vld [vmem:[%s443 + $0x30] sm:$0xff]
        %v451 = vld [vmem:[%s443 + $0x40] sm:$0xff]
        %v452 = vld [vmem:[%s443 + $0x48] sm:$0xff]
        %v453 = vld [vmem:[%s443 + $0x50] sm:$0xff]
        %v454 = vld [vmem:[%s443 + $0x60] sm:$0xff]
        %v455 = vld [vmem:[%s443 + $0x68] sm:$0xff]
        %v456 = vld [vmem:[%s443 + $0x70] sm:$0xff]
        %v457 = vld [vmem:[%s443 + $0x80] sm:$0xff]
        %v458 = vld [vmem:[%s443 + $0x88] sm:$0xff]
        %v459 = vld [vmem:[%s443 + $0x90] sm:$0xff]
        %v460 = vld [vmem:[%s443 + $0xa0] sm:$0xff]
        %v461 = vld [vmem:[%s443 + $0xa8] sm:$0xff]
        %v462 = vld [vmem:[%s443 + $0xb0] sm:$0xff]
        %v463 = vld [vmem:[%s443 + $0xc0] sm:$0xff]
        %v464 = vld [vmem:[%s443 + $0xc8] sm:$0xff]
        %v465 = vld [vmem:[%s443 + $0xd0] sm:$0xff]
        %v466 = vld [vmem:[%s443 + $0xe0] sm:$0xff]
        %v467 = vld [vmem:[%s443 + $0xe8] sm:$0xff]
        %v468 = vld [vmem:[%s443 + $0xf0] sm:$0xff]
        %v469 = vld [vmem:[#allocation5] sm:$0xff]
        %v470 = vld [vmem:[#allocation5 + $0x8] sm:$0xff]
        %v471 = vld [vmem:[#allocation5 + $0x10] sm:$0xff]
        %v472 = vld [vmem:[#allocation5 + $0x18] sm:$0xff]
        %v473 = vld [vmem:[#allocation5 + $0x20] sm:$0xff]
        %v474 = vld [vmem:[#allocation5 + $0x28] sm:$0xff]
        %v475 = vld [vmem:[#allocation5 + $0x30] sm:$0xff]
        %v476 = vld [vmem:[#allocation5 + $0x38] sm:$0xff]
        %v477 = vld [vmem:[#allocation5 + $0x40] sm:$0xff]
        %v478 = vld [vmem:[#allocation5 + $0x48] sm:$0xff]
        %v479 = vld [vmem:[#allocation5 + $0x50] sm:$0xff]
        %v480 = vld [vmem:[#allocation5 + $0x58] sm:$0xff]
        %v481 = vld [vmem:[#allocation5 + $0x60] sm:$0xf]
        %v482 = vld [vmem:[#allocation5 + $0x68] sm:$0xf]
        %v483 = vld [vmem:[#allocation5 + $0x70] sm:$0xf]
        %v484 = vld [vmem:[#allocation5 + $0x78] sm:$0xf]
        %v485 = vld [vmem:[%s443 + $0x1] sm:$0xff]
        %v486 = vld [vmem:[%s443 + $0x9] sm:$0xff]
        %v487 = vld [vmem:[%s443 + $0x11] sm:$0xff]
        %v488 = vld [vmem:[%s443 + $0x21] sm:$0xff]
        %v489 = vld [vmem:[%s443 + $0x29] sm:$0xff]
        %v490 = vld [vmem:[%s443 + $0x31] sm:$0xff]
        %v491 = vld [vmem:[%s443 + $0x41] sm:$0xff]
        %v492 = vld [vmem:[%s443 + $0x49] sm:$0xff]
        %v493 = vld [vmem:[%s443 + $0x51] sm:$0xff]
        %v494 = vld [vmem:[%s443 + $0x61] sm:$0xff]
        %v495 = vld [vmem:[%s443 + $0x69] sm:$0xff]
        %v496 = vld [vmem:[%s443 + $0x71] sm:$0xff]
        %v497 = vld [vmem:[%s443 + $0x81] sm:$0xff]
        %v498 = vld [vmem:[%s443 + $0x89] sm:$0xff]
        %v499 = vld [vmem:[%s443 + $0x91] sm:$0xff]
        %v500 = vld [vmem:[%s443 + $0xa1] sm:$0xff]
        %v501 = vld [vmem:[%s443 + $0xa9] sm:$0xff]
        %v502 = vld [vmem:[%s443 + $0xb1] sm:$0xff]
        %v503 = vld [vmem:[%s443 + $0xc1] sm:$0xff]
        %v504 = vld [vmem:[%s443 + $0xc9] sm:$0xff]
        %v505 = vld [vmem:[%s443 + $0xd1] sm:$0xff]
        %v506 = vld [vmem:[%s443 + $0xe1] sm:$0xff]
        %v507 = vld [vmem:[%s443 + $0xe9] sm:$0xff]
        %v508 = vld [vmem:[%s443 + $0xf1] sm:$0xff]
        %s509 = scalar_lea.vmem [#allocation5], 128
        %v510 = vld [vmem:[%s509] sm:$0xff]
        %v511 = vld [vmem:[%s509 + $0x8] sm:$0xff]
        %v512 = vld [vmem:[%s509 + $0x10] sm:$0xff]
        %v513 = vld [vmem:[%s509 + $0x18] sm:$0xff]
        %v514 = vld [vmem:[%s509 + $0x20] sm:$0xff]
        %v515 = vld [vmem:[%s509 + $0x28] sm:$0xff]
        %v516 = vld [vmem:[%s509 + $0x30] sm:$0xff]
        %v517 = vld [vmem:[%s509 + $0x38] sm:$0xff]
        %v518 = vld [vmem:[%s509 + $0x40] sm:$0xff]
        %v519 = vld [vmem:[%s509 + $0x48] sm:$0xff]
        %v520 = vld [vmem:[%s509 + $0x50] sm:$0xff]
        %v521 = vld [vmem:[%s509 + $0x58] sm:$0xff]
        %v522 = vld [vmem:[%s509 + $0x60] sm:$0xf]
        %v523 = vld [vmem:[%s509 + $0x68] sm:$0xf]
        %v524 = vld [vmem:[%s509 + $0x70] sm:$0xf]
        %v525 = vld [vmem:[%s509 + $0x78] sm:$0xf]
        %vm526 = vcmask 228352
        %v528 = vsel %vm526, %v485, 0
        %v531 = vsel %vm526, %v486, 0
        %v534 = vsel %vm526, %v487, 0
        %v537 = vsel %vm526, %v488, 0
        %v540 = vsel %vm526, %v489, 0
        %v543 = vsel %vm526, %v490, 0
        %v546 = vsel %vm526, %v491, 0
        %v549 = vsel %vm526, %v492, 0
        %v552 = vsel %vm526, %v493, 0
        %v555 = vsel %vm526, %v494, 0
        %v558 = vsel %vm526, %v495, 0
        %v561 = vsel %vm526, %v496, 0
        %v564 = vsel %vm526, %v497, 0
        %v567 = vsel %vm526, %v498, 0
        %v570 = vsel %vm526, %v499, 0
        %v573 = vsel %vm526, %v500, 0
        %v576 = vsel %vm526, %v501, 0
        %v579 = vsel %vm526, %v502, 0
        %v582 = vsel %vm526, %v503, 0
        %v585 = vsel %vm526, %v504, 0
        %v588 = vsel %vm526, %v505, 0
        %v591 = vsel %vm526, %v506, 0
        %v594 = vsel %vm526, %v507, 0
        %v597 = vsel %vm526, %v508, 0
        %vm599 = vcmask 1043456
        %v601 = vsel %vm599, %v522, 0
        %v604 = vsel %vm599, %v523, 0
        %v607 = vsel %vm599, %v524, 0
        %v610 = vsel %vm599, %v525, 0
        %612 = vmatprep.subr.mxu0 0.0
        %613 = vmatpush1.msra.mxu0 0.0
        %614 = vmatprep.subr.mxu0 0.0
        %615 = vmatpush1.msra.mxu0 0.0
        %616 = vmatprep.subr.mxu0 0.0
        %617 = vmatpush1.msra.mxu0 0.0
        %618 = vmatprep.subr.mxu0 0.0
        %619 = vmatpush1.msra.mxu0 0.0
        %620 = vmatprep.subr.mxu0 0.0
        %621 = vmatpush1.msra.mxu0 0.0
        %622 = vmatprep.subr.mxu0 0.0
        %623 = vmatpush1.msra.mxu0 0.0
        %624 = vmatprep.subr.mxu0 0.0
        %625 = vmatpush1.msra.mxu0 0.0
        %626 = vmatprep.subr.mxu0 0.0
        %627 = vmatpush1.msra.mxu0 0.0
        %628 = vmatprep.subr.mxu0 0.0
        %629 = vmatpush1.msra.mxu0 0.0
        %630 = vmatprep.subr.mxu0 0.0
        %631 = vmatpush1.msra.mxu0 0.0
        %632 = vmatprep.subr.mxu0 0.0
        %633 = vmatpush1.msra.mxu0 0.0
        %634 = vmatprep.subr.mxu0 0.0
        %635 = vmatpush1.msra.mxu0 0.0
        %636 = vmatprep.subr.mxu0 %v604
        %637 = vmatpush1.msra.mxu0 %v601
        %638 = vmatprep.subr.mxu0 %v519
        %639 = vmatpush1.msra.mxu0 %v518
        %640 = vmatprep.subr.mxu0 %v515
        %641 = vmatpush1.msra.mxu0 %v514
        %642 = vmatprep.subr.mxu0 %v511
        %643 = vmatpush1.msra.mxu0 %v510
        %644 = vmatprep.subr.mxu0 0.0
        %645 = vmatpush2.msra.mxu0 0.0
        %646 = vmatprep.subr.mxu0 0.0
        %647 = vmatpush2.msra.mxu0 0.0
        %648 = vmatprep.subr.mxu0 0.0
        %649 = vmatpush2.msra.mxu0 0.0
        %650 = vmatprep.subr.mxu0 0.0
        %651 = vmatpush2.msra.mxu0 0.0
        %652 = vmatprep.subr.mxu0 0.0
        %653 = vmatpush2.msra.mxu0 0.0
        %654 = vmatprep.subr.mxu0 0.0
        %655 = vmatpush2.msra.mxu0 0.0
        %656 = vmatprep.subr.mxu0 0.0
        %657 = vmatpush2.msra.mxu0 0.0
        %658 = vmatprep.subr.mxu0 0.0
        %659 = vmatpush2.msra.mxu0 0.0
        %660 = vmatprep.subr.mxu0 0.0
        %661 = vmatpush2.msra.mxu0 0.0
        %662 = vmatprep.subr.mxu0 0.0
        %663 = vmatpush2.msra.mxu0 0.0
        %664 = vmatprep.subr.mxu0 0.0
        %665 = vmatpush2.msra.mxu0 0.0
        %666 = vmatprep.subr.mxu0 0.0
        %667 = vmatpush2.msra.mxu0 0.0
        %668 = vmatprep.subr.mxu0 0.0
        %669 = vmatpush2.msra.mxu0 0.0
        %670 = vmatprep.subr.mxu0 0.0
        %671 = vmatpush2.msra.mxu0 0.0
        %672 = vmatprep.subr.mxu0 0.0
        %673 = vmatpush2.msra.mxu0 0.0
        %674 = vmatprep.subr.mxu0 0.0
        %675 = vmatpush2.msra.mxu0 0.0
        %676 = vmatprep.mubr.f32.mxu0 0.0
        %677 = vmatmul.mubr.f32.gmra.mxu0 %v528
        %v678 = vpop.f32.mrf.mxu0
        %v679 = vadd.f32 0.0, %v678
        %v680 = vpop.f32.mrf.mxu0
        %v681 = vadd.f32 0.0, %v680
        %682 = vmatprep.mubr.f32.mxu0 0.0
        %683 = vmatmul.mubr.f32.gmra.mxu0 %v531
        %v684 = vpop.f32.mrf.mxu0
        %v685 = vadd.f32 0.0, %v684
        %v686 = vpop.f32.mrf.mxu0
        %v687 = vadd.f32 0.0, %v686
        %688 = vmatprep.mubr.f32.mxu0 0.0
        %689 = vmatmul.mubr.f32.gmra.mxu0 %v534
        %v690 = vpop.f32.mrf.mxu0
        %v691 = vadd.f32 0.0, %v690
        %v692 = vpop.f32.mrf.mxu0
        %v693 = vadd.f32 0.0, %v692
        %694 = vmatprep.mubr.f32.mxu0 0.0
        %695 = vmatmul.mubr.f32.gmra.mxu0 %v537
        %v696 = vpop.f32.mrf.mxu0
        %v697 = vadd.f32 0.0, %v696
        %v698 = vpop.f32.mrf.mxu0
        %v699 = vadd.f32 0.0, %v698
        %700 = vmatprep.mubr.f32.mxu0 0.0
        %701 = vmatmul.mubr.f32.gmra.mxu0 %v540
        %v702 = vpop.f32.mrf.mxu0
        %v703 = vadd.f32 0.0, %v702
        %v704 = vpop.f32.mrf.mxu0
        %v705 = vadd.f32 0.0, %v704
        %706 = vmatprep.mubr.f32.mxu0 0.0
        %707 = vmatmul.mubr.f32.gmra.mxu0 %v543
        %v708 = vpop.f32.mrf.mxu0
        %v709 = vadd.f32 0.0, %v708
        %v710 = vpop.f32.mrf.mxu0
        %v711 = vadd.f32 0.0, %v710
        %712 = vmatprep.mubr.f32.mxu0 0.0
        %713 = vmatmul.mubr.f32.gmra.mxu0 %v546
        %v714 = vpop.f32.mrf.mxu0
        %v715 = vadd.f32 0.0, %v714
        %v716 = vpop.f32.mrf.mxu0
        %v717 = vadd.f32 0.0, %v716
        %718 = vmatprep.mubr.f32.mxu0 0.0
        %719 = vmatmul.mubr.f32.gmra.mxu0 %v549
        %v720 = vpop.f32.mrf.mxu0
        %v721 = vadd.f32 0.0, %v720
        %v722 = vpop.f32.mrf.mxu0
        %v723 = vadd.f32 0.0, %v722
        %724 = vmatprep.mubr.f32.mxu0 0.0
        %725 = vmatmul.mubr.f32.gmra.mxu0 %v552
        %v726 = vpop.f32.mrf.mxu0
        %v727 = vadd.f32 0.0, %v726
        %v728 = vpop.f32.mrf.mxu0
        %v729 = vadd.f32 0.0, %v728
        %730 = vmatprep.mubr.f32.mxu0 0.0
        %731 = vmatmul.mubr.f32.gmra.mxu0 %v555
        %v732 = vpop.f32.mrf.mxu0
        %v733 = vadd.f32 0.0, %v732
        %v734 = vpop.f32.mrf.mxu0
        %v735 = vadd.f32 0.0, %v734
        %736 = vmatprep.mubr.f32.mxu0 0.0
        %737 = vmatmul.mubr.f32.gmra.mxu0 %v558
        %v738 = vpop.f32.mrf.mxu0
        %v739 = vadd.f32 0.0, %v738
        %v740 = vpop.f32.mrf.mxu0
        %v741 = vadd.f32 0.0, %v740
        %742 = vmatprep.mubr.f32.mxu0 0.0
        %743 = vmatmul.mubr.f32.gmra.mxu0 %v561
        %v744 = vpop.f32.mrf.mxu0
        %v745 = vadd.f32 0.0, %v744
        %v746 = vpop.f32.mrf.mxu0
        %v747 = vadd.f32 0.0, %v746
        %748 = vmatprep.mubr.f32.mxu0 0.0
        %749 = vmatmul.mubr.f32.gmra.mxu0 %v564
        %v750 = vpop.f32.mrf.mxu0
        %v751 = vadd.f32 0.0, %v750
        %v752 = vpop.f32.mrf.mxu0
        %v753 = vadd.f32 0.0, %v752
        %754 = vmatprep.mubr.f32.mxu0 0.0
        %755 = vmatmul.mubr.f32.gmra.mxu0 %v567
        %v756 = vpop.f32.mrf.mxu0
        %v757 = vadd.f32 0.0, %v756
        %v758 = vpop.f32.mrf.mxu0
        %v759 = vadd.f32 0.0, %v758
        %760 = vmatprep.mubr.f32.mxu0 0.0
        %761 = vmatmul.mubr.f32.gmra.mxu0 %v570
        %v762 = vpop.f32.mrf.mxu0
        %v763 = vadd.f32 0.0, %v762
        %v764 = vpop.f32.mrf.mxu0
        %v765 = vadd.f32 0.0, %v764
        %766 = vmatprep.mubr.f32.mxu0 0.0
        %767 = vmatmul.mubr.f32.gmra.mxu0 %v573
        %v768 = vpop.f32.mrf.mxu0
        %v769 = vadd.f32 0.0, %v768
        %v770 = vpop.f32.mrf.mxu0
        %v771 = vadd.f32 0.0, %v770
        %772 = vmatprep.mubr.f32.mxu0 0.0
        %773 = vmatmul.mubr.f32.gmra.mxu0 %v576
        %v774 = vpop.f32.mrf.mxu0
        %v775 = vadd.f32 0.0, %v774
        %v776 = vpop.f32.mrf.mxu0
        %v777 = vadd.f32 0.0, %v776
        %778 = vmatprep.mubr.f32.mxu0 0.0
        %779 = vmatmul.mubr.f32.gmra.mxu0 %v579
        %v780 = vpop.f32.mrf.mxu0
        %v781 = vadd.f32 0.0, %v780
        %v782 = vpop.f32.mrf.mxu0
        %v783 = vadd.f32 0.0, %v782
        %784 = vmatprep.mubr.f32.mxu0 0.0
        %785 = vmatmul.mubr.f32.gmra.mxu0 %v582
        %v786 = vpop.f32.mrf.mxu0
        %v787 = vadd.f32 0.0, %v786
        %v788 = vpop.f32.mrf.mxu0
        %v789 = vadd.f32 0.0, %v788
        %790 = vmatprep.mubr.f32.mxu0 0.0
        %791 = vmatmul.mubr.f32.gmra.mxu0 %v585
        %v792 = vpop.f32.mrf.mxu0
        %v793 = vadd.f32 0.0, %v792
        %v794 = vpop.f32.mrf.mxu0
        %v795 = vadd.f32 0.0, %v794
        %796 = vmatprep.mubr.f32.mxu0 0.0
        %797 = vmatmul.mubr.f32.gmra.mxu0 %v588
        %v798 = vpop.f32.mrf.mxu0
        %v799 = vadd.f32 0.0, %v798
        %v800 = vpop.f32.mrf.mxu0
        %v801 = vadd.f32 0.0, %v800
        %802 = vmatprep.mubr.f32.mxu0 0.0
        %803 = vmatmul.mubr.f32.gmra.mxu0 %v591
        %v804 = vpop.f32.mrf.mxu0
        %v805 = vadd.f32 0.0, %v804
        %v806 = vpop.f32.mrf.mxu0
        %v807 = vadd.f32 0.0, %v806
        %808 = vmatprep.mubr.f32.mxu0 0.0
        %809 = vmatmul.mubr.f32.gmra.mxu0 %v594
        %v810 = vpop.f32.mrf.mxu0
        %v811 = vadd.f32 0.0, %v810
        %v812 = vpop.f32.mrf.mxu0
        %v813 = vadd.f32 0.0, %v812
        %814 = vmatprep.mubr.f32.mxu0 0.0
        %815 = vmatmul.mubr.f32.gmra.mxu0 %v597
        %v816 = vpop.f32.mrf.mxu0
        %v817 = vadd.f32 0.0, %v816
        %v818 = vpop.f32.mrf.mxu0
        %v819 = vadd.f32 0.0, %v818
        %820 = vdwg.mxu0
        %821 = vmatprep.subr.mxu0 0.0
        %822 = vmatpush1.msra.mxu0 0.0
        %823 = vmatprep.subr.mxu0 0.0
        %824 = vmatpush1.msra.mxu0 0.0
        %825 = vmatprep.subr.mxu0 0.0
        %826 = vmatpush1.msra.mxu0 0.0
        %827 = vmatprep.subr.mxu0 0.0
        %828 = vmatpush1.msra.mxu0 0.0
        %829 = vmatprep.subr.mxu0 0.0
        %830 = vmatpush1.msra.mxu0 0.0
        %831 = vmatprep.subr.mxu0 0.0
        %832 = vmatpush1.msra.mxu0 0.0
        %833 = vmatprep.subr.mxu0 0.0
        %834 = vmatpush1.msra.mxu0 0.0
        %835 = vmatprep.subr.mxu0 0.0
        %836 = vmatpush1.msra.mxu0 0.0
        %837 = vmatprep.subr.mxu0 0.0
        %838 = vmatpush1.msra.mxu0 0.0
        %839 = vmatprep.subr.mxu0 0.0
        %840 = vmatpush1.msra.mxu0 0.0
        %841 = vmatprep.subr.mxu0 0.0
        %842 = vmatpush1.msra.mxu0 0.0
        %843 = vmatprep.subr.mxu0 0.0
        %844 = vmatpush1.msra.mxu0 0.0
        %845 = vmatprep.subr.mxu0 %v610
        %846 = vmatpush1.msra.mxu0 %v607
        %847 = vmatprep.subr.mxu0 %v521
        %848 = vmatpush1.msra.mxu0 %v520
        %849 = vmatprep.subr.mxu0 %v517
        %850 = vmatpush1.msra.mxu0 %v516
        %851 = vmatprep.subr.mxu0 %v513
        %852 = vmatpush1.msra.mxu0 %v512
        %853 = vmatprep.subr.mxu0 0.0
        %854 = vmatpush2.msra.mxu0 0.0
        %855 = vmatprep.subr.mxu0 0.0
        %856 = vmatpush2.msra.mxu0 0.0
        %857 = vmatprep.subr.mxu0 0.0
        %858 = vmatpush2.msra.mxu0 0.0
        %859 = vmatprep.subr.mxu0 0.0
        %860 = vmatpush2.msra.mxu0 0.0
        %861 = vmatprep.subr.mxu0 0.0
        %862 = vmatpush2.msra.mxu0 0.0
        %863 = vmatprep.subr.mxu0 0.0
        %864 = vmatpush2.msra.mxu0 0.0
        %865 = vmatprep.subr.mxu0 0.0
        %866 = vmatpush2.msra.mxu0 0.0
        %867 = vmatprep.subr.mxu0 0.0
        %868 = vmatpush2.msra.mxu0 0.0
        %869 = vmatprep.subr.mxu0 0.0
        %870 = vmatpush2.msra.mxu0 0.0
        %871 = vmatprep.subr.mxu0 0.0
        %872 = vmatpush2.msra.mxu0 0.0
        %873 = vmatprep.subr.mxu0 0.0
        %874 = vmatpush2.msra.mxu0 0.0
        %875 = vmatprep.subr.mxu0 0.0
        %876 = vmatpush2.msra.mxu0 0.0
        %877 = vmatprep.subr.mxu0 0.0
        %878 = vmatpush2.msra.mxu0 0.0
        %879 = vmatprep.subr.mxu0 0.0
        %880 = vmatpush2.msra.mxu0 0.0
        %881 = vmatprep.subr.mxu0 0.0
        %882 = vmatpush2.msra.mxu0 0.0
        %883 = vmatprep.subr.mxu0 0.0
        %884 = vmatpush2.msra.mxu0 0.0
        %885 = vmatprep.mubr.f32.mxu0 0.0
        %886 = vmatmul.mubr.f32.gmra.mxu0 %v528
        %v887 = vpop.f32.mrf.mxu0
        %v888 = vadd.f32 0.0, %v887
        %v889 = vpop.f32.mrf.mxu0
        %v890 = vadd.f32 0.0, %v889
        %891 = vmatprep.mubr.f32.mxu0 0.0
        %892 = vmatmul.mubr.f32.gmra.mxu0 %v531
        %v893 = vpop.f32.mrf.mxu0
        %v894 = vadd.f32 0.0, %v893
        %v895 = vpop.f32.mrf.mxu0
        %v896 = vadd.f32 0.0, %v895
        %897 = vmatprep.mubr.f32.mxu0 0.0
        %898 = vmatmul.mubr.f32.gmra.mxu0 %v534
        %v899 = vpop.f32.mrf.mxu0
        %v900 = vadd.f32 0.0, %v899
        %v901 = vpop.f32.mrf.mxu0
        %v902 = vadd.f32 0.0, %v901
        %903 = vmatprep.mubr.f32.mxu0 0.0
        %904 = vmatmul.mubr.f32.gmra.mxu0 %v537
        %v905 = vpop.f32.mrf.mxu0
        %v906 = vadd.f32 0.0, %v905
        %v907 = vpop.f32.mrf.mxu0
        %v908 = vadd.f32 0.0, %v907
        %909 = vmatprep.mubr.f32.mxu0 0.0
        %910 = vmatmul.mubr.f32.gmra.mxu0 %v540
        %v911 = vpop.f32.mrf.mxu0
        %v912 = vadd.f32 0.0, %v911
        %v913 = vpop.f32.mrf.mxu0
        %v914 = vadd.f32 0.0, %v913
        %915 = vmatprep.mubr.f32.mxu0 0.0
        %916 = vmatmul.mubr.f32.gmra.mxu0 %v543
        %v917 = vpop.f32.mrf.mxu0
        %v918 = vadd.f32 0.0, %v917
        %v919 = vpop.f32.mrf.mxu0
        %v920 = vadd.f32 0.0, %v919
        %921 = vmatprep.mubr.f32.mxu0 0.0
        %922 = vmatmul.mubr.f32.gmra.mxu0 %v546
        %v923 = vpop.f32.mrf.mxu0
        %v924 = vadd.f32 0.0, %v923
        %v925 = vpop.f32.mrf.mxu0
        %v926 = vadd.f32 0.0, %v925
        %927 = vmatprep.mubr.f32.mxu0 0.0
        %928 = vmatmul.mubr.f32.gmra.mxu0 %v549
        %v929 = vpop.f32.mrf.mxu0
        %v930 = vadd.f32 0.0, %v929
        %v931 = vpop.f32.mrf.mxu0
        %v932 = vadd.f32 0.0, %v931
        %933 = vmatprep.mubr.f32.mxu0 0.0
        %934 = vmatmul.mubr.f32.gmra.mxu0 %v552
        %v935 = vpop.f32.mrf.mxu0
        %v936 = vadd.f32 0.0, %v935
        %v937 = vpop.f32.mrf.mxu0
        %v938 = vadd.f32 0.0, %v937
        %939 = vmatprep.mubr.f32.mxu0 0.0
        %940 = vmatmul.mubr.f32.gmra.mxu0 %v555
        %v941 = vpop.f32.mrf.mxu0
        %v942 = vadd.f32 0.0, %v941
        %v943 = vpop.f32.mrf.mxu0
        %v944 = vadd.f32 0.0, %v943
        %945 = vmatprep.mubr.f32.mxu0 0.0
        %946 = vmatmul.mubr.f32.gmra.mxu0 %v558
        %v947 = vpop.f32.mrf.mxu0
        %v948 = vadd.f32 0.0, %v947
        %v949 = vpop.f32.mrf.mxu0
        %v950 = vadd.f32 0.0, %v949
        %951 = vmatprep.mubr.f32.mxu0 0.0
        %952 = vmatmul.mubr.f32.gmra.mxu0 %v561
        %v953 = vpop.f32.mrf.mxu0
        %v954 = vadd.f32 0.0, %v953
        %v955 = vpop.f32.mrf.mxu0
        %v956 = vadd.f32 0.0, %v955
        %957 = vmatprep.mubr.f32.mxu0 0.0
        %958 = vmatmul.mubr.f32.gmra.mxu0 %v564
        %v959 = vpop.f32.mrf.mxu0
        %v960 = vadd.f32 0.0, %v959
        %v961 = vpop.f32.mrf.mxu0
        %v962 = vadd.f32 0.0, %v961
        %963 = vmatprep.mubr.f32.mxu0 0.0
        %964 = vmatmul.mubr.f32.gmra.mxu0 %v567
        %v965 = vpop.f32.mrf.mxu0
        %v966 = vadd.f32 0.0, %v965
        %v967 = vpop.f32.mrf.mxu0
        %v968 = vadd.f32 0.0, %v967
        %969 = vmatprep.mubr.f32.mxu0 0.0
        %970 = vmatmul.mubr.f32.gmra.mxu0 %v570
        %v971 = vpop.f32.mrf.mxu0
        %v972 = vadd.f32 0.0, %v971
        %v973 = vpop.f32.mrf.mxu0
        %v974 = vadd.f32 0.0, %v973
        %975 = vmatprep.mubr.f32.mxu0 0.0
        %976 = vmatmul.mubr.f32.gmra.mxu0 %v573
        %v977 = vpop.f32.mrf.mxu0
        %v978 = vadd.f32 0.0, %v977
        %v979 = vpop.f32.mrf.mxu0
        %v980 = vadd.f32 0.0, %v979
        %981 = vmatprep.mubr.f32.mxu0 0.0
        %982 = vmatmul.mubr.f32.gmra.mxu0 %v576
        %v983 = vpop.f32.mrf.mxu0
        %v984 = vadd.f32 0.0, %v983
        %v985 = vpop.f32.mrf.mxu0
        %v986 = vadd.f32 0.0, %v985
        %987 = vmatprep.mubr.f32.mxu0 0.0
        %988 = vmatmul.mubr.f32.gmra.mxu0 %v579
        %v989 = vpop.f32.mrf.mxu0
        %v990 = vadd.f32 0.0, %v989
        %v991 = vpop.f32.mrf.mxu0
        %v992 = vadd.f32 0.0, %v991
        %993 = vmatprep.mubr.f32.mxu0 0.0
        %994 = vmatmul.mubr.f32.gmra.mxu0 %v582
        %v995 = vpop.f32.mrf.mxu0
        %v996 = vadd.f32 0.0, %v995
        %v997 = vpop.f32.mrf.mxu0
        %v998 = vadd.f32 0.0, %v997
        %999 = vmatprep.mubr.f32.mxu0 0.0
        %1000 = vmatmul.mubr.f32.gmra.mxu0 %v585
        %v1001 = vpop.f32.mrf.mxu0
        %v1002 = vadd.f32 0.0, %v1001
        %v1003 = vpop.f32.mrf.mxu0
        %v1004 = vadd.f32 0.0, %v1003
        %1005 = vmatprep.mubr.f32.mxu0 0.0
        %1006 = vmatmul.mubr.f32.gmra.mxu0 %v588
        %v1007 = vpop.f32.mrf.mxu0
        %v1008 = vadd.f32 0.0, %v1007
        %v1009 = vpop.f32.mrf.mxu0
        %v1010 = vadd.f32 0.0, %v1009
        %1011 = vmatprep.mubr.f32.mxu0 0.0
        %1012 = vmatmul.mubr.f32.gmra.mxu0 %v591
        %v1013 = vpop.f32.mrf.mxu0
        %v1014 = vadd.f32 0.0, %v1013
        %v1015 = vpop.f32.mrf.mxu0
        %v1016 = vadd.f32 0.0, %v1015
        %1017 = vmatprep.mubr.f32.mxu0 0.0
        %1018 = vmatmul.mubr.f32.gmra.mxu0 %v594
        %v1019 = vpop.f32.mrf.mxu0
        %v1020 = vadd.f32 0.0, %v1019
        %v1021 = vpop.f32.mrf.mxu0
        %v1022 = vadd.f32 0.0, %v1021
        %1023 = vmatprep.mubr.f32.mxu0 0.0
        %1024 = vmatmul.mubr.f32.gmra.mxu0 %v597
        %v1025 = vpop.f32.mrf.mxu0
        %v1026 = vadd.f32 0.0, %v1025
        %v1027 = vpop.f32.mrf.mxu0
        %v1028 = vadd.f32 0.0, %v1027
        %1029 = vdwg.mxu0
        %v1031 = vsel %vm526, %v445, 0
        %v1034 = vsel %vm526, %v446, 0
        %v1037 = vsel %vm526, %v447, 0
        %v1040 = vsel %vm526, %v448, 0
        %v1043 = vsel %vm526, %v449, 0
        %v1046 = vsel %vm526, %v450, 0
        %v1049 = vsel %vm526, %v451, 0
        %v1052 = vsel %vm526, %v452, 0
        %v1055 = vsel %vm526, %v453, 0
        %v1058 = vsel %vm526, %v454, 0
        %v1061 = vsel %vm526, %v455, 0
        %v1064 = vsel %vm526, %v456, 0
        %v1067 = vsel %vm526, %v457, 0
        %v1070 = vsel %vm526, %v458, 0
        %v1073 = vsel %vm526, %v459, 0
        %v1076 = vsel %vm526, %v460, 0
        %v1079 = vsel %vm526, %v461, 0
        %v1082 = vsel %vm526, %v462, 0
        %v1085 = vsel %vm526, %v463, 0
        %v1088 = vsel %vm526, %v464, 0
        %v1091 = vsel %vm526, %v465, 0
        %v1094 = vsel %vm526, %v466, 0
        %v1097 = vsel %vm526, %v467, 0
        %v1100 = vsel %vm526, %v468, 0
        %v1103 = vsel %vm599, %v481, 0
        %v1106 = vsel %vm599, %v482, 0
        %v1109 = vsel %vm599, %v483, 0
        %v1112 = vsel %vm599, %v484, 0
        %1114 = vmatprep.subr.mxu0 0.0
        %1115 = vmatpush1.msra.mxu0 0.0
        %1116 = vmatprep.subr.mxu0 0.0
        %1117 = vmatpush1.msra.mxu0 0.0
        %1118 = vmatprep.subr.mxu0 0.0
        %1119 = vmatpush1.msra.mxu0 0.0
        %1120 = vmatprep.subr.mxu0 0.0
        %1121 = vmatpush1.msra.mxu0 0.0
        %1122 = vmatprep.subr.mxu0 0.0
        %1123 = vmatpush1.msra.mxu0 0.0
        %1124 = vmatprep.subr.mxu0 0.0
        %1125 = vmatpush1.msra.mxu0 0.0
        %1126 = vmatprep.subr.mxu0 0.0
        %1127 = vmatpush1.msra.mxu0 0.0
        %1128 = vmatprep.subr.mxu0 0.0
        %1129 = vmatpush1.msra.mxu0 0.0
        %1130 = vmatprep.subr.mxu0 0.0
        %1131 = vmatpush1.msra.mxu0 0.0
        %1132 = vmatprep.subr.mxu0 0.0
        %1133 = vmatpush1.msra.mxu0 0.0
        %1134 = vmatprep.subr.mxu0 0.0
        %1135 = vmatpush1.msra.mxu0 0.0
        %1136 = vmatprep.subr.mxu0 0.0
        %1137 = vmatpush1.msra.mxu0 0.0
        %1138 = vmatprep.subr.mxu0 %v1106
        %1139 = vmatpush1.msra.mxu0 %v1103
        %1140 = vmatprep.subr.mxu0 %v478
        %1141 = vmatpush1.msra.mxu0 %v477
        %1142 = vmatprep.subr.mxu0 %v474
        %1143 = vmatpush1.msra.mxu0 %v473
        %1144 = vmatprep.subr.mxu0 %v470
        %1145 = vmatpush1.msra.mxu0 %v469
        %1146 = vmatprep.subr.mxu0 0.0
        %1147 = vmatpush2.msra.mxu0 0.0
        %1148 = vmatprep.subr.mxu0 0.0
        %1149 = vmatpush2.msra.mxu0 0.0
        %1150 = vmatprep.subr.mxu0 0.0
        %1151 = vmatpush2.msra.mxu0 0.0
        %1152 = vmatprep.subr.mxu0 0.0
        %1153 = vmatpush2.msra.mxu0 0.0
        %1154 = vmatprep.subr.mxu0 0.0
        %1155 = vmatpush2.msra.mxu0 0.0
        %1156 = vmatprep.subr.mxu0 0.0
        %1157 = vmatpush2.msra.mxu0 0.0
        %1158 = vmatprep.subr.mxu0 0.0
        %1159 = vmatpush2.msra.mxu0 0.0
        %1160 = vmatprep.subr.mxu0 0.0
        %1161 = vmatpush2.msra.mxu0 0.0
        %1162 = vmatprep.subr.mxu0 0.0
        %1163 = vmatpush2.msra.mxu0 0.0
        %1164 = vmatprep.subr.mxu0 0.0
        %1165 = vmatpush2.msra.mxu0 0.0
        %1166 = vmatprep.subr.mxu0 0.0
        %1167 = vmatpush2.msra.mxu0 0.0
        %1168 = vmatprep.subr.mxu0 0.0
        %1169 = vmatpush2.msra.mxu0 0.0
        %1170 = vmatprep.subr.mxu0 0.0
        %1171 = vmatpush2.msra.mxu0 0.0
        %1172 = vmatprep.subr.mxu0 0.0
        %1173 = vmatpush2.msra.mxu0 0.0
        %1174 = vmatprep.subr.mxu0 0.0
        %1175 = vmatpush2.msra.mxu0 0.0
        %1176 = vmatprep.subr.mxu0 0.0
        %1177 = vmatpush2.msra.mxu0 0.0
        %1178 = vmatprep.mubr.f32.mxu0 0.0
        %1179 = vmatmul.mubr.f32.gmra.mxu0 %v1031
        %v1180 = vpop.f32.mrf.mxu0
        %v1181 = vadd.f32 %v679, %v1180
        %v1182 = vpop.f32.mrf.mxu0
        %v1183 = vadd.f32 %v681, %v1182
        %1184 = vmatprep.mubr.f32.mxu0 0.0
        %1185 = vmatmul.mubr.f32.gmra.mxu0 %v1034
        %v1186 = vpop.f32.mrf.mxu0
        %v1187 = vadd.f32 %v685, %v1186
        %v1188 = vpop.f32.mrf.mxu0
        %v1189 = vadd.f32 %v687, %v1188
        %1190 = vmatprep.mubr.f32.mxu0 0.0
        %1191 = vmatmul.mubr.f32.gmra.mxu0 %v1037
        %v1192 = vpop.f32.mrf.mxu0
        %v1193 = vadd.f32 %v691, %v1192
        %v1194 = vpop.f32.mrf.mxu0
        %v1195 = vadd.f32 %v693, %v1194
        %1196 = vmatprep.mubr.f32.mxu0 0.0
        %1197 = vmatmul.mubr.f32.gmra.mxu0 %v1040
        %v1198 = vpop.f32.mrf.mxu0
        %v1199 = vadd.f32 %v697, %v1198
        %v1200 = vpop.f32.mrf.mxu0
        %v1201 = vadd.f32 %v699, %v1200
        %1202 = vmatprep.mubr.f32.mxu0 0.0
        %1203 = vmatmul.mubr.f32.gmra.mxu0 %v1043
        %v1204 = vpop.f32.mrf.mxu0
        %v1205 = vadd.f32 %v703, %v1204
        %v1206 = vpop.f32.mrf.mxu0
        %v1207 = vadd.f32 %v705, %v1206
        %1208 = vmatprep.mubr.f32.mxu0 0.0
        %1209 = vmatmul.mubr.f32.gmra.mxu0 %v1046
        %v1210 = vpop.f32.mrf.mxu0
        %v1211 = vadd.f32 %v709, %v1210
        %v1212 = vpop.f32.mrf.mxu0
        %v1213 = vadd.f32 %v711, %v1212
        %1214 = vmatprep.mubr.f32.mxu0 0.0
        %1215 = vmatmul.mubr.f32.gmra.mxu0 %v1049
        %v1216 = vpop.f32.mrf.mxu0
        %v1217 = vadd.f32 %v715, %v1216
        %v1218 = vpop.f32.mrf.mxu0
        %v1219 = vadd.f32 %v717, %v1218
        %1220 = vmatprep.mubr.f32.mxu0 0.0
        %1221 = vmatmul.mubr.f32.gmra.mxu0 %v1052
        %v1222 = vpop.f32.mrf.mxu0
        %v1223 = vadd.f32 %v721, %v1222
        %v1224 = vpop.f32.mrf.mxu0
        %v1225 = vadd.f32 %v723, %v1224
        %1226 = vmatprep.mubr.f32.mxu0 0.0
        %1227 = vmatmul.mubr.f32.gmra.mxu0 %v1055
        %v1228 = vpop.f32.mrf.mxu0
        %v1229 = vadd.f32 %v727, %v1228
        %v1230 = vpop.f32.mrf.mxu0
        %v1231 = vadd.f32 %v729, %v1230
        %1232 = vmatprep.mubr.f32.mxu0 0.0
        %1233 = vmatmul.mubr.f32.gmra.mxu0 %v1058
        %v1234 = vpop.f32.mrf.mxu0
        %v1235 = vadd.f32 %v733, %v1234
        %v1236 = vpop.f32.mrf.mxu0
        %v1237 = vadd.f32 %v735, %v1236
        %1238 = vmatprep.mubr.f32.mxu0 0.0
        %1239 = vmatmul.mubr.f32.gmra.mxu0 %v1061
        %v1240 = vpop.f32.mrf.mxu0
        %v1241 = vadd.f32 %v739, %v1240
        %v1242 = vpop.f32.mrf.mxu0
        %v1243 = vadd.f32 %v741, %v1242
        %1244 = vmatprep.mubr.f32.mxu0 0.0
        %1245 = vmatmul.mubr.f32.gmra.mxu0 %v1064
        %v1246 = vpop.f32.mrf.mxu0
        %v1247 = vadd.f32 %v745, %v1246
        %v1248 = vpop.f32.mrf.mxu0
        %v1249 = vadd.f32 %v747, %v1248
        %1250 = vmatprep.mubr.f32.mxu0 0.0
        %1251 = vmatmul.mubr.f32.gmra.mxu0 %v1067
        %v1252 = vpop.f32.mrf.mxu0
        %v1253 = vadd.f32 %v751, %v1252
        %v1254 = vpop.f32.mrf.mxu0
        %v1255 = vadd.f32 %v753, %v1254
        %1256 = vmatprep.mubr.f32.mxu0 0.0
        %1257 = vmatmul.mubr.f32.gmra.mxu0 %v1070
        %v1258 = vpop.f32.mrf.mxu0
        %v1259 = vadd.f32 %v757, %v1258
        %v1260 = vpop.f32.mrf.mxu0
        %v1261 = vadd.f32 %v759, %v1260
        %1262 = vmatprep.mubr.f32.mxu0 0.0
        %1263 = vmatmul.mubr.f32.gmra.mxu0 %v1073
        %v1264 = vpop.f32.mrf.mxu0
        %v1265 = vadd.f32 %v763, %v1264
        %v1266 = vpop.f32.mrf.mxu0
        %v1267 = vadd.f32 %v765, %v1266
        %1268 = vmatprep.mubr.f32.mxu0 0.0
        %1269 = vmatmul.mubr.f32.gmra.mxu0 %v1076
        %v1270 = vpop.f32.mrf.mxu0
        %v1271 = vadd.f32 %v769, %v1270
        %v1272 = vpop.f32.mrf.mxu0
        %v1273 = vadd.f32 %v771, %v1272
        %1274 = vmatprep.mubr.f32.mxu0 0.0
        %1275 = vmatmul.mubr.f32.gmra.mxu0 %v1079
        %v1276 = vpop.f32.mrf.mxu0
        %v1277 = vadd.f32 %v775, %v1276
        %v1278 = vpop.f32.mrf.mxu0
        %v1279 = vadd.f32 %v777, %v1278
        %1280 = vmatprep.mubr.f32.mxu0 0.0
        %1281 = vmatmul.mubr.f32.gmra.mxu0 %v1082
        %v1282 = vpop.f32.mrf.mxu0
        %v1283 = vadd.f32 %v781, %v1282
        %v1284 = vpop.f32.mrf.mxu0
        %v1285 = vadd.f32 %v783, %v1284
        %1286 = vmatprep.mubr.f32.mxu0 0.0
        %1287 = vmatmul.mubr.f32.gmra.mxu0 %v1085
        %v1288 = vpop.f32.mrf.mxu0
        %v1289 = vadd.f32 %v787, %v1288
        %v1290 = vpop.f32.mrf.mxu0
        %v1291 = vadd.f32 %v789, %v1290
        %1292 = vmatprep.mubr.f32.mxu0 0.0
        %1293 = vmatmul.mubr.f32.gmra.mxu0 %v1088
        %v1294 = vpop.f32.mrf.mxu0
        %v1295 = vadd.f32 %v793, %v1294
        %v1296 = vpop.f32.mrf.mxu0
        %v1297 = vadd.f32 %v795, %v1296
        %1298 = vmatprep.mubr.f32.mxu0 0.0
        %1299 = vmatmul.mubr.f32.gmra.mxu0 %v1091
        %v1300 = vpop.f32.mrf.mxu0
        %v1301 = vadd.f32 %v799, %v1300
        %v1302 = vpop.f32.mrf.mxu0
        %v1303 = vadd.f32 %v801, %v1302
        %1304 = vmatprep.mubr.f32.mxu0 0.0
        %1305 = vmatmul.mubr.f32.gmra.mxu0 %v1094
        %v1306 = vpop.f32.mrf.mxu0
        %v1307 = vadd.f32 %v805, %v1306
        %v1308 = vpop.f32.mrf.mxu0
        %v1309 = vadd.f32 %v807, %v1308
        %1310 = vmatprep.mubr.f32.mxu0 0.0
        %1311 = vmatmul.mubr.f32.gmra.mxu0 %v1097
        %v1312 = vpop.f32.mrf.mxu0
        %v1313 = vadd.f32 %v811, %v1312
        %v1314 = vpop.f32.mrf.mxu0
        %v1315 = vadd.f32 %v813, %v1314
        %1316 = vmatprep.mubr.f32.mxu0 0.0
        %1317 = vmatmul.mubr.f32.gmra.mxu0 %v1100
        %v1318 = vpop.f32.mrf.mxu0
        %v1319 = vadd.f32 %v817, %v1318
        %v1320 = vpop.f32.mrf.mxu0
        %v1321 = vadd.f32 %v819, %v1320
        %1322 = vdwg.mxu0
        %1323 = vmatprep.subr.mxu0 0.0
        %1324 = vmatpush1.msra.mxu0 0.0
        %1325 = vmatprep.subr.mxu0 0.0
        %1326 = vmatpush1.msra.mxu0 0.0
        %1327 = vmatprep.subr.mxu0 0.0
        %1328 = vmatpush1.msra.mxu0 0.0
        %1329 = vmatprep.subr.mxu0 0.0
        %1330 = vmatpush1.msra.mxu0 0.0
        %1331 = vmatprep.subr.mxu0 0.0
        %1332 = vmatpush1.msra.mxu0 0.0
        %1333 = vmatprep.subr.mxu0 0.0
        %1334 = vmatpush1.msra.mxu0 0.0
        %1335 = vmatprep.subr.mxu0 0.0
        %1336 = vmatpush1.msra.mxu0 0.0
        %1337 = vmatprep.subr.mxu0 0.0
        %1338 = vmatpush1.msra.mxu0 0.0
        %1339 = vmatprep.subr.mxu0 0.0
        %1340 = vmatpush1.msra.mxu0 0.0
        %1341 = vmatprep.subr.mxu0 0.0
        %1342 = vmatpush1.msra.mxu0 0.0
        %1343 = vmatprep.subr.mxu0 0.0
        %1344 = vmatpush1.msra.mxu0 0.0
        %1345 = vmatprep.subr.mxu0 0.0
        %1346 = vmatpush1.msra.mxu0 0.0
        %1347 = vmatprep.subr.mxu0 %v1112
        %1348 = vmatpush1.msra.mxu0 %v1109
        %1349 = vmatprep.subr.mxu0 %v480
        %1350 = vmatpush1.msra.mxu0 %v479
        %1351 = vmatprep.subr.mxu0 %v476
        %1352 = vmatpush1.msra.mxu0 %v475
        %1353 = vmatprep.subr.mxu0 %v472
        %1354 = vmatpush1.msra.mxu0 %v471
        %1355 = vmatprep.subr.mxu0 0.0
        %1356 = vmatpush2.msra.mxu0 0.0
        %1357 = vmatprep.subr.mxu0 0.0
        %1358 = vmatpush2.msra.mxu0 0.0
        %1359 = vmatprep.subr.mxu0 0.0
        %1360 = vmatpush2.msra.mxu0 0.0
        %1361 = vmatprep.subr.mxu0 0.0
        %1362 = vmatpush2.msra.mxu0 0.0
        %1363 = vmatprep.subr.mxu0 0.0
        %1364 = vmatpush2.msra.mxu0 0.0
        %1365 = vmatprep.subr.mxu0 0.0
        %1366 = vmatpush2.msra.mxu0 0.0
        %1367 = vmatprep.subr.mxu0 0.0
        %1368 = vmatpush2.msra.mxu0 0.0
        %1369 = vmatprep.subr.mxu0 0.0
        %1370 = vmatpush2.msra.mxu0 0.0
        %1371 = vmatprep.subr.mxu0 0.0
        %1372 = vmatpush2.msra.mxu0 0.0
        %1373 = vmatprep.subr.mxu0 0.0
        %1374 = vmatpush2.msra.mxu0 0.0
        %1375 = vmatprep.subr.mxu0 0.0
        %1376 = vmatpush2.msra.mxu0 0.0
        %1377 = vmatprep.subr.mxu0 0.0
        %1378 = vmatpush2.msra.mxu0 0.0
        %1379 = vmatprep.subr.mxu0 0.0
        %1380 = vmatpush2.msra.mxu0 0.0
        %1381 = vmatprep.subr.mxu0 0.0
        %1382 = vmatpush2.msra.mxu0 0.0
        %1383 = vmatprep.subr.mxu0 0.0
        %1384 = vmatpush2.msra.mxu0 0.0
        %1385 = vmatprep.subr.mxu0 0.0
        %1386 = vmatpush2.msra.mxu0 0.0
        %1387 = vmatprep.mubr.f32.mxu0 0.0
        %1388 = vmatmul.mubr.f32.gmra.mxu0 %v1031
        %v1389 = vpop.f32.mrf.mxu0
        %v1390 = vadd.f32 %v888, %v1389
        %v1391 = vpop.f32.mrf.mxu0
        %v1392 = vadd.f32 %v890, %v1391
        %1393 = vmatprep.mubr.f32.mxu0 0.0
        %1394 = vmatmul.mubr.f32.gmra.mxu0 %v1034
        %v1395 = vpop.f32.mrf.mxu0
        %v1396 = vadd.f32 %v894, %v1395
        %v1397 = vpop.f32.mrf.mxu0
        %v1398 = vadd.f32 %v896, %v1397
        %1399 = vmatprep.mubr.f32.mxu0 0.0
        %1400 = vmatmul.mubr.f32.gmra.mxu0 %v1037
        %v1401 = vpop.f32.mrf.mxu0
        %v1402 = vadd.f32 %v900, %v1401
        %v1403 = vpop.f32.mrf.mxu0
        %v1404 = vadd.f32 %v902, %v1403
        %1405 = vmatprep.mubr.f32.mxu0 0.0
        %1406 = vmatmul.mubr.f32.gmra.mxu0 %v1040
        %v1407 = vpop.f32.mrf.mxu0
        %v1408 = vadd.f32 %v906, %v1407
        %v1409 = vpop.f32.mrf.mxu0
        %v1410 = vadd.f32 %v908, %v1409
        %1411 = vmatprep.mubr.f32.mxu0 0.0
        %1412 = vmatmul.mubr.f32.gmra.mxu0 %v1043
        %v1413 = vpop.f32.mrf.mxu0
        %v1414 = vadd.f32 %v912, %v1413
        %v1415 = vpop.f32.mrf.mxu0
        %v1416 = vadd.f32 %v914, %v1415
        %1417 = vmatprep.mubr.f32.mxu0 0.0
        %1418 = vmatmul.mubr.f32.gmra.mxu0 %v1046
        %v1419 = vpop.f32.mrf.mxu0
        %v1420 = vadd.f32 %v918, %v1419
        %v1421 = vpop.f32.mrf.mxu0
        %v1422 = vadd.f32 %v920, %v1421
        %1423 = vmatprep.mubr.f32.mxu0 0.0
        %1424 = vmatmul.mubr.f32.gmra.mxu0 %v1049
        %v1425 = vpop.f32.mrf.mxu0
        %v1426 = vadd.f32 %v924, %v1425
        %v1427 = vpop.f32.mrf.mxu0
        %v1428 = vadd.f32 %v926, %v1427
        %1429 = vmatprep.mubr.f32.mxu0 0.0
        %1430 = vmatmul.mubr.f32.gmra.mxu0 %v1052
        %v1431 = vpop.f32.mrf.mxu0
        %v1432 = vadd.f32 %v930, %v1431
        %v1433 = vpop.f32.mrf.mxu0
        %v1434 = vadd.f32 %v932, %v1433
        %1435 = vmatprep.mubr.f32.mxu0 0.0
        %1436 = vmatmul.mubr.f32.gmra.mxu0 %v1055
        %v1437 = vpop.f32.mrf.mxu0
        %v1438 = vadd.f32 %v936, %v1437
        %v1439 = vpop.f32.mrf.mxu0
        %v1440 = vadd.f32 %v938, %v1439
        %1441 = vmatprep.mubr.f32.mxu0 0.0
        %1442 = vmatmul.mubr.f32.gmra.mxu0 %v1058
        %v1443 = vpop.f32.mrf.mxu0
        %v1444 = vadd.f32 %v942, %v1443
        %v1445 = vpop.f32.mrf.mxu0
        %v1446 = vadd.f32 %v944, %v1445
        %1447 = vmatprep.mubr.f32.mxu0 0.0
        %1448 = vmatmul.mubr.f32.gmra.mxu0 %v1061
        %v1449 = vpop.f32.mrf.mxu0
        %v1450 = vadd.f32 %v948, %v1449
        %v1451 = vpop.f32.mrf.mxu0
        %v1452 = vadd.f32 %v950, %v1451
        %1453 = vmatprep.mubr.f32.mxu0 0.0
        %1454 = vmatmul.mubr.f32.gmra.mxu0 %v1064
        %v1455 = vpop.f32.mrf.mxu0
        %v1456 = vadd.f32 %v954, %v1455
        %v1457 = vpop.f32.mrf.mxu0
        %v1458 = vadd.f32 %v956, %v1457
        %1459 = vmatprep.mubr.f32.mxu0 0.0
        %1460 = vmatmul.mubr.f32.gmra.mxu0 %v1067
        %v1461 = vpop.f32.mrf.mxu0
        %v1462 = vadd.f32 %v960, %v1461
        %v1463 = vpop.f32.mrf.mxu0
        %v1464 = vadd.f32 %v962, %v1463
        %1465 = vmatprep.mubr.f32.mxu0 0.0
        %1466 = vmatmul.mubr.f32.gmra.mxu0 %v1070
        %v1467 = vpop.f32.mrf.mxu0
        %v1468 = vadd.f32 %v966, %v1467
        %v1469 = vpop.f32.mrf.mxu0
        %v1470 = vadd.f32 %v968, %v1469
        %1471 = vmatprep.mubr.f32.mxu0 0.0
        %1472 = vmatmul.mubr.f32.gmra.mxu0 %v1073
        %v1473 = vpop.f32.mrf.mxu0
        %v1474 = vadd.f32 %v972, %v1473
        %v1475 = vpop.f32.mrf.mxu0
        %v1476 = vadd.f32 %v974, %v1475
        %1477 = vmatprep.mubr.f32.mxu0 0.0
        %1478 = vmatmul.mubr.f32.gmra.mxu0 %v1076
        %v1479 = vpop.f32.mrf.mxu0
        %v1480 = vadd.f32 %v978, %v1479
        %v1481 = vpop.f32.mrf.mxu0
        %v1482 = vadd.f32 %v980, %v1481
        %1483 = vmatprep.mubr.f32.mxu0 0.0
        %1484 = vmatmul.mubr.f32.gmra.mxu0 %v1079
        %v1485 = vpop.f32.mrf.mxu0
        %v1486 = vadd.f32 %v984, %v1485
        %v1487 = vpop.f32.mrf.mxu0
        %v1488 = vadd.f32 %v986, %v1487
        %1489 = vmatprep.mubr.f32.mxu0 0.0
        %1490 = vmatmul.mubr.f32.gmra.mxu0 %v1082
        %v1491 = vpop.f32.mrf.mxu0
        %v1492 = vadd.f32 %v990, %v1491
        %v1493 = vpop.f32.mrf.mxu0
        %v1494 = vadd.f32 %v992, %v1493
        %1495 = vmatprep.mubr.f32.mxu0 0.0
        %1496 = vmatmul.mubr.f32.gmra.mxu0 %v1085
        %v1497 = vpop.f32.mrf.mxu0
        %v1498 = vadd.f32 %v996, %v1497
        %v1499 = vpop.f32.mrf.mxu0
        %v1500 = vadd.f32 %v998, %v1499
        %1501 = vmatprep.mubr.f32.mxu0 0.0
        %1502 = vmatmul.mubr.f32.gmra.mxu0 %v1088
        %v1503 = vpop.f32.mrf.mxu0
        %v1504 = vadd.f32 %v1002, %v1503
        %v1505 = vpop.f32.mrf.mxu0
        %v1506 = vadd.f32 %v1004, %v1505
        %1507 = vmatprep.mubr.f32.mxu0 0.0
        %1508 = vmatmul.mubr.f32.gmra.mxu0 %v1091
        %v1509 = vpop.f32.mrf.mxu0
        %v1510 = vadd.f32 %v1008, %v1509
        %v1511 = vpop.f32.mrf.mxu0
        %v1512 = vadd.f32 %v1010, %v1511
        %1513 = vmatprep.mubr.f32.mxu0 0.0
        %1514 = vmatmul.mubr.f32.gmra.mxu0 %v1094
        %v1515 = vpop.f32.mrf.mxu0
        %v1516 = vadd.f32 %v1014, %v1515
        %v1517 = vpop.f32.mrf.mxu0
        %v1518 = vadd.f32 %v1016, %v1517
        %1519 = vmatprep.mubr.f32.mxu0 0.0
        %1520 = vmatmul.mubr.f32.gmra.mxu0 %v1097
        %v1521 = vpop.f32.mrf.mxu0
        %v1522 = vadd.f32 %v1020, %v1521
        %v1523 = vpop.f32.mrf.mxu0
        %v1524 = vadd.f32 %v1022, %v1523
        %1525 = vmatprep.mubr.f32.mxu0 0.0
        %1526 = vmatmul.mubr.f32.gmra.mxu0 %v1100
        %v1527 = vpop.f32.mrf.mxu0
        %v1528 = vadd.f32 %v1026, %v1527
        %v1529 = vpop.f32.mrf.mxu0
        %v1530 = vadd.f32 %v1028, %v1529
        %1531 = vdwg.mxu0
        %v1532 = vld [vmem:[%s443 + $0x2] sm:$0xff]
        %v1533 = vld [vmem:[%s443 + $0xa] sm:$0xff]
        %v1534 = vld [vmem:[%s443 + $0x12] sm:$0xff]
        %v1535 = vld [vmem:[%s443 + $0x22] sm:$0xff]
        %v1536 = vld [vmem:[%s443 + $0x2a] sm:$0xff]
        %v1537 = vld [vmem:[%s443 + $0x32] sm:$0xff]
        %v1538 = vld [vmem:[%s443 + $0x42] sm:$0xff]
        %v1539 = vld [vmem:[%s443 + $0x4a] sm:$0xff]
        %v1540 = vld [vmem:[%s443 + $0x52] sm:$0xff]
        %v1541 = vld [vmem:[%s443 + $0x62] sm:$0xff]
        %v1542 = vld [vmem:[%s443 + $0x6a] sm:$0xff]
        %v1543 = vld [vmem:[%s443 + $0x72] sm:$0xff]
        %v1544 = vld [vmem:[%s443 + $0x82] sm:$0xff]
        %v1545 = vld [vmem:[%s443 + $0x8a] sm:$0xff]
        %v1546 = vld [vmem:[%s443 + $0x92] sm:$0xff]
        %v1547 = vld [vmem:[%s443 + $0xa2] sm:$0xff]
        %v1548 = vld [vmem:[%s443 + $0xaa] sm:$0xff]
        %v1549 = vld [vmem:[%s443 + $0xb2] sm:$0xff]
        %v1550 = vld [vmem:[%s443 + $0xc2] sm:$0xff]
        %v1551 = vld [vmem:[%s443 + $0xca] sm:$0xff]
        %v1552 = vld [vmem:[%s443 + $0xd2] sm:$0xff]
        %v1553 = vld [vmem:[%s443 + $0xe2] sm:$0xff]
        %v1554 = vld [vmem:[%s443 + $0xea] sm:$0xff]
        %v1555 = vld [vmem:[%s443 + $0xf2] sm:$0xff]
        %s1556 = scalar_lea.vmem [#allocation5], 256
        %v1557 = vld [vmem:[%s1556] sm:$0xff]
        %v1558 = vld [vmem:[%s1556 + $0x8] sm:$0xff]
        %v1559 = vld [vmem:[%s1556 + $0x10] sm:$0xff]
        %v1560 = vld [vmem:[%s1556 + $0x18] sm:$0xff]
        %v1561 = vld [vmem:[%s1556 + $0x20] sm:$0xff]
        %v1562 = vld [vmem:[%s1556 + $0x28] sm:$0xff]
        %v1563 = vld [vmem:[%s1556 + $0x30] sm:$0xff]
        %v1564 = vld [vmem:[%s1556 + $0x38] sm:$0xff]
        %v1565 = vld [vmem:[%s1556 + $0x40] sm:$0xff]
        %v1566 = vld [vmem:[%s1556 + $0x48] sm:$0xff]
        %v1567 = vld [vmem:[%s1556 + $0x50] sm:$0xff]
        %v1568 = vld [vmem:[%s1556 + $0x58] sm:$0xff]
        %v1569 = vld [vmem:[%s1556 + $0x60] sm:$0xf]
        %v1570 = vld [vmem:[%s1556 + $0x68] sm:$0xf]
        %v1571 = vld [vmem:[%s1556 + $0x70] sm:$0xf]
        %v1572 = vld [vmem:[%s1556 + $0x78] sm:$0xf]
        %v1574 = vsel %vm526, %v1532, 0
        %v1577 = vsel %vm526, %v1533, 0
        %v1580 = vsel %vm526, %v1534, 0
        %v1583 = vsel %vm526, %v1535, 0
        %v1586 = vsel %vm526, %v1536, 0
        %v1589 = vsel %vm526, %v1537, 0
        %v1592 = vsel %vm526, %v1538, 0
        %v1595 = vsel %vm526, %v1539, 0
        %v1598 = vsel %vm526, %v1540, 0
        %v1601 = vsel %vm526, %v1541, 0
        %v1604 = vsel %vm526, %v1542, 0
        %v1607 = vsel %vm526, %v1543, 0
        %v1610 = vsel %vm526, %v1544, 0
        %v1613 = vsel %vm526, %v1545, 0
        %v1616 = vsel %vm526, %v1546, 0
        %v1619 = vsel %vm526, %v1547, 0
        %v1622 = vsel %vm526, %v1548, 0
        %v1625 = vsel %vm526, %v1549, 0
        %v1628 = vsel %vm526, %v1550, 0
        %v1631 = vsel %vm526, %v1551, 0
        %v1634 = vsel %vm526, %v1552, 0
        %v1637 = vsel %vm526, %v1553, 0
        %v1640 = vsel %vm526, %v1554, 0
        %v1643 = vsel %vm526, %v1555, 0
        %v1646 = vsel %vm599, %v1569, 0
        %v1649 = vsel %vm599, %v1570, 0
        %v1652 = vsel %vm599, %v1571, 0
        %v1655 = vsel %vm599, %v1572, 0
        %1657 = vmatprep.subr.mxu0 0.0
        %1658 = vmatpush1.msra.mxu0 0.0
        %1659 = vmatprep.subr.mxu0 0.0
        %1660 = vmatpush1.msra.mxu0 0.0
        %1661 = vmatprep.subr.mxu0 0.0
        %1662 = vmatpush1.msra.mxu0 0.0
        %1663 = vmatprep.subr.mxu0 0.0
        %1664 = vmatpush1.msra.mxu0 0.0
        %1665 = vmatprep.subr.mxu0 0.0
        %1666 = vmatpush1.msra.mxu0 0.0
        %1667 = vmatprep.subr.mxu0 0.0
        %1668 = vmatpush1.msra.mxu0 0.0
        %1669 = vmatprep.subr.mxu0 0.0
        %1670 = vmatpush1.msra.mxu0 0.0
        %1671 = vmatprep.subr.mxu0 0.0
        %1672 = vmatpush1.msra.mxu0 0.0
        %1673 = vmatprep.subr.mxu0 0.0
        %1674 = vmatpush1.msra.mxu0 0.0
        %1675 = vmatprep.subr.mxu0 0.0
        %1676 = vmatpush1.msra.mxu0 0.0
        %1677 = vmatprep.subr.mxu0 0.0
        %1678 = vmatpush1.msra.mxu0 0.0
        %1679 = vmatprep.subr.mxu0 0.0
        %1680 = vmatpush1.msra.mxu0 0.0
        %1681 = vmatprep.subr.mxu0 %v1649
        %1682 = vmatpush1.msra.mxu0 %v1646
        %1683 = vmatprep.subr.mxu0 %v1566
        %1684 = vmatpush1.msra.mxu0 %v1565
        %1685 = vmatprep.subr.mxu0 %v1562
        %1686 = vmatpush1.msra.mxu0 %v1561
        %1687 = vmatprep.subr.mxu0 %v1558
        %1688 = vmatpush1.msra.mxu0 %v1557
        %1689 = vmatprep.subr.mxu0 0.0
        %1690 = vmatpush2.msra.mxu0 0.0
        %1691 = vmatprep.subr.mxu0 0.0
        %1692 = vmatpush2.msra.mxu0 0.0
        %1693 = vmatprep.subr.mxu0 0.0
        %1694 = vmatpush2.msra.mxu0 0.0
        %1695 = vmatprep.subr.mxu0 0.0
        %1696 = vmatpush2.msra.mxu0 0.0
        %1697 = vmatprep.subr.mxu0 0.0
        %1698 = vmatpush2.msra.mxu0 0.0
        %1699 = vmatprep.subr.mxu0 0.0
        %1700 = vmatpush2.msra.mxu0 0.0
        %1701 = vmatprep.subr.mxu0 0.0
        %1702 = vmatpush2.msra.mxu0 0.0
        %1703 = vmatprep.subr.mxu0 0.0
        %1704 = vmatpush2.msra.mxu0 0.0
        %1705 = vmatprep.subr.mxu0 0.0
        %1706 = vmatpush2.msra.mxu0 0.0
        %1707 = vmatprep.subr.mxu0 0.0
        %1708 = vmatpush2.msra.mxu0 0.0
        %1709 = vmatprep.subr.mxu0 0.0
        %1710 = vmatpush2.msra.mxu0 0.0
        %1711 = vmatprep.subr.mxu0 0.0
        %1712 = vmatpush2.msra.mxu0 0.0
        %1713 = vmatprep.subr.mxu0 0.0
        %1714 = vmatpush2.msra.mxu0 0.0
        %1715 = vmatprep.subr.mxu0 0.0
        %1716 = vmatpush2.msra.mxu0 0.0
        %1717 = vmatprep.subr.mxu0 0.0
        %1718 = vmatpush2.msra.mxu0 0.0
        %1719 = vmatprep.subr.mxu0 0.0
        %1720 = vmatpush2.msra.mxu0 0.0
        %1721 = vmatprep.mubr.f32.mxu0 0.0
        %1722 = vmatmul.mubr.f32.gmra.mxu0 %v1574
        %v1723 = vpop.f32.mrf.mxu0
        %v1724 = vadd.f32 0.0, %v1723
        %v1725 = vpop.f32.mrf.mxu0
        %v1726 = vadd.f32 0.0, %v1725
        %1727 = vmatprep.mubr.f32.mxu0 0.0
        %1728 = vmatmul.mubr.f32.gmra.mxu0 %v1577
        %v1729 = vpop.f32.mrf.mxu0
        %v1730 = vadd.f32 0.0, %v1729
        %v1731 = vpop.f32.mrf.mxu0
        %v1732 = vadd.f32 0.0, %v1731
        %1733 = vmatprep.mubr.f32.mxu0 0.0
        %1734 = vmatmul.mubr.f32.gmra.mxu0 %v1580
        %v1735 = vpop.f32.mrf.mxu0
        %v1736 = vadd.f32 0.0, %v1735
        %v1737 = vpop.f32.mrf.mxu0
        %v1738 = vadd.f32 0.0, %v1737
        %1739 = vmatprep.mubr.f32.mxu0 0.0
        %1740 = vmatmul.mubr.f32.gmra.mxu0 %v1583
        %v1741 = vpop.f32.mrf.mxu0
        %v1742 = vadd.f32 0.0, %v1741
        %v1743 = vpop.f32.mrf.mxu0
        %v1744 = vadd.f32 0.0, %v1743
        %1745 = vmatprep.mubr.f32.mxu0 0.0
        %1746 = vmatmul.mubr.f32.gmra.mxu0 %v1586
        %v1747 = vpop.f32.mrf.mxu0
        %v1748 = vadd.f32 0.0, %v1747
        %v1749 = vpop.f32.mrf.mxu0
        %v1750 = vadd.f32 0.0, %v1749
        %1751 = vmatprep.mubr.f32.mxu0 0.0
        %1752 = vmatmul.mubr.f32.gmra.mxu0 %v1589
        %v1753 = vpop.f32.mrf.mxu0
        %v1754 = vadd.f32 0.0, %v1753
        %v1755 = vpop.f32.mrf.mxu0
        %v1756 = vadd.f32 0.0, %v1755
        %1757 = vmatprep.mubr.f32.mxu0 0.0
        %1758 = vmatmul.mubr.f32.gmra.mxu0 %v1592
        %v1759 = vpop.f32.mrf.mxu0
        %v1760 = vadd.f32 0.0, %v1759
        %v1761 = vpop.f32.mrf.mxu0
        %v1762 = vadd.f32 0.0, %v1761
        %1763 = vmatprep.mubr.f32.mxu0 0.0
        %1764 = vmatmul.mubr.f32.gmra.mxu0 %v1595
        %v1765 = vpop.f32.mrf.mxu0
        %v1766 = vadd.f32 0.0, %v1765
        %v1767 = vpop.f32.mrf.mxu0
        %v1768 = vadd.f32 0.0, %v1767
        %1769 = vmatprep.mubr.f32.mxu0 0.0
        %1770 = vmatmul.mubr.f32.gmra.mxu0 %v1598
        %v1771 = vpop.f32.mrf.mxu0
        %v1772 = vadd.f32 0.0, %v1771
        %v1773 = vpop.f32.mrf.mxu0
        %v1774 = vadd.f32 0.0, %v1773
        %1775 = vmatprep.mubr.f32.mxu0 0.0
        %1776 = vmatmul.mubr.f32.gmra.mxu0 %v1601
        %v1777 = vpop.f32.mrf.mxu0
        %v1778 = vadd.f32 0.0, %v1777
        %v1779 = vpop.f32.mrf.mxu0
        %v1780 = vadd.f32 0.0, %v1779
        %1781 = vmatprep.mubr.f32.mxu0 0.0
        %1782 = vmatmul.mubr.f32.gmra.mxu0 %v1604
        %v1783 = vpop.f32.mrf.mxu0
        %v1784 = vadd.f32 0.0, %v1783
        %v1785 = vpop.f32.mrf.mxu0
        %v1786 = vadd.f32 0.0, %v1785
        %1787 = vmatprep.mubr.f32.mxu0 0.0
        %1788 = vmatmul.mubr.f32.gmra.mxu0 %v1607
        %v1789 = vpop.f32.mrf.mxu0
        %v1790 = vadd.f32 0.0, %v1789
        %v1791 = vpop.f32.mrf.mxu0
        %v1792 = vadd.f32 0.0, %v1791
        %1793 = vmatprep.mubr.f32.mxu0 0.0
        %1794 = vmatmul.mubr.f32.gmra.mxu0 %v1610
        %v1795 = vpop.f32.mrf.mxu0
        %v1796 = vadd.f32 0.0, %v1795
        %v1797 = vpop.f32.mrf.mxu0
        %v1798 = vadd.f32 0.0, %v1797
        %1799 = vmatprep.mubr.f32.mxu0 0.0
        %1800 = vmatmul.mubr.f32.gmra.mxu0 %v1613
        %v1801 = vpop.f32.mrf.mxu0
        %v1802 = vadd.f32 0.0, %v1801
        %v1803 = vpop.f32.mrf.mxu0
        %v1804 = vadd.f32 0.0, %v1803
        %1805 = vmatprep.mubr.f32.mxu0 0.0
        %1806 = vmatmul.mubr.f32.gmra.mxu0 %v1616
        %v1807 = vpop.f32.mrf.mxu0
        %v1808 = vadd.f32 0.0, %v1807
        %v1809 = vpop.f32.mrf.mxu0
        %v1810 = vadd.f32 0.0, %v1809
        %1811 = vmatprep.mubr.f32.mxu0 0.0
        %1812 = vmatmul.mubr.f32.gmra.mxu0 %v1619
        %v1813 = vpop.f32.mrf.mxu0
        %v1814 = vadd.f32 0.0, %v1813
        %v1815 = vpop.f32.mrf.mxu0
        %v1816 = vadd.f32 0.0, %v1815
        %1817 = vmatprep.mubr.f32.mxu0 0.0
        %1818 = vmatmul.mubr.f32.gmra.mxu0 %v1622
        %v1819 = vpop.f32.mrf.mxu0
        %v1820 = vadd.f32 0.0, %v1819
        %v1821 = vpop.f32.mrf.mxu0
        %v1822 = vadd.f32 0.0, %v1821
        %1823 = vmatprep.mubr.f32.mxu0 0.0
        %1824 = vmatmul.mubr.f32.gmra.mxu0 %v1625
        %v1825 = vpop.f32.mrf.mxu0
        %v1826 = vadd.f32 0.0, %v1825
        %v1827 = vpop.f32.mrf.mxu0
        %v1828 = vadd.f32 0.0, %v1827
        %1829 = vmatprep.mubr.f32.mxu0 0.0
        %1830 = vmatmul.mubr.f32.gmra.mxu0 %v1628
        %v1831 = vpop.f32.mrf.mxu0
        %v1832 = vadd.f32 0.0, %v1831
        %v1833 = vpop.f32.mrf.mxu0
        %v1834 = vadd.f32 0.0, %v1833
        %1835 = vmatprep.mubr.f32.mxu0 0.0
        %1836 = vmatmul.mubr.f32.gmra.mxu0 %v1631
        %v1837 = vpop.f32.mrf.mxu0
        %v1838 = vadd.f32 0.0, %v1837
        %v1839 = vpop.f32.mrf.mxu0
        %v1840 = vadd.f32 0.0, %v1839
        %1841 = vmatprep.mubr.f32.mxu0 0.0
        %1842 = vmatmul.mubr.f32.gmra.mxu0 %v1634
        %v1843 = vpop.f32.mrf.mxu0
        %v1844 = vadd.f32 0.0, %v1843
        %v1845 = vpop.f32.mrf.mxu0
        %v1846 = vadd.f32 0.0, %v1845
        %1847 = vmatprep.mubr.f32.mxu0 0.0
        %1848 = vmatmul.mubr.f32.gmra.mxu0 %v1637
        %v1849 = vpop.f32.mrf.mxu0
        %v1850 = vadd.f32 0.0, %v1849
        %v1851 = vpop.f32.mrf.mxu0
        %v1852 = vadd.f32 0.0, %v1851
        %1853 = vmatprep.mubr.f32.mxu0 0.0
        %1854 = vmatmul.mubr.f32.gmra.mxu0 %v1640
        %v1855 = vpop.f32.mrf.mxu0
        %v1856 = vadd.f32 0.0, %v1855
        %v1857 = vpop.f32.mrf.mxu0
        %v1858 = vadd.f32 0.0, %v1857
        %1859 = vmatprep.mubr.f32.mxu0 0.0
        %1860 = vmatmul.mubr.f32.gmra.mxu0 %v1643
        %v1861 = vpop.f32.mrf.mxu0
        %v1862 = vadd.f32 0.0, %v1861
        %v1863 = vpop.f32.mrf.mxu0
        %v1864 = vadd.f32 0.0, %v1863
        %1865 = vdwg.mxu0
        %1866 = vmatprep.subr.mxu0 0.0
        %1867 = vmatpush1.msra.mxu0 0.0
        %1868 = vmatprep.subr.mxu0 0.0
        %1869 = vmatpush1.msra.mxu0 0.0
        %1870 = vmatprep.subr.mxu0 0.0
        %1871 = vmatpush1.msra.mxu0 0.0
        %1872 = vmatprep.subr.mxu0 0.0
        %1873 = vmatpush1.msra.mxu0 0.0
        %1874 = vmatprep.subr.mxu0 0.0
        %1875 = vmatpush1.msra.mxu0 0.0
        %1876 = vmatprep.subr.mxu0 0.0
        %1877 = vmatpush1.msra.mxu0 0.0
        %1878 = vmatprep.subr.mxu0 0.0
        %1879 = vmatpush1.msra.mxu0 0.0
        %1880 = vmatprep.subr.mxu0 0.0
        %1881 = vmatpush1.msra.mxu0 0.0
        %1882 = vmatprep.subr.mxu0 0.0
        %1883 = vmatpush1.msra.mxu0 0.0
        %1884 = vmatprep.subr.mxu0 0.0
        %1885 = vmatpush1.msra.mxu0 0.0
        %1886 = vmatprep.subr.mxu0 0.0
        %1887 = vmatpush1.msra.mxu0 0.0
        %1888 = vmatprep.subr.mxu0 0.0
        %1889 = vmatpush1.msra.mxu0 0.0
        %1890 = vmatprep.subr.mxu0 %v1655
        %1891 = vmatpush1.msra.mxu0 %v1652
        %1892 = vmatprep.subr.mxu0 %v1568
        %1893 = vmatpush1.msra.mxu0 %v1567
        %1894 = vmatprep.subr.mxu0 %v1564
        %1895 = vmatpush1.msra.mxu0 %v1563
        %1896 = vmatprep.subr.mxu0 %v1560
        %1897 = vmatpush1.msra.mxu0 %v1559
        %1898 = vmatprep.subr.mxu0 0.0
        %1899 = vmatpush2.msra.mxu0 0.0
        %1900 = vmatprep.subr.mxu0 0.0
        %1901 = vmatpush2.msra.mxu0 0.0
        %1902 = vmatprep.subr.mxu0 0.0
        %1903 = vmatpush2.msra.mxu0 0.0
        %1904 = vmatprep.subr.mxu0 0.0
        %1905 = vmatpush2.msra.mxu0 0.0
        %1906 = vmatprep.subr.mxu0 0.0
        %1907 = vmatpush2.msra.mxu0 0.0
        %1908 = vmatprep.subr.mxu0 0.0
        %1909 = vmatpush2.msra.mxu0 0.0
        %1910 = vmatprep.subr.mxu0 0.0
        %1911 = vmatpush2.msra.mxu0 0.0
        %1912 = vmatprep.subr.mxu0 0.0
        %1913 = vmatpush2.msra.mxu0 0.0
        %1914 = vmatprep.subr.mxu0 0.0
        %1915 = vmatpush2.msra.mxu0 0.0
        %1916 = vmatprep.subr.mxu0 0.0
        %1917 = vmatpush2.msra.mxu0 0.0
        %1918 = vmatprep.subr.mxu0 0.0
        %1919 = vmatpush2.msra.mxu0 0.0
        %1920 = vmatprep.subr.mxu0 0.0
        %1921 = vmatpush2.msra.mxu0 0.0
        %1922 = vmatprep.subr.mxu0 0.0
        %1923 = vmatpush2.msra.mxu0 0.0
        %1924 = vmatprep.subr.mxu0 0.0
        %1925 = vmatpush2.msra.mxu0 0.0
        %1926 = vmatprep.subr.mxu0 0.0
        %1927 = vmatpush2.msra.mxu0 0.0
        %1928 = vmatprep.subr.mxu0 0.0
        %1929 = vmatpush2.msra.mxu0 0.0
        %1930 = vmatprep.mubr.f32.mxu0 0.0
        %1931 = vmatmul.mubr.f32.gmra.mxu0 %v1574
        %v1932 = vpop.f32.mrf.mxu0
        %v1933 = vadd.f32 0.0, %v1932
        %v1934 = vpop.f32.mrf.mxu0
        %v1935 = vadd.f32 0.0, %v1934
        %1936 = vmatprep.mubr.f32.mxu0 0.0
        %1937 = vmatmul.mubr.f32.gmra.mxu0 %v1577
        %v1938 = vpop.f32.mrf.mxu0
        %v1939 = vadd.f32 0.0, %v1938
        %v1940 = vpop.f32.mrf.mxu0
        %v1941 = vadd.f32 0.0, %v1940
        %1942 = vmatprep.mubr.f32.mxu0 0.0
        %1943 = vmatmul.mubr.f32.gmra.mxu0 %v1580
        %v1944 = vpop.f32.mrf.mxu0
        %v1945 = vadd.f32 0.0, %v1944
        %v1946 = vpop.f32.mrf.mxu0
        %v1947 = vadd.f32 0.0, %v1946
        %1948 = vmatprep.mubr.f32.mxu0 0.0
        %1949 = vmatmul.mubr.f32.gmra.mxu0 %v1583
        %v1950 = vpop.f32.mrf.mxu0
        %v1951 = vadd.f32 0.0, %v1950
        %v1952 = vpop.f32.mrf.mxu0
        %v1953 = vadd.f32 0.0, %v1952
        %1954 = vmatprep.mubr.f32.mxu0 0.0
        %1955 = vmatmul.mubr.f32.gmra.mxu0 %v1586
        %v1956 = vpop.f32.mrf.mxu0
        %v1957 = vadd.f32 0.0, %v1956
        %v1958 = vpop.f32.mrf.mxu0
        %v1959 = vadd.f32 0.0, %v1958
        %1960 = vmatprep.mubr.f32.mxu0 0.0
        %1961 = vmatmul.mubr.f32.gmra.mxu0 %v1589
        %v1962 = vpop.f32.mrf.mxu0
        %v1963 = vadd.f32 0.0, %v1962
        %v1964 = vpop.f32.mrf.mxu0
        %v1965 = vadd.f32 0.0, %v1964
        %1966 = vmatprep.mubr.f32.mxu0 0.0
        %1967 = vmatmul.mubr.f32.gmra.mxu0 %v1592
        %v1968 = vpop.f32.mrf.mxu0
        %v1969 = vadd.f32 0.0, %v1968
        %v1970 = vpop.f32.mrf.mxu0
        %v1971 = vadd.f32 0.0, %v1970
        %1972 = vmatprep.mubr.f32.mxu0 0.0
        %1973 = vmatmul.mubr.f32.gmra.mxu0 %v1595
        %v1974 = vpop.f32.mrf.mxu0
        %v1975 = vadd.f32 0.0, %v1974
        %v1976 = vpop.f32.mrf.mxu0
        %v1977 = vadd.f32 0.0, %v1976
        %1978 = vmatprep.mubr.f32.mxu0 0.0
        %1979 = vmatmul.mubr.f32.gmra.mxu0 %v1598
        %v1980 = vpop.f32.mrf.mxu0
        %v1981 = vadd.f32 0.0, %v1980
        %v1982 = vpop.f32.mrf.mxu0
        %v1983 = vadd.f32 0.0, %v1982
        %1984 = vmatprep.mubr.f32.mxu0 0.0
        %1985 = vmatmul.mubr.f32.gmra.mxu0 %v1601
        %v1986 = vpop.f32.mrf.mxu0
        %v1987 = vadd.f32 0.0, %v1986
        %v1988 = vpop.f32.mrf.mxu0
        %v1989 = vadd.f32 0.0, %v1988
        %1990 = vmatprep.mubr.f32.mxu0 0.0
        %1991 = vmatmul.mubr.f32.gmra.mxu0 %v1604
        %v1992 = vpop.f32.mrf.mxu0
        %v1993 = vadd.f32 0.0, %v1992
        %v1994 = vpop.f32.mrf.mxu0
        %v1995 = vadd.f32 0.0, %v1994
        %1996 = vmatprep.mubr.f32.mxu0 0.0
        %1997 = vmatmul.mubr.f32.gmra.mxu0 %v1607
        %v1998 = vpop.f32.mrf.mxu0
        %v1999 = vadd.f32 0.0, %v1998
        %v2000 = vpop.f32.mrf.mxu0
        %v2001 = vadd.f32 0.0, %v2000
        %2002 = vmatprep.mubr.f32.mxu0 0.0
        %2003 = vmatmul.mubr.f32.gmra.mxu0 %v1610
        %v2004 = vpop.f32.mrf.mxu0
        %v2005 = vadd.f32 0.0, %v2004
        %v2006 = vpop.f32.mrf.mxu0
        %v2007 = vadd.f32 0.0, %v2006
        %2008 = vmatprep.mubr.f32.mxu0 0.0
        %2009 = vmatmul.mubr.f32.gmra.mxu0 %v1613
        %v2010 = vpop.f32.mrf.mxu0
        %v2011 = vadd.f32 0.0, %v2010
        %v2012 = vpop.f32.mrf.mxu0
        %v2013 = vadd.f32 0.0, %v2012
        %2014 = vmatprep.mubr.f32.mxu0 0.0
        %2015 = vmatmul.mubr.f32.gmra.mxu0 %v1616
        %v2016 = vpop.f32.mrf.mxu0
        %v2017 = vadd.f32 0.0, %v2016
        %v2018 = vpop.f32.mrf.mxu0
        %v2019 = vadd.f32 0.0, %v2018
        %2020 = vmatprep.mubr.f32.mxu0 0.0
        %2021 = vmatmul.mubr.f32.gmra.mxu0 %v1619
        %v2022 = vpop.f32.mrf.mxu0
        %v2023 = vadd.f32 0.0, %v2022
        %v2024 = vpop.f32.mrf.mxu0
        %v2025 = vadd.f32 0.0, %v2024
        %2026 = vmatprep.mubr.f32.mxu0 0.0
        %2027 = vmatmul.mubr.f32.gmra.mxu0 %v1622
        %v2028 = vpop.f32.mrf.mxu0
        %v2029 = vadd.f32 0.0, %v2028
        %v2030 = vpop.f32.mrf.mxu0
        %v2031 = vadd.f32 0.0, %v2030
        %2032 = vmatprep.mubr.f32.mxu0 0.0
        %2033 = vmatmul.mubr.f32.gmra.mxu0 %v1625
        %v2034 = vpop.f32.mrf.mxu0
        %v2035 = vadd.f32 0.0, %v2034
        %v2036 = vpop.f32.mrf.mxu0
        %v2037 = vadd.f32 0.0, %v2036
        %2038 = vmatprep.mubr.f32.mxu0 0.0
        %2039 = vmatmul.mubr.f32.gmra.mxu0 %v1628
        %v2040 = vpop.f32.mrf.mxu0
        %v2041 = vadd.f32 0.0, %v2040
        %v2042 = vpop.f32.mrf.mxu0
        %v2043 = vadd.f32 0.0, %v2042
        %2044 = vmatprep.mubr.f32.mxu0 0.0
        %2045 = vmatmul.mubr.f32.gmra.mxu0 %v1631
        %v2046 = vpop.f32.mrf.mxu0
        %v2047 = vadd.f32 0.0, %v2046
        %v2048 = vpop.f32.mrf.mxu0
        %v2049 = vadd.f32 0.0, %v2048
        %2050 = vmatprep.mubr.f32.mxu0 0.0
        %2051 = vmatmul.mubr.f32.gmra.mxu0 %v1634
        %v2052 = vpop.f32.mrf.mxu0
        %v2053 = vadd.f32 0.0, %v2052
        %v2054 = vpop.f32.mrf.mxu0
        %v2055 = vadd.f32 0.0, %v2054
        %2056 = vmatprep.mubr.f32.mxu0 0.0
        %2057 = vmatmul.mubr.f32.gmra.mxu0 %v1637
        %v2058 = vpop.f32.mrf.mxu0
        %v2059 = vadd.f32 0.0, %v2058
        %v2060 = vpop.f32.mrf.mxu0
        %v2061 = vadd.f32 0.0, %v2060
        %2062 = vmatprep.mubr.f32.mxu0 0.0
        %2063 = vmatmul.mubr.f32.gmra.mxu0 %v1640
        %v2064 = vpop.f32.mrf.mxu0
        %v2065 = vadd.f32 0.0, %v2064
        %v2066 = vpop.f32.mrf.mxu0
        %v2067 = vadd.f32 0.0, %v2066
        %2068 = vmatprep.mubr.f32.mxu0 0.0
        %2069 = vmatmul.mubr.f32.gmra.mxu0 %v1643
        %v2070 = vpop.f32.mrf.mxu0
        %v2071 = vadd.f32 0.0, %v2070
        %v2072 = vpop.f32.mrf.mxu0
        %v2073 = vadd.f32 0.0, %v2072
        %2074 = vdwg.mxu0
        %v2075 = vadd.f32 %v1181, %v1724
        %v2076 = vadd.f32 %v1183, %v1726
        %v2077 = vadd.f32 %v1390, %v1933
        %v2078 = vadd.f32 %v1392, %v1935
        %v2079 = vadd.f32 %v1187, %v1730
        %v2080 = vadd.f32 %v1189, %v1732
        %v2081 = vadd.f32 %v1396, %v1939
        %v2082 = vadd.f32 %v1398, %v1941
        %v2083 = vadd.f32 %v1193, %v1736
        %v2084 = vadd.f32 %v1195, %v1738
        %v2085 = vadd.f32 %v1402, %v1945
        %v2086 = vadd.f32 %v1404, %v1947
        %v2087 = vadd.f32 %v1199, %v1742
        %v2088 = vadd.f32 %v1201, %v1744
        %v2089 = vadd.f32 %v1408, %v1951
        %v2090 = vadd.f32 %v1410, %v1953
        %v2091 = vadd.f32 %v1205, %v1748
        %v2092 = vadd.f32 %v1207, %v1750
        %v2093 = vadd.f32 %v1414, %v1957
        %v2094 = vadd.f32 %v1416, %v1959
        %v2095 = vadd.f32 %v1211, %v1754
        %v2096 = vadd.f32 %v1213, %v1756
        %v2097 = vadd.f32 %v1420, %v1963
        %v2098 = vadd.f32 %v1422, %v1965
        %v2099 = vadd.f32 %v1217, %v1760
        %v2100 = vadd.f32 %v1219, %v1762
        %v2101 = vadd.f32 %v1426, %v1969
        %v2102 = vadd.f32 %v1428, %v1971
        %v2103 = vadd.f32 %v1223, %v1766
        %v2104 = vadd.f32 %v1225, %v1768
        %v2105 = vadd.f32 %v1432, %v1975
        %v2106 = vadd.f32 %v1434, %v1977
        %v2107 = vadd.f32 %v1229, %v1772
        %v2108 = vadd.f32 %v1231, %v1774
        %v2109 = vadd.f32 %v1438, %v1981
        %v2110 = vadd.f32 %v1440, %v1983
        %v2111 = vadd.f32 %v1235, %v1778
        %v2112 = vadd.f32 %v1237, %v1780
        %v2113 = vadd.f32 %v1444, %v1987
        %v2114 = vadd.f32 %v1446, %v1989
        %v2115 = vadd.f32 %v1241, %v1784
        %v2116 = vadd.f32 %v1243, %v1786
        %v2117 = vadd.f32 %v1450, %v1993
        %v2118 = vadd.f32 %v1452, %v1995
        %v2119 = vadd.f32 %v1247, %v1790
        %v2120 = vadd.f32 %v1249, %v1792
        %v2121 = vadd.f32 %v1456, %v1999
        %v2122 = vadd.f32 %v1458, %v2001
        %v2123 = vadd.f32 %v1253, %v1796
        %v2124 = vadd.f32 %v1255, %v1798
        %v2125 = vadd.f32 %v1462, %v2005
        %v2126 = vadd.f32 %v1464, %v2007
        %v2127 = vadd.f32 %v1259, %v1802
        %v2128 = vadd.f32 %v1261, %v1804
        %v2129 = vadd.f32 %v1468, %v2011
        %v2130 = vadd.f32 %v1470, %v2013
        %v2131 = vadd.f32 %v1265, %v1808
        %v2132 = vadd.f32 %v1267, %v1810
        %v2133 = vadd.f32 %v1474, %v2017
        %v2134 = vadd.f32 %v1476, %v2019
        %v2135 = vadd.f32 %v1271, %v1814
        %v2136 = vadd.f32 %v1273, %v1816
        %v2137 = vadd.f32 %v1480, %v2023
        %v2138 = vadd.f32 %v1482, %v2025
        %v2139 = vadd.f32 %v1277, %v1820
        %v2140 = vadd.f32 %v1279, %v1822
        %v2141 = vadd.f32 %v1486, %v2029
        %v2142 = vadd.f32 %v1488, %v2031
        %v2143 = vadd.f32 %v1283, %v1826
        %v2144 = vadd.f32 %v1285, %v1828
        %v2145 = vadd.f32 %v1492, %v2035
        %v2146 = vadd.f32 %v1494, %v2037
        %v2147 = vadd.f32 %v1289, %v1832
        %v2148 = vadd.f32 %v1291, %v1834
        %v2149 = vadd.f32 %v1498, %v2041
        %v2150 = vadd.f32 %v1500, %v2043
        %v2151 = vadd.f32 %v1295, %v1838
        %v2152 = vadd.f32 %v1297, %v1840
        %v2153 = vadd.f32 %v1504, %v2047
        %v2154 = vadd.f32 %v1506, %v2049
        %v2155 = vadd.f32 %v1301, %v1844
        %v2156 = vadd.f32 %v1303, %v1846
        %v2157 = vadd.f32 %v1510, %v2053
        %v2158 = vadd.f32 %v1512, %v2055
        %v2159 = vadd.f32 %v1307, %v1850
        %v2160 = vadd.f32 %v1309, %v1852
        %v2161 = vadd.f32 %v1516, %v2059
        %v2162 = vadd.f32 %v1518, %v2061
        %v2163 = vadd.f32 %v1313, %v1856
        %v2164 = vadd.f32 %v1315, %v1858
        %v2165 = vadd.f32 %v1522, %v2065
        %v2166 = vadd.f32 %v1524, %v2067
        %v2167 = vadd.f32 %v1319, %v1862
        %v2168 = vadd.f32 %v1321, %v1864
        %v2169 = vadd.f32 %v1528, %v2071
        %v2170 = vadd.f32 %v1530, %v2073
        %v2171 = vld [vmem:[%s443 + $0x3] sm:$0xff]
        %v2172 = vld [vmem:[%s443 + $0xb] sm:$0xff]
        %v2173 = vld [vmem:[%s443 + $0x13] sm:$0xff]
        %v2174 = vld [vmem:[%s443 + $0x23] sm:$0xff]
        %v2175 = vld [vmem:[%s443 + $0x2b] sm:$0xff]
        %v2176 = vld [vmem:[%s443 + $0x33] sm:$0xff]
        %v2177 = vld [vmem:[%s443 + $0x43] sm:$0xff]
        %v2178 = vld [vmem:[%s443 + $0x4b] sm:$0xff]
        %v2179 = vld [vmem:[%s443 + $0x53] sm:$0xff]
        %v2180 = vld [vmem:[%s443 + $0x63] sm:$0xff]
        %v2181 = vld [vmem:[%s443 + $0x6b] sm:$0xff]
        %v2182 = vld [vmem:[%s443 + $0x73] sm:$0xff]
        %v2183 = vld [vmem:[%s443 + $0x83] sm:$0xff]
        %v2184 = vld [vmem:[%s443 + $0x8b] sm:$0xff]
        %v2185 = vld [vmem:[%s443 + $0x93] sm:$0xff]
        %v2186 = vld [vmem:[%s443 + $0xa3] sm:$0xff]
        %v2187 = vld [vmem:[%s443 + $0xab] sm:$0xff]
        %v2188 = vld [vmem:[%s443 + $0xb3] sm:$0xff]
        %v2189 = vld [vmem:[%s443 + $0xc3] sm:$0xff]
        %v2190 = vld [vmem:[%s443 + $0xcb] sm:$0xff]
        %v2191 = vld [vmem:[%s443 + $0xd3] sm:$0xff]
        %v2192 = vld [vmem:[%s443 + $0xe3] sm:$0xff]
        %v2193 = vld [vmem:[%s443 + $0xeb] sm:$0xff]
        %v2194 = vld [vmem:[%s443 + $0xf3] sm:$0xff]
        %s2195 = scalar_lea.vmem [#allocation5], 384
        %v2196 = vld [vmem:[%s2195] sm:$0xff]
        %v2197 = vld [vmem:[%s2195 + $0x8] sm:$0xff]
        %v2198 = vld [vmem:[%s2195 + $0x10] sm:$0xff]
        %v2199 = vld [vmem:[%s2195 + $0x18] sm:$0xff]
        %v2200 = vld [vmem:[%s2195 + $0x20] sm:$0xff]
        %v2201 = vld [vmem:[%s2195 + $0x28] sm:$0xff]
        %v2202 = vld [vmem:[%s2195 + $0x30] sm:$0xff]
        %v2203 = vld [vmem:[%s2195 + $0x38] sm:$0xff]
        %v2204 = vld [vmem:[%s2195 + $0x40] sm:$0xff]
        %v2205 = vld [vmem:[%s2195 + $0x48] sm:$0xff]
        %v2206 = vld [vmem:[%s2195 + $0x50] sm:$0xff]
        %v2207 = vld [vmem:[%s2195 + $0x58] sm:$0xff]
        %v2208 = vld [vmem:[%s2195 + $0x60] sm:$0xf]
        %v2209 = vld [vmem:[%s2195 + $0x68] sm:$0xf]
        %v2210 = vld [vmem:[%s2195 + $0x70] sm:$0xf]
        %v2211 = vld [vmem:[%s2195 + $0x78] sm:$0xf]
        %v2213 = vsel %vm526, %v2171, 0
        %v2216 = vsel %vm526, %v2172, 0
        %v2219 = vsel %vm526, %v2173, 0
        %v2222 = vsel %vm526, %v2174, 0
        %v2225 = vsel %vm526, %v2175, 0
        %v2228 = vsel %vm526, %v2176, 0
        %v2231 = vsel %vm526, %v2177, 0
        %v2234 = vsel %vm526, %v2178, 0
        %v2237 = vsel %vm526, %v2179, 0
        %v2240 = vsel %vm526, %v2180, 0
        %v2243 = vsel %vm526, %v2181, 0
        %v2246 = vsel %vm526, %v2182, 0
        %v2249 = vsel %vm526, %v2183, 0
        %v2252 = vsel %vm526, %v2184, 0
        %v2255 = vsel %vm526, %v2185, 0
        %v2258 = vsel %vm526, %v2186, 0
        %v2261 = vsel %vm526, %v2187, 0
        %v2264 = vsel %vm526, %v2188, 0
        %v2267 = vsel %vm526, %v2189, 0
        %v2270 = vsel %vm526, %v2190, 0
        %v2273 = vsel %vm526, %v2191, 0
        %v2276 = vsel %vm526, %v2192, 0
        %v2279 = vsel %vm526, %v2193, 0
        %v2282 = vsel %vm526, %v2194, 0
        %v2285 = vsel %vm599, %v2208, 0
        %v2288 = vsel %vm599, %v2209, 0
        %v2291 = vsel %vm599, %v2210, 0
        %v2294 = vsel %vm599, %v2211, 0
        %2296 = vmatprep.subr.mxu0 0.0
        %2297 = vmatpush1.msra.mxu0 0.0
        %2298 = vmatprep.subr.mxu0 0.0
        %2299 = vmatpush1.msra.mxu0 0.0
        %2300 = vmatprep.subr.mxu0 0.0
        %2301 = vmatpush1.msra.mxu0 0.0
        %2302 = vmatprep.subr.mxu0 0.0
        %2303 = vmatpush1.msra.mxu0 0.0
        %2304 = vmatprep.subr.mxu0 0.0
        %2305 = vmatpush1.msra.mxu0 0.0
        %2306 = vmatprep.subr.mxu0 0.0
        %2307 = vmatpush1.msra.mxu0 0.0
        %2308 = vmatprep.subr.mxu0 0.0
        %2309 = vmatpush1.msra.mxu0 0.0
        %2310 = vmatprep.subr.mxu0 0.0
        %2311 = vmatpush1.msra.mxu0 0.0
        %2312 = vmatprep.subr.mxu0 0.0
        %2313 = vmatpush1.msra.mxu0 0.0
        %2314 = vmatprep.subr.mxu0 0.0
        %2315 = vmatpush1.msra.mxu0 0.0
        %2316 = vmatprep.subr.mxu0 0.0
        %2317 = vmatpush1.msra.mxu0 0.0
        %2318 = vmatprep.subr.mxu0 0.0
        %2319 = vmatpush1.msra.mxu0 0.0
        %2320 = vmatprep.subr.mxu0 %v2288
        %2321 = vmatpush1.msra.mxu0 %v2285
        %2322 = vmatprep.subr.mxu0 %v2205
        %2323 = vmatpush1.msra.mxu0 %v2204
        %2324 = vmatprep.subr.mxu0 %v2201
        %2325 = vmatpush1.msra.mxu0 %v2200
        %2326 = vmatprep.subr.mxu0 %v2197
        %2327 = vmatpush1.msra.mxu0 %v2196
        %2328 = vmatprep.subr.mxu0 0.0
        %2329 = vmatpush2.msra.mxu0 0.0
        %2330 = vmatprep.subr.mxu0 0.0
        %2331 = vmatpush2.msra.mxu0 0.0
        %2332 = vmatprep.subr.mxu0 0.0
        %2333 = vmatpush2.msra.mxu0 0.0
        %2334 = vmatprep.subr.mxu0 0.0
        %2335 = vmatpush2.msra.mxu0 0.0
        %2336 = vmatprep.subr.mxu0 0.0
        %2337 = vmatpush2.msra.mxu0 0.0
        %2338 = vmatprep.subr.mxu0 0.0
        %2339 = vmatpush2.msra.mxu0 0.0
        %2340 = vmatprep.subr.mxu0 0.0
        %2341 = vmatpush2.msra.mxu0 0.0
        %2342 = vmatprep.subr.mxu0 0.0
        %2343 = vmatpush2.msra.mxu0 0.0
        %2344 = vmatprep.subr.mxu0 0.0
        %2345 = vmatpush2.msra.mxu0 0.0
        %2346 = vmatprep.subr.mxu0 0.0
        %2347 = vmatpush2.msra.mxu0 0.0
        %2348 = vmatprep.subr.mxu0 0.0
        %2349 = vmatpush2.msra.mxu0 0.0
        %2350 = vmatprep.subr.mxu0 0.0
        %2351 = vmatpush2.msra.mxu0 0.0
        %2352 = vmatprep.subr.mxu0 0.0
        %2353 = vmatpush2.msra.mxu0 0.0
        %2354 = vmatprep.subr.mxu0 0.0
        %2355 = vmatpush2.msra.mxu0 0.0
        %2356 = vmatprep.subr.mxu0 0.0
        %2357 = vmatpush2.msra.mxu0 0.0
        %2358 = vmatprep.subr.mxu0 0.0
        %2359 = vmatpush2.msra.mxu0 0.0
        %2360 = vmatprep.mubr.f32.mxu0 0.0
        %2361 = vmatmul.mubr.f32.gmra.mxu0 %v2213
        %v2362 = vpop.f32.mrf.mxu0
        %v2363 = vadd.f32 0.0, %v2362
        %v2364 = vpop.f32.mrf.mxu0
        %v2365 = vadd.f32 0.0, %v2364
        %2366 = vmatprep.mubr.f32.mxu0 0.0
        %2367 = vmatmul.mubr.f32.gmra.mxu0 %v2216
        %v2368 = vpop.f32.mrf.mxu0
        %v2369 = vadd.f32 0.0, %v2368
        %v2370 = vpop.f32.mrf.mxu0
        %v2371 = vadd.f32 0.0, %v2370
        %2372 = vmatprep.mubr.f32.mxu0 0.0
        %2373 = vmatmul.mubr.f32.gmra.mxu0 %v2219
        %v2374 = vpop.f32.mrf.mxu0
        %v2375 = vadd.f32 0.0, %v2374
        %v2376 = vpop.f32.mrf.mxu0
        %v2377 = vadd.f32 0.0, %v2376
        %2378 = vmatprep.mubr.f32.mxu0 0.0
        %2379 = vmatmul.mubr.f32.gmra.mxu0 %v2222
        %v2380 = vpop.f32.mrf.mxu0
        %v2381 = vadd.f32 0.0, %v2380
        %v2382 = vpop.f32.mrf.mxu0
        %v2383 = vadd.f32 0.0, %v2382
        %2384 = vmatprep.mubr.f32.mxu0 0.0
        %2385 = vmatmul.mubr.f32.gmra.mxu0 %v2225
        %v2386 = vpop.f32.mrf.mxu0
        %v2387 = vadd.f32 0.0, %v2386
        %v2388 = vpop.f32.mrf.mxu0
        %v2389 = vadd.f32 0.0, %v2388
        %2390 = vmatprep.mubr.f32.mxu0 0.0
        %2391 = vmatmul.mubr.f32.gmra.mxu0 %v2228
        %v2392 = vpop.f32.mrf.mxu0
        %v2393 = vadd.f32 0.0, %v2392
        %v2394 = vpop.f32.mrf.mxu0
        %v2395 = vadd.f32 0.0, %v2394
        %2396 = vmatprep.mubr.f32.mxu0 0.0
        %2397 = vmatmul.mubr.f32.gmra.mxu0 %v2231
        %v2398 = vpop.f32.mrf.mxu0
        %v2399 = vadd.f32 0.0, %v2398
        %v2400 = vpop.f32.mrf.mxu0
        %v2401 = vadd.f32 0.0, %v2400
        %2402 = vmatprep.mubr.f32.mxu0 0.0
        %2403 = vmatmul.mubr.f32.gmra.mxu0 %v2234
        %v2404 = vpop.f32.mrf.mxu0
        %v2405 = vadd.f32 0.0, %v2404
        %v2406 = vpop.f32.mrf.mxu0
        %v2407 = vadd.f32 0.0, %v2406
        %2408 = vmatprep.mubr.f32.mxu0 0.0
        %2409 = vmatmul.mubr.f32.gmra.mxu0 %v2237
        %v2410 = vpop.f32.mrf.mxu0
        %v2411 = vadd.f32 0.0, %v2410
        %v2412 = vpop.f32.mrf.mxu0
        %v2413 = vadd.f32 0.0, %v2412
        %2414 = vmatprep.mubr.f32.mxu0 0.0
        %2415 = vmatmul.mubr.f32.gmra.mxu0 %v2240
        %v2416 = vpop.f32.mrf.mxu0
        %v2417 = vadd.f32 0.0, %v2416
        %v2418 = vpop.f32.mrf.mxu0
        %v2419 = vadd.f32 0.0, %v2418
        %2420 = vmatprep.mubr.f32.mxu0 0.0
        %2421 = vmatmul.mubr.f32.gmra.mxu0 %v2243
        %v2422 = vpop.f32.mrf.mxu0
        %v2423 = vadd.f32 0.0, %v2422
        %v2424 = vpop.f32.mrf.mxu0
        %v2425 = vadd.f32 0.0, %v2424
        %2426 = vmatprep.mubr.f32.mxu0 0.0
        %2427 = vmatmul.mubr.f32.gmra.mxu0 %v2246
        %v2428 = vpop.f32.mrf.mxu0
        %v2429 = vadd.f32 0.0, %v2428
        %v2430 = vpop.f32.mrf.mxu0
        %v2431 = vadd.f32 0.0, %v2430
        %2432 = vmatprep.mubr.f32.mxu0 0.0
        %2433 = vmatmul.mubr.f32.gmra.mxu0 %v2249
        %v2434 = vpop.f32.mrf.mxu0
        %v2435 = vadd.f32 0.0, %v2434
        %v2436 = vpop.f32.mrf.mxu0
        %v2437 = vadd.f32 0.0, %v2436
        %2438 = vmatprep.mubr.f32.mxu0 0.0
        %2439 = vmatmul.mubr.f32.gmra.mxu0 %v2252
        %v2440 = vpop.f32.mrf.mxu0
        %v2441 = vadd.f32 0.0, %v2440
        %v2442 = vpop.f32.mrf.mxu0
        %v2443 = vadd.f32 0.0, %v2442
        %2444 = vmatprep.mubr.f32.mxu0 0.0
        %2445 = vmatmul.mubr.f32.gmra.mxu0 %v2255
        %v2446 = vpop.f32.mrf.mxu0
        %v2447 = vadd.f32 0.0, %v2446
        %v2448 = vpop.f32.mrf.mxu0
        %v2449 = vadd.f32 0.0, %v2448
        %2450 = vmatprep.mubr.f32.mxu0 0.0
        %2451 = vmatmul.mubr.f32.gmra.mxu0 %v2258
        %v2452 = vpop.f32.mrf.mxu0
        %v2453 = vadd.f32 0.0, %v2452
        %v2454 = vpop.f32.mrf.mxu0
        %v2455 = vadd.f32 0.0, %v2454
        %2456 = vmatprep.mubr.f32.mxu0 0.0
        %2457 = vmatmul.mubr.f32.gmra.mxu0 %v2261
        %v2458 = vpop.f32.mrf.mxu0
        %v2459 = vadd.f32 0.0, %v2458
        %v2460 = vpop.f32.mrf.mxu0
        %v2461 = vadd.f32 0.0, %v2460
        %2462 = vmatprep.mubr.f32.mxu0 0.0
        %2463 = vmatmul.mubr.f32.gmra.mxu0 %v2264
        %v2464 = vpop.f32.mrf.mxu0
        %v2465 = vadd.f32 0.0, %v2464
        %v2466 = vpop.f32.mrf.mxu0
        %v2467 = vadd.f32 0.0, %v2466
        %2468 = vmatprep.mubr.f32.mxu0 0.0
        %2469 = vmatmul.mubr.f32.gmra.mxu0 %v2267
        %v2470 = vpop.f32.mrf.mxu0
        %v2471 = vadd.f32 0.0, %v2470
        %v2472 = vpop.f32.mrf.mxu0
        %v2473 = vadd.f32 0.0, %v2472
        %2474 = vmatprep.mubr.f32.mxu0 0.0
        %2475 = vmatmul.mubr.f32.gmra.mxu0 %v2270
        %v2476 = vpop.f32.mrf.mxu0
        %v2477 = vadd.f32 0.0, %v2476
        %v2478 = vpop.f32.mrf.mxu0
        %v2479 = vadd.f32 0.0, %v2478
        %2480 = vmatprep.mubr.f32.mxu0 0.0
        %2481 = vmatmul.mubr.f32.gmra.mxu0 %v2273
        %v2482 = vpop.f32.mrf.mxu0
        %v2483 = vadd.f32 0.0, %v2482
        %v2484 = vpop.f32.mrf.mxu0
        %v2485 = vadd.f32 0.0, %v2484
        %2486 = vmatprep.mubr.f32.mxu0 0.0
        %2487 = vmatmul.mubr.f32.gmra.mxu0 %v2276
        %v2488 = vpop.f32.mrf.mxu0
        %v2489 = vadd.f32 0.0, %v2488
        %v2490 = vpop.f32.mrf.mxu0
        %v2491 = vadd.f32 0.0, %v2490
        %2492 = vmatprep.mubr.f32.mxu0 0.0
        %2493 = vmatmul.mubr.f32.gmra.mxu0 %v2279
        %v2494 = vpop.f32.mrf.mxu0
        %v2495 = vadd.f32 0.0, %v2494
        %v2496 = vpop.f32.mrf.mxu0
        %v2497 = vadd.f32 0.0, %v2496
        %2498 = vmatprep.mubr.f32.mxu0 0.0
        %2499 = vmatmul.mubr.f32.gmra.mxu0 %v2282
        %v2500 = vpop.f32.mrf.mxu0
        %v2501 = vadd.f32 0.0, %v2500
        %v2502 = vpop.f32.mrf.mxu0
        %v2503 = vadd.f32 0.0, %v2502
        %2504 = vdwg.mxu0
        %2505 = vmatprep.subr.mxu0 0.0
        %2506 = vmatpush1.msra.mxu0 0.0
        %2507 = vmatprep.subr.mxu0 0.0
        %2508 = vmatpush1.msra.mxu0 0.0
        %2509 = vmatprep.subr.mxu0 0.0
        %2510 = vmatpush1.msra.mxu0 0.0
        %2511 = vmatprep.subr.mxu0 0.0
        %2512 = vmatpush1.msra.mxu0 0.0
        %2513 = vmatprep.subr.mxu0 0.0
        %2514 = vmatpush1.msra.mxu0 0.0
        %2515 = vmatprep.subr.mxu0 0.0
        %2516 = vmatpush1.msra.mxu0 0.0
        %2517 = vmatprep.subr.mxu0 0.0
        %2518 = vmatpush1.msra.mxu0 0.0
        %2519 = vmatprep.subr.mxu0 0.0
        %2520 = vmatpush1.msra.mxu0 0.0
        %2521 = vmatprep.subr.mxu0 0.0
        %2522 = vmatpush1.msra.mxu0 0.0
        %2523 = vmatprep.subr.mxu0 0.0
        %2524 = vmatpush1.msra.mxu0 0.0
        %2525 = vmatprep.subr.mxu0 0.0
        %2526 = vmatpush1.msra.mxu0 0.0
        %2527 = vmatprep.subr.mxu0 0.0
        %2528 = vmatpush1.msra.mxu0 0.0
        %2529 = vmatprep.subr.mxu0 %v2294
        %2530 = vmatpush1.msra.mxu0 %v2291
        %2531 = vmatprep.subr.mxu0 %v2207
        %2532 = vmatpush1.msra.mxu0 %v2206
        %2533 = vmatprep.subr.mxu0 %v2203
        %2534 = vmatpush1.msra.mxu0 %v2202
        %2535 = vmatprep.subr.mxu0 %v2199
        %2536 = vmatpush1.msra.mxu0 %v2198
        %2537 = vmatprep.subr.mxu0 0.0
        %2538 = vmatpush2.msra.mxu0 0.0
        %2539 = vmatprep.subr.mxu0 0.0
        %2540 = vmatpush2.msra.mxu0 0.0
        %2541 = vmatprep.subr.mxu0 0.0
        %2542 = vmatpush2.msra.mxu0 0.0
        %2543 = vmatprep.subr.mxu0 0.0
        %2544 = vmatpush2.msra.mxu0 0.0
        %2545 = vmatprep.subr.mxu0 0.0
        %2546 = vmatpush2.msra.mxu0 0.0
        %2547 = vmatprep.subr.mxu0 0.0
        %2548 = vmatpush2.msra.mxu0 0.0
        %2549 = vmatprep.subr.mxu0 0.0
        %2550 = vmatpush2.msra.mxu0 0.0
        %2551 = vmatprep.subr.mxu0 0.0
        %2552 = vmatpush2.msra.mxu0 0.0
        %2553 = vmatprep.subr.mxu0 0.0
        %2554 = vmatpush2.msra.mxu0 0.0
        %2555 = vmatprep.subr.mxu0 0.0
        %2556 = vmatpush2.msra.mxu0 0.0
        %2557 = vmatprep.subr.mxu0 0.0
        %2558 = vmatpush2.msra.mxu0 0.0
        %2559 = vmatprep.subr.mxu0 0.0
        %2560 = vmatpush2.msra.mxu0 0.0
        %2561 = vmatprep.subr.mxu0 0.0
        %2562 = vmatpush2.msra.mxu0 0.0
        %2563 = vmatprep.subr.mxu0 0.0
        %2564 = vmatpush2.msra.mxu0 0.0
        %2565 = vmatprep.subr.mxu0 0.0
        %2566 = vmatpush2.msra.mxu0 0.0
        %2567 = vmatprep.subr.mxu0 0.0
        %2568 = vmatpush2.msra.mxu0 0.0
        %2569 = vmatprep.mubr.f32.mxu0 0.0
        %2570 = vmatmul.mubr.f32.gmra.mxu0 %v2213
        %v2571 = vpop.f32.mrf.mxu0
        %v2572 = vadd.f32 0.0, %v2571
        %v2573 = vpop.f32.mrf.mxu0
        %v2574 = vadd.f32 0.0, %v2573
        %2575 = vmatprep.mubr.f32.mxu0 0.0
        %2576 = vmatmul.mubr.f32.gmra.mxu0 %v2216
        %v2577 = vpop.f32.mrf.mxu0
        %v2578 = vadd.f32 0.0, %v2577
        %v2579 = vpop.f32.mrf.mxu0
        %v2580 = vadd.f32 0.0, %v2579
        %2581 = vmatprep.mubr.f32.mxu0 0.0
        %2582 = vmatmul.mubr.f32.gmra.mxu0 %v2219
        %v2583 = vpop.f32.mrf.mxu0
        %v2584 = vadd.f32 0.0, %v2583
        %v2585 = vpop.f32.mrf.mxu0
        %v2586 = vadd.f32 0.0, %v2585
        %2587 = vmatprep.mubr.f32.mxu0 0.0
        %2588 = vmatmul.mubr.f32.gmra.mxu0 %v2222
        %v2589 = vpop.f32.mrf.mxu0
        %v2590 = vadd.f32 0.0, %v2589
        %v2591 = vpop.f32.mrf.mxu0
        %v2592 = vadd.f32 0.0, %v2591
        %2593 = vmatprep.mubr.f32.mxu0 0.0
        %2594 = vmatmul.mubr.f32.gmra.mxu0 %v2225
        %v2595 = vpop.f32.mrf.mxu0
        %v2596 = vadd.f32 0.0, %v2595
        %v2597 = vpop.f32.mrf.mxu0
        %v2598 = vadd.f32 0.0, %v2597
        %2599 = vmatprep.mubr.f32.mxu0 0.0
        %2600 = vmatmul.mubr.f32.gmra.mxu0 %v2228
        %v2601 = vpop.f32.mrf.mxu0
        %v2602 = vadd.f32 0.0, %v2601
        %v2603 = vpop.f32.mrf.mxu0
        %v2604 = vadd.f32 0.0, %v2603
        %2605 = vmatprep.mubr.f32.mxu0 0.0
        %2606 = vmatmul.mubr.f32.gmra.mxu0 %v2231
        %v2607 = vpop.f32.mrf.mxu0
        %v2608 = vadd.f32 0.0, %v2607
        %v2609 = vpop.f32.mrf.mxu0
        %v2610 = vadd.f32 0.0, %v2609
        %2611 = vmatprep.mubr.f32.mxu0 0.0
        %2612 = vmatmul.mubr.f32.gmra.mxu0 %v2234
        %v2613 = vpop.f32.mrf.mxu0
        %v2614 = vadd.f32 0.0, %v2613
        %v2615 = vpop.f32.mrf.mxu0
        %v2616 = vadd.f32 0.0, %v2615
        %2617 = vmatprep.mubr.f32.mxu0 0.0
        %2618 = vmatmul.mubr.f32.gmra.mxu0 %v2237
        %v2619 = vpop.f32.mrf.mxu0
        %v2620 = vadd.f32 0.0, %v2619
        %v2621 = vpop.f32.mrf.mxu0
        %v2622 = vadd.f32 0.0, %v2621
        %2623 = vmatprep.mubr.f32.mxu0 0.0
        %2624 = vmatmul.mubr.f32.gmra.mxu0 %v2240
        %v2625 = vpop.f32.mrf.mxu0
        %v2626 = vadd.f32 0.0, %v2625
        %v2627 = vpop.f32.mrf.mxu0
        %v2628 = vadd.f32 0.0, %v2627
        %2629 = vmatprep.mubr.f32.mxu0 0.0
        %2630 = vmatmul.mubr.f32.gmra.mxu0 %v2243
        %v2631 = vpop.f32.mrf.mxu0
        %v2632 = vadd.f32 0.0, %v2631
        %v2633 = vpop.f32.mrf.mxu0
        %v2634 = vadd.f32 0.0, %v2633
        %2635 = vmatprep.mubr.f32.mxu0 0.0
        %2636 = vmatmul.mubr.f32.gmra.mxu0 %v2246
        %v2637 = vpop.f32.mrf.mxu0
        %v2638 = vadd.f32 0.0, %v2637
        %v2639 = vpop.f32.mrf.mxu0
        %v2640 = vadd.f32 0.0, %v2639
        %2641 = vmatprep.mubr.f32.mxu0 0.0
        %2642 = vmatmul.mubr.f32.gmra.mxu0 %v2249
        %v2643 = vpop.f32.mrf.mxu0
        %v2644 = vadd.f32 0.0, %v2643
        %v2645 = vpop.f32.mrf.mxu0
        %v2646 = vadd.f32 0.0, %v2645
        %2647 = vmatprep.mubr.f32.mxu0 0.0
        %2648 = vmatmul.mubr.f32.gmra.mxu0 %v2252
        %v2649 = vpop.f32.mrf.mxu0
        %v2650 = vadd.f32 0.0, %v2649
        %v2651 = vpop.f32.mrf.mxu0
        %v2652 = vadd.f32 0.0, %v2651
        %2653 = vmatprep.mubr.f32.mxu0 0.0
        %2654 = vmatmul.mubr.f32.gmra.mxu0 %v2255
        %v2655 = vpop.f32.mrf.mxu0
        %v2656 = vadd.f32 0.0, %v2655
        %v2657 = vpop.f32.mrf.mxu0
        %v2658 = vadd.f32 0.0, %v2657
        %2659 = vmatprep.mubr.f32.mxu0 0.0
        %2660 = vmatmul.mubr.f32.gmra.mxu0 %v2258
        %v2661 = vpop.f32.mrf.mxu0
        %v2662 = vadd.f32 0.0, %v2661
        %v2663 = vpop.f32.mrf.mxu0
        %v2664 = vadd.f32 0.0, %v2663
        %2665 = vmatprep.mubr.f32.mxu0 0.0
        %2666 = vmatmul.mubr.f32.gmra.mxu0 %v2261
        %v2667 = vpop.f32.mrf.mxu0
        %v2668 = vadd.f32 0.0, %v2667
        %v2669 = vpop.f32.mrf.mxu0
        %v2670 = vadd.f32 0.0, %v2669
        %2671 = vmatprep.mubr.f32.mxu0 0.0
        %2672 = vmatmul.mubr.f32.gmra.mxu0 %v2264
        %v2673 = vpop.f32.mrf.mxu0
        %v2674 = vadd.f32 0.0, %v2673
        %v2675 = vpop.f32.mrf.mxu0
        %v2676 = vadd.f32 0.0, %v2675
        %2677 = vmatprep.mubr.f32.mxu0 0.0
        %2678 = vmatmul.mubr.f32.gmra.mxu0 %v2267
        %v2679 = vpop.f32.mrf.mxu0
        %v2680 = vadd.f32 0.0, %v2679
        %v2681 = vpop.f32.mrf.mxu0
        %v2682 = vadd.f32 0.0, %v2681
        %2683 = vmatprep.mubr.f32.mxu0 0.0
        %2684 = vmatmul.mubr.f32.gmra.mxu0 %v2270
        %v2685 = vpop.f32.mrf.mxu0
        %v2686 = vadd.f32 0.0, %v2685
        %v2687 = vpop.f32.mrf.mxu0
        %v2688 = vadd.f32 0.0, %v2687
        %2689 = vmatprep.mubr.f32.mxu0 0.0
        %2690 = vmatmul.mubr.f32.gmra.mxu0 %v2273
        %v2691 = vpop.f32.mrf.mxu0
        %v2692 = vadd.f32 0.0, %v2691
        %v2693 = vpop.f32.mrf.mxu0
        %v2694 = vadd.f32 0.0, %v2693
        %2695 = vmatprep.mubr.f32.mxu0 0.0
        %2696 = vmatmul.mubr.f32.gmra.mxu0 %v2276
        %v2697 = vpop.f32.mrf.mxu0
        %v2698 = vadd.f32 0.0, %v2697
        %v2699 = vpop.f32.mrf.mxu0
        %v2700 = vadd.f32 0.0, %v2699
        %2701 = vmatprep.mubr.f32.mxu0 0.0
        %2702 = vmatmul.mubr.f32.gmra.mxu0 %v2279
        %v2703 = vpop.f32.mrf.mxu0
        %v2704 = vadd.f32 0.0, %v2703
        %v2705 = vpop.f32.mrf.mxu0
        %v2706 = vadd.f32 0.0, %v2705
        %2707 = vmatprep.mubr.f32.mxu0 0.0
        %2708 = vmatmul.mubr.f32.gmra.mxu0 %v2282
        %v2709 = vpop.f32.mrf.mxu0
        %v2710 = vadd.f32 0.0, %v2709
        %v2711 = vpop.f32.mrf.mxu0
        %v2712 = vadd.f32 0.0, %v2711
        %2713 = vdwg.mxu0
        %v2714 = vadd.f32 %v2075, %v2363
        %v2715 = vadd.f32 %v2076, %v2365
        %v2716 = vadd.f32 %v2077, %v2572
        %v2717 = vadd.f32 %v2078, %v2574
        %v2718 = vadd.f32 %v2079, %v2369
        %v2719 = vadd.f32 %v2080, %v2371
        %v2720 = vadd.f32 %v2081, %v2578
        %v2721 = vadd.f32 %v2082, %v2580
        %v2722 = vadd.f32 %v2083, %v2375
        %v2723 = vadd.f32 %v2084, %v2377
        %v2724 = vadd.f32 %v2085, %v2584
        %v2725 = vadd.f32 %v2086, %v2586
        %v2726 = vadd.f32 %v2087, %v2381
        %v2727 = vadd.f32 %v2088, %v2383
        %v2728 = vadd.f32 %v2089, %v2590
        %v2729 = vadd.f32 %v2090, %v2592
        %v2730 = vadd.f32 %v2091, %v2387
        %v2731 = vadd.f32 %v2092, %v2389
        %v2732 = vadd.f32 %v2093, %v2596
        %v2733 = vadd.f32 %v2094, %v2598
        %v2734 = vadd.f32 %v2095, %v2393
        %v2735 = vadd.f32 %v2096, %v2395
        %v2736 = vadd.f32 %v2097, %v2602
        %v2737 = vadd.f32 %v2098, %v2604
        %v2738 = vadd.f32 %v2099, %v2399
        %v2739 = vadd.f32 %v2100, %v2401
        %v2740 = vadd.f32 %v2101, %v2608
        %v2741 = vadd.f32 %v2102, %v2610
        %v2742 = vadd.f32 %v2103, %v2405
        %v2743 = vadd.f32 %v2104, %v2407
        %v2744 = vadd.f32 %v2105, %v2614
        %v2745 = vadd.f32 %v2106, %v2616
        %v2746 = vadd.f32 %v2107, %v2411
        %v2747 = vadd.f32 %v2108, %v2413
        %v2748 = vadd.f32 %v2109, %v2620
        %v2749 = vadd.f32 %v2110, %v2622
        %v2750 = vadd.f32 %v2111, %v2417
        %v2751 = vadd.f32 %v2112, %v2419
        %v2752 = vadd.f32 %v2113, %v2626
        %v2753 = vadd.f32 %v2114, %v2628
        %v2754 = vadd.f32 %v2115, %v2423
        %v2755 = vadd.f32 %v2116, %v2425
        %v2756 = vadd.f32 %v2117, %v2632
        %v2757 = vadd.f32 %v2118, %v2634
        %v2758 = vadd.f32 %v2119, %v2429
        %v2759 = vadd.f32 %v2120, %v2431
        %v2760 = vadd.f32 %v2121, %v2638
        %v2761 = vadd.f32 %v2122, %v2640
        %v2762 = vadd.f32 %v2123, %v2435
        %v2763 = vadd.f32 %v2124, %v2437
        %v2764 = vadd.f32 %v2125, %v2644
        %v2765 = vadd.f32 %v2126, %v2646
        %v2766 = vadd.f32 %v2127, %v2441
        %v2767 = vadd.f32 %v2128, %v2443
        %v2768 = vadd.f32 %v2129, %v2650
        %v2769 = vadd.f32 %v2130, %v2652
        %v2770 = vadd.f32 %v2131, %v2447
        %v2771 = vadd.f32 %v2132, %v2449
        %v2772 = vadd.f32 %v2133, %v2656
        %v2773 = vadd.f32 %v2134, %v2658
        %v2774 = vadd.f32 %v2135, %v2453
        %v2775 = vadd.f32 %v2136, %v2455
        %v2776 = vadd.f32 %v2137, %v2662
        %v2777 = vadd.f32 %v2138, %v2664
        %v2778 = vadd.f32 %v2139, %v2459
        %v2779 = vadd.f32 %v2140, %v2461
        %v2780 = vadd.f32 %v2141, %v2668
        %v2781 = vadd.f32 %v2142, %v2670
        %v2782 = vadd.f32 %v2143, %v2465
        %v2783 = vadd.f32 %v2144, %v2467
        %v2784 = vadd.f32 %v2145, %v2674
        %v2785 = vadd.f32 %v2146, %v2676
        %v2786 = vadd.f32 %v2147, %v2471
        %v2787 = vadd.f32 %v2148, %v2473
        %v2788 = vadd.f32 %v2149, %v2680
        %v2789 = vadd.f32 %v2150, %v2682
        %v2790 = vadd.f32 %v2151, %v2477
        %v2791 = vadd.f32 %v2152, %v2479
        %v2792 = vadd.f32 %v2153, %v2686
        %v2793 = vadd.f32 %v2154, %v2688
        %v2794 = vadd.f32 %v2155, %v2483
        %v2795 = vadd.f32 %v2156, %v2485
        %v2796 = vadd.f32 %v2157, %v2692
        %v2797 = vadd.f32 %v2158, %v2694
        %v2798 = vadd.f32 %v2159, %v2489
        %v2799 = vadd.f32 %v2160, %v2491
        %v2800 = vadd.f32 %v2161, %v2698
        %v2801 = vadd.f32 %v2162, %v2700
        %v2802 = vadd.f32 %v2163, %v2495
        %v2803 = vadd.f32 %v2164, %v2497
        %v2804 = vadd.f32 %v2165, %v2704
        %v2805 = vadd.f32 %v2166, %v2706
        %v2806 = vadd.f32 %v2167, %v2501
        %v2807 = vadd.f32 %v2168, %v2503
        %v2808 = vadd.f32 %v2169, %v2710
        %v2809 = vadd.f32 %v2170, %v2712
        %v2810 = vld [vmem:[%s443 + $0x4] sm:$0xff]
        %v2811 = vld [vmem:[%s443 + $0xc] sm:$0xff]
        %v2812 = vld [vmem:[%s443 + $0x14] sm:$0xff]
        %v2813 = vld [vmem:[%s443 + $0x24] sm:$0xff]
        %v2814 = vld [vmem:[%s443 + $0x2c] sm:$0xff]
        %v2815 = vld [vmem:[%s443 + $0x34] sm:$0xff]
        %v2816 = vld [vmem:[%s443 + $0x44] sm:$0xff]
        %v2817 = vld [vmem:[%s443 + $0x4c] sm:$0xff]
        %v2818 = vld [vmem:[%s443 + $0x54] sm:$0xff]
        %v2819 = vld [vmem:[%s443 + $0x64] sm:$0xff]
        %v2820 = vld [vmem:[%s443 + $0x6c] sm:$0xff]
        %v2821 = vld [vmem:[%s443 + $0x74] sm:$0xff]
        %v2822 = vld [vmem:[%s443 + $0x84] sm:$0xff]
        %v2823 = vld [vmem:[%s443 + $0x8c] sm:$0xff]
        %v2824 = vld [vmem:[%s443 + $0x94] sm:$0xff]
        %v2825 = vld [vmem:[%s443 + $0xa4] sm:$0xff]
        %v2826 = vld [vmem:[%s443 + $0xac] sm:$0xff]
        %v2827 = vld [vmem:[%s443 + $0xb4] sm:$0xff]
        %v2828 = vld [vmem:[%s443 + $0xc4] sm:$0xff]
        %v2829 = vld [vmem:[%s443 + $0xcc] sm:$0xff]
        %v2830 = vld [vmem:[%s443 + $0xd4] sm:$0xff]
        %v2831 = vld [vmem:[%s443 + $0xe4] sm:$0xff]
        %v2832 = vld [vmem:[%s443 + $0xec] sm:$0xff]
        %v2833 = vld [vmem:[%s443 + $0xf4] sm:$0xff]
        %s2834 = scalar_lea.vmem [#allocation5], 512
        %v2835 = vld [vmem:[%s2834] sm:$0xff]
        %v2836 = vld [vmem:[%s2834 + $0x8] sm:$0xff]
        %v2837 = vld [vmem:[%s2834 + $0x10] sm:$0xff]
        %v2838 = vld [vmem:[%s2834 + $0x18] sm:$0xff]
        %v2839 = vld [vmem:[%s2834 + $0x20] sm:$0xff]
        %v2840 = vld [vmem:[%s2834 + $0x28] sm:$0xff]
        %v2841 = vld [vmem:[%s2834 + $0x30] sm:$0xff]
        %v2842 = vld [vmem:[%s2834 + $0x38] sm:$0xff]
        %v2843 = vld [vmem:[%s2834 + $0x40] sm:$0xff]
        %v2844 = vld [vmem:[%s2834 + $0x48] sm:$0xff]
        %v2845 = vld [vmem:[%s2834 + $0x50] sm:$0xff]
        %v2846 = vld [vmem:[%s2834 + $0x58] sm:$0xff]
        %v2847 = vld [vmem:[%s2834 + $0x60] sm:$0xf]
        %v2848 = vld [vmem:[%s2834 + $0x68] sm:$0xf]
        %v2849 = vld [vmem:[%s2834 + $0x70] sm:$0xf]
        %v2850 = vld [vmem:[%s2834 + $0x78] sm:$0xf]
        %v2852 = vsel %vm526, %v2810, 0
        %v2855 = vsel %vm526, %v2811, 0
        %v2858 = vsel %vm526, %v2812, 0
        %v2861 = vsel %vm526, %v2813, 0
        %v2864 = vsel %vm526, %v2814, 0
        %v2867 = vsel %vm526, %v2815, 0
        %v2870 = vsel %vm526, %v2816, 0
        %v2873 = vsel %vm526, %v2817, 0
        %v2876 = vsel %vm526, %v2818, 0
        %v2879 = vsel %vm526, %v2819, 0
        %v2882 = vsel %vm526, %v2820, 0
        %v2885 = vsel %vm526, %v2821, 0
        %v2888 = vsel %vm526, %v2822, 0
        %v2891 = vsel %vm526, %v2823, 0
        %v2894 = vsel %vm526, %v2824, 0
        %v2897 = vsel %vm526, %v2825, 0
        %v2900 = vsel %vm526, %v2826, 0
        %v2903 = vsel %vm526, %v2827, 0
        %v2906 = vsel %vm526, %v2828, 0
        %v2909 = vsel %vm526, %v2829, 0
        %v2912 = vsel %vm526, %v2830, 0
        %v2915 = vsel %vm526, %v2831, 0
        %v2918 = vsel %vm526, %v2832, 0
        %v2921 = vsel %vm526, %v2833, 0
        %v2924 = vsel %vm599, %v2847, 0
        %v2927 = vsel %vm599, %v2848, 0
        %v2930 = vsel %vm599, %v2849, 0
        %v2933 = vsel %vm599, %v2850, 0
        %2935 = vmatprep.subr.mxu0 0.0
        %2936 = vmatpush1.msra.mxu0 0.0
        %2937 = vmatprep.subr.mxu0 0.0
        %2938 = vmatpush1.msra.mxu0 0.0
        %2939 = vmatprep.subr.mxu0 0.0
        %2940 = vmatpush1.msra.mxu0 0.0
        %2941 = vmatprep.subr.mxu0 0.0
        %2942 = vmatpush1.msra.mxu0 0.0
        %2943 = vmatprep.subr.mxu0 0.0
        %2944 = vmatpush1.msra.mxu0 0.0
        %2945 = vmatprep.subr.mxu0 0.0
        %2946 = vmatpush1.msra.mxu0 0.0
        %2947 = vmatprep.subr.mxu0 0.0
        %2948 = vmatpush1.msra.mxu0 0.0
        %2949 = vmatprep.subr.mxu0 0.0
        %2950 = vmatpush1.msra.mxu0 0.0
        %2951 = vmatprep.subr.mxu0 0.0
        %2952 = vmatpush1.msra.mxu0 0.0
        %2953 = vmatprep.subr.mxu0 0.0
        %2954 = vmatpush1.msra.mxu0 0.0
        %2955 = vmatprep.subr.mxu0 0.0
        %2956 = vmatpush1.msra.mxu0 0.0
        %2957 = vmatprep.subr.mxu0 0.0
        %2958 = vmatpush1.msra.mxu0 0.0
        %2959 = vmatprep.subr.mxu0 %v2927
        %2960 = vmatpush1.msra.mxu0 %v2924
        %2961 = vmatprep.subr.mxu0 %v2844
        %2962 = vmatpush1.msra.mxu0 %v2843
        %2963 = vmatprep.subr.mxu0 %v2840
        %2964 = vmatpush1.msra.mxu0 %v2839
        %2965 = vmatprep.subr.mxu0 %v2836
        %2966 = vmatpush1.msra.mxu0 %v2835
        %2967 = vmatprep.subr.mxu0 0.0
        %2968 = vmatpush2.msra.mxu0 0.0
        %2969 = vmatprep.subr.mxu0 0.0
        %2970 = vmatpush2.msra.mxu0 0.0
        %2971 = vmatprep.subr.mxu0 0.0
        %2972 = vmatpush2.msra.mxu0 0.0
        %2973 = vmatprep.subr.mxu0 0.0
        %2974 = vmatpush2.msra.mxu0 0.0
        %2975 = vmatprep.subr.mxu0 0.0
        %2976 = vmatpush2.msra.mxu0 0.0
        %2977 = vmatprep.subr.mxu0 0.0
        %2978 = vmatpush2.msra.mxu0 0.0
        %2979 = vmatprep.subr.mxu0 0.0
        %2980 = vmatpush2.msra.mxu0 0.0
        %2981 = vmatprep.subr.mxu0 0.0
        %2982 = vmatpush2.msra.mxu0 0.0
        %2983 = vmatprep.subr.mxu0 0.0
        %2984 = vmatpush2.msra.mxu0 0.0
        %2985 = vmatprep.subr.mxu0 0.0
        %2986 = vmatpush2.msra.mxu0 0.0
        %2987 = vmatprep.subr.mxu0 0.0
        %2988 = vmatpush2.msra.mxu0 0.0
        %2989 = vmatprep.subr.mxu0 0.0
        %2990 = vmatpush2.msra.mxu0 0.0
        %2991 = vmatprep.subr.mxu0 0.0
        %2992 = vmatpush2.msra.mxu0 0.0
        %2993 = vmatprep.subr.mxu0 0.0
        %2994 = vmatpush2.msra.mxu0 0.0
        %2995 = vmatprep.subr.mxu0 0.0
        %2996 = vmatpush2.msra.mxu0 0.0
        %2997 = vmatprep.subr.mxu0 0.0
        %2998 = vmatpush2.msra.mxu0 0.0
        %2999 = vmatprep.mubr.f32.mxu0 0.0
        %3000 = vmatmul.mubr.f32.gmra.mxu0 %v2852
        %v3001 = vpop.f32.mrf.mxu0
        %v3002 = vadd.f32 0.0, %v3001
        %v3003 = vpop.f32.mrf.mxu0
        %v3004 = vadd.f32 0.0, %v3003
        %3005 = vmatprep.mubr.f32.mxu0 0.0
        %3006 = vmatmul.mubr.f32.gmra.mxu0 %v2855
        %v3007 = vpop.f32.mrf.mxu0
        %v3008 = vadd.f32 0.0, %v3007
        %v3009 = vpop.f32.mrf.mxu0
        %v3010 = vadd.f32 0.0, %v3009
        %3011 = vmatprep.mubr.f32.mxu0 0.0
        %3012 = vmatmul.mubr.f32.gmra.mxu0 %v2858
        %v3013 = vpop.f32.mrf.mxu0
        %v3014 = vadd.f32 0.0, %v3013
        %v3015 = vpop.f32.mrf.mxu0
        %v3016 = vadd.f32 0.0, %v3015
        %3017 = vmatprep.mubr.f32.mxu0 0.0
        %3018 = vmatmul.mubr.f32.gmra.mxu0 %v2861
        %v3019 = vpop.f32.mrf.mxu0
        %v3020 = vadd.f32 0.0, %v3019
        %v3021 = vpop.f32.mrf.mxu0
        %v3022 = vadd.f32 0.0, %v3021
        %3023 = vmatprep.mubr.f32.mxu0 0.0
        %3024 = vmatmul.mubr.f32.gmra.mxu0 %v2864
        %v3025 = vpop.f32.mrf.mxu0
        %v3026 = vadd.f32 0.0, %v3025
        %v3027 = vpop.f32.mrf.mxu0
        %v3028 = vadd.f32 0.0, %v3027
        %3029 = vmatprep.mubr.f32.mxu0 0.0
        %3030 = vmatmul.mubr.f32.gmra.mxu0 %v2867
        %v3031 = vpop.f32.mrf.mxu0
        %v3032 = vadd.f32 0.0, %v3031
        %v3033 = vpop.f32.mrf.mxu0
        %v3034 = vadd.f32 0.0, %v3033
        %3035 = vmatprep.mubr.f32.mxu0 0.0
        %3036 = vmatmul.mubr.f32.gmra.mxu0 %v2870
        %v3037 = vpop.f32.mrf.mxu0
        %v3038 = vadd.f32 0.0, %v3037
        %v3039 = vpop.f32.mrf.mxu0
        %v3040 = vadd.f32 0.0, %v3039
        %3041 = vmatprep.mubr.f32.mxu0 0.0
        %3042 = vmatmul.mubr.f32.gmra.mxu0 %v2873
        %v3043 = vpop.f32.mrf.mxu0
        %v3044 = vadd.f32 0.0, %v3043
        %v3045 = vpop.f32.mrf.mxu0
        %v3046 = vadd.f32 0.0, %v3045
        %3047 = vmatprep.mubr.f32.mxu0 0.0
        %3048 = vmatmul.mubr.f32.gmra.mxu0 %v2876
        %v3049 = vpop.f32.mrf.mxu0
        %v3050 = vadd.f32 0.0, %v3049
        %v3051 = vpop.f32.mrf.mxu0
        %v3052 = vadd.f32 0.0, %v3051
        %3053 = vmatprep.mubr.f32.mxu0 0.0
        %3054 = vmatmul.mubr.f32.gmra.mxu0 %v2879
        %v3055 = vpop.f32.mrf.mxu0
        %v3056 = vadd.f32 0.0, %v3055
        %v3057 = vpop.f32.mrf.mxu0
        %v3058 = vadd.f32 0.0, %v3057
        %3059 = vmatprep.mubr.f32.mxu0 0.0
        %3060 = vmatmul.mubr.f32.gmra.mxu0 %v2882
        %v3061 = vpop.f32.mrf.mxu0
        %v3062 = vadd.f32 0.0, %v3061
        %v3063 = vpop.f32.mrf.mxu0
        %v3064 = vadd.f32 0.0, %v3063
        %3065 = vmatprep.mubr.f32.mxu0 0.0
        %3066 = vmatmul.mubr.f32.gmra.mxu0 %v2885
        %v3067 = vpop.f32.mrf.mxu0
        %v3068 = vadd.f32 0.0, %v3067
        %v3069 = vpop.f32.mrf.mxu0
        %v3070 = vadd.f32 0.0, %v3069
        %3071 = vmatprep.mubr.f32.mxu0 0.0
        %3072 = vmatmul.mubr.f32.gmra.mxu0 %v2888
        %v3073 = vpop.f32.mrf.mxu0
        %v3074 = vadd.f32 0.0, %v3073
        %v3075 = vpop.f32.mrf.mxu0
        %v3076 = vadd.f32 0.0, %v3075
        %3077 = vmatprep.mubr.f32.mxu0 0.0
        %3078 = vmatmul.mubr.f32.gmra.mxu0 %v2891
        %v3079 = vpop.f32.mrf.mxu0
        %v3080 = vadd.f32 0.0, %v3079
        %v3081 = vpop.f32.mrf.mxu0
        %v3082 = vadd.f32 0.0, %v3081
        %3083 = vmatprep.mubr.f32.mxu0 0.0
        %3084 = vmatmul.mubr.f32.gmra.mxu0 %v2894
        %v3085 = vpop.f32.mrf.mxu0
        %v3086 = vadd.f32 0.0, %v3085
        %v3087 = vpop.f32.mrf.mxu0
        %v3088 = vadd.f32 0.0, %v3087
        %3089 = vmatprep.mubr.f32.mxu0 0.0
        %3090 = vmatmul.mubr.f32.gmra.mxu0 %v2897
        %v3091 = vpop.f32.mrf.mxu0
        %v3092 = vadd.f32 0.0, %v3091
        %v3093 = vpop.f32.mrf.mxu0
        %v3094 = vadd.f32 0.0, %v3093
        %3095 = vmatprep.mubr.f32.mxu0 0.0
        %3096 = vmatmul.mubr.f32.gmra.mxu0 %v2900
        %v3097 = vpop.f32.mrf.mxu0
        %v3098 = vadd.f32 0.0, %v3097
        %v3099 = vpop.f32.mrf.mxu0
        %v3100 = vadd.f32 0.0, %v3099
        %3101 = vmatprep.mubr.f32.mxu0 0.0
        %3102 = vmatmul.mubr.f32.gmra.mxu0 %v2903
        %v3103 = vpop.f32.mrf.mxu0
        %v3104 = vadd.f32 0.0, %v3103
        %v3105 = vpop.f32.mrf.mxu0
        %v3106 = vadd.f32 0.0, %v3105
        %3107 = vmatprep.mubr.f32.mxu0 0.0
        %3108 = vmatmul.mubr.f32.gmra.mxu0 %v2906
        %v3109 = vpop.f32.mrf.mxu0
        %v3110 = vadd.f32 0.0, %v3109
        %v3111 = vpop.f32.mrf.mxu0
        %v3112 = vadd.f32 0.0, %v3111
        %3113 = vmatprep.mubr.f32.mxu0 0.0
        %3114 = vmatmul.mubr.f32.gmra.mxu0 %v2909
        %v3115 = vpop.f32.mrf.mxu0
        %v3116 = vadd.f32 0.0, %v3115
        %v3117 = vpop.f32.mrf.mxu0
        %v3118 = vadd.f32 0.0, %v3117
        %3119 = vmatprep.mubr.f32.mxu0 0.0
        %3120 = vmatmul.mubr.f32.gmra.mxu0 %v2912
        %v3121 = vpop.f32.mrf.mxu0
        %v3122 = vadd.f32 0.0, %v3121
        %v3123 = vpop.f32.mrf.mxu0
        %v3124 = vadd.f32 0.0, %v3123
        %3125 = vmatprep.mubr.f32.mxu0 0.0
        %3126 = vmatmul.mubr.f32.gmra.mxu0 %v2915
        %v3127 = vpop.f32.mrf.mxu0
        %v3128 = vadd.f32 0.0, %v3127
        %v3129 = vpop.f32.mrf.mxu0
        %v3130 = vadd.f32 0.0, %v3129
        %3131 = vmatprep.mubr.f32.mxu0 0.0
        %3132 = vmatmul.mubr.f32.gmra.mxu0 %v2918
        %v3133 = vpop.f32.mrf.mxu0
        %v3134 = vadd.f32 0.0, %v3133
        %v3135 = vpop.f32.mrf.mxu0
        %v3136 = vadd.f32 0.0, %v3135
        %3137 = vmatprep.mubr.f32.mxu0 0.0
        %3138 = vmatmul.mubr.f32.gmra.mxu0 %v2921
        %v3139 = vpop.f32.mrf.mxu0
        %v3140 = vadd.f32 0.0, %v3139
        %v3141 = vpop.f32.mrf.mxu0
        %v3142 = vadd.f32 0.0, %v3141
        %3143 = vdwg.mxu0
        %3144 = vmatprep.subr.mxu0 0.0
        %3145 = vmatpush1.msra.mxu0 0.0
        %3146 = vmatprep.subr.mxu0 0.0
        %3147 = vmatpush1.msra.mxu0 0.0
        %3148 = vmatprep.subr.mxu0 0.0
        %3149 = vmatpush1.msra.mxu0 0.0
        %3150 = vmatprep.subr.mxu0 0.0
        %3151 = vmatpush1.msra.mxu0 0.0
        %3152 = vmatprep.subr.mxu0 0.0
        %3153 = vmatpush1.msra.mxu0 0.0
        %3154 = vmatprep.subr.mxu0 0.0
        %3155 = vmatpush1.msra.mxu0 0.0
        %3156 = vmatprep.subr.mxu0 0.0
        %3157 = vmatpush1.msra.mxu0 0.0
        %3158 = vmatprep.subr.mxu0 0.0
        %3159 = vmatpush1.msra.mxu0 0.0
        %3160 = vmatprep.subr.mxu0 0.0
        %3161 = vmatpush1.msra.mxu0 0.0
        %3162 = vmatprep.subr.mxu0 0.0
        %3163 = vmatpush1.msra.mxu0 0.0
        %3164 = vmatprep.subr.mxu0 0.0
        %3165 = vmatpush1.msra.mxu0 0.0
        %3166 = vmatprep.subr.mxu0 0.0
        %3167 = vmatpush1.msra.mxu0 0.0
        %3168 = vmatprep.subr.mxu0 %v2933
        %3169 = vmatpush1.msra.mxu0 %v2930
        %3170 = vmatprep.subr.mxu0 %v2846
        %3171 = vmatpush1.msra.mxu0 %v2845
        %3172 = vmatprep.subr.mxu0 %v2842
        %3173 = vmatpush1.msra.mxu0 %v2841
        %3174 = vmatprep.subr.mxu0 %v2838
        %3175 = vmatpush1.msra.mxu0 %v2837
        %3176 = vmatprep.subr.mxu0 0.0
        %3177 = vmatpush2.msra.mxu0 0.0
        %3178 = vmatprep.subr.mxu0 0.0
        %3179 = vmatpush2.msra.mxu0 0.0
        %3180 = vmatprep.subr.mxu0 0.0
        %3181 = vmatpush2.msra.mxu0 0.0
        %3182 = vmatprep.subr.mxu0 0.0
        %3183 = vmatpush2.msra.mxu0 0.0
        %3184 = vmatprep.subr.mxu0 0.0
        %3185 = vmatpush2.msra.mxu0 0.0
        %3186 = vmatprep.subr.mxu0 0.0
        %3187 = vmatpush2.msra.mxu0 0.0
        %3188 = vmatprep.subr.mxu0 0.0
        %3189 = vmatpush2.msra.mxu0 0.0
        %3190 = vmatprep.subr.mxu0 0.0
        %3191 = vmatpush2.msra.mxu0 0.0
        %3192 = vmatprep.subr.mxu0 0.0
        %3193 = vmatpush2.msra.mxu0 0.0
        %3194 = vmatprep.subr.mxu0 0.0
        %3195 = vmatpush2.msra.mxu0 0.0
        %3196 = vmatprep.subr.mxu0 0.0
        %3197 = vmatpush2.msra.mxu0 0.0
        %3198 = vmatprep.subr.mxu0 0.0
        %3199 = vmatpush2.msra.mxu0 0.0
        %3200 = vmatprep.subr.mxu0 0.0
        %3201 = vmatpush2.msra.mxu0 0.0
        %3202 = vmatprep.subr.mxu0 0.0
        %3203 = vmatpush2.msra.mxu0 0.0
        %3204 = vmatprep.subr.mxu0 0.0
        %3205 = vmatpush2.msra.mxu0 0.0
        %3206 = vmatprep.subr.mxu0 0.0
        %3207 = vmatpush2.msra.mxu0 0.0
        %3208 = vmatprep.mubr.f32.mxu0 0.0
        %3209 = vmatmul.mubr.f32.gmra.mxu0 %v2852
        %v3210 = vpop.f32.mrf.mxu0
        %v3211 = vadd.f32 0.0, %v3210
        %v3212 = vpop.f32.mrf.mxu0
        %v3213 = vadd.f32 0.0, %v3212
        %3214 = vmatprep.mubr.f32.mxu0 0.0
        %3215 = vmatmul.mubr.f32.gmra.mxu0 %v2855
        %v3216 = vpop.f32.mrf.mxu0
        %v3217 = vadd.f32 0.0, %v3216
        %v3218 = vpop.f32.mrf.mxu0
        %v3219 = vadd.f32 0.0, %v3218
        %3220 = vmatprep.mubr.f32.mxu0 0.0
        %3221 = vmatmul.mubr.f32.gmra.mxu0 %v2858
        %v3222 = vpop.f32.mrf.mxu0
        %v3223 = vadd.f32 0.0, %v3222
        %v3224 = vpop.f32.mrf.mxu0
        %v3225 = vadd.f32 0.0, %v3224
        %3226 = vmatprep.mubr.f32.mxu0 0.0
        %3227 = vmatmul.mubr.f32.gmra.mxu0 %v2861
        %v3228 = vpop.f32.mrf.mxu0
        %v3229 = vadd.f32 0.0, %v3228
        %v3230 = vpop.f32.mrf.mxu0
        %v3231 = vadd.f32 0.0, %v3230
        %3232 = vmatprep.mubr.f32.mxu0 0.0
        %3233 = vmatmul.mubr.f32.gmra.mxu0 %v2864
        %v3234 = vpop.f32.mrf.mxu0
        %v3235 = vadd.f32 0.0, %v3234
        %v3236 = vpop.f32.mrf.mxu0
        %v3237 = vadd.f32 0.0, %v3236
        %3238 = vmatprep.mubr.f32.mxu0 0.0
        %3239 = vmatmul.mubr.f32.gmra.mxu0 %v2867
        %v3240 = vpop.f32.mrf.mxu0
        %v3241 = vadd.f32 0.0, %v3240
        %v3242 = vpop.f32.mrf.mxu0
        %v3243 = vadd.f32 0.0, %v3242
        %3244 = vmatprep.mubr.f32.mxu0 0.0
        %3245 = vmatmul.mubr.f32.gmra.mxu0 %v2870
        %v3246 = vpop.f32.mrf.mxu0
        %v3247 = vadd.f32 0.0, %v3246
        %v3248 = vpop.f32.mrf.mxu0
        %v3249 = vadd.f32 0.0, %v3248
        %3250 = vmatprep.mubr.f32.mxu0 0.0
        %3251 = vmatmul.mubr.f32.gmra.mxu0 %v2873
        %v3252 = vpop.f32.mrf.mxu0
        %v3253 = vadd.f32 0.0, %v3252
        %v3254 = vpop.f32.mrf.mxu0
        %v3255 = vadd.f32 0.0, %v3254
        %3256 = vmatprep.mubr.f32.mxu0 0.0
        %3257 = vmatmul.mubr.f32.gmra.mxu0 %v2876
        %v3258 = vpop.f32.mrf.mxu0
        %v3259 = vadd.f32 0.0, %v3258
        %v3260 = vpop.f32.mrf.mxu0
        %v3261 = vadd.f32 0.0, %v3260
        %3262 = vmatprep.mubr.f32.mxu0 0.0
        %3263 = vmatmul.mubr.f32.gmra.mxu0 %v2879
        %v3264 = vpop.f32.mrf.mxu0
        %v3265 = vadd.f32 0.0, %v3264
        %v3266 = vpop.f32.mrf.mxu0
        %v3267 = vadd.f32 0.0, %v3266
        %3268 = vmatprep.mubr.f32.mxu0 0.0
        %3269 = vmatmul.mubr.f32.gmra.mxu0 %v2882
        %v3270 = vpop.f32.mrf.mxu0
        %v3271 = vadd.f32 0.0, %v3270
        %v3272 = vpop.f32.mrf.mxu0
        %v3273 = vadd.f32 0.0, %v3272
        %3274 = vmatprep.mubr.f32.mxu0 0.0
        %3275 = vmatmul.mubr.f32.gmra.mxu0 %v2885
        %v3276 = vpop.f32.mrf.mxu0
        %v3277 = vadd.f32 0.0, %v3276
        %v3278 = vpop.f32.mrf.mxu0
        %v3279 = vadd.f32 0.0, %v3278
        %3280 = vmatprep.mubr.f32.mxu0 0.0
        %3281 = vmatmul.mubr.f32.gmra.mxu0 %v2888
        %v3282 = vpop.f32.mrf.mxu0
        %v3283 = vadd.f32 0.0, %v3282
        %v3284 = vpop.f32.mrf.mxu0
        %v3285 = vadd.f32 0.0, %v3284
        %3286 = vmatprep.mubr.f32.mxu0 0.0
        %3287 = vmatmul.mubr.f32.gmra.mxu0 %v2891
        %v3288 = vpop.f32.mrf.mxu0
        %v3289 = vadd.f32 0.0, %v3288
        %v3290 = vpop.f32.mrf.mxu0
        %v3291 = vadd.f32 0.0, %v3290
        %3292 = vmatprep.mubr.f32.mxu0 0.0
        %3293 = vmatmul.mubr.f32.gmra.mxu0 %v2894
        %v3294 = vpop.f32.mrf.mxu0
        %v3295 = vadd.f32 0.0, %v3294
        %v3296 = vpop.f32.mrf.mxu0
        %v3297 = vadd.f32 0.0, %v3296
        %3298 = vmatprep.mubr.f32.mxu0 0.0
        %3299 = vmatmul.mubr.f32.gmra.mxu0 %v2897
        %v3300 = vpop.f32.mrf.mxu0
        %v3301 = vadd.f32 0.0, %v3300
        %v3302 = vpop.f32.mrf.mxu0
        %v3303 = vadd.f32 0.0, %v3302
        %3304 = vmatprep.mubr.f32.mxu0 0.0
        %3305 = vmatmul.mubr.f32.gmra.mxu0 %v2900
        %v3306 = vpop.f32.mrf.mxu0
        %v3307 = vadd.f32 0.0, %v3306
        %v3308 = vpop.f32.mrf.mxu0
        %v3309 = vadd.f32 0.0, %v3308
        %3310 = vmatprep.mubr.f32.mxu0 0.0
        %3311 = vmatmul.mubr.f32.gmra.mxu0 %v2903
        %v3312 = vpop.f32.mrf.mxu0
        %v3313 = vadd.f32 0.0, %v3312
        %v3314 = vpop.f32.mrf.mxu0
        %v3315 = vadd.f32 0.0, %v3314
        %3316 = vmatprep.mubr.f32.mxu0 0.0
        %3317 = vmatmul.mubr.f32.gmra.mxu0 %v2906
        %v3318 = vpop.f32.mrf.mxu0
        %v3319 = vadd.f32 0.0, %v3318
        %v3320 = vpop.f32.mrf.mxu0
        %v3321 = vadd.f32 0.0, %v3320
        %3322 = vmatprep.mubr.f32.mxu0 0.0
        %3323 = vmatmul.mubr.f32.gmra.mxu0 %v2909
        %v3324 = vpop.f32.mrf.mxu0
        %v3325 = vadd.f32 0.0, %v3324
        %v3326 = vpop.f32.mrf.mxu0
        %v3327 = vadd.f32 0.0, %v3326
        %3328 = vmatprep.mubr.f32.mxu0 0.0
        %3329 = vmatmul.mubr.f32.gmra.mxu0 %v2912
        %v3330 = vpop.f32.mrf.mxu0
        %v3331 = vadd.f32 0.0, %v3330
        %v3332 = vpop.f32.mrf.mxu0
        %v3333 = vadd.f32 0.0, %v3332
        %3334 = vmatprep.mubr.f32.mxu0 0.0
        %3335 = vmatmul.mubr.f32.gmra.mxu0 %v2915
        %v3336 = vpop.f32.mrf.mxu0
        %v3337 = vadd.f32 0.0, %v3336
        %v3338 = vpop.f32.mrf.mxu0
        %v3339 = vadd.f32 0.0, %v3338
        %3340 = vmatprep.mubr.f32.mxu0 0.0
        %3341 = vmatmul.mubr.f32.gmra.mxu0 %v2918
        %v3342 = vpop.f32.mrf.mxu0
        %v3343 = vadd.f32 0.0, %v3342
        %v3344 = vpop.f32.mrf.mxu0
        %v3345 = vadd.f32 0.0, %v3344
        %3346 = vmatprep.mubr.f32.mxu0 0.0
        %3347 = vmatmul.mubr.f32.gmra.mxu0 %v2921
        %v3348 = vpop.f32.mrf.mxu0
        %v3349 = vadd.f32 0.0, %v3348
        %v3350 = vpop.f32.mrf.mxu0
        %v3351 = vadd.f32 0.0, %v3350
        %3352 = vdwg.mxu0
        %v3353 = vadd.f32 %v2714, %v3002
        %v3354 = vadd.f32 %v2715, %v3004
        %v3355 = vadd.f32 %v2716, %v3211
        %v3356 = vadd.f32 %v2717, %v3213
        %v3357 = vadd.f32 %v2718, %v3008
        %v3358 = vadd.f32 %v2719, %v3010
        %v3359 = vadd.f32 %v2720, %v3217
        %v3360 = vadd.f32 %v2721, %v3219
        %v3361 = vadd.f32 %v2722, %v3014
        %v3362 = vadd.f32 %v2723, %v3016
        %v3363 = vadd.f32 %v2724, %v3223
        %v3364 = vadd.f32 %v2725, %v3225
        %v3365 = vadd.f32 %v2726, %v3020
        %v3366 = vadd.f32 %v2727, %v3022
        %v3367 = vadd.f32 %v2728, %v3229
        %v3368 = vadd.f32 %v2729, %v3231
        %v3369 = vadd.f32 %v2730, %v3026
        %v3370 = vadd.f32 %v2731, %v3028
        %v3371 = vadd.f32 %v2732, %v3235
        %v3372 = vadd.f32 %v2733, %v3237
        %v3373 = vadd.f32 %v2734, %v3032
        %v3374 = vadd.f32 %v2735, %v3034
        %v3375 = vadd.f32 %v2736, %v3241
        %v3376 = vadd.f32 %v2737, %v3243
        %v3377 = vadd.f32 %v2738, %v3038
        %v3378 = vadd.f32 %v2739, %v3040
        %v3379 = vadd.f32 %v2740, %v3247
        %v3380 = vadd.f32 %v2741, %v3249
        %v3381 = vadd.f32 %v2742, %v3044
        %v3382 = vadd.f32 %v2743, %v3046
        %v3383 = vadd.f32 %v2744, %v3253
        %v3384 = vadd.f32 %v2745, %v3255
        %v3385 = vadd.f32 %v2746, %v3050
        %v3386 = vadd.f32 %v2747, %v3052
        %v3387 = vadd.f32 %v2748, %v3259
        %v3388 = vadd.f32 %v2749, %v3261
        %v3389 = vadd.f32 %v2750, %v3056
        %v3390 = vadd.f32 %v2751, %v3058
        %v3391 = vadd.f32 %v2752, %v3265
        %v3392 = vadd.f32 %v2753, %v3267
        %v3393 = vadd.f32 %v2754, %v3062
        %v3394 = vadd.f32 %v2755, %v3064
        %v3395 = vadd.f32 %v2756, %v3271
        %v3396 = vadd.f32 %v2757, %v3273
        %v3397 = vadd.f32 %v2758, %v3068
        %v3398 = vadd.f32 %v2759, %v3070
        %v3399 = vadd.f32 %v2760, %v3277
        %v3400 = vadd.f32 %v2761, %v3279
        %v3401 = vadd.f32 %v2762, %v3074
        %v3402 = vadd.f32 %v2763, %v3076
        %v3403 = vadd.f32 %v2764, %v3283
        %v3404 = vadd.f32 %v2765, %v3285
        %v3405 = vadd.f32 %v2766, %v3080
        %v3406 = vadd.f32 %v2767, %v3082
        %v3407 = vadd.f32 %v2768, %v3289
        %v3408 = vadd.f32 %v2769, %v3291
        %v3409 = vadd.f32 %v2770, %v3086
        %v3410 = vadd.f32 %v2771, %v3088
        %v3411 = vadd.f32 %v2772, %v3295
        %v3412 = vadd.f32 %v2773, %v3297
        %v3413 = vadd.f32 %v2774, %v3092
        %v3414 = vadd.f32 %v2775, %v3094
        %v3415 = vadd.f32 %v2776, %v3301
        %v3416 = vadd.f32 %v2777, %v3303
        %v3417 = vadd.f32 %v2778, %v3098
        %v3418 = vadd.f32 %v2779, %v3100
        %v3419 = vadd.f32 %v2780, %v3307
        %v3420 = vadd.f32 %v2781, %v3309
        %v3421 = vadd.f32 %v2782, %v3104
        %v3422 = vadd.f32 %v2783, %v3106
        %v3423 = vadd.f32 %v2784, %v3313
        %v3424 = vadd.f32 %v2785, %v3315
        %v3425 = vadd.f32 %v2786, %v3110
        %v3426 = vadd.f32 %v2787, %v3112
        %v3427 = vadd.f32 %v2788, %v3319
        %v3428 = vadd.f32 %v2789, %v3321
        %v3429 = vadd.f32 %v2790, %v3116
        %v3430 = vadd.f32 %v2791, %v3118
        %v3431 = vadd.f32 %v2792, %v3325
        %v3432 = vadd.f32 %v2793, %v3327
        %v3433 = vadd.f32 %v2794, %v3122
        %v3434 = vadd.f32 %v2795, %v3124
        %v3435 = vadd.f32 %v2796, %v3331
        %v3436 = vadd.f32 %v2797, %v3333
        %v3437 = vadd.f32 %v2798, %v3128
        %v3438 = vadd.f32 %v2799, %v3130
        %v3439 = vadd.f32 %v2800, %v3337
        %v3440 = vadd.f32 %v2801, %v3339
        %v3441 = vadd.f32 %v2802, %v3134
        %v3442 = vadd.f32 %v2803, %v3136
        %v3443 = vadd.f32 %v2804, %v3343
        %v3444 = vadd.f32 %v2805, %v3345
        %v3445 = vadd.f32 %v2806, %v3140
        %v3446 = vadd.f32 %v2807, %v3142
        %v3447 = vadd.f32 %v2808, %v3349
        %v3448 = vadd.f32 %v2809, %v3351
        %v3449 = vld [vmem:[#allocation8] sm:$0xf]
        %v3451 = vlaneseq
        %v3452 = vshrl.u32 %v3451, 7
        %v3453 = vsub.s32 0, %v3452
        %v3454 = vrot.slane %v3449, %v3453
        %v3455 = vlaneseq
        %v3456 = vshrl.u32 %v3455, 7
        %v3457 = vsub.s32 1, %v3456
        %v3458 = vrot.slane %v3449, %v3457
        %v3459 = vlaneseq
        %v3460 = vshrl.u32 %v3459, 7
        %v3461 = vsub.s32 2, %v3460
        %v3462 = vrot.slane %v3449, %v3461
        %v3463 = vlaneseq
        %v3464 = vshrl.u32 %v3463, 7
        %v3465 = vsub.s32 3, %v3464
        %v3466 = vrot.slane %v3449, %v3465
        %v3471 = vadd.f32 %v3353, %v3454
        %v3472 = vadd.f32 %v3354, %v3458
        %v3473 = vadd.f32 %v3355, %v3462
        %v3474 = vadd.f32 %v3356, %v3466
        %v3475 = vadd.f32 %v3357, %v3454
        %v3476 = vadd.f32 %v3358, %v3458
        %v3477 = vadd.f32 %v3359, %v3462
        %v3478 = vadd.f32 %v3360, %v3466
        %v3479 = vadd.f32 %v3361, %v3454
        %v3480 = vadd.f32 %v3362, %v3458
        %v3481 = vadd.f32 %v3363, %v3462
        %v3482 = vadd.f32 %v3364, %v3466
        %v3483 = vadd.f32 %v3365, %v3454
        %v3484 = vadd.f32 %v3366, %v3458
        %v3485 = vadd.f32 %v3367, %v3462
        %v3486 = vadd.f32 %v3368, %v3466
        %v3487 = vadd.f32 %v3369, %v3454
        %v3488 = vadd.f32 %v3370, %v3458
        %v3489 = vadd.f32 %v3371, %v3462
        %v3490 = vadd.f32 %v3372, %v3466
        %v3491 = vadd.f32 %v3373, %v3454
        %v3492 = vadd.f32 %v3374, %v3458
        %v3493 = vadd.f32 %v3375, %v3462
        %v3494 = vadd.f32 %v3376, %v3466
        %v3495 = vadd.f32 %v3377, %v3454
        %v3496 = vadd.f32 %v3378, %v3458
        %v3497 = vadd.f32 %v3379, %v3462
        %v3498 = vadd.f32 %v3380, %v3466
        %v3499 = vadd.f32 %v3381, %v3454
        %v3500 = vadd.f32 %v3382, %v3458
        %v3501 = vadd.f32 %v3383, %v3462
        %v3502 = vadd.f32 %v3384, %v3466
        %v3503 = vadd.f32 %v3385, %v3454
        %v3504 = vadd.f32 %v3386, %v3458
        %v3505 = vadd.f32 %v3387, %v3462
        %v3506 = vadd.f32 %v3388, %v3466
        %v3507 = vadd.f32 %v3389, %v3454
        %v3508 = vadd.f32 %v3390, %v3458
        %v3509 = vadd.f32 %v3391, %v3462
        %v3510 = vadd.f32 %v3392, %v3466
        %v3511 = vadd.f32 %v3393, %v3454
        %v3512 = vadd.f32 %v3394, %v3458
        %v3513 = vadd.f32 %v3395, %v3462
        %v3514 = vadd.f32 %v3396, %v3466
        %v3515 = vadd.f32 %v3397, %v3454
        %v3516 = vadd.f32 %v3398, %v3458
        %v3517 = vadd.f32 %v3399, %v3462
        %v3518 = vadd.f32 %v3400, %v3466
        %v3519 = vadd.f32 %v3401, %v3454
        %v3520 = vadd.f32 %v3402, %v3458
        %v3521 = vadd.f32 %v3403, %v3462
        %v3522 = vadd.f32 %v3404, %v3466
        %v3523 = vadd.f32 %v3405, %v3454
        %v3524 = vadd.f32 %v3406, %v3458
        %v3525 = vadd.f32 %v3407, %v3462
        %v3526 = vadd.f32 %v3408, %v3466
        %v3527 = vadd.f32 %v3409, %v3454
        %v3528 = vadd.f32 %v3410, %v3458
        %v3529 = vadd.f32 %v3411, %v3462
        %v3530 = vadd.f32 %v3412, %v3466
        %v3531 = vadd.f32 %v3413, %v3454
        %v3532 = vadd.f32 %v3414, %v3458
        %v3533 = vadd.f32 %v3415, %v3462
        %v3534 = vadd.f32 %v3416, %v3466
        %v3535 = vadd.f32 %v3417, %v3454
        %v3536 = vadd.f32 %v3418, %v3458
        %v3537 = vadd.f32 %v3419, %v3462
        %v3538 = vadd.f32 %v3420, %v3466
        %v3539 = vadd.f32 %v3421, %v3454
        %v3540 = vadd.f32 %v3422, %v3458
        %v3541 = vadd.f32 %v3423, %v3462
        %v3542 = vadd.f32 %v3424, %v3466
        %v3543 = vadd.f32 %v3425, %v3454
        %v3544 = vadd.f32 %v3426, %v3458
        %v3545 = vadd.f32 %v3427, %v3462
        %v3546 = vadd.f32 %v3428, %v3466
        %v3547 = vadd.f32 %v3429, %v3454
        %v3548 = vadd.f32 %v3430, %v3458
        %v3549 = vadd.f32 %v3431, %v3462
        %v3550 = vadd.f32 %v3432, %v3466
        %v3551 = vadd.f32 %v3433, %v3454
        %v3552 = vadd.f32 %v3434, %v3458
        %v3553 = vadd.f32 %v3435, %v3462
        %v3554 = vadd.f32 %v3436, %v3466
        %v3555 = vadd.f32 %v3437, %v3454
        %v3556 = vadd.f32 %v3438, %v3458
        %v3557 = vadd.f32 %v3439, %v3462
        %v3558 = vadd.f32 %v3440, %v3466
        %v3559 = vadd.f32 %v3441, %v3454
        %v3560 = vadd.f32 %v3442, %v3458
        %v3561 = vadd.f32 %v3443, %v3462
        %v3562 = vadd.f32 %v3444, %v3466
        %v3563 = vadd.f32 %v3445, %v3454
        %v3564 = vadd.f32 %v3446, %v3458
        %v3565 = vadd.f32 %v3447, %v3462
        %v3566 = vadd.f32 %v3448, %v3466
        %v3567 = vmax.f32 %v3471, 0.0
        %v3568 = vmax.f32 %v3472, 0.0
        %v3569 = vmax.f32 %v3473, 0.0
        %v3570 = vmax.f32 %v3474, 0.0
        %v3571 = vmax.f32 %v3475, 0.0
        %v3572 = vmax.f32 %v3476, 0.0
        %v3573 = vmax.f32 %v3477, 0.0
        %v3574 = vmax.f32 %v3478, 0.0
        %v3575 = vmax.f32 %v3479, 0.0
        %v3576 = vmax.f32 %v3480, 0.0
        %v3577 = vmax.f32 %v3481, 0.0
        %v3578 = vmax.f32 %v3482, 0.0
        %v3579 = vmax.f32 %v3483, 0.0
        %v3580 = vmax.f32 %v3484, 0.0
        %v3581 = vmax.f32 %v3485, 0.0
        %v3582 = vmax.f32 %v3486, 0.0
        %v3583 = vmax.f32 %v3487, 0.0
        %v3584 = vmax.f32 %v3488, 0.0
        %v3585 = vmax.f32 %v3489, 0.0
        %v3586 = vmax.f32 %v3490, 0.0
        %v3587 = vmax.f32 %v3491, 0.0
        %v3588 = vmax.f32 %v3492, 0.0
        %v3589 = vmax.f32 %v3493, 0.0
        %v3590 = vmax.f32 %v3494, 0.0
        %v3591 = vmax.f32 %v3495, 0.0
        %v3592 = vmax.f32 %v3496, 0.0
        %v3593 = vmax.f32 %v3497, 0.0
        %v3594 = vmax.f32 %v3498, 0.0
        %v3595 = vmax.f32 %v3499, 0.0
        %v3596 = vmax.f32 %v3500, 0.0
        %v3597 = vmax.f32 %v3501, 0.0
        %v3598 = vmax.f32 %v3502, 0.0
        %v3599 = vmax.f32 %v3503, 0.0
        %v3600 = vmax.f32 %v3504, 0.0
        %v3601 = vmax.f32 %v3505, 0.0
        %v3602 = vmax.f32 %v3506, 0.0
        %v3603 = vmax.f32 %v3507, 0.0
        %v3604 = vmax.f32 %v3508, 0.0
        %v3605 = vmax.f32 %v3509, 0.0
        %v3606 = vmax.f32 %v3510, 0.0
        %v3607 = vmax.f32 %v3511, 0.0
        %v3608 = vmax.f32 %v3512, 0.0
        %v3609 = vmax.f32 %v3513, 0.0
        %v3610 = vmax.f32 %v3514, 0.0
        %v3611 = vmax.f32 %v3515, 0.0
        %v3612 = vmax.f32 %v3516, 0.0
        %v3613 = vmax.f32 %v3517, 0.0
        %v3614 = vmax.f32 %v3518, 0.0
        %v3615 = vmax.f32 %v3519, 0.0
        %v3616 = vmax.f32 %v3520, 0.0
        %v3617 = vmax.f32 %v3521, 0.0
        %v3618 = vmax.f32 %v3522, 0.0
        %v3619 = vmax.f32 %v3523, 0.0
        %v3620 = vmax.f32 %v3524, 0.0
        %v3621 = vmax.f32 %v3525, 0.0
        %v3622 = vmax.f32 %v3526, 0.0
        %v3623 = vmax.f32 %v3527, 0.0
        %v3624 = vmax.f32 %v3528, 0.0
        %v3625 = vmax.f32 %v3529, 0.0
        %v3626 = vmax.f32 %v3530, 0.0
        %v3627 = vmax.f32 %v3531, 0.0
        %v3628 = vmax.f32 %v3532, 0.0
        %v3629 = vmax.f32 %v3533, 0.0
        %v3630 = vmax.f32 %v3534, 0.0
        %v3631 = vmax.f32 %v3535, 0.0
        %v3632 = vmax.f32 %v3536, 0.0
        %v3633 = vmax.f32 %v3537, 0.0
        %v3634 = vmax.f32 %v3538, 0.0
        %v3635 = vmax.f32 %v3539, 0.0
        %v3636 = vmax.f32 %v3540, 0.0
        %v3637 = vmax.f32 %v3541, 0.0
        %v3638 = vmax.f32 %v3542, 0.0
        %v3639 = vmax.f32 %v3543, 0.0
        %v3640 = vmax.f32 %v3544, 0.0
        %v3641 = vmax.f32 %v3545, 0.0
        %v3642 = vmax.f32 %v3546, 0.0
        %v3643 = vmax.f32 %v3547, 0.0
        %v3644 = vmax.f32 %v3548, 0.0
        %v3645 = vmax.f32 %v3549, 0.0
        %v3646 = vmax.f32 %v3550, 0.0
        %v3647 = vmax.f32 %v3551, 0.0
        %v3648 = vmax.f32 %v3552, 0.0
        %v3649 = vmax.f32 %v3553, 0.0
        %v3650 = vmax.f32 %v3554, 0.0
        %v3651 = vmax.f32 %v3555, 0.0
        %v3652 = vmax.f32 %v3556, 0.0
        %v3653 = vmax.f32 %v3557, 0.0
        %v3654 = vmax.f32 %v3558, 0.0
        %v3655 = vmax.f32 %v3559, 0.0
        %v3656 = vmax.f32 %v3560, 0.0
        %v3657 = vmax.f32 %v3561, 0.0
        %v3658 = vmax.f32 %v3562, 0.0
        %v3659 = vmax.f32 %v3563, 0.0
        %v3660 = vmax.f32 %v3564, 0.0
        %v3661 = vmax.f32 %v3565, 0.0
        %v3662 = vmax.f32 %v3566, 0.0
        %v3663 = vmax.f32 %v3567, %v3569
        %v3664 = vmax.f32 %v3568, %v3570
        %v3665 = vmax.f32 %v3571, %v3573
        %v3666 = vmax.f32 %v3572, %v3574
        %v3667 = vmax.f32 %v3575, %v3577
        %v3668 = vmax.f32 %v3576, %v3578
        %v3669 = vmax.f32 %v3579, %v3581
        %v3670 = vmax.f32 %v3580, %v3582
        %v3671 = vmax.f32 %v3583, %v3585
        %v3672 = vmax.f32 %v3584, %v3586
        %v3673 = vmax.f32 %v3587, %v3589
        %v3674 = vmax.f32 %v3588, %v3590
        %v3675 = vmax.f32 %v3591, %v3593
        %v3676 = vmax.f32 %v3592, %v3594
        %v3677 = vmax.f32 %v3595, %v3597
        %v3678 = vmax.f32 %v3596, %v3598
        %v3679 = vmax.f32 %v3599, %v3601
        %v3680 = vmax.f32 %v3600, %v3602
        %v3681 = vmax.f32 %v3603, %v3605
        %v3682 = vmax.f32 %v3604, %v3606
        %v3683 = vmax.f32 %v3607, %v3609
        %v3684 = vmax.f32 %v3608, %v3610
        %v3685 = vmax.f32 %v3611, %v3613
        %v3686 = vmax.f32 %v3612, %v3614
        %v3687 = vmax.f32 %v3615, %v3617
        %v3688 = vmax.f32 %v3616, %v3618
        %v3689 = vmax.f32 %v3619, %v3621
        %v3690 = vmax.f32 %v3620, %v3622
        %v3691 = vmax.f32 %v3623, %v3625
        %v3692 = vmax.f32 %v3624, %v3626
        %v3693 = vmax.f32 %v3627, %v3629
        %v3694 = vmax.f32 %v3628, %v3630
        %v3695 = vmax.f32 %v3631, %v3633
        %v3696 = vmax.f32 %v3632, %v3634
        %v3697 = vmax.f32 %v3635, %v3637
        %v3698 = vmax.f32 %v3636, %v3638
        %v3699 = vmax.f32 %v3639, %v3641
        %v3700 = vmax.f32 %v3640, %v3642
        %v3701 = vmax.f32 %v3643, %v3645
        %v3702 = vmax.f32 %v3644, %v3646
        %v3703 = vmax.f32 %v3647, %v3649
        %v3704 = vmax.f32 %v3648, %v3650
        %v3705 = vmax.f32 %v3651, %v3653
        %v3706 = vmax.f32 %v3652, %v3654
        %v3707 = vmax.f32 %v3655, %v3657
        %v3708 = vmax.f32 %v3656, %v3658
        %v3709 = vmax.f32 %v3659, %v3661
        %v3710 = vmax.f32 %v3660, %v3662
        %3711 = vst [vmem:[#allocation2] sm:$0xff] %v3663
        %3712 = vst [vmem:[#allocation2 + $0x8] sm:$0xff] %v3664
        %3713 = vst [vmem:[#allocation2 + $0x10] sm:$0xff] %v3665
        %3714 = vst [vmem:[#allocation2 + $0x18] sm:$0xff] %v3666
        %3715 = vst [vmem:[#allocation2 + $0x20] sm:$0xff] %v3667
        %3716 = vst [vmem:[#allocation2 + $0x28] sm:$0xff] %v3668
        %3717 = vst [vmem:[#allocation2 + $0x30] sm:$0xff] %v3669
        %3718 = vst [vmem:[#allocation2 + $0x38] sm:$0xff] %v3670
        %3719 = vst [vmem:[#allocation2 + $0x40] sm:$0xff] %v3671
        %3720 = vst [vmem:[#allocation2 + $0x48] sm:$0xff] %v3672
        %3721 = vst [vmem:[#allocation2 + $0x50] sm:$0xff] %v3673
        %3722 = vst [vmem:[#allocation2 + $0x58] sm:$0xff] %v3674
        %3723 = vst [vmem:[#allocation2 + $0x60] sm:$0xff] %v3675
        %3724 = vst [vmem:[#allocation2 + $0x68] sm:$0xff] %v3676
        %3725 = vst [vmem:[#allocation2 + $0x70] sm:$0xff] %v3677
        %3726 = vst [vmem:[#allocation2 + $0x78] sm:$0xff] %v3678
        %3727 = vst [vmem:[#allocation2 + $0x80] sm:$0xff] %v3679
        %3728 = vst [vmem:[#allocation2 + $0x88] sm:$0xff] %v3680
        %3729 = vst [vmem:[#allocation2 + $0x90] sm:$0xff] %v3681
        %3730 = vst [vmem:[#allocation2 + $0x98] sm:$0xff] %v3682
        %3731 = vst [vmem:[#allocation2 + $0xa0] sm:$0xff] %v3683
        %3732 = vst [vmem:[#allocation2 + $0xa8] sm:$0xff] %v3684
        %3733 = vst [vmem:[#allocation2 + $0xb0] sm:$0xff] %v3685
        %3734 = vst [vmem:[#allocation2 + $0xb8] sm:$0xff] %v3686
        %3735 = vst [vmem:[#allocation2 + $0xc0] sm:$0xff] %v3687
        %3736 = vst [vmem:[#allocation2 + $0xc8] sm:$0xff] %v3688
        %3737 = vst [vmem:[#allocation2 + $0xd0] sm:$0xff] %v3689
        %3738 = vst [vmem:[#allocation2 + $0xd8] sm:$0xff] %v3690
        %3739 = vst [vmem:[#allocation2 + $0xe0] sm:$0xff] %v3691
        %3740 = vst [vmem:[#allocation2 + $0xe8] sm:$0xff] %v3692
        %3741 = vst [vmem:[#allocation2 + $0xf0] sm:$0xff] %v3693
        %3742 = vst [vmem:[#allocation2 + $0xf8] sm:$0xff] %v3694
        %3743 = vst [vmem:[#allocation2 + $0x100] sm:$0xff] %v3695
        %3744 = vst [vmem:[#allocation2 + $0x108] sm:$0xff] %v3696
        %3745 = vst [vmem:[#allocation2 + $0x110] sm:$0xff] %v3697
        %3746 = vst [vmem:[#allocation2 + $0x118] sm:$0xff] %v3698
        %3747 = vst [vmem:[#allocation2 + $0x120] sm:$0xff] %v3699
        %3748 = vst [vmem:[#allocation2 + $0x128] sm:$0xff] %v3700
        %3749 = vst [vmem:[#allocation2 + $0x130] sm:$0xff] %v3701
        %3750 = vst [vmem:[#allocation2 + $0x138] sm:$0xff] %v3702
        %3751 = vst [vmem:[#allocation2 + $0x140] sm:$0xff] %v3703
        %3752 = vst [vmem:[#allocation2 + $0x148] sm:$0xff] %v3704
        %3753 = vst [vmem:[#allocation2 + $0x150] sm:$0xff] %v3705
        %3754 = vst [vmem:[#allocation2 + $0x158] sm:$0xff] %v3706
        %3755 = vst [vmem:[#allocation2 + $0x160] sm:$0xff] %v3707
        %3756 = vst [vmem:[#allocation2 + $0x168] sm:$0xff] %v3708
        %3757 = vst [vmem:[#allocation2 + $0x170] sm:$0xff] %v3709
        %3758 = vst [vmem:[#allocation2 + $0x178] sm:$0xff] %v3710
        %v3759 = vld [vmem:[#allocation2] ss:$8 sm:$0x3]
        %s3760 = scalar_lea.vmem [#allocation2], 48
        %v3761 = vld [vmem:[%s3760] ss:$8 sm:$0x3]
        %s3762 = scalar_lea.vmem [#allocation2], 96
        %v3763 = vld [vmem:[%s3762] ss:$8 sm:$0x3]
        %s3764 = scalar_lea.vmem [#allocation2], 144
        %v3765 = vld [vmem:[%s3764] ss:$8 sm:$0x3]
        %s3766 = scalar_lea.vmem [#allocation2], 192
        %v3767 = vld [vmem:[%s3766] ss:$8 sm:$0x3]
        %s3768 = scalar_lea.vmem [#allocation2], 240
        %v3769 = vld [vmem:[%s3768] ss:$8 sm:$0x3]
        %s3770 = scalar_lea.vmem [#allocation2], 288
        %v3771 = vld [vmem:[%s3770] ss:$8 sm:$0x3]
        %s3772 = scalar_lea.vmem [#allocation2], 336
        %v3773 = vld [vmem:[%s3772] ss:$8 sm:$0x3]
        %s3774 = scalar_lea.vmem [#allocation2], 1
        %v3775 = vld [vmem:[%s3774] ss:$8 sm:$0x3]
        %s3776 = scalar_lea.vmem [#allocation2], 49
        %v3777 = vld [vmem:[%s3776] ss:$8 sm:$0x3]
        %s3778 = scalar_lea.vmem [#allocation2], 97
        %v3779 = vld [vmem:[%s3778] ss:$8 sm:$0x3]
        %s3780 = scalar_lea.vmem [#allocation2], 145
        %v3781 = vld [vmem:[%s3780] ss:$8 sm:$0x3]
        %s3782 = scalar_lea.vmem [#allocation2], 193
        %v3783 = vld [vmem:[%s3782] ss:$8 sm:$0x3]
        %s3784 = scalar_lea.vmem [#allocation2], 241
        %v3785 = vld [vmem:[%s3784] ss:$8 sm:$0x3]
        %s3786 = scalar_lea.vmem [#allocation2], 289
        %v3787 = vld [vmem:[%s3786] ss:$8 sm:$0x3]
        %s3788 = scalar_lea.vmem [#allocation2], 337
        %v3789 = vld [vmem:[%s3788] ss:$8 sm:$0x3]
        %v3790 = vmax.f32 %v3759, %v3775
        %v3791 = vmax.f32 %v3761, %v3777
        %v3792 = vmax.f32 %v3763, %v3779
        %v3793 = vmax.f32 %v3765, %v3781
        %v3794 = vmax.f32 %v3767, %v3783
        %v3795 = vmax.f32 %v3769, %v3785
        %v3796 = vmax.f32 %v3771, %v3787
        %v3797 = vmax.f32 %v3773, %v3789
        %v3798 = vlaneseq
        %vm3799 = vcmp.ge.s32.totalorder %v3798, 0
        %vm3800 = vcmp.lt.s32.totalorder %v3798, 256
        %vm3801 = vmand %vm3799, %vm3800
        %3802 = vst.msk [vmem:[#allocation3] ss:$8 sm:$0x3] %vm3801, %v3790
        %3803 = vst.msk [vmem:[#allocation3] ss:$8 sm:$0x0] %vm3801, %v3790
        %s3804 = scalar_lea.vmem [#allocation3], 32
        %3805 = vst.msk [vmem:[%s3804] ss:$8 sm:$0x3] %vm3801, %v3791
        %3806 = vst.msk [vmem:[%s3804] ss:$8 sm:$0x0] %vm3801, %v3791
        %s3807 = scalar_lea.vmem [#allocation3], 64
        %3808 = vst.msk [vmem:[%s3807] ss:$8 sm:$0x3] %vm3801, %v3792
        %3809 = vst.msk [vmem:[%s3807] ss:$8 sm:$0x0] %vm3801, %v3792
        %s3810 = scalar_lea.vmem [#allocation3], 96
        %3811 = vst.msk [vmem:[%s3810] ss:$8 sm:$0x3] %vm3801, %v3793
        %3812 = vst.msk [vmem:[%s3810] ss:$8 sm:$0x0] %vm3801, %v3793
        %s3813 = scalar_lea.vmem [#allocation3], 128
        %3814 = vst.msk [vmem:[%s3813] ss:$8 sm:$0x3] %vm3801, %v3794
        %3815 = vst.msk [vmem:[%s3813] ss:$8 sm:$0x0] %vm3801, %v3794
        %s3816 = scalar_lea.vmem [#allocation3], 160
        %3817 = vst.msk [vmem:[%s3816] ss:$8 sm:$0x3] %vm3801, %v3795
        %3818 = vst.msk [vmem:[%s3816] ss:$8 sm:$0x0] %vm3801, %v3795
        %s3819 = scalar_lea.vmem [#allocation3], 192
        %3820 = vst.msk [vmem:[%s3819] ss:$8 sm:$0x3] %vm3801, %v3796
        %3821 = vst.msk [vmem:[%s3819] ss:$8 sm:$0x0] %vm3801, %v3796
        %s3822 = scalar_lea.vmem [#allocation3], 224
        %3823 = vst.msk [vmem:[%s3822] ss:$8 sm:$0x3] %vm3801, %v3797
        %3824 = vst.msk [vmem:[%s3822] ss:$8 sm:$0x0] %vm3801, %v3797
        %s3825 = scalar_lea.vmem [#allocation2], 2
        %v3826 = vld [vmem:[%s3825] ss:$8 sm:$0x3]
        %s3827 = scalar_lea.vmem [#allocation2], 50
        %v3828 = vld [vmem:[%s3827] ss:$8 sm:$0x3]
        %s3829 = scalar_lea.vmem [#allocation2], 98
        %v3830 = vld [vmem:[%s3829] ss:$8 sm:$0x3]
        %s3831 = scalar_lea.vmem [#allocation2], 146
        %v3832 = vld [vmem:[%s3831] ss:$8 sm:$0x3]
        %s3833 = scalar_lea.vmem [#allocation2], 194
        %v3834 = vld [vmem:[%s3833] ss:$8 sm:$0x3]
        %s3835 = scalar_lea.vmem [#allocation2], 242
        %v3836 = vld [vmem:[%s3835] ss:$8 sm:$0x3]
        %s3837 = scalar_lea.vmem [#allocation2], 290
        %v3838 = vld [vmem:[%s3837] ss:$8 sm:$0x3]
        %s3839 = scalar_lea.vmem [#allocation2], 338
        %v3840 = vld [vmem:[%s3839] ss:$8 sm:$0x3]
        %s3841 = scalar_lea.vmem [#allocation2], 3
        %v3842 = vld [vmem:[%s3841] ss:$8 sm:$0x3]
        %s3843 = scalar_lea.vmem [#allocation2], 51
        %v3844 = vld [vmem:[%s3843] ss:$8 sm:$0x3]
        %s3845 = scalar_lea.vmem [#allocation2], 99
        %v3846 = vld [vmem:[%s3845] ss:$8 sm:$0x3]
        %s3847 = scalar_lea.vmem [#allocation2], 147
        %v3848 = vld [vmem:[%s3847] ss:$8 sm:$0x3]
        %s3849 = scalar_lea.vmem [#allocation2], 195
        %v3850 = vld [vmem:[%s3849] ss:$8 sm:$0x3]
        %s3851 = scalar_lea.vmem [#allocation2], 243
        %v3852 = vld [vmem:[%s3851] ss:$8 sm:$0x3]
        %s3853 = scalar_lea.vmem [#allocation2], 291
        %v3854 = vld [vmem:[%s3853] ss:$8 sm:$0x3]
        %s3855 = scalar_lea.vmem [#allocation2], 339
        %v3856 = vld [vmem:[%s3855] ss:$8 sm:$0x3]
        %v3857 = vmax.f32 %v3826, %v3842
        %v3858 = vmax.f32 %v3828, %v3844
        %v3859 = vmax.f32 %v3830, %v3846
        %v3860 = vmax.f32 %v3832, %v3848
        %v3861 = vmax.f32 %v3834, %v3850
        %v3862 = vmax.f32 %v3836, %v3852
        %v3863 = vmax.f32 %v3838, %v3854
        %v3864 = vmax.f32 %v3840, %v3856
        %s3865 = scalar_lea.vmem [#allocation3], 1
        %3866 = vst.msk [vmem:[%s3865] ss:$8 sm:$0x3] %vm3801, %v3857
        %3867 = vst.msk [vmem:[%s3865] ss:$8 sm:$0x0] %vm3801, %v3857
        %s3868 = scalar_lea.vmem [#allocation3], 33
        %3869 = vst.msk [vmem:[%s3868] ss:$8 sm:$0x3] %vm3801, %v3858
        %3870 = vst.msk [vmem:[%s3868] ss:$8 sm:$0x0] %vm3801, %v3858
        %s3871 = scalar_lea.vmem [#allocation3], 65
        %3872 = vst.msk [vmem:[%s3871] ss:$8 sm:$0x3] %vm3801, %v3859
        %3873 = vst.msk [vmem:[%s3871] ss:$8 sm:$0x0] %vm3801, %v3859
        %s3874 = scalar_lea.vmem [#allocation3], 97
        %3875 = vst.msk [vmem:[%s3874] ss:$8 sm:$0x3] %vm3801, %v3860
        %3876 = vst.msk [vmem:[%s3874] ss:$8 sm:$0x0] %vm3801, %v3860
        %s3877 = scalar_lea.vmem [#allocation3], 129
        %3878 = vst.msk [vmem:[%s3877] ss:$8 sm:$0x3] %vm3801, %v3861
        %3879 = vst.msk [vmem:[%s3877] ss:$8 sm:$0x0] %vm3801, %v3861
        %s3880 = scalar_lea.vmem [#allocation3], 161
        %3881 = vst.msk [vmem:[%s3880] ss:$8 sm:$0x3] %vm3801, %v3862
        %3882 = vst.msk [vmem:[%s3880] ss:$8 sm:$0x0] %vm3801, %v3862
        %s3883 = scalar_lea.vmem [#allocation3], 193
        %3884 = vst.msk [vmem:[%s3883] ss:$8 sm:$0x3] %vm3801, %v3863
        %3885 = vst.msk [vmem:[%s3883] ss:$8 sm:$0x0] %vm3801, %v3863
        %s3886 = scalar_lea.vmem [#allocation3], 225
        %3887 = vst.msk [vmem:[%s3886] ss:$8 sm:$0x3] %vm3801, %v3864
        %3888 = vst.msk [vmem:[%s3886] ss:$8 sm:$0x0] %vm3801, %v3864
        %s3889 = scalar_lea.vmem [#allocation2], 4
        %v3890 = vld [vmem:[%s3889] ss:$8 sm:$0x3]
        %s3891 = scalar_lea.vmem [#allocation2], 52
        %v3892 = vld [vmem:[%s3891] ss:$8 sm:$0x3]
        %s3893 = scalar_lea.vmem [#allocation2], 100
        %v3894 = vld [vmem:[%s3893] ss:$8 sm:$0x3]
        %s3895 = scalar_lea.vmem [#allocation2], 148
        %v3896 = vld [vmem:[%s3895] ss:$8 sm:$0x3]
        %s3897 = scalar_lea.vmem [#allocation2], 196
        %v3898 = vld [vmem:[%s3897] ss:$8 sm:$0x3]
        %s3899 = scalar_lea.vmem [#allocation2], 244
        %v3900 = vld [vmem:[%s3899] ss:$8 sm:$0x3]
        %s3901 = scalar_lea.vmem [#allocation2], 292
        %v3902 = vld [vmem:[%s3901] ss:$8 sm:$0x3]
        %s3903 = scalar_lea.vmem [#allocation2], 340
        %v3904 = vld [vmem:[%s3903] ss:$8 sm:$0x3]
        %s3905 = scalar_lea.vmem [#allocation2], 5
        %v3906 = vld [vmem:[%s3905] ss:$8 sm:$0x3]
        %s3907 = scalar_lea.vmem [#allocation2], 53
        %v3908 = vld [vmem:[%s3907] ss:$8 sm:$0x3]
        %s3909 = scalar_lea.vmem [#allocation2], 101
        %v3910 = vld [vmem:[%s3909] ss:$8 sm:$0x3]
        %s3911 = scalar_lea.vmem [#allocation2], 149
        %v3912 = vld [vmem:[%s3911] ss:$8 sm:$0x3]
        %s3913 = scalar_lea.vmem [#allocation2], 197
        %v3914 = vld [vmem:[%s3913] ss:$8 sm:$0x3]
        %s3915 = scalar_lea.vmem [#allocation2], 245
        %v3916 = vld [vmem:[%s3915] ss:$8 sm:$0x3]
        %s3917 = scalar_lea.vmem [#allocation2], 293
        %v3918 = vld [vmem:[%s3917] ss:$8 sm:$0x3]
        %s3919 = scalar_lea.vmem [#allocation2], 341
        %v3920 = vld [vmem:[%s3919] ss:$8 sm:$0x3]
        %v3921 = vmax.f32 %v3890, %v3906
        %v3922 = vmax.f32 %v3892, %v3908
        %v3923 = vmax.f32 %v3894, %v3910
        %v3924 = vmax.f32 %v3896, %v3912
        %v3925 = vmax.f32 %v3898, %v3914
        %v3926 = vmax.f32 %v3900, %v3916
        %v3927 = vmax.f32 %v3902, %v3918
        %v3928 = vmax.f32 %v3904, %v3920
        %s3929 = scalar_lea.vmem [#allocation3], 2
        %3930 = vst.msk [vmem:[%s3929] ss:$8 sm:$0x3] %vm3801, %v3921
        %3931 = vst.msk [vmem:[%s3929] ss:$8 sm:$0x0] %vm3801, %v3921
        %s3932 = scalar_lea.vmem [#allocation3], 34
        %3933 = vst.msk [vmem:[%s3932] ss:$8 sm:$0x3] %vm3801, %v3922
        %3934 = vst.msk [vmem:[%s3932] ss:$8 sm:$0x0] %vm3801, %v3922
        %s3935 = scalar_lea.vmem [#allocation3], 66
        %3936 = vst.msk [vmem:[%s3935] ss:$8 sm:$0x3] %vm3801, %v3923
        %3937 = vst.msk [vmem:[%s3935] ss:$8 sm:$0x0] %vm3801, %v3923
        %s3938 = scalar_lea.vmem [#allocation3], 98
        %3939 = vst.msk [vmem:[%s3938] ss:$8 sm:$0x3] %vm3801, %v3924
        %3940 = vst.msk [vmem:[%s3938] ss:$8 sm:$0x0] %vm3801, %v3924
        %s3941 = scalar_lea.vmem [#allocation3], 130
        %3942 = vst.msk [vmem:[%s3941] ss:$8 sm:$0x3] %vm3801, %v3925
        %3943 = vst.msk [vmem:[%s3941] ss:$8 sm:$0x0] %vm3801, %v3925
        %s3944 = scalar_lea.vmem [#allocation3], 162
        %3945 = vst.msk [vmem:[%s3944] ss:$8 sm:$0x3] %vm3801, %v3926
        %3946 = vst.msk [vmem:[%s3944] ss:$8 sm:$0x0] %vm3801, %v3926
        %s3947 = scalar_lea.vmem [#allocation3], 194
        %3948 = vst.msk [vmem:[%s3947] ss:$8 sm:$0x3] %vm3801, %v3927
        %3949 = vst.msk [vmem:[%s3947] ss:$8 sm:$0x0] %vm3801, %v3927
        %s3950 = scalar_lea.vmem [#allocation3], 226
        %3951 = vst.msk [vmem:[%s3950] ss:$8 sm:$0x3] %vm3801, %v3928
        %3952 = vst.msk [vmem:[%s3950] ss:$8 sm:$0x0] %vm3801, %v3928
        %s3953 = scalar_lea.vmem [#allocation2], 6
        %v3954 = vld [vmem:[%s3953] ss:$8 sm:$0x3]
        %s3955 = scalar_lea.vmem [#allocation2], 54
        %v3956 = vld [vmem:[%s3955] ss:$8 sm:$0x3]
        %s3957 = scalar_lea.vmem [#allocation2], 102
        %v3958 = vld [vmem:[%s3957] ss:$8 sm:$0x3]
        %s3959 = scalar_lea.vmem [#allocation2], 150
        %v3960 = vld [vmem:[%s3959] ss:$8 sm:$0x3]
        %s3961 = scalar_lea.vmem [#allocation2], 198
        %v3962 = vld [vmem:[%s3961] ss:$8 sm:$0x3]
        %s3963 = scalar_lea.vmem [#allocation2], 246
        %v3964 = vld [vmem:[%s3963] ss:$8 sm:$0x3]
        %s3965 = scalar_lea.vmem [#allocation2], 294
        %v3966 = vld [vmem:[%s3965] ss:$8 sm:$0x3]
        %s3967 = scalar_lea.vmem [#allocation2], 342
        %v3968 = vld [vmem:[%s3967] ss:$8 sm:$0x3]
        %s3969 = scalar_lea.vmem [#allocation2], 7
        %v3970 = vld [vmem:[%s3969] ss:$8 sm:$0x3]
        %s3971 = scalar_lea.vmem [#allocation2], 55
        %v3972 = vld [vmem:[%s3971] ss:$8 sm:$0x3]
        %s3973 = scalar_lea.vmem [#allocation2], 103
        %v3974 = vld [vmem:[%s3973] ss:$8 sm:$0x3]
        %s3975 = scalar_lea.vmem [#allocation2], 151
        %v3976 = vld [vmem:[%s3975] ss:$8 sm:$0x3]
        %s3977 = scalar_lea.vmem [#allocation2], 199
        %v3978 = vld [vmem:[%s3977] ss:$8 sm:$0x3]
        %s3979 = scalar_lea.vmem [#allocation2], 247
        %v3980 = vld [vmem:[%s3979] ss:$8 sm:$0x3]
        %s3981 = scalar_lea.vmem [#allocation2], 295
        %v3982 = vld [vmem:[%s3981] ss:$8 sm:$0x3]
        %s3983 = scalar_lea.vmem [#allocation2], 343
        %v3984 = vld [vmem:[%s3983] ss:$8 sm:$0x3]
        %v3985 = vmax.f32 %v3954, %v3970
        %v3986 = vmax.f32 %v3956, %v3972
        %v3987 = vmax.f32 %v3958, %v3974
        %v3988 = vmax.f32 %v3960, %v3976
        %v3989 = vmax.f32 %v3962, %v3978
        %v3990 = vmax.f32 %v3964, %v3980
        %v3991 = vmax.f32 %v3966, %v3982
        %v3992 = vmax.f32 %v3968, %v3984
        %s3993 = scalar_lea.vmem [#allocation3], 3
        %3994 = vst.msk [vmem:[%s3993] ss:$8 sm:$0x3] %vm3801, %v3985
        %3995 = vst.msk [vmem:[%s3993] ss:$8 sm:$0x0] %vm3801, %v3985
        %s3996 = scalar_lea.vmem [#allocation3], 35
        %3997 = vst.msk [vmem:[%s3996] ss:$8 sm:$0x3] %vm3801, %v3986
        %3998 = vst.msk [vmem:[%s3996] ss:$8 sm:$0x0] %vm3801, %v3986
        %s3999 = scalar_lea.vmem [#allocation3], 67
        %4000 = vst.msk [vmem:[%s3999] ss:$8 sm:$0x3] %vm3801, %v3987
        %4001 = vst.msk [vmem:[%s3999] ss:$8 sm:$0x0] %vm3801, %v3987
        %s4002 = scalar_lea.vmem [#allocation3], 99
        %4003 = vst.msk [vmem:[%s4002] ss:$8 sm:$0x3] %vm3801, %v3988
        %4004 = vst.msk [vmem:[%s4002] ss:$8 sm:$0x0] %vm3801, %v3988
        %s4005 = scalar_lea.vmem [#allocation3], 131
        %4006 = vst.msk [vmem:[%s4005] ss:$8 sm:$0x3] %vm3801, %v3989
        %4007 = vst.msk [vmem:[%s4005] ss:$8 sm:$0x0] %vm3801, %v3989
        %s4008 = scalar_lea.vmem [#allocation3], 163
        %4009 = vst.msk [vmem:[%s4008] ss:$8 sm:$0x3] %vm3801, %v3990
        %4010 = vst.msk [vmem:[%s4008] ss:$8 sm:$0x0] %vm3801, %v3990
        %s4011 = scalar_lea.vmem [#allocation3], 195
        %4012 = vst.msk [vmem:[%s4011] ss:$8 sm:$0x3] %vm3801, %v3991
        %4013 = vst.msk [vmem:[%s4011] ss:$8 sm:$0x0] %vm3801, %v3991
        %s4014 = scalar_lea.vmem [#allocation3], 227
        %4015 = vst.msk [vmem:[%s4014] ss:$8 sm:$0x3] %vm3801, %v3992
        %4016 = vst.msk [vmem:[%s4014] ss:$8 sm:$0x0] %vm3801, %v3992
        %s4017 = scalar_lea.vmem [#allocation2], 16
        %v4018 = vld [vmem:[%s4017] ss:$8 sm:$0x3]
        %s4019 = scalar_lea.vmem [#allocation2], 64
        %v4020 = vld [vmem:[%s4019] ss:$8 sm:$0x3]
        %s4021 = scalar_lea.vmem [#allocation2], 112
        %v4022 = vld [vmem:[%s4021] ss:$8 sm:$0x3]
        %s4023 = scalar_lea.vmem [#allocation2], 160
        %v4024 = vld [vmem:[%s4023] ss:$8 sm:$0x3]
        %s4025 = scalar_lea.vmem [#allocation2], 208
        %v4026 = vld [vmem:[%s4025] ss:$8 sm:$0x3]
        %s4027 = scalar_lea.vmem [#allocation2], 256
        %v4028 = vld [vmem:[%s4027] ss:$8 sm:$0x3]
        %s4029 = scalar_lea.vmem [#allocation2], 304
        %v4030 = vld [vmem:[%s4029] ss:$8 sm:$0x3]
        %s4031 = scalar_lea.vmem [#allocation2], 352
        %v4032 = vld [vmem:[%s4031] ss:$8 sm:$0x3]
        %s4033 = scalar_lea.vmem [#allocation2], 17
        %v4034 = vld [vmem:[%s4033] ss:$8 sm:$0x3]
        %s4035 = scalar_lea.vmem [#allocation2], 65
        %v4036 = vld [vmem:[%s4035] ss:$8 sm:$0x3]
        %s4037 = scalar_lea.vmem [#allocation2], 113
        %v4038 = vld [vmem:[%s4037] ss:$8 sm:$0x3]
        %s4039 = scalar_lea.vmem [#allocation2], 161
        %v4040 = vld [vmem:[%s4039] ss:$8 sm:$0x3]
        %s4041 = scalar_lea.vmem [#allocation2], 209
        %v4042 = vld [vmem:[%s4041] ss:$8 sm:$0x3]
        %s4043 = scalar_lea.vmem [#allocation2], 257
        %v4044 = vld [vmem:[%s4043] ss:$8 sm:$0x3]
        %s4045 = scalar_lea.vmem [#allocation2], 305
        %v4046 = vld [vmem:[%s4045] ss:$8 sm:$0x3]
        %s4047 = scalar_lea.vmem [#allocation2], 353
        %v4048 = vld [vmem:[%s4047] ss:$8 sm:$0x3]
        %v4049 = vmax.f32 %v4018, %v4034
        %v4050 = vmax.f32 %v4020, %v4036
        %v4051 = vmax.f32 %v4022, %v4038
        %v4052 = vmax.f32 %v4024, %v4040
        %v4053 = vmax.f32 %v4026, %v4042
        %v4054 = vmax.f32 %v4028, %v4044
        %v4055 = vmax.f32 %v4030, %v4046
        %v4056 = vmax.f32 %v4032, %v4048
        %s4057 = scalar_lea.vmem [#allocation3], 4
        %4058 = vst.msk [vmem:[%s4057] ss:$8 sm:$0x3] %vm3801, %v4049
        %4059 = vst.msk [vmem:[%s4057] ss:$8 sm:$0x0] %vm3801, %v4049
        %s4060 = scalar_lea.vmem [#allocation3], 36
        %4061 = vst.msk [vmem:[%s4060] ss:$8 sm:$0x3] %vm3801, %v4050
        %4062 = vst.msk [vmem:[%s4060] ss:$8 sm:$0x0] %vm3801, %v4050
        %s4063 = scalar_lea.vmem [#allocation3], 68
        %4064 = vst.msk [vmem:[%s4063] ss:$8 sm:$0x3] %vm3801, %v4051
        %4065 = vst.msk [vmem:[%s4063] ss:$8 sm:$0x0] %vm3801, %v4051
        %s4066 = scalar_lea.vmem [#allocation3], 100
        %4067 = vst.msk [vmem:[%s4066] ss:$8 sm:$0x3] %vm3801, %v4052
        %4068 = vst.msk [vmem:[%s4066] ss:$8 sm:$0x0] %vm3801, %v4052
        %s4069 = scalar_lea.vmem [#allocation3], 132
        %4070 = vst.msk [vmem:[%s4069] ss:$8 sm:$0x3] %vm3801, %v4053
        %4071 = vst.msk [vmem:[%s4069] ss:$8 sm:$0x0] %vm3801, %v4053
        %s4072 = scalar_lea.vmem [#allocation3], 164
        %4073 = vst.msk [vmem:[%s4072] ss:$8 sm:$0x3] %vm3801, %v4054
        %4074 = vst.msk [vmem:[%s4072] ss:$8 sm:$0x0] %vm3801, %v4054
        %s4075 = scalar_lea.vmem [#allocation3], 196
        %4076 = vst.msk [vmem:[%s4075] ss:$8 sm:$0x3] %vm3801, %v4055
        %4077 = vst.msk [vmem:[%s4075] ss:$8 sm:$0x0] %vm3801, %v4055
        %s4078 = scalar_lea.vmem [#allocation3], 228
        %4079 = vst.msk [vmem:[%s4078] ss:$8 sm:$0x3] %vm3801, %v4056
        %4080 = vst.msk [vmem:[%s4078] ss:$8 sm:$0x0] %vm3801, %v4056
        %s4081 = scalar_lea.vmem [#allocation2], 18
        %v4082 = vld [vmem:[%s4081] ss:$8 sm:$0x3]
        %s4083 = scalar_lea.vmem [#allocation2], 66
        %v4084 = vld [vmem:[%s4083] ss:$8 sm:$0x3]
        %s4085 = scalar_lea.vmem [#allocation2], 114
        %v4086 = vld [vmem:[%s4085] ss:$8 sm:$0x3]
        %s4087 = scalar_lea.vmem [#allocation2], 162
        %v4088 = vld [vmem:[%s4087] ss:$8 sm:$0x3]
        %s4089 = scalar_lea.vmem [#allocation2], 210
        %v4090 = vld [vmem:[%s4089] ss:$8 sm:$0x3]
        %s4091 = scalar_lea.vmem [#allocation2], 258
        %v4092 = vld [vmem:[%s4091] ss:$8 sm:$0x3]
        %s4093 = scalar_lea.vmem [#allocation2], 306
        %v4094 = vld [vmem:[%s4093] ss:$8 sm:$0x3]
        %s4095 = scalar_lea.vmem [#allocation2], 354
        %v4096 = vld [vmem:[%s4095] ss:$8 sm:$0x3]
        %s4097 = scalar_lea.vmem [#allocation2], 19
        %v4098 = vld [vmem:[%s4097] ss:$8 sm:$0x3]
        %s4099 = scalar_lea.vmem [#allocation2], 67
        %v4100 = vld [vmem:[%s4099] ss:$8 sm:$0x3]
        %s4101 = scalar_lea.vmem [#allocation2], 115
        %v4102 = vld [vmem:[%s4101] ss:$8 sm:$0x3]
        %s4103 = scalar_lea.vmem [#allocation2], 163
        %v4104 = vld [vmem:[%s4103] ss:$8 sm:$0x3]
        %s4105 = scalar_lea.vmem [#allocation2], 211
        %v4106 = vld [vmem:[%s4105] ss:$8 sm:$0x3]
        %s4107 = scalar_lea.vmem [#allocation2], 259
        %v4108 = vld [vmem:[%s4107] ss:$8 sm:$0x3]
        %s4109 = scalar_lea.vmem [#allocation2], 307
        %v4110 = vld [vmem:[%s4109] ss:$8 sm:$0x3]
        %s4111 = scalar_lea.vmem [#allocation2], 355
        %v4112 = vld [vmem:[%s4111] ss:$8 sm:$0x3]
        %v4113 = vmax.f32 %v4082, %v4098
        %v4114 = vmax.f32 %v4084, %v4100
        %v4115 = vmax.f32 %v4086, %v4102
        %v4116 = vmax.f32 %v4088, %v4104
        %v4117 = vmax.f32 %v4090, %v4106
        %v4118 = vmax.f32 %v4092, %v4108
        %v4119 = vmax.f32 %v4094, %v4110
        %v4120 = vmax.f32 %v4096, %v4112
        %s4121 = scalar_lea.vmem [#allocation3], 5
        %4122 = vst.msk [vmem:[%s4121] ss:$8 sm:$0x3] %vm3801, %v4113
        %4123 = vst.msk [vmem:[%s4121] ss:$8 sm:$0x0] %vm3801, %v4113
        %s4124 = scalar_lea.vmem [#allocation3], 37
        %4125 = vst.msk [vmem:[%s4124] ss:$8 sm:$0x3] %vm3801, %v4114
        %4126 = vst.msk [vmem:[%s4124] ss:$8 sm:$0x0] %vm3801, %v4114
        %s4127 = scalar_lea.vmem [#allocation3], 69
        %4128 = vst.msk [vmem:[%s4127] ss:$8 sm:$0x3] %vm3801, %v4115
        %4129 = vst.msk [vmem:[%s4127] ss:$8 sm:$0x0] %vm3801, %v4115
        %s4130 = scalar_lea.vmem [#allocation3], 101
        %4131 = vst.msk [vmem:[%s4130] ss:$8 sm:$0x3] %vm3801, %v4116
        %4132 = vst.msk [vmem:[%s4130] ss:$8 sm:$0x0] %vm3801, %v4116
        %s4133 = scalar_lea.vmem [#allocation3], 133
        %4134 = vst.msk [vmem:[%s4133] ss:$8 sm:$0x3] %vm3801, %v4117
        %4135 = vst.msk [vmem:[%s4133] ss:$8 sm:$0x0] %vm3801, %v4117
        %s4136 = scalar_lea.vmem [#allocation3], 165
        %4137 = vst.msk [vmem:[%s4136] ss:$8 sm:$0x3] %vm3801, %v4118
        %4138 = vst.msk [vmem:[%s4136] ss:$8 sm:$0x0] %vm3801, %v4118
        %s4139 = scalar_lea.vmem [#allocation3], 197
        %4140 = vst.msk [vmem:[%s4139] ss:$8 sm:$0x3] %vm3801, %v4119
        %4141 = vst.msk [vmem:[%s4139] ss:$8 sm:$0x0] %vm3801, %v4119
        %s4142 = scalar_lea.vmem [#allocation3], 229
        %4143 = vst.msk [vmem:[%s4142] ss:$8 sm:$0x3] %vm3801, %v4120
        %4144 = vst.msk [vmem:[%s4142] ss:$8 sm:$0x0] %vm3801, %v4120
        %s4145 = scalar_lea.vmem [#allocation2], 20
        %v4146 = vld [vmem:[%s4145] ss:$8 sm:$0x3]
        %s4147 = scalar_lea.vmem [#allocation2], 68
        %v4148 = vld [vmem:[%s4147] ss:$8 sm:$0x3]
        %s4149 = scalar_lea.vmem [#allocation2], 116
        %v4150 = vld [vmem:[%s4149] ss:$8 sm:$0x3]
        %s4151 = scalar_lea.vmem [#allocation2], 164
        %v4152 = vld [vmem:[%s4151] ss:$8 sm:$0x3]
        %s4153 = scalar_lea.vmem [#allocation2], 212
        %v4154 = vld [vmem:[%s4153] ss:$8 sm:$0x3]
        %s4155 = scalar_lea.vmem [#allocation2], 260
        %v4156 = vld [vmem:[%s4155] ss:$8 sm:$0x3]
        %s4157 = scalar_lea.vmem [#allocation2], 308
        %v4158 = vld [vmem:[%s4157] ss:$8 sm:$0x3]
        %s4159 = scalar_lea.vmem [#allocation2], 356
        %v4160 = vld [vmem:[%s4159] ss:$8 sm:$0x3]
        %s4161 = scalar_lea.vmem [#allocation2], 21
        %v4162 = vld [vmem:[%s4161] ss:$8 sm:$0x3]
        %s4163 = scalar_lea.vmem [#allocation2], 69
        %v4164 = vld [vmem:[%s4163] ss:$8 sm:$0x3]
        %s4165 = scalar_lea.vmem [#allocation2], 117
        %v4166 = vld [vmem:[%s4165] ss:$8 sm:$0x3]
        %s4167 = scalar_lea.vmem [#allocation2], 165
        %v4168 = vld [vmem:[%s4167] ss:$8 sm:$0x3]
        %s4169 = scalar_lea.vmem [#allocation2], 213
        %v4170 = vld [vmem:[%s4169] ss:$8 sm:$0x3]
        %s4171 = scalar_lea.vmem [#allocation2], 261
        %v4172 = vld [vmem:[%s4171] ss:$8 sm:$0x3]
        %s4173 = scalar_lea.vmem [#allocation2], 309
        %v4174 = vld [vmem:[%s4173] ss:$8 sm:$0x3]
        %s4175 = scalar_lea.vmem [#allocation2], 357
        %v4176 = vld [vmem:[%s4175] ss:$8 sm:$0x3]
        %v4177 = vmax.f32 %v4146, %v4162
        %v4178 = vmax.f32 %v4148, %v4164
        %v4179 = vmax.f32 %v4150, %v4166
        %v4180 = vmax.f32 %v4152, %v4168
        %v4181 = vmax.f32 %v4154, %v4170
        %v4182 = vmax.f32 %v4156, %v4172
        %v4183 = vmax.f32 %v4158, %v4174
        %v4184 = vmax.f32 %v4160, %v4176
        %s4185 = scalar_lea.vmem [#allocation3], 6
        %4186 = vst.msk [vmem:[%s4185] ss:$8 sm:$0x3] %vm3801, %v4177
        %4187 = vst.msk [vmem:[%s4185] ss:$8 sm:$0x0] %vm3801, %v4177
        %s4188 = scalar_lea.vmem [#allocation3], 38
        %4189 = vst.msk [vmem:[%s4188] ss:$8 sm:$0x3] %vm3801, %v4178
        %4190 = vst.msk [vmem:[%s4188] ss:$8 sm:$0x0] %vm3801, %v4178
        %s4191 = scalar_lea.vmem [#allocation3], 70
        %4192 = vst.msk [vmem:[%s4191] ss:$8 sm:$0x3] %vm3801, %v4179
        %4193 = vst.msk [vmem:[%s4191] ss:$8 sm:$0x0] %vm3801, %v4179
        %s4194 = scalar_lea.vmem [#allocation3], 102
        %4195 = vst.msk [vmem:[%s4194] ss:$8 sm:$0x3] %vm3801, %v4180
        %4196 = vst.msk [vmem:[%s4194] ss:$8 sm:$0x0] %vm3801, %v4180
        %s4197 = scalar_lea.vmem [#allocation3], 134
        %4198 = vst.msk [vmem:[%s4197] ss:$8 sm:$0x3] %vm3801, %v4181
        %4199 = vst.msk [vmem:[%s4197] ss:$8 sm:$0x0] %vm3801, %v4181
        %s4200 = scalar_lea.vmem [#allocation3], 166
        %4201 = vst.msk [vmem:[%s4200] ss:$8 sm:$0x3] %vm3801, %v4182
        %4202 = vst.msk [vmem:[%s4200] ss:$8 sm:$0x0] %vm3801, %v4182
        %s4203 = scalar_lea.vmem [#allocation3], 198
        %4204 = vst.msk [vmem:[%s4203] ss:$8 sm:$0x3] %vm3801, %v4183
        %4205 = vst.msk [vmem:[%s4203] ss:$8 sm:$0x0] %vm3801, %v4183
        %s4206 = scalar_lea.vmem [#allocation3], 230
        %4207 = vst.msk [vmem:[%s4206] ss:$8 sm:$0x3] %vm3801, %v4184
        %4208 = vst.msk [vmem:[%s4206] ss:$8 sm:$0x0] %vm3801, %v4184
        %s4209 = scalar_lea.vmem [#allocation2], 22
        %v4210 = vld [vmem:[%s4209] ss:$8 sm:$0x3]
        %s4211 = scalar_lea.vmem [#allocation2], 70
        %v4212 = vld [vmem:[%s4211] ss:$8 sm:$0x3]
        %s4213 = scalar_lea.vmem [#allocation2], 118
        %v4214 = vld [vmem:[%s4213] ss:$8 sm:$0x3]
        %s4215 = scalar_lea.vmem [#allocation2], 166
        %v4216 = vld [vmem:[%s4215] ss:$8 sm:$0x3]
        %s4217 = scalar_lea.vmem [#allocation2], 214
        %v4218 = vld [vmem:[%s4217] ss:$8 sm:$0x3]
        %s4219 = scalar_lea.vmem [#allocation2], 262
        %v4220 = vld [vmem:[%s4219] ss:$8 sm:$0x3]
        %s4221 = scalar_lea.vmem [#allocation2], 310
        %v4222 = vld [vmem:[%s4221] ss:$8 sm:$0x3]
        %s4223 = scalar_lea.vmem [#allocation2], 358
        %v4224 = vld [vmem:[%s4223] ss:$8 sm:$0x3]
        %s4225 = scalar_lea.vmem [#allocation2], 23
        %v4226 = vld [vmem:[%s4225] ss:$8 sm:$0x3]
        %s4227 = scalar_lea.vmem [#allocation2], 71
        %v4228 = vld [vmem:[%s4227] ss:$8 sm:$0x3]
        %s4229 = scalar_lea.vmem [#allocation2], 119
        %v4230 = vld [vmem:[%s4229] ss:$8 sm:$0x3]
        %s4231 = scalar_lea.vmem [#allocation2], 167
        %v4232 = vld [vmem:[%s4231] ss:$8 sm:$0x3]
        %s4233 = scalar_lea.vmem [#allocation2], 215
        %v4234 = vld [vmem:[%s4233] ss:$8 sm:$0x3]
        %s4235 = scalar_lea.vmem [#allocation2], 263
        %v4236 = vld [vmem:[%s4235] ss:$8 sm:$0x3]
        %s4237 = scalar_lea.vmem [#allocation2], 311
        %v4238 = vld [vmem:[%s4237] ss:$8 sm:$0x3]
        %s4239 = scalar_lea.vmem [#allocation2], 359
        %v4240 = vld [vmem:[%s4239] ss:$8 sm:$0x3]
        %v4241 = vmax.f32 %v4210, %v4226
        %v4242 = vmax.f32 %v4212, %v4228
        %v4243 = vmax.f32 %v4214, %v4230
        %v4244 = vmax.f32 %v4216, %v4232
        %v4245 = vmax.f32 %v4218, %v4234
        %v4246 = vmax.f32 %v4220, %v4236
        %v4247 = vmax.f32 %v4222, %v4238
        %v4248 = vmax.f32 %v4224, %v4240
        %s4249 = scalar_lea.vmem [#allocation3], 7
        %4250 = vst.msk [vmem:[%s4249] ss:$8 sm:$0x3] %vm3801, %v4241
        %4251 = vst.msk [vmem:[%s4249] ss:$8 sm:$0x0] %vm3801, %v4241
        %s4252 = scalar_lea.vmem [#allocation3], 39
        %4253 = vst.msk [vmem:[%s4252] ss:$8 sm:$0x3] %vm3801, %v4242
        %4254 = vst.msk [vmem:[%s4252] ss:$8 sm:$0x0] %vm3801, %v4242
        %s4255 = scalar_lea.vmem [#allocation3], 71
        %4256 = vst.msk [vmem:[%s4255] ss:$8 sm:$0x3] %vm3801, %v4243
        %4257 = vst.msk [vmem:[%s4255] ss:$8 sm:$0x0] %vm3801, %v4243
        %s4258 = scalar_lea.vmem [#allocation3], 103
        %4259 = vst.msk [vmem:[%s4258] ss:$8 sm:$0x3] %vm3801, %v4244
        %4260 = vst.msk [vmem:[%s4258] ss:$8 sm:$0x0] %vm3801, %v4244
        %s4261 = scalar_lea.vmem [#allocation3], 135
        %4262 = vst.msk [vmem:[%s4261] ss:$8 sm:$0x3] %vm3801, %v4245
        %4263 = vst.msk [vmem:[%s4261] ss:$8 sm:$0x0] %vm3801, %v4245
        %s4264 = scalar_lea.vmem [#allocation3], 167
        %4265 = vst.msk [vmem:[%s4264] ss:$8 sm:$0x3] %vm3801, %v4246
        %4266 = vst.msk [vmem:[%s4264] ss:$8 sm:$0x0] %vm3801, %v4246
        %s4267 = scalar_lea.vmem [#allocation3], 199
        %4268 = vst.msk [vmem:[%s4267] ss:$8 sm:$0x3] %vm3801, %v4247
        %4269 = vst.msk [vmem:[%s4267] ss:$8 sm:$0x0] %vm3801, %v4247
        %s4270 = scalar_lea.vmem [#allocation3], 231
        %4271 = vst.msk [vmem:[%s4270] ss:$8 sm:$0x3] %vm3801, %v4248
        %4272 = vst.msk [vmem:[%s4270] ss:$8 sm:$0x0] %vm3801, %v4248
        %s4273 = scalar_lea.vmem [#allocation2], 32
        %v4274 = vld [vmem:[%s4273] ss:$8 sm:$0x3]
        %s4275 = scalar_lea.vmem [#allocation2], 80
        %v4276 = vld [vmem:[%s4275] ss:$8 sm:$0x3]
        %s4277 = scalar_lea.vmem [#allocation2], 128
        %v4278 = vld [vmem:[%s4277] ss:$8 sm:$0x3]
        %s4279 = scalar_lea.vmem [#allocation2], 176
        %v4280 = vld [vmem:[%s4279] ss:$8 sm:$0x3]
        %s4281 = scalar_lea.vmem [#allocation2], 224
        %v4282 = vld [vmem:[%s4281] ss:$8 sm:$0x3]
        %s4283 = scalar_lea.vmem [#allocation2], 272
        %v4284 = vld [vmem:[%s4283] ss:$8 sm:$0x3]
        %s4285 = scalar_lea.vmem [#allocation2], 320
        %v4286 = vld [vmem:[%s4285] ss:$8 sm:$0x3]
        %s4287 = scalar_lea.vmem [#allocation2], 368
        %v4288 = vld [vmem:[%s4287] ss:$8 sm:$0x3]
        %s4289 = scalar_lea.vmem [#allocation2], 33
        %v4290 = vld [vmem:[%s4289] ss:$8 sm:$0x3]
        %s4291 = scalar_lea.vmem [#allocation2], 81
        %v4292 = vld [vmem:[%s4291] ss:$8 sm:$0x3]
        %s4293 = scalar_lea.vmem [#allocation2], 129
        %v4294 = vld [vmem:[%s4293] ss:$8 sm:$0x3]
        %s4295 = scalar_lea.vmem [#allocation2], 177
        %v4296 = vld [vmem:[%s4295] ss:$8 sm:$0x3]
        %s4297 = scalar_lea.vmem [#allocation2], 225
        %v4298 = vld [vmem:[%s4297] ss:$8 sm:$0x3]
        %s4299 = scalar_lea.vmem [#allocation2], 273
        %v4300 = vld [vmem:[%s4299] ss:$8 sm:$0x3]
        %s4301 = scalar_lea.vmem [#allocation2], 321
        %v4302 = vld [vmem:[%s4301] ss:$8 sm:$0x3]
        %s4303 = scalar_lea.vmem [#allocation2], 369
        %v4304 = vld [vmem:[%s4303] ss:$8 sm:$0x3]
        %v4305 = vmax.f32 %v4274, %v4290
        %v4306 = vmax.f32 %v4276, %v4292
        %v4307 = vmax.f32 %v4278, %v4294
        %v4308 = vmax.f32 %v4280, %v4296
        %v4309 = vmax.f32 %v4282, %v4298
        %v4310 = vmax.f32 %v4284, %v4300
        %v4311 = vmax.f32 %v4286, %v4302
        %v4312 = vmax.f32 %v4288, %v4304
        %s4313 = scalar_lea.vmem [#allocation3], 16
        %4314 = vst.msk [vmem:[%s4313] ss:$8 sm:$0x3] %vm3801, %v4305
        %4315 = vst.msk [vmem:[%s4313] ss:$8 sm:$0x0] %vm3801, %v4305
        %s4316 = scalar_lea.vmem [#allocation3], 48
        %4317 = vst.msk [vmem:[%s4316] ss:$8 sm:$0x3] %vm3801, %v4306
        %4318 = vst.msk [vmem:[%s4316] ss:$8 sm:$0x0] %vm3801, %v4306
        %s4319 = scalar_lea.vmem [#allocation3], 80
        %4320 = vst.msk [vmem:[%s4319] ss:$8 sm:$0x3] %vm3801, %v4307
        %4321 = vst.msk [vmem:[%s4319] ss:$8 sm:$0x0] %vm3801, %v4307
        %s4322 = scalar_lea.vmem [#allocation3], 112
        %4323 = vst.msk [vmem:[%s4322] ss:$8 sm:$0x3] %vm3801, %v4308
        %4324 = vst.msk [vmem:[%s4322] ss:$8 sm:$0x0] %vm3801, %v4308
        %s4325 = scalar_lea.vmem [#allocation3], 144
        %4326 = vst.msk [vmem:[%s4325] ss:$8 sm:$0x3] %vm3801, %v4309
        %4327 = vst.msk [vmem:[%s4325] ss:$8 sm:$0x0] %vm3801, %v4309
        %s4328 = scalar_lea.vmem [#allocation3], 176
        %4329 = vst.msk [vmem:[%s4328] ss:$8 sm:$0x3] %vm3801, %v4310
        %4330 = vst.msk [vmem:[%s4328] ss:$8 sm:$0x0] %vm3801, %v4310
        %s4331 = scalar_lea.vmem [#allocation3], 208
        %4332 = vst.msk [vmem:[%s4331] ss:$8 sm:$0x3] %vm3801, %v4311
        %4333 = vst.msk [vmem:[%s4331] ss:$8 sm:$0x0] %vm3801, %v4311
        %s4334 = scalar_lea.vmem [#allocation3], 240
        %4335 = vst.msk [vmem:[%s4334] ss:$8 sm:$0x3] %vm3801, %v4312
        %4336 = vst.msk [vmem:[%s4334] ss:$8 sm:$0x0] %vm3801, %v4312
        %s4337 = scalar_lea.vmem [#allocation2], 34
        %v4338 = vld [vmem:[%s4337] ss:$8 sm:$0x3]
        %s4339 = scalar_lea.vmem [#allocation2], 82
        %v4340 = vld [vmem:[%s4339] ss:$8 sm:$0x3]
        %s4341 = scalar_lea.vmem [#allocation2], 130
        %v4342 = vld [vmem:[%s4341] ss:$8 sm:$0x3]
        %s4343 = scalar_lea.vmem [#allocation2], 178
        %v4344 = vld [vmem:[%s4343] ss:$8 sm:$0x3]
        %s4345 = scalar_lea.vmem [#allocation2], 226
        %v4346 = vld [vmem:[%s4345] ss:$8 sm:$0x3]
        %s4347 = scalar_lea.vmem [#allocation2], 274
        %v4348 = vld [vmem:[%s4347] ss:$8 sm:$0x3]
        %s4349 = scalar_lea.vmem [#allocation2], 322
        %v4350 = vld [vmem:[%s4349] ss:$8 sm:$0x3]
        %s4351 = scalar_lea.vmem [#allocation2], 370
        %v4352 = vld [vmem:[%s4351] ss:$8 sm:$0x3]
        %s4353 = scalar_lea.vmem [#allocation2], 35
        %v4354 = vld [vmem:[%s4353] ss:$8 sm:$0x3]
        %s4355 = scalar_lea.vmem [#allocation2], 83
        %v4356 = vld [vmem:[%s4355] ss:$8 sm:$0x3]
        %s4357 = scalar_lea.vmem [#allocation2], 131
        %v4358 = vld [vmem:[%s4357] ss:$8 sm:$0x3]
        %s4359 = scalar_lea.vmem [#allocation2], 179
        %v4360 = vld [vmem:[%s4359] ss:$8 sm:$0x3]
        %s4361 = scalar_lea.vmem [#allocation2], 227
        %v4362 = vld [vmem:[%s4361] ss:$8 sm:$0x3]
        %s4363 = scalar_lea.vmem [#allocation2], 275
        %v4364 = vld [vmem:[%s4363] ss:$8 sm:$0x3]
        %s4365 = scalar_lea.vmem [#allocation2], 323
        %v4366 = vld [vmem:[%s4365] ss:$8 sm:$0x3]
        %s4367 = scalar_lea.vmem [#allocation2], 371
        %v4368 = vld [vmem:[%s4367] ss:$8 sm:$0x3]
        %v4369 = vmax.f32 %v4338, %v4354
        %v4370 = vmax.f32 %v4340, %v4356
        %v4371 = vmax.f32 %v4342, %v4358
        %v4372 = vmax.f32 %v4344, %v4360
        %v4373 = vmax.f32 %v4346, %v4362
        %v4374 = vmax.f32 %v4348, %v4364
        %v4375 = vmax.f32 %v4350, %v4366
        %v4376 = vmax.f32 %v4352, %v4368
        %s4377 = scalar_lea.vmem [#allocation3], 17
        %4378 = vst.msk [vmem:[%s4377] ss:$8 sm:$0x3] %vm3801, %v4369
        %4379 = vst.msk [vmem:[%s4377] ss:$8 sm:$0x0] %vm3801, %v4369
        %s4380 = scalar_lea.vmem [#allocation3], 49
        %4381 = vst.msk [vmem:[%s4380] ss:$8 sm:$0x3] %vm3801, %v4370
        %4382 = vst.msk [vmem:[%s4380] ss:$8 sm:$0x0] %vm3801, %v4370
        %s4383 = scalar_lea.vmem [#allocation3], 81
        %4384 = vst.msk [vmem:[%s4383] ss:$8 sm:$0x3] %vm3801, %v4371
        %4385 = vst.msk [vmem:[%s4383] ss:$8 sm:$0x0] %vm3801, %v4371
        %s4386 = scalar_lea.vmem [#allocation3], 113
        %4387 = vst.msk [vmem:[%s4386] ss:$8 sm:$0x3] %vm3801, %v4372
        %4388 = vst.msk [vmem:[%s4386] ss:$8 sm:$0x0] %vm3801, %v4372
        %s4389 = scalar_lea.vmem [#allocation3], 145
        %4390 = vst.msk [vmem:[%s4389] ss:$8 sm:$0x3] %vm3801, %v4373
        %4391 = vst.msk [vmem:[%s4389] ss:$8 sm:$0x0] %vm3801, %v4373
        %s4392 = scalar_lea.vmem [#allocation3], 177
        %4393 = vst.msk [vmem:[%s4392] ss:$8 sm:$0x3] %vm3801, %v4374
        %4394 = vst.msk [vmem:[%s4392] ss:$8 sm:$0x0] %vm3801, %v4374
        %s4395 = scalar_lea.vmem [#allocation3], 209
        %4396 = vst.msk [vmem:[%s4395] ss:$8 sm:$0x3] %vm3801, %v4375
        %4397 = vst.msk [vmem:[%s4395] ss:$8 sm:$0x0] %vm3801, %v4375
        %s4398 = scalar_lea.vmem [#allocation3], 241
        %4399 = vst.msk [vmem:[%s4398] ss:$8 sm:$0x3] %vm3801, %v4376
        %4400 = vst.msk [vmem:[%s4398] ss:$8 sm:$0x0] %vm3801, %v4376
        %s4401 = scalar_lea.vmem [#allocation2], 36
        %v4402 = vld [vmem:[%s4401] ss:$8 sm:$0x3]
        %s4403 = scalar_lea.vmem [#allocation2], 84
        %v4404 = vld [vmem:[%s4403] ss:$8 sm:$0x3]
        %s4405 = scalar_lea.vmem [#allocation2], 132
        %v4406 = vld [vmem:[%s4405] ss:$8 sm:$0x3]
        %s4407 = scalar_lea.vmem [#allocation2], 180
        %v4408 = vld [vmem:[%s4407] ss:$8 sm:$0x3]
        %s4409 = scalar_lea.vmem [#allocation2], 228
        %v4410 = vld [vmem:[%s4409] ss:$8 sm:$0x3]
        %s4411 = scalar_lea.vmem [#allocation2], 276
        %v4412 = vld [vmem:[%s4411] ss:$8 sm:$0x3]
        %s4413 = scalar_lea.vmem [#allocation2], 324
        %v4414 = vld [vmem:[%s4413] ss:$8 sm:$0x3]
        %s4415 = scalar_lea.vmem [#allocation2], 372
        %v4416 = vld [vmem:[%s4415] ss:$8 sm:$0x3]
        %s4417 = scalar_lea.vmem [#allocation2], 37
        %v4418 = vld [vmem:[%s4417] ss:$8 sm:$0x3]
        %s4419 = scalar_lea.vmem [#allocation2], 85
        %v4420 = vld [vmem:[%s4419] ss:$8 sm:$0x3]
        %s4421 = scalar_lea.vmem [#allocation2], 133
        %v4422 = vld [vmem:[%s4421] ss:$8 sm:$0x3]
        %s4423 = scalar_lea.vmem [#allocation2], 181
        %v4424 = vld [vmem:[%s4423] ss:$8 sm:$0x3]
        %s4425 = scalar_lea.vmem [#allocation2], 229
        %v4426 = vld [vmem:[%s4425] ss:$8 sm:$0x3]
        %s4427 = scalar_lea.vmem [#allocation2], 277
        %v4428 = vld [vmem:[%s4427] ss:$8 sm:$0x3]
        %s4429 = scalar_lea.vmem [#allocation2], 325
        %v4430 = vld [vmem:[%s4429] ss:$8 sm:$0x3]
        %s4431 = scalar_lea.vmem [#allocation2], 373
        %v4432 = vld [vmem:[%s4431] ss:$8 sm:$0x3]
        %v4433 = vmax.f32 %v4402, %v4418
        %v4434 = vmax.f32 %v4404, %v4420
        %v4435 = vmax.f32 %v4406, %v4422
        %v4436 = vmax.f32 %v4408, %v4424
        %v4437 = vmax.f32 %v4410, %v4426
        %v4438 = vmax.f32 %v4412, %v4428
        %v4439 = vmax.f32 %v4414, %v4430
        %v4440 = vmax.f32 %v4416, %v4432
        %s4441 = scalar_lea.vmem [#allocation3], 18
        %4442 = vst.msk [vmem:[%s4441] ss:$8 sm:$0x3] %vm3801, %v4433
        %4443 = vst.msk [vmem:[%s4441] ss:$8 sm:$0x0] %vm3801, %v4433
        %s4444 = scalar_lea.vmem [#allocation3], 50
        %4445 = vst.msk [vmem:[%s4444] ss:$8 sm:$0x3] %vm3801, %v4434
        %4446 = vst.msk [vmem:[%s4444] ss:$8 sm:$0x0] %vm3801, %v4434
        %s4447 = scalar_lea.vmem [#allocation3], 82
        %4448 = vst.msk [vmem:[%s4447] ss:$8 sm:$0x3] %vm3801, %v4435
        %4449 = vst.msk [vmem:[%s4447] ss:$8 sm:$0x0] %vm3801, %v4435
        %s4450 = scalar_lea.vmem [#allocation3], 114
        %4451 = vst.msk [vmem:[%s4450] ss:$8 sm:$0x3] %vm3801, %v4436
        %4452 = vst.msk [vmem:[%s4450] ss:$8 sm:$0x0] %vm3801, %v4436
        %s4453 = scalar_lea.vmem [#allocation3], 146
        %4454 = vst.msk [vmem:[%s4453] ss:$8 sm:$0x3] %vm3801, %v4437
        %4455 = vst.msk [vmem:[%s4453] ss:$8 sm:$0x0] %vm3801, %v4437
        %s4456 = scalar_lea.vmem [#allocation3], 178
        %4457 = vst.msk [vmem:[%s4456] ss:$8 sm:$0x3] %vm3801, %v4438
        %4458 = vst.msk [vmem:[%s4456] ss:$8 sm:$0x0] %vm3801, %v4438
        %s4459 = scalar_lea.vmem [#allocation3], 210
        %4460 = vst.msk [vmem:[%s4459] ss:$8 sm:$0x3] %vm3801, %v4439
        %4461 = vst.msk [vmem:[%s4459] ss:$8 sm:$0x0] %vm3801, %v4439
        %s4462 = scalar_lea.vmem [#allocation3], 242
        %4463 = vst.msk [vmem:[%s4462] ss:$8 sm:$0x3] %vm3801, %v4440
        %4464 = vst.msk [vmem:[%s4462] ss:$8 sm:$0x0] %vm3801, %v4440
        %s4465 = scalar_lea.vmem [#allocation2], 38
        %v4466 = vld [vmem:[%s4465] ss:$8 sm:$0x3]
        %s4467 = scalar_lea.vmem [#allocation2], 86
        %v4468 = vld [vmem:[%s4467] ss:$8 sm:$0x3]
        %s4469 = scalar_lea.vmem [#allocation2], 134
        %v4470 = vld [vmem:[%s4469] ss:$8 sm:$0x3]
        %s4471 = scalar_lea.vmem [#allocation2], 182
        %v4472 = vld [vmem:[%s4471] ss:$8 sm:$0x3]
        %s4473 = scalar_lea.vmem [#allocation2], 230
        %v4474 = vld [vmem:[%s4473] ss:$8 sm:$0x3]
        %s4475 = scalar_lea.vmem [#allocation2], 278
        %v4476 = vld [vmem:[%s4475] ss:$8 sm:$0x3]
        %s4477 = scalar_lea.vmem [#allocation2], 326
        %v4478 = vld [vmem:[%s4477] ss:$8 sm:$0x3]
        %s4479 = scalar_lea.vmem [#allocation2], 374
        %v4480 = vld [vmem:[%s4479] ss:$8 sm:$0x3]
        %s4481 = scalar_lea.vmem [#allocation2], 39
        %v4482 = vld [vmem:[%s4481] ss:$8 sm:$0x3]
        %s4483 = scalar_lea.vmem [#allocation2], 87
        %v4484 = vld [vmem:[%s4483] ss:$8 sm:$0x3]
        %s4485 = scalar_lea.vmem [#allocation2], 135
        %v4486 = vld [vmem:[%s4485] ss:$8 sm:$0x3]
        %s4487 = scalar_lea.vmem [#allocation2], 183
        %v4488 = vld [vmem:[%s4487] ss:$8 sm:$0x3]
        %s4489 = scalar_lea.vmem [#allocation2], 231
        %v4490 = vld [vmem:[%s4489] ss:$8 sm:$0x3]
        %s4491 = scalar_lea.vmem [#allocation2], 279
        %v4492 = vld [vmem:[%s4491] ss:$8 sm:$0x3]
        %s4493 = scalar_lea.vmem [#allocation2], 327
        %v4494 = vld [vmem:[%s4493] ss:$8 sm:$0x3]
        %s4495 = scalar_lea.vmem [#allocation2], 375
        %v4496 = vld [vmem:[%s4495] ss:$8 sm:$0x3]
        %v4497 = vmax.f32 %v4466, %v4482
        %v4498 = vmax.f32 %v4468, %v4484
        %v4499 = vmax.f32 %v4470, %v4486
        %v4500 = vmax.f32 %v4472, %v4488
        %v4501 = vmax.f32 %v4474, %v4490
        %v4502 = vmax.f32 %v4476, %v4492
        %v4503 = vmax.f32 %v4478, %v4494
        %v4504 = vmax.f32 %v4480, %v4496
        %s4505 = scalar_lea.vmem [#allocation3], 19
        %4506 = vst.msk [vmem:[%s4505] ss:$8 sm:$0x3] %vm3801, %v4497
        %4507 = vst.msk [vmem:[%s4505] ss:$8 sm:$0x0] %vm3801, %v4497
        %s4508 = scalar_lea.vmem [#allocation3], 51
        %4509 = vst.msk [vmem:[%s4508] ss:$8 sm:$0x3] %vm3801, %v4498
        %4510 = vst.msk [vmem:[%s4508] ss:$8 sm:$0x0] %vm3801, %v4498
        %s4511 = scalar_lea.vmem [#allocation3], 83
        %4512 = vst.msk [vmem:[%s4511] ss:$8 sm:$0x3] %vm3801, %v4499
        %4513 = vst.msk [vmem:[%s4511] ss:$8 sm:$0x0] %vm3801, %v4499
        %s4514 = scalar_lea.vmem [#allocation3], 115
        %4515 = vst.msk [vmem:[%s4514] ss:$8 sm:$0x3] %vm3801, %v4500
        %4516 = vst.msk [vmem:[%s4514] ss:$8 sm:$0x0] %vm3801, %v4500
        %s4517 = scalar_lea.vmem [#allocation3], 147
        %4518 = vst.msk [vmem:[%s4517] ss:$8 sm:$0x3] %vm3801, %v4501
        %4519 = vst.msk [vmem:[%s4517] ss:$8 sm:$0x0] %vm3801, %v4501
        %s4520 = scalar_lea.vmem [#allocation3], 179
        %4521 = vst.msk [vmem:[%s4520] ss:$8 sm:$0x3] %vm3801, %v4502
        %4522 = vst.msk [vmem:[%s4520] ss:$8 sm:$0x0] %vm3801, %v4502
        %s4523 = scalar_lea.vmem [#allocation3], 211
        %4524 = vst.msk [vmem:[%s4523] ss:$8 sm:$0x3] %vm3801, %v4503
        %4525 = vst.msk [vmem:[%s4523] ss:$8 sm:$0x0] %vm3801, %v4503
        %s4526 = scalar_lea.vmem [#allocation3], 243
        %4527 = vst.msk [vmem:[%s4526] ss:$8 sm:$0x3] %vm3801, %v4504
        %4528 = vst.msk [vmem:[%s4526] ss:$8 sm:$0x0] %vm3801, %v4504
        %v4529 = vld [vmem:[#allocation3] sm:$0xff]
        %v4530 = vld [vmem:[#allocation3 + $0x8] sm:$0xff]
        %v4531 = vld [vmem:[#allocation3 + $0x20] sm:$0xff]
        %v4532 = vld [vmem:[#allocation3 + $0x28] sm:$0xff]
        %v4533 = vld [vmem:[#allocation3 + $0x40] sm:$0xff]
        %v4534 = vld [vmem:[#allocation3 + $0x48] sm:$0xff]
        %v4535 = vld [vmem:[#allocation3 + $0x60] sm:$0xff]
        %v4536 = vld [vmem:[#allocation3 + $0x68] sm:$0xff]
        %v4537 = vld [vmem:[#allocation3 + $0x80] sm:$0xff]
        %v4538 = vld [vmem:[#allocation3 + $0x88] sm:$0xff]
        %v4539 = vld [vmem:[#allocation3 + $0xa0] sm:$0xff]
        %v4540 = vld [vmem:[#allocation3 + $0xa8] sm:$0xff]
        %v4541 = vld [vmem:[#allocation3 + $0xc0] sm:$0xff]
        %v4542 = vld [vmem:[#allocation3 + $0xc8] sm:$0xff]
        %v4543 = vld [vmem:[#allocation3 + $0xe0] sm:$0xff]
        %v4544 = vld [vmem:[#allocation3 + $0xe8] sm:$0xff]
        %v4545 = vld [vmem:[#allocation10] sm:$0xff]
        %v4546 = vld [vmem:[#allocation10 + $0x8] sm:$0xff]
        %v4547 = vld [vmem:[#allocation10 + $0x10] sm:$0xff]
        %v4548 = vld [vmem:[#allocation10 + $0x18] sm:$0xff]
        %v4549 = vld [vmem:[#allocation10 + $0x20] sm:$0xff]
        %v4550 = vld [vmem:[#allocation10 + $0x28] sm:$0xff]
        %v4551 = vld [vmem:[#allocation10 + $0x30] sm:$0xff]
        %v4552 = vld [vmem:[#allocation10 + $0x38] sm:$0xff]
        %v4553 = vld [vmem:[#allocation10 + $0x40] sm:$0xff]
        %v4554 = vld [vmem:[#allocation10 + $0x48] sm:$0xff]
        %v4555 = vld [vmem:[#allocation10 + $0x50] sm:$0xff]
        %v4556 = vld [vmem:[#allocation10 + $0x58] sm:$0xff]
        %v4557 = vld [vmem:[#allocation10 + $0x60] sm:$0xff]
        %v4558 = vld [vmem:[#allocation10 + $0x68] sm:$0xff]
        %v4559 = vld [vmem:[#allocation10 + $0x70] sm:$0xff]
        %v4560 = vld [vmem:[#allocation10 + $0x78] sm:$0xff]
        %v4561 = vld [vmem:[#allocation10 + $0x80] sm:$0xff]
        %v4562 = vld [vmem:[#allocation10 + $0x88] sm:$0xff]
        %v4563 = vld [vmem:[#allocation10 + $0x90] sm:$0xff]
        %v4564 = vld [vmem:[#allocation10 + $0x98] sm:$0xff]
        %v4565 = vld [vmem:[#allocation10 + $0xa0] sm:$0xff]
        %v4566 = vld [vmem:[#allocation10 + $0xa8] sm:$0xff]
        %v4567 = vld [vmem:[#allocation10 + $0xb0] sm:$0xff]
        %v4568 = vld [vmem:[#allocation10 + $0xb8] sm:$0xff]
        %v4569 = vld [vmem:[#allocation10 + $0xc0] sm:$0xff]
        %v4570 = vld [vmem:[#allocation10 + $0xc8] sm:$0xff]
        %v4571 = vld [vmem:[#allocation10 + $0xd0] sm:$0xff]
        %v4572 = vld [vmem:[#allocation10 + $0xd8] sm:$0xff]
        %v4573 = vld [vmem:[#allocation10 + $0xe0] sm:$0xff]
        %v4574 = vld [vmem:[#allocation10 + $0xe8] sm:$0xff]
        %v4575 = vld [vmem:[#allocation10 + $0xf0] sm:$0xff]
        %v4576 = vld [vmem:[#allocation10 + $0xf8] sm:$0xff]
        %v4577 = vld [vmem:[#allocation10 + $0x100] sm:$0xff]
        %v4578 = vld [vmem:[#allocation10 + $0x108] sm:$0xff]
        %v4579 = vld [vmem:[#allocation10 + $0x110] sm:$0xff]
        %v4580 = vld [vmem:[#allocation10 + $0x118] sm:$0xff]
        %v4581 = vld [vmem:[#allocation10 + $0x120] sm:$0xff]
        %v4582 = vld [vmem:[#allocation10 + $0x128] sm:$0xff]
        %v4583 = vld [vmem:[#allocation10 + $0x130] sm:$0xff]
        %v4584 = vld [vmem:[#allocation10 + $0x138] sm:$0xff]
        %v4585 = vld [vmem:[#allocation10 + $0x140] sm:$0xff]
        %v4586 = vld [vmem:[#allocation10 + $0x148] sm:$0xff]
        %v4587 = vld [vmem:[#allocation10 + $0x150] sm:$0xff]
        %v4588 = vld [vmem:[#allocation10 + $0x158] sm:$0xff]
        %v4589 = vld [vmem:[#allocation10 + $0x160] sm:$0xff]
        %v4590 = vld [vmem:[#allocation10 + $0x168] sm:$0xff]
        %v4591 = vld [vmem:[#allocation10 + $0x170] sm:$0xff]
        %v4592 = vld [vmem:[#allocation10 + $0x178] sm:$0xff]
        %v4593 = vld [vmem:[#allocation10 + $0x180] sm:$0xff]
        %v4594 = vld [vmem:[#allocation10 + $0x188] sm:$0xff]
        %v4595 = vld [vmem:[#allocation10 + $0x190] sm:$0xff]
        %v4596 = vld [vmem:[#allocation10 + $0x198] sm:$0xff]
        %v4597 = vld [vmem:[#allocation10 + $0x1a0] sm:$0xff]
        %v4598 = vld [vmem:[#allocation10 + $0x1a8] sm:$0xff]
        %v4599 = vld [vmem:[#allocation10 + $0x1b0] sm:$0xff]
        %v4600 = vld [vmem:[#allocation10 + $0x1b8] sm:$0xff]
        %v4601 = vld [vmem:[#allocation10 + $0x1c0] sm:$0xff]
        %v4602 = vld [vmem:[#allocation10 + $0x1c8] sm:$0xff]
        %v4603 = vld [vmem:[#allocation10 + $0x1d0] sm:$0xff]
        %v4604 = vld [vmem:[#allocation10 + $0x1d8] sm:$0xff]
        %v4605 = vld [vmem:[#allocation10 + $0x1e0] sm:$0xff]
        %v4606 = vld [vmem:[#allocation10 + $0x1e8] sm:$0xff]
        %v4607 = vld [vmem:[#allocation10 + $0x1f0] sm:$0xff]
        %v4608 = vld [vmem:[#allocation10 + $0x1f8] sm:$0xff]
        %v4609 = vld [vmem:[#allocation10 + $0x200] sm:$0xff]
        %v4610 = vld [vmem:[#allocation10 + $0x208] sm:$0xff]
        %v4611 = vld [vmem:[#allocation10 + $0x210] sm:$0xff]
        %v4612 = vld [vmem:[#allocation10 + $0x218] sm:$0xff]
        %v4613 = vld [vmem:[#allocation10 + $0x220] sm:$0xff]
        %v4614 = vld [vmem:[#allocation10 + $0x228] sm:$0xff]
        %v4615 = vld [vmem:[#allocation10 + $0x230] sm:$0xff]
        %v4616 = vld [vmem:[#allocation10 + $0x238] sm:$0xff]
        %v4617 = vld [vmem:[#allocation10 + $0x240] sm:$0xff]
        %v4618 = vld [vmem:[#allocation10 + $0x248] sm:$0xff]
        %v4619 = vld [vmem:[#allocation10 + $0x250] sm:$0xff]
        %v4620 = vld [vmem:[#allocation10 + $0x258] sm:$0xff]
        %v4621 = vld [vmem:[#allocation10 + $0x260] sm:$0xff]
        %v4622 = vld [vmem:[#allocation10 + $0x268] sm:$0xff]
        %v4623 = vld [vmem:[#allocation10 + $0x270] sm:$0xff]
        %v4624 = vld [vmem:[#allocation10 + $0x278] sm:$0xff]
        %v4625 = vld [vmem:[#allocation10 + $0x280] sm:$0xff]
        %v4626 = vld [vmem:[#allocation10 + $0x288] sm:$0xff]
        %v4627 = vld [vmem:[#allocation10 + $0x290] sm:$0xff]
        %v4628 = vld [vmem:[#allocation10 + $0x298] sm:$0xff]
        %v4629 = vld [vmem:[#allocation10 + $0x2a0] sm:$0xff]
        %v4630 = vld [vmem:[#allocation10 + $0x2a8] sm:$0xff]
        %v4631 = vld [vmem:[#allocation10 + $0x2b0] sm:$0xff]
        %v4632 = vld [vmem:[#allocation10 + $0x2b8] sm:$0xff]
        %v4633 = vld [vmem:[#allocation10 + $0x2c0] sm:$0xff]
        %v4634 = vld [vmem:[#allocation10 + $0x2c8] sm:$0xff]
        %v4635 = vld [vmem:[#allocation10 + $0x2d0] sm:$0xff]
        %v4636 = vld [vmem:[#allocation10 + $0x2d8] sm:$0xff]
        %v4637 = vld [vmem:[#allocation10 + $0x2e0] sm:$0xff]
        %v4638 = vld [vmem:[#allocation10 + $0x2e8] sm:$0xff]
        %v4639 = vld [vmem:[#allocation10 + $0x2f0] sm:$0xff]
        %v4640 = vld [vmem:[#allocation10 + $0x2f8] sm:$0xff]
        %v4641 = vld [vmem:[#allocation10 + $0x300] sm:$0xff]
        %v4642 = vld [vmem:[#allocation10 + $0x308] sm:$0xff]
        %v4643 = vld [vmem:[#allocation10 + $0x310] sm:$0xff]
        %v4644 = vld [vmem:[#allocation10 + $0x318] sm:$0xff]
        %v4645 = vld [vmem:[#allocation10 + $0x320] sm:$0xff]
        %v4646 = vld [vmem:[#allocation10 + $0x328] sm:$0xff]
        %v4647 = vld [vmem:[#allocation10 + $0x330] sm:$0xff]
        %v4648 = vld [vmem:[#allocation10 + $0x338] sm:$0xff]
        %v4649 = vld [vmem:[#allocation10 + $0x340] sm:$0xff]
        %v4650 = vld [vmem:[#allocation10 + $0x348] sm:$0xff]
        %v4651 = vld [vmem:[#allocation10 + $0x350] sm:$0xff]
        %v4652 = vld [vmem:[#allocation10 + $0x358] sm:$0xff]
        %v4653 = vld [vmem:[#allocation10 + $0x360] sm:$0xff]
        %v4654 = vld [vmem:[#allocation10 + $0x368] sm:$0xff]
        %v4655 = vld [vmem:[#allocation10 + $0x370] sm:$0xff]
        %v4656 = vld [vmem:[#allocation10 + $0x378] sm:$0xff]
        %v4657 = vld [vmem:[#allocation10 + $0x380] sm:$0xff]
        %v4658 = vld [vmem:[#allocation10 + $0x388] sm:$0xff]
        %v4659 = vld [vmem:[#allocation10 + $0x390] sm:$0xff]
        %v4660 = vld [vmem:[#allocation10 + $0x398] sm:$0xff]
        %v4661 = vld [vmem:[#allocation10 + $0x3a0] sm:$0xff]
        %v4662 = vld [vmem:[#allocation10 + $0x3a8] sm:$0xff]
        %v4663 = vld [vmem:[#allocation10 + $0x3b0] sm:$0xff]
        %v4664 = vld [vmem:[#allocation10 + $0x3b8] sm:$0xff]
        %v4665 = vld [vmem:[#allocation10 + $0x3c0] sm:$0xff]
        %v4666 = vld [vmem:[#allocation10 + $0x3c8] sm:$0xff]
        %v4667 = vld [vmem:[#allocation10 + $0x3d0] sm:$0xff]
        %v4668 = vld [vmem:[#allocation10 + $0x3d8] sm:$0xff]
        %v4669 = vld [vmem:[#allocation10 + $0x3e0] sm:$0xff]
        %v4670 = vld [vmem:[#allocation10 + $0x3e8] sm:$0xff]
        %v4671 = vld [vmem:[#allocation10 + $0x3f0] sm:$0xff]
        %v4672 = vld [vmem:[#allocation10 + $0x3f8] sm:$0xff]
        %v4673 = vld [vmem:[#allocation3] sm:$0xfe]
        %v4674 = vld [vmem:[#allocation3 + $0x8] sm:$0xfe]
        %v4675 = vld [vmem:[#allocation3 + $0x10] sm:$0x1]
        %v4676 = vld [vmem:[#allocation3 + $0x18] sm:$0x1]
        %v4677 = vld [vmem:[#allocation3 + $0x20] sm:$0xfe]
        %v4678 = vld [vmem:[#allocation3 + $0x28] sm:$0xfe]
        %v4679 = vld [vmem:[#allocation3 + $0x30] sm:$0x1]
        %v4680 = vld [vmem:[#allocation3 + $0x38] sm:$0x1]
        %v4681 = vld [vmem:[#allocation3 + $0x40] sm:$0xfe]
        %v4682 = vld [vmem:[#allocation3 + $0x48] sm:$0xfe]
        %v4683 = vld [vmem:[#allocation3 + $0x50] sm:$0x1]
        %v4684 = vld [vmem:[#allocation3 + $0x58] sm:$0x1]
        %v4685 = vld [vmem:[#allocation3 + $0x60] sm:$0xfe]
        %v4686 = vld [vmem:[#allocation3 + $0x68] sm:$0xfe]
        %v4687 = vld [vmem:[#allocation3 + $0x70] sm:$0x1]
        %v4688 = vld [vmem:[#allocation3 + $0x78] sm:$0x1]
        %v4689 = vld [vmem:[#allocation3 + $0x80] sm:$0xfe]
        %v4690 = vld [vmem:[#allocation3 + $0x88] sm:$0xfe]
        %v4691 = vld [vmem:[#allocation3 + $0x90] sm:$0x1]
        %v4692 = vld [vmem:[#allocation3 + $0x98] sm:$0x1]
        %v4693 = vld [vmem:[#allocation3 + $0xa0] sm:$0xfe]
        %v4694 = vld [vmem:[#allocation3 + $0xa8] sm:$0xfe]
        %v4695 = vld [vmem:[#allocation3 + $0xb0] sm:$0x1]
        %v4696 = vld [vmem:[#allocation3 + $0xb8] sm:$0x1]
        %v4697 = vld [vmem:[#allocation3 + $0xc0] sm:$0xfe]
        %v4698 = vld [vmem:[#allocation3 + $0xc8] sm:$0xfe]
        %v4699 = vld [vmem:[#allocation3 + $0xd0] sm:$0x1]
        %v4700 = vld [vmem:[#allocation3 + $0xd8] sm:$0x1]
        %v4701 = vld [vmem:[#allocation3 + $0xe0] sm:$0xfe]
        %v4702 = vld [vmem:[#allocation3 + $0xe8] sm:$0xfe]
        %v4703 = vld [vmem:[#allocation3 + $0xf0] sm:$0x1]
        %v4704 = vld [vmem:[#allocation3 + $0xf8] sm:$0x1]
        %vm4737 = vcmask 1046528
        %v4738 = vrot.slane %v4673, 1
        %v4739 = vrot.slane %v4675, 1
        %v4740 = vsel %vm4737, %v4738, %v4739
        %v4741 = vrot.slane %v4674, 1
        %v4742 = vrot.slane %v4676, 1
        %v4743 = vsel %vm4737, %v4741, %v4742
        %v4744 = vrot.slane %v4677, 1
        %v4745 = vrot.slane %v4679, 1
        %v4746 = vsel %vm4737, %v4744, %v4745
        %v4747 = vrot.slane %v4678, 1
        %v4748 = vrot.slane %v4680, 1
        %v4749 = vsel %vm4737, %v4747, %v4748
        %v4750 = vrot.slane %v4681, 1
        %v4751 = vrot.slane %v4683, 1
        %v4752 = vsel %vm4737, %v4750, %v4751
        %v4753 = vrot.slane %v4682, 1
        %v4754 = vrot.slane %v4684, 1
        %v4755 = vsel %vm4737, %v4753, %v4754
        %v4756 = vrot.slane %v4685, 1
        %v4757 = vrot.slane %v4687, 1
        %v4758 = vsel %vm4737, %v4756, %v4757
        %v4759 = vrot.slane %v4686, 1
        %v4760 = vrot.slane %v4688, 1
        %v4761 = vsel %vm4737, %v4759, %v4760
        %v4762 = vrot.slane %v4689, 1
        %v4763 = vrot.slane %v4691, 1
        %v4764 = vsel %vm4737, %v4762, %v4763
        %v4765 = vrot.slane %v4690, 1
        %v4766 = vrot.slane %v4692, 1
        %v4767 = vsel %vm4737, %v4765, %v4766
        %v4768 = vrot.slane %v4693, 1
        %v4769 = vrot.slane %v4695, 1
        %v4770 = vsel %vm4737, %v4768, %v4769
        %v4771 = vrot.slane %v4694, 1
        %v4772 = vrot.slane %v4696, 1
        %v4773 = vsel %vm4737, %v4771, %v4772
        %v4774 = vrot.slane %v4697, 1
        %v4775 = vrot.slane %v4699, 1
        %v4776 = vsel %vm4737, %v4774, %v4775
        %v4777 = vrot.slane %v4698, 1
        %v4778 = vrot.slane %v4700, 1
        %v4779 = vsel %vm4737, %v4777, %v4778
        %v4780 = vrot.slane %v4701, 1
        %v4781 = vrot.slane %v4703, 1
        %v4782 = vsel %vm4737, %v4780, %v4781
        %v4783 = vrot.slane %v4702, 1
        %v4784 = vrot.slane %v4704, 1
        %v4785 = vsel %vm4737, %v4783, %v4784
        %s4802 = scalar_lea.vmem [#allocation10], 1024
        %v4803 = vld [vmem:[%s4802] sm:$0xff]
        %v4804 = vld [vmem:[%s4802 + $0x8] sm:$0xff]
        %v4805 = vld [vmem:[%s4802 + $0x10] sm:$0xff]
        %v4806 = vld [vmem:[%s4802 + $0x18] sm:$0xff]
        %v4807 = vld [vmem:[%s4802 + $0x20] sm:$0xff]
        %v4808 = vld [vmem:[%s4802 + $0x28] sm:$0xff]
        %v4809 = vld [vmem:[%s4802 + $0x30] sm:$0xff]
        %v4810 = vld [vmem:[%s4802 + $0x38] sm:$0xff]
        %v4811 = vld [vmem:[%s4802 + $0x40] sm:$0xff]
        %v4812 = vld [vmem:[%s4802 + $0x48] sm:$0xff]
        %v4813 = vld [vmem:[%s4802 + $0x50] sm:$0xff]
        %v4814 = vld [vmem:[%s4802 + $0x58] sm:$0xff]
        %v4815 = vld [vmem:[%s4802 + $0x60] sm:$0xff]
        %v4816 = vld [vmem:[%s4802 + $0x68] sm:$0xff]
        %v4817 = vld [vmem:[%s4802 + $0x70] sm:$0xff]
        %v4818 = vld [vmem:[%s4802 + $0x78] sm:$0xff]
        %v4819 = vld [vmem:[%s4802 + $0x80] sm:$0xff]
        %v4820 = vld [vmem:[%s4802 + $0x88] sm:$0xff]
        %v4821 = vld [vmem:[%s4802 + $0x90] sm:$0xff]
        %v4822 = vld [vmem:[%s4802 + $0x98] sm:$0xff]
        %v4823 = vld [vmem:[%s4802 + $0xa0] sm:$0xff]
        %v4824 = vld [vmem:[%s4802 + $0xa8] sm:$0xff]
        %v4825 = vld [vmem:[%s4802 + $0xb0] sm:$0xff]
        %v4826 = vld [vmem:[%s4802 + $0xb8] sm:$0xff]
        %v4827 = vld [vmem:[%s4802 + $0xc0] sm:$0xff]
        %v4828 = vld [vmem:[%s4802 + $0xc8] sm:$0xff]
        %v4829 = vld [vmem:[%s4802 + $0xd0] sm:$0xff]
        %v4830 = vld [vmem:[%s4802 + $0xd8] sm:$0xff]
        %v4831 = vld [vmem:[%s4802 + $0xe0] sm:$0xff]
        %v4832 = vld [vmem:[%s4802 + $0xe8] sm:$0xff]
        %v4833 = vld [vmem:[%s4802 + $0xf0] sm:$0xff]
        %v4834 = vld [vmem:[%s4802 + $0xf8] sm:$0xff]
        %v4835 = vld [vmem:[%s4802 + $0x100] sm:$0xff]
        %v4836 = vld [vmem:[%s4802 + $0x108] sm:$0xff]
        %v4837 = vld [vmem:[%s4802 + $0x110] sm:$0xff]
        %v4838 = vld [vmem:[%s4802 + $0x118] sm:$0xff]
        %v4839 = vld [vmem:[%s4802 + $0x120] sm:$0xff]
        %v4840 = vld [vmem:[%s4802 + $0x128] sm:$0xff]
        %v4841 = vld [vmem:[%s4802 + $0x130] sm:$0xff]
        %v4842 = vld [vmem:[%s4802 + $0x138] sm:$0xff]
        %v4843 = vld [vmem:[%s4802 + $0x140] sm:$0xff]
        %v4844 = vld [vmem:[%s4802 + $0x148] sm:$0xff]
        %v4845 = vld [vmem:[%s4802 + $0x150] sm:$0xff]
        %v4846 = vld [vmem:[%s4802 + $0x158] sm:$0xff]
        %v4847 = vld [vmem:[%s4802 + $0x160] sm:$0xff]
        %v4848 = vld [vmem:[%s4802 + $0x168] sm:$0xff]
        %v4849 = vld [vmem:[%s4802 + $0x170] sm:$0xff]
        %v4850 = vld [vmem:[%s4802 + $0x178] sm:$0xff]
        %v4851 = vld [vmem:[%s4802 + $0x180] sm:$0xff]
        %v4852 = vld [vmem:[%s4802 + $0x188] sm:$0xff]
        %v4853 = vld [vmem:[%s4802 + $0x190] sm:$0xff]
        %v4854 = vld [vmem:[%s4802 + $0x198] sm:$0xff]
        %v4855 = vld [vmem:[%s4802 + $0x1a0] sm:$0xff]
        %v4856 = vld [vmem:[%s4802 + $0x1a8] sm:$0xff]
        %v4857 = vld [vmem:[%s4802 + $0x1b0] sm:$0xff]
        %v4858 = vld [vmem:[%s4802 + $0x1b8] sm:$0xff]
        %v4859 = vld [vmem:[%s4802 + $0x1c0] sm:$0xff]
        %v4860 = vld [vmem:[%s4802 + $0x1c8] sm:$0xff]
        %v4861 = vld [vmem:[%s4802 + $0x1d0] sm:$0xff]
        %v4862 = vld [vmem:[%s4802 + $0x1d8] sm:$0xff]
        %v4863 = vld [vmem:[%s4802 + $0x1e0] sm:$0xff]
        %v4864 = vld [vmem:[%s4802 + $0x1e8] sm:$0xff]
        %v4865 = vld [vmem:[%s4802 + $0x1f0] sm:$0xff]
        %v4866 = vld [vmem:[%s4802 + $0x1f8] sm:$0xff]
        %v4867 = vld [vmem:[%s4802 + $0x200] sm:$0xff]
        %v4868 = vld [vmem:[%s4802 + $0x208] sm:$0xff]
        %v4869 = vld [vmem:[%s4802 + $0x210] sm:$0xff]
        %v4870 = vld [vmem:[%s4802 + $0x218] sm:$0xff]
        %v4871 = vld [vmem:[%s4802 + $0x220] sm:$0xff]
        %v4872 = vld [vmem:[%s4802 + $0x228] sm:$0xff]
        %v4873 = vld [vmem:[%s4802 + $0x230] sm:$0xff]
        %v4874 = vld [vmem:[%s4802 + $0x238] sm:$0xff]
        %v4875 = vld [vmem:[%s4802 + $0x240] sm:$0xff]
        %v4876 = vld [vmem:[%s4802 + $0x248] sm:$0xff]
        %v4877 = vld [vmem:[%s4802 + $0x250] sm:$0xff]
        %v4878 = vld [vmem:[%s4802 + $0x258] sm:$0xff]
        %v4879 = vld [vmem:[%s4802 + $0x260] sm:$0xff]
        %v4880 = vld [vmem:[%s4802 + $0x268] sm:$0xff]
        %v4881 = vld [vmem:[%s4802 + $0x270] sm:$0xff]
        %v4882 = vld [vmem:[%s4802 + $0x278] sm:$0xff]
        %v4883 = vld [vmem:[%s4802 + $0x280] sm:$0xff]
        %v4884 = vld [vmem:[%s4802 + $0x288] sm:$0xff]
        %v4885 = vld [vmem:[%s4802 + $0x290] sm:$0xff]
        %v4886 = vld [vmem:[%s4802 + $0x298] sm:$0xff]
        %v4887 = vld [vmem:[%s4802 + $0x2a0] sm:$0xff]
        %v4888 = vld [vmem:[%s4802 + $0x2a8] sm:$0xff]
        %v4889 = vld [vmem:[%s4802 + $0x2b0] sm:$0xff]
        %v4890 = vld [vmem:[%s4802 + $0x2b8] sm:$0xff]
        %v4891 = vld [vmem:[%s4802 + $0x2c0] sm:$0xff]
        %v4892 = vld [vmem:[%s4802 + $0x2c8] sm:$0xff]
        %v4893 = vld [vmem:[%s4802 + $0x2d0] sm:$0xff]
        %v4894 = vld [vmem:[%s4802 + $0x2d8] sm:$0xff]
        %v4895 = vld [vmem:[%s4802 + $0x2e0] sm:$0xff]
        %v4896 = vld [vmem:[%s4802 + $0x2e8] sm:$0xff]
        %v4897 = vld [vmem:[%s4802 + $0x2f0] sm:$0xff]
        %v4898 = vld [vmem:[%s4802 + $0x2f8] sm:$0xff]
        %v4899 = vld [vmem:[%s4802 + $0x300] sm:$0xff]
        %v4900 = vld [vmem:[%s4802 + $0x308] sm:$0xff]
        %v4901 = vld [vmem:[%s4802 + $0x310] sm:$0xff]
        %v4902 = vld [vmem:[%s4802 + $0x318] sm:$0xff]
        %v4903 = vld [vmem:[%s4802 + $0x320] sm:$0xff]
        %v4904 = vld [vmem:[%s4802 + $0x328] sm:$0xff]
        %v4905 = vld [vmem:[%s4802 + $0x330] sm:$0xff]
        %v4906 = vld [vmem:[%s4802 + $0x338] sm:$0xff]
        %v4907 = vld [vmem:[%s4802 + $0x340] sm:$0xff]
        %v4908 = vld [vmem:[%s4802 + $0x348] sm:$0xff]
        %v4909 = vld [vmem:[%s4802 + $0x350] sm:$0xff]
        %v4910 = vld [vmem:[%s4802 + $0x358] sm:$0xff]
        %v4911 = vld [vmem:[%s4802 + $0x360] sm:$0xff]
        %v4912 = vld [vmem:[%s4802 + $0x368] sm:$0xff]
        %v4913 = vld [vmem:[%s4802 + $0x370] sm:$0xff]
        %v4914 = vld [vmem:[%s4802 + $0x378] sm:$0xff]
        %v4915 = vld [vmem:[%s4802 + $0x380] sm:$0xff]
        %v4916 = vld [vmem:[%s4802 + $0x388] sm:$0xff]
        %v4917 = vld [vmem:[%s4802 + $0x390] sm:$0xff]
        %v4918 = vld [vmem:[%s4802 + $0x398] sm:$0xff]
        %v4919 = vld [vmem:[%s4802 + $0x3a0] sm:$0xff]
        %v4920 = vld [vmem:[%s4802 + $0x3a8] sm:$0xff]
        %v4921 = vld [vmem:[%s4802 + $0x3b0] sm:$0xff]
        %v4922 = vld [vmem:[%s4802 + $0x3b8] sm:$0xff]
        %v4923 = vld [vmem:[%s4802 + $0x3c0] sm:$0xff]
        %v4924 = vld [vmem:[%s4802 + $0x3c8] sm:$0xff]
        %v4925 = vld [vmem:[%s4802 + $0x3d0] sm:$0xff]
        %v4926 = vld [vmem:[%s4802 + $0x3d8] sm:$0xff]
        %v4927 = vld [vmem:[%s4802 + $0x3e0] sm:$0xff]
        %v4928 = vld [vmem:[%s4802 + $0x3e8] sm:$0xff]
        %v4929 = vld [vmem:[%s4802 + $0x3f0] sm:$0xff]
        %v4930 = vld [vmem:[%s4802 + $0x3f8] sm:$0xff]
        %4931 = vmatprep.subr.mxu0 %v4864
        %4932 = vmatpush1.msra.mxu0 %v4863
        %4933 = vmatprep.subr.mxu0 %v4860
        %4934 = vmatpush1.msra.mxu0 %v4859
        %4935 = vmatprep.subr.mxu0 %v4856
        %4936 = vmatpush1.msra.mxu0 %v4855
        %4937 = vmatprep.subr.mxu0 %v4852
        %4938 = vmatpush1.msra.mxu0 %v4851
        %4939 = vmatprep.subr.mxu0 %v4848
        %4940 = vmatpush1.msra.mxu0 %v4847
        %4941 = vmatprep.subr.mxu0 %v4844
        %4942 = vmatpush1.msra.mxu0 %v4843
        %4943 = vmatprep.subr.mxu0 %v4840
        %4944 = vmatpush1.msra.mxu0 %v4839
        %4945 = vmatprep.subr.mxu0 %v4836
        %4946 = vmatpush1.msra.mxu0 %v4835
        %4947 = vmatprep.subr.mxu0 %v4832
        %4948 = vmatpush1.msra.mxu0 %v4831
        %4949 = vmatprep.subr.mxu0 %v4828
        %4950 = vmatpush1.msra.mxu0 %v4827
        %4951 = vmatprep.subr.mxu0 %v4824
        %4952 = vmatpush1.msra.mxu0 %v4823
        %4953 = vmatprep.subr.mxu0 %v4820
        %4954 = vmatpush1.msra.mxu0 %v4819
        %4955 = vmatprep.subr.mxu0 %v4816
        %4956 = vmatpush1.msra.mxu0 %v4815
        %4957 = vmatprep.subr.mxu0 %v4812
        %4958 = vmatpush1.msra.mxu0 %v4811
        %4959 = vmatprep.subr.mxu0 %v4808
        %4960 = vmatpush1.msra.mxu0 %v4807
        %4961 = vmatprep.subr.mxu0 %v4804
        %4962 = vmatpush1.msra.mxu0 %v4803
        %4963 = vmatprep.subr.mxu0 %v4928
        %4964 = vmatpush2.msra.mxu0 %v4927
        %4965 = vmatprep.subr.mxu0 %v4924
        %4966 = vmatpush2.msra.mxu0 %v4923
        %4967 = vmatprep.subr.mxu0 %v4920
        %4968 = vmatpush2.msra.mxu0 %v4919
        %4969 = vmatprep.subr.mxu0 %v4916
        %4970 = vmatpush2.msra.mxu0 %v4915
        %4971 = vmatprep.subr.mxu0 %v4912
        %4972 = vmatpush2.msra.mxu0 %v4911
        %4973 = vmatprep.subr.mxu0 %v4908
        %4974 = vmatpush2.msra.mxu0 %v4907
        %4975 = vmatprep.subr.mxu0 %v4904
        %4976 = vmatpush2.msra.mxu0 %v4903
        %4977 = vmatprep.subr.mxu0 %v4900
        %4978 = vmatpush2.msra.mxu0 %v4899
        %4979 = vmatprep.subr.mxu0 %v4896
        %4980 = vmatpush2.msra.mxu0 %v4895
        %4981 = vmatprep.subr.mxu0 %v4892
        %4982 = vmatpush2.msra.mxu0 %v4891
        %4983 = vmatprep.subr.mxu0 %v4888
        %4984 = vmatpush2.msra.mxu0 %v4887
        %4985 = vmatprep.subr.mxu0 %v4884
        %4986 = vmatpush2.msra.mxu0 %v4883
        %4987 = vmatprep.subr.mxu0 %v4880
        %4988 = vmatpush2.msra.mxu0 %v4879
        %4989 = vmatprep.subr.mxu0 %v4876
        %4990 = vmatpush2.msra.mxu0 %v4875
        %4991 = vmatprep.subr.mxu0 %v4872
        %4992 = vmatpush2.msra.mxu0 %v4871
        %4993 = vmatprep.subr.mxu0 %v4868
        %4994 = vmatpush2.msra.mxu0 %v4867
        %4995 = vmatprep.mubr.f32.mxu0 %v4743
        %4996 = vmatmul.mubr.f32.gmra.mxu0 %v4740
        %v4997 = vpop.f32.mrf.mxu0
        %v4998 = vadd.f32 0.0, %v4997
        %v4999 = vpop.f32.mrf.mxu0
        %v5000 = vadd.f32 0.0, %v4999
        %5001 = vmatprep.mubr.f32.mxu0 %v4749
        %5002 = vmatmul.mubr.f32.gmra.mxu0 %v4746
        %v5003 = vpop.f32.mrf.mxu0
        %v5004 = vadd.f32 0.0, %v5003
        %v5005 = vpop.f32.mrf.mxu0
        %v5006 = vadd.f32 0.0, %v5005
        %5007 = vmatprep.mubr.f32.mxu0 %v4755
        %5008 = vmatmul.mubr.f32.gmra.mxu0 %v4752
        %v5009 = vpop.f32.mrf.mxu0
        %v5010 = vadd.f32 0.0, %v5009
        %v5011 = vpop.f32.mrf.mxu0
        %v5012 = vadd.f32 0.0, %v5011
        %5013 = vmatprep.mubr.f32.mxu0 %v4761
        %5014 = vmatmul.mubr.f32.gmra.mxu0 %v4758
        %v5015 = vpop.f32.mrf.mxu0
        %v5016 = vadd.f32 0.0, %v5015
        %v5017 = vpop.f32.mrf.mxu0
        %v5018 = vadd.f32 0.0, %v5017
        %5019 = vmatprep.mubr.f32.mxu0 %v4767
        %5020 = vmatmul.mubr.f32.gmra.mxu0 %v4764
        %v5021 = vpop.f32.mrf.mxu0
        %v5022 = vadd.f32 0.0, %v5021
        %v5023 = vpop.f32.mrf.mxu0
        %v5024 = vadd.f32 0.0, %v5023
        %5025 = vmatprep.mubr.f32.mxu0 %v4773
        %5026 = vmatmul.mubr.f32.gmra.mxu0 %v4770
        %v5027 = vpop.f32.mrf.mxu0
        %v5028 = vadd.f32 0.0, %v5027
        %v5029 = vpop.f32.mrf.mxu0
        %v5030 = vadd.f32 0.0, %v5029
        %5031 = vmatprep.mubr.f32.mxu0 %v4779
        %5032 = vmatmul.mubr.f32.gmra.mxu0 %v4776
        %v5033 = vpop.f32.mrf.mxu0
        %v5034 = vadd.f32 0.0, %v5033
        %v5035 = vpop.f32.mrf.mxu0
        %v5036 = vadd.f32 0.0, %v5035
        %5037 = vmatprep.mubr.f32.mxu0 %v4785
        %5038 = vmatmul.mubr.f32.gmra.mxu0 %v4782
        %v5039 = vpop.f32.mrf.mxu0
        %v5040 = vadd.f32 0.0, %v5039
        %v5041 = vpop.f32.mrf.mxu0
        %v5042 = vadd.f32 0.0, %v5041
        %5043 = vdwg.mxu0
        %5044 = vmatprep.subr.mxu0 %v4866
        %5045 = vmatpush1.msra.mxu0 %v4865
        %5046 = vmatprep.subr.mxu0 %v4862
        %5047 = vmatpush1.msra.mxu0 %v4861
        %5048 = vmatprep.subr.mxu0 %v4858
        %5049 = vmatpush1.msra.mxu0 %v4857
        %5050 = vmatprep.subr.mxu0 %v4854
        %5051 = vmatpush1.msra.mxu0 %v4853
        %5052 = vmatprep.subr.mxu0 %v4850
        %5053 = vmatpush1.msra.mxu0 %v4849
        %5054 = vmatprep.subr.mxu0 %v4846
        %5055 = vmatpush1.msra.mxu0 %v4845
        %5056 = vmatprep.subr.mxu0 %v4842
        %5057 = vmatpush1.msra.mxu0 %v4841
        %5058 = vmatprep.subr.mxu0 %v4838
        %5059 = vmatpush1.msra.mxu0 %v4837
        %5060 = vmatprep.subr.mxu0 %v4834
        %5061 = vmatpush1.msra.mxu0 %v4833
        %5062 = vmatprep.subr.mxu0 %v4830
        %5063 = vmatpush1.msra.mxu0 %v4829
        %5064 = vmatprep.subr.mxu0 %v4826
        %5065 = vmatpush1.msra.mxu0 %v4825
        %5066 = vmatprep.subr.mxu0 %v4822
        %5067 = vmatpush1.msra.mxu0 %v4821
        %5068 = vmatprep.subr.mxu0 %v4818
        %5069 = vmatpush1.msra.mxu0 %v4817
        %5070 = vmatprep.subr.mxu0 %v4814
        %5071 = vmatpush1.msra.mxu0 %v4813
        %5072 = vmatprep.subr.mxu0 %v4810
        %5073 = vmatpush1.msra.mxu0 %v4809
        %5074 = vmatprep.subr.mxu0 %v4806
        %5075 = vmatpush1.msra.mxu0 %v4805
        %5076 = vmatprep.subr.mxu0 %v4930
        %5077 = vmatpush2.msra.mxu0 %v4929
        %5078 = vmatprep.subr.mxu0 %v4926
        %5079 = vmatpush2.msra.mxu0 %v4925
        %5080 = vmatprep.subr.mxu0 %v4922
        %5081 = vmatpush2.msra.mxu0 %v4921
        %5082 = vmatprep.subr.mxu0 %v4918
        %5083 = vmatpush2.msra.mxu0 %v4917
        %5084 = vmatprep.subr.mxu0 %v4914
        %5085 = vmatpush2.msra.mxu0 %v4913
        %5086 = vmatprep.subr.mxu0 %v4910
        %5087 = vmatpush2.msra.mxu0 %v4909
        %5088 = vmatprep.subr.mxu0 %v4906
        %5089 = vmatpush2.msra.mxu0 %v4905
        %5090 = vmatprep.subr.mxu0 %v4902
        %5091 = vmatpush2.msra.mxu0 %v4901
        %5092 = vmatprep.subr.mxu0 %v4898
        %5093 = vmatpush2.msra.mxu0 %v4897
        %5094 = vmatprep.subr.mxu0 %v4894
        %5095 = vmatpush2.msra.mxu0 %v4893
        %5096 = vmatprep.subr.mxu0 %v4890
        %5097 = vmatpush2.msra.mxu0 %v4889
        %5098 = vmatprep.subr.mxu0 %v4886
        %5099 = vmatpush2.msra.mxu0 %v4885
        %5100 = vmatprep.subr.mxu0 %v4882
        %5101 = vmatpush2.msra.mxu0 %v4881
        %5102 = vmatprep.subr.mxu0 %v4878
        %5103 = vmatpush2.msra.mxu0 %v4877
        %5104 = vmatprep.subr.mxu0 %v4874
        %5105 = vmatpush2.msra.mxu0 %v4873
        %5106 = vmatprep.subr.mxu0 %v4870
        %5107 = vmatpush2.msra.mxu0 %v4869
        %5108 = vmatprep.mubr.f32.mxu0 %v4743
        %5109 = vmatmul.mubr.f32.gmra.mxu0 %v4740
        %v5110 = vpop.f32.mrf.mxu0
        %v5111 = vadd.f32 0.0, %v5110
        %v5112 = vpop.f32.mrf.mxu0
        %v5113 = vadd.f32 0.0, %v5112
        %5114 = vmatprep.mubr.f32.mxu0 %v4749
        %5115 = vmatmul.mubr.f32.gmra.mxu0 %v4746
        %v5116 = vpop.f32.mrf.mxu0
        %v5117 = vadd.f32 0.0, %v5116
        %v5118 = vpop.f32.mrf.mxu0
        %v5119 = vadd.f32 0.0, %v5118
        %5120 = vmatprep.mubr.f32.mxu0 %v4755
        %5121 = vmatmul.mubr.f32.gmra.mxu0 %v4752
        %v5122 = vpop.f32.mrf.mxu0
        %v5123 = vadd.f32 0.0, %v5122
        %v5124 = vpop.f32.mrf.mxu0
        %v5125 = vadd.f32 0.0, %v5124
        %5126 = vmatprep.mubr.f32.mxu0 %v4761
        %5127 = vmatmul.mubr.f32.gmra.mxu0 %v4758
        %v5128 = vpop.f32.mrf.mxu0
        %v5129 = vadd.f32 0.0, %v5128
        %v5130 = vpop.f32.mrf.mxu0
        %v5131 = vadd.f32 0.0, %v5130
        %5132 = vmatprep.mubr.f32.mxu0 %v4767
        %5133 = vmatmul.mubr.f32.gmra.mxu0 %v4764
        %v5134 = vpop.f32.mrf.mxu0
        %v5135 = vadd.f32 0.0, %v5134
        %v5136 = vpop.f32.mrf.mxu0
        %v5137 = vadd.f32 0.0, %v5136
        %5138 = vmatprep.mubr.f32.mxu0 %v4773
        %5139 = vmatmul.mubr.f32.gmra.mxu0 %v4770
        %v5140 = vpop.f32.mrf.mxu0
        %v5141 = vadd.f32 0.0, %v5140
        %v5142 = vpop.f32.mrf.mxu0
        %v5143 = vadd.f32 0.0, %v5142
        %5144 = vmatprep.mubr.f32.mxu0 %v4779
        %5145 = vmatmul.mubr.f32.gmra.mxu0 %v4776
        %v5146 = vpop.f32.mrf.mxu0
        %v5147 = vadd.f32 0.0, %v5146
        %v5148 = vpop.f32.mrf.mxu0
        %v5149 = vadd.f32 0.0, %v5148
        %5150 = vmatprep.mubr.f32.mxu0 %v4785
        %5151 = vmatmul.mubr.f32.gmra.mxu0 %v4782
        %v5152 = vpop.f32.mrf.mxu0
        %v5153 = vadd.f32 0.0, %v5152
        %v5154 = vpop.f32.mrf.mxu0
        %v5155 = vadd.f32 0.0, %v5154
        %5156 = vdwg.mxu0
        %5157 = vmatprep.subr.mxu0 %v4606
        %5158 = vmatpush1.msra.mxu0 %v4605
        %5159 = vmatprep.subr.mxu0 %v4602
        %5160 = vmatpush1.msra.mxu0 %v4601
        %5161 = vmatprep.subr.mxu0 %v4598
        %5162 = vmatpush1.msra.mxu0 %v4597
        %5163 = vmatprep.subr.mxu0 %v4594
        %5164 = vmatpush1.msra.mxu0 %v4593
        %5165 = vmatprep.subr.mxu0 %v4590
        %5166 = vmatpush1.msra.mxu0 %v4589
        %5167 = vmatprep.subr.mxu0 %v4586
        %5168 = vmatpush1.msra.mxu0 %v4585
        %5169 = vmatprep.subr.mxu0 %v4582
        %5170 = vmatpush1.msra.mxu0 %v4581
        %5171 = vmatprep.subr.mxu0 %v4578
        %5172 = vmatpush1.msra.mxu0 %v4577
        %5173 = vmatprep.subr.mxu0 %v4574
        %5174 = vmatpush1.msra.mxu0 %v4573
        %5175 = vmatprep.subr.mxu0 %v4570
        %5176 = vmatpush1.msra.mxu0 %v4569
        %5177 = vmatprep.subr.mxu0 %v4566
        %5178 = vmatpush1.msra.mxu0 %v4565
        %5179 = vmatprep.subr.mxu0 %v4562
        %5180 = vmatpush1.msra.mxu0 %v4561
        %5181 = vmatprep.subr.mxu0 %v4558
        %5182 = vmatpush1.msra.mxu0 %v4557
        %5183 = vmatprep.subr.mxu0 %v4554
        %5184 = vmatpush1.msra.mxu0 %v4553
        %5185 = vmatprep.subr.mxu0 %v4550
        %5186 = vmatpush1.msra.mxu0 %v4549
        %5187 = vmatprep.subr.mxu0 %v4546
        %5188 = vmatpush1.msra.mxu0 %v4545
        %5189 = vmatprep.subr.mxu0 %v4670
        %5190 = vmatpush2.msra.mxu0 %v4669
        %5191 = vmatprep.subr.mxu0 %v4666
        %5192 = vmatpush2.msra.mxu0 %v4665
        %5193 = vmatprep.subr.mxu0 %v4662
        %5194 = vmatpush2.msra.mxu0 %v4661
        %5195 = vmatprep.subr.mxu0 %v4658
        %5196 = vmatpush2.msra.mxu0 %v4657
        %5197 = vmatprep.subr.mxu0 %v4654
        %5198 = vmatpush2.msra.mxu0 %v4653
        %5199 = vmatprep.subr.mxu0 %v4650
        %5200 = vmatpush2.msra.mxu0 %v4649
        %5201 = vmatprep.subr.mxu0 %v4646
        %5202 = vmatpush2.msra.mxu0 %v4645
        %5203 = vmatprep.subr.mxu0 %v4642
        %5204 = vmatpush2.msra.mxu0 %v4641
        %5205 = vmatprep.subr.mxu0 %v4638
        %5206 = vmatpush2.msra.mxu0 %v4637
        %5207 = vmatprep.subr.mxu0 %v4634
        %5208 = vmatpush2.msra.mxu0 %v4633
        %5209 = vmatprep.subr.mxu0 %v4630
        %5210 = vmatpush2.msra.mxu0 %v4629
        %5211 = vmatprep.subr.mxu0 %v4626
        %5212 = vmatpush2.msra.mxu0 %v4625
        %5213 = vmatprep.subr.mxu0 %v4622
        %5214 = vmatpush2.msra.mxu0 %v4621
        %5215 = vmatprep.subr.mxu0 %v4618
        %5216 = vmatpush2.msra.mxu0 %v4617
        %5217 = vmatprep.subr.mxu0 %v4614
        %5218 = vmatpush2.msra.mxu0 %v4613
        %5219 = vmatprep.subr.mxu0 %v4610
        %5220 = vmatpush2.msra.mxu0 %v4609
        %5221 = vmatprep.mubr.f32.mxu0 %v4530
        %5222 = vmatmul.mubr.f32.gmra.mxu0 %v4529
        %v5223 = vpop.f32.mrf.mxu0
        %v5224 = vadd.f32 %v4998, %v5223
        %v5225 = vpop.f32.mrf.mxu0
        %v5226 = vadd.f32 %v5000, %v5225
        %5227 = vmatprep.mubr.f32.mxu0 %v4532
        %5228 = vmatmul.mubr.f32.gmra.mxu0 %v4531
        %v5229 = vpop.f32.mrf.mxu0
        %v5230 = vadd.f32 %v5004, %v5229
        %v5231 = vpop.f32.mrf.mxu0
        %v5232 = vadd.f32 %v5006, %v5231
        %5233 = vmatprep.mubr.f32.mxu0 %v4534
        %5234 = vmatmul.mubr.f32.gmra.mxu0 %v4533
        %v5235 = vpop.f32.mrf.mxu0
        %v5236 = vadd.f32 %v5010, %v5235
        %v5237 = vpop.f32.mrf.mxu0
        %v5238 = vadd.f32 %v5012, %v5237
        %5239 = vmatprep.mubr.f32.mxu0 %v4536
        %5240 = vmatmul.mubr.f32.gmra.mxu0 %v4535
        %v5241 = vpop.f32.mrf.mxu0
        %v5242 = vadd.f32 %v5016, %v5241
        %v5243 = vpop.f32.mrf.mxu0
        %v5244 = vadd.f32 %v5018, %v5243
        %5245 = vmatprep.mubr.f32.mxu0 %v4538
        %5246 = vmatmul.mubr.f32.gmra.mxu0 %v4537
        %v5247 = vpop.f32.mrf.mxu0
        %v5248 = vadd.f32 %v5022, %v5247
        %v5249 = vpop.f32.mrf.mxu0
        %v5250 = vadd.f32 %v5024, %v5249
        %5251 = vmatprep.mubr.f32.mxu0 %v4540
        %5252 = vmatmul.mubr.f32.gmra.mxu0 %v4539
        %v5253 = vpop.f32.mrf.mxu0
        %v5254 = vadd.f32 %v5028, %v5253
        %v5255 = vpop.f32.mrf.mxu0
        %v5256 = vadd.f32 %v5030, %v5255
        %5257 = vmatprep.mubr.f32.mxu0 %v4542
        %5258 = vmatmul.mubr.f32.gmra.mxu0 %v4541
        %v5259 = vpop.f32.mrf.mxu0
        %v5260 = vadd.f32 %v5034, %v5259
        %v5261 = vpop.f32.mrf.mxu0
        %v5262 = vadd.f32 %v5036, %v5261
        %5263 = vmatprep.mubr.f32.mxu0 %v4544
        %5264 = vmatmul.mubr.f32.gmra.mxu0 %v4543
        %v5265 = vpop.f32.mrf.mxu0
        %v5266 = vadd.f32 %v5040, %v5265
        %v5267 = vpop.f32.mrf.mxu0
        %v5268 = vadd.f32 %v5042, %v5267
        %5269 = vdwg.mxu0
        %5270 = vmatprep.subr.mxu0 %v4608
        %5271 = vmatpush1.msra.mxu0 %v4607
        %5272 = vmatprep.subr.mxu0 %v4604
        %5273 = vmatpush1.msra.mxu0 %v4603
        %5274 = vmatprep.subr.mxu0 %v4600
        %5275 = vmatpush1.msra.mxu0 %v4599
        %5276 = vmatprep.subr.mxu0 %v4596
        %5277 = vmatpush1.msra.mxu0 %v4595
        %5278 = vmatprep.subr.mxu0 %v4592
        %5279 = vmatpush1.msra.mxu0 %v4591
        %5280 = vmatprep.subr.mxu0 %v4588
        %5281 = vmatpush1.msra.mxu0 %v4587
        %5282 = vmatprep.subr.mxu0 %v4584
        %5283 = vmatpush1.msra.mxu0 %v4583
        %5284 = vmatprep.subr.mxu0 %v4580
        %5285 = vmatpush1.msra.mxu0 %v4579
        %5286 = vmatprep.subr.mxu0 %v4576
        %5287 = vmatpush1.msra.mxu0 %v4575
        %5288 = vmatprep.subr.mxu0 %v4572
        %5289 = vmatpush1.msra.mxu0 %v4571
        %5290 = vmatprep.subr.mxu0 %v4568
        %5291 = vmatpush1.msra.mxu0 %v4567
        %5292 = vmatprep.subr.mxu0 %v4564
        %5293 = vmatpush1.msra.mxu0 %v4563
        %5294 = vmatprep.subr.mxu0 %v4560
        %5295 = vmatpush1.msra.mxu0 %v4559
        %5296 = vmatprep.subr.mxu0 %v4556
        %5297 = vmatpush1.msra.mxu0 %v4555
        %5298 = vmatprep.subr.mxu0 %v4552
        %5299 = vmatpush1.msra.mxu0 %v4551
        %5300 = vmatprep.subr.mxu0 %v4548
        %5301 = vmatpush1.msra.mxu0 %v4547
        %5302 = vmatprep.subr.mxu0 %v4672
        %5303 = vmatpush2.msra.mxu0 %v4671
        %5304 = vmatprep.subr.mxu0 %v4668
        %5305 = vmatpush2.msra.mxu0 %v4667
        %5306 = vmatprep.subr.mxu0 %v4664
        %5307 = vmatpush2.msra.mxu0 %v4663
        %5308 = vmatprep.subr.mxu0 %v4660
        %5309 = vmatpush2.msra.mxu0 %v4659
        %5310 = vmatprep.subr.mxu0 %v4656
        %5311 = vmatpush2.msra.mxu0 %v4655
        %5312 = vmatprep.subr.mxu0 %v4652
        %5313 = vmatpush2.msra.mxu0 %v4651
        %5314 = vmatprep.subr.mxu0 %v4648
        %5315 = vmatpush2.msra.mxu0 %v4647
        %5316 = vmatprep.subr.mxu0 %v4644
        %5317 = vmatpush2.msra.mxu0 %v4643
        %5318 = vmatprep.subr.mxu0 %v4640
        %5319 = vmatpush2.msra.mxu0 %v4639
        %5320 = vmatprep.subr.mxu0 %v4636
        %5321 = vmatpush2.msra.mxu0 %v4635
        %5322 = vmatprep.subr.mxu0 %v4632
        %5323 = vmatpush2.msra.mxu0 %v4631
        %5324 = vmatprep.subr.mxu0 %v4628
        %5325 = vmatpush2.msra.mxu0 %v4627
        %5326 = vmatprep.subr.mxu0 %v4624
        %5327 = vmatpush2.msra.mxu0 %v4623
        %5328 = vmatprep.subr.mxu0 %v4620
        %5329 = vmatpush2.msra.mxu0 %v4619
        %5330 = vmatprep.subr.mxu0 %v4616
        %5331 = vmatpush2.msra.mxu0 %v4615
        %5332 = vmatprep.subr.mxu0 %v4612
        %5333 = vmatpush2.msra.mxu0 %v4611
        %5334 = vmatprep.mubr.f32.mxu0 %v4530
        %5335 = vmatmul.mubr.f32.gmra.mxu0 %v4529
        %v5336 = vpop.f32.mrf.mxu0
        %v5337 = vadd.f32 %v5111, %v5336
        %v5338 = vpop.f32.mrf.mxu0
        %v5339 = vadd.f32 %v5113, %v5338
        %5340 = vmatprep.mubr.f32.mxu0 %v4532
        %5341 = vmatmul.mubr.f32.gmra.mxu0 %v4531
        %v5342 = vpop.f32.mrf.mxu0
        %v5343 = vadd.f32 %v5117, %v5342
        %v5344 = vpop.f32.mrf.mxu0
        %v5345 = vadd.f32 %v5119, %v5344
        %5346 = vmatprep.mubr.f32.mxu0 %v4534
        %5347 = vmatmul.mubr.f32.gmra.mxu0 %v4533
        %v5348 = vpop.f32.mrf.mxu0
        %v5349 = vadd.f32 %v5123, %v5348
        %v5350 = vpop.f32.mrf.mxu0
        %v5351 = vadd.f32 %v5125, %v5350
        %5352 = vmatprep.mubr.f32.mxu0 %v4536
        %5353 = vmatmul.mubr.f32.gmra.mxu0 %v4535
        %v5354 = vpop.f32.mrf.mxu0
        %v5355 = vadd.f32 %v5129, %v5354
        %v5356 = vpop.f32.mrf.mxu0
        %v5357 = vadd.f32 %v5131, %v5356
        %5358 = vmatprep.mubr.f32.mxu0 %v4538
        %5359 = vmatmul.mubr.f32.gmra.mxu0 %v4537
        %v5360 = vpop.f32.mrf.mxu0
        %v5361 = vadd.f32 %v5135, %v5360
        %v5362 = vpop.f32.mrf.mxu0
        %v5363 = vadd.f32 %v5137, %v5362
        %5364 = vmatprep.mubr.f32.mxu0 %v4540
        %5365 = vmatmul.mubr.f32.gmra.mxu0 %v4539
        %v5366 = vpop.f32.mrf.mxu0
        %v5367 = vadd.f32 %v5141, %v5366
        %v5368 = vpop.f32.mrf.mxu0
        %v5369 = vadd.f32 %v5143, %v5368
        %5370 = vmatprep.mubr.f32.mxu0 %v4542
        %5371 = vmatmul.mubr.f32.gmra.mxu0 %v4541
        %v5372 = vpop.f32.mrf.mxu0
        %v5373 = vadd.f32 %v5147, %v5372
        %v5374 = vpop.f32.mrf.mxu0
        %v5375 = vadd.f32 %v5149, %v5374
        %5376 = vmatprep.mubr.f32.mxu0 %v4544
        %5377 = vmatmul.mubr.f32.gmra.mxu0 %v4543
        %v5378 = vpop.f32.mrf.mxu0
        %v5379 = vadd.f32 %v5153, %v5378
        %v5380 = vpop.f32.mrf.mxu0
        %v5381 = vadd.f32 %v5155, %v5380
        %5382 = vdwg.mxu0
        %v5383 = vld [vmem:[#allocation3] sm:$0xfc]
        %v5384 = vld [vmem:[#allocation3 + $0x8] sm:$0xfc]
        %v5385 = vld [vmem:[#allocation3 + $0x10] sm:$0x3]
        %v5386 = vld [vmem:[#allocation3 + $0x18] sm:$0x3]
        %v5387 = vld [vmem:[#allocation3 + $0x20] sm:$0xfc]
        %v5388 = vld [vmem:[#allocation3 + $0x28] sm:$0xfc]
        %v5389 = vld [vmem:[#allocation3 + $0x30] sm:$0x3]
        %v5390 = vld [vmem:[#allocation3 + $0x38] sm:$0x3]
        %v5391 = vld [vmem:[#allocation3 + $0x40] sm:$0xfc]
        %v5392 = vld [vmem:[#allocation3 + $0x48] sm:$0xfc]
        %v5393 = vld [vmem:[#allocation3 + $0x50] sm:$0x3]
        %v5394 = vld [vmem:[#allocation3 + $0x58] sm:$0x3]
        %v5395 = vld [vmem:[#allocation3 + $0x60] sm:$0xfc]
        %v5396 = vld [vmem:[#allocation3 + $0x68] sm:$0xfc]
        %v5397 = vld [vmem:[#allocation3 + $0x70] sm:$0x3]
        %v5398 = vld [vmem:[#allocation3 + $0x78] sm:$0x3]
        %v5399 = vld [vmem:[#allocation3 + $0x80] sm:$0xfc]
        %v5400 = vld [vmem:[#allocation3 + $0x88] sm:$0xfc]
        %v5401 = vld [vmem:[#allocation3 + $0x90] sm:$0x3]
        %v5402 = vld [vmem:[#allocation3 + $0x98] sm:$0x3]
        %v5403 = vld [vmem:[#allocation3 + $0xa0] sm:$0xfc]
        %v5404 = vld [vmem:[#allocation3 + $0xa8] sm:$0xfc]
        %v5405 = vld [vmem:[#allocation3 + $0xb0] sm:$0x3]
        %v5406 = vld [vmem:[#allocation3 + $0xb8] sm:$0x3]
        %v5407 = vld [vmem:[#allocation3 + $0xc0] sm:$0xfc]
        %v5408 = vld [vmem:[#allocation3 + $0xc8] sm:$0xfc]
        %v5409 = vld [vmem:[#allocation3 + $0xd0] sm:$0x3]
        %v5410 = vld [vmem:[#allocation3 + $0xd8] sm:$0x3]
        %v5411 = vld [vmem:[#allocation3 + $0xe0] sm:$0xfc]
        %v5412 = vld [vmem:[#allocation3 + $0xe8] sm:$0xfc]
        %v5413 = vld [vmem:[#allocation3 + $0xf0] sm:$0x3]
        %v5414 = vld [vmem:[#allocation3 + $0xf8] sm:$0x3]
        %vm5447 = vcmask 1045504
        %v5448 = vrot.slane %v5383, 2
        %v5449 = vrot.slane %v5385, 2
        %v5450 = vsel %vm5447, %v5448, %v5449
        %v5451 = vrot.slane %v5384, 2
        %v5452 = vrot.slane %v5386, 2
        %v5453 = vsel %vm5447, %v5451, %v5452
        %v5454 = vrot.slane %v5387, 2
        %v5455 = vrot.slane %v5389, 2
        %v5456 = vsel %vm5447, %v5454, %v5455
        %v5457 = vrot.slane %v5388, 2
        %v5458 = vrot.slane %v5390, 2
        %v5459 = vsel %vm5447, %v5457, %v5458
        %v5460 = vrot.slane %v5391, 2
        %v5461 = vrot.slane %v5393, 2
        %v5462 = vsel %vm5447, %v5460, %v5461
        %v5463 = vrot.slane %v5392, 2
        %v5464 = vrot.slane %v5394, 2
        %v5465 = vsel %vm5447, %v5463, %v5464
        %v5466 = vrot.slane %v5395, 2
        %v5467 = vrot.slane %v5397, 2
        %v5468 = vsel %vm5447, %v5466, %v5467
        %v5469 = vrot.slane %v5396, 2
        %v5470 = vrot.slane %v5398, 2
        %v5471 = vsel %vm5447, %v5469, %v5470
        %v5472 = vrot.slane %v5399, 2
        %v5473 = vrot.slane %v5401, 2
        %v5474 = vsel %vm5447, %v5472, %v5473
        %v5475 = vrot.slane %v5400, 2
        %v5476 = vrot.slane %v5402, 2
        %v5477 = vsel %vm5447, %v5475, %v5476
        %v5478 = vrot.slane %v5403, 2
        %v5479 = vrot.slane %v5405, 2
        %v5480 = vsel %vm5447, %v5478, %v5479
        %v5481 = vrot.slane %v5404, 2
        %v5482 = vrot.slane %v5406, 2
        %v5483 = vsel %vm5447, %v5481, %v5482
        %v5484 = vrot.slane %v5407, 2
        %v5485 = vrot.slane %v5409, 2
        %v5486 = vsel %vm5447, %v5484, %v5485
        %v5487 = vrot.slane %v5408, 2
        %v5488 = vrot.slane %v5410, 2
        %v5489 = vsel %vm5447, %v5487, %v5488
        %v5490 = vrot.slane %v5411, 2
        %v5491 = vrot.slane %v5413, 2
        %v5492 = vsel %vm5447, %v5490, %v5491
        %v5493 = vrot.slane %v5412, 2
        %v5494 = vrot.slane %v5414, 2
        %v5495 = vsel %vm5447, %v5493, %v5494
        %s5512 = scalar_lea.vmem [#allocation10], 2048
        %v5513 = vld [vmem:[%s5512] sm:$0xff]
        %v5514 = vld [vmem:[%s5512 + $0x8] sm:$0xff]
        %v5515 = vld [vmem:[%s5512 + $0x10] sm:$0xff]
        %v5516 = vld [vmem:[%s5512 + $0x18] sm:$0xff]
        %v5517 = vld [vmem:[%s5512 + $0x20] sm:$0xff]
        %v5518 = vld [vmem:[%s5512 + $0x28] sm:$0xff]
        %v5519 = vld [vmem:[%s5512 + $0x30] sm:$0xff]
        %v5520 = vld [vmem:[%s5512 + $0x38] sm:$0xff]
        %v5521 = vld [vmem:[%s5512 + $0x40] sm:$0xff]
        %v5522 = vld [vmem:[%s5512 + $0x48] sm:$0xff]
        %v5523 = vld [vmem:[%s5512 + $0x50] sm:$0xff]
        %v5524 = vld [vmem:[%s5512 + $0x58] sm:$0xff]
        %v5525 = vld [vmem:[%s5512 + $0x60] sm:$0xff]
        %v5526 = vld [vmem:[%s5512 + $0x68] sm:$0xff]
        %v5527 = vld [vmem:[%s5512 + $0x70] sm:$0xff]
        %v5528 = vld [vmem:[%s5512 + $0x78] sm:$0xff]
        %v5529 = vld [vmem:[%s5512 + $0x80] sm:$0xff]
        %v5530 = vld [vmem:[%s5512 + $0x88] sm:$0xff]
        %v5531 = vld [vmem:[%s5512 + $0x90] sm:$0xff]
        %v5532 = vld [vmem:[%s5512 + $0x98] sm:$0xff]
        %v5533 = vld [vmem:[%s5512 + $0xa0] sm:$0xff]
        %v5534 = vld [vmem:[%s5512 + $0xa8] sm:$0xff]
        %v5535 = vld [vmem:[%s5512 + $0xb0] sm:$0xff]
        %v5536 = vld [vmem:[%s5512 + $0xb8] sm:$0xff]
        %v5537 = vld [vmem:[%s5512 + $0xc0] sm:$0xff]
        %v5538 = vld [vmem:[%s5512 + $0xc8] sm:$0xff]
        %v5539 = vld [vmem:[%s5512 + $0xd0] sm:$0xff]
        %v5540 = vld [vmem:[%s5512 + $0xd8] sm:$0xff]
        %v5541 = vld [vmem:[%s5512 + $0xe0] sm:$0xff]
        %v5542 = vld [vmem:[%s5512 + $0xe8] sm:$0xff]
        %v5543 = vld [vmem:[%s5512 + $0xf0] sm:$0xff]
        %v5544 = vld [vmem:[%s5512 + $0xf8] sm:$0xff]
        %v5545 = vld [vmem:[%s5512 + $0x100] sm:$0xff]
        %v5546 = vld [vmem:[%s5512 + $0x108] sm:$0xff]
        %v5547 = vld [vmem:[%s5512 + $0x110] sm:$0xff]
        %v5548 = vld [vmem:[%s5512 + $0x118] sm:$0xff]
        %v5549 = vld [vmem:[%s5512 + $0x120] sm:$0xff]
        %v5550 = vld [vmem:[%s5512 + $0x128] sm:$0xff]
        %v5551 = vld [vmem:[%s5512 + $0x130] sm:$0xff]
        %v5552 = vld [vmem:[%s5512 + $0x138] sm:$0xff]
        %v5553 = vld [vmem:[%s5512 + $0x140] sm:$0xff]
        %v5554 = vld [vmem:[%s5512 + $0x148] sm:$0xff]
        %v5555 = vld [vmem:[%s5512 + $0x150] sm:$0xff]
        %v5556 = vld [vmem:[%s5512 + $0x158] sm:$0xff]
        %v5557 = vld [vmem:[%s5512 + $0x160] sm:$0xff]
        %v5558 = vld [vmem:[%s5512 + $0x168] sm:$0xff]
        %v5559 = vld [vmem:[%s5512 + $0x170] sm:$0xff]
        %v5560 = vld [vmem:[%s5512 + $0x178] sm:$0xff]
        %v5561 = vld [vmem:[%s5512 + $0x180] sm:$0xff]
        %v5562 = vld [vmem:[%s5512 + $0x188] sm:$0xff]
        %v5563 = vld [vmem:[%s5512 + $0x190] sm:$0xff]
        %v5564 = vld [vmem:[%s5512 + $0x198] sm:$0xff]
        %v5565 = vld [vmem:[%s5512 + $0x1a0] sm:$0xff]
        %v5566 = vld [vmem:[%s5512 + $0x1a8] sm:$0xff]
        %v5567 = vld [vmem:[%s5512 + $0x1b0] sm:$0xff]
        %v5568 = vld [vmem:[%s5512 + $0x1b8] sm:$0xff]
        %v5569 = vld [vmem:[%s5512 + $0x1c0] sm:$0xff]
        %v5570 = vld [vmem:[%s5512 + $0x1c8] sm:$0xff]
        %v5571 = vld [vmem:[%s5512 + $0x1d0] sm:$0xff]
        %v5572 = vld [vmem:[%s5512 + $0x1d8] sm:$0xff]
        %v5573 = vld [vmem:[%s5512 + $0x1e0] sm:$0xff]
        %v5574 = vld [vmem:[%s5512 + $0x1e8] sm:$0xff]
        %v5575 = vld [vmem:[%s5512 + $0x1f0] sm:$0xff]
        %v5576 = vld [vmem:[%s5512 + $0x1f8] sm:$0xff]
        %v5577 = vld [vmem:[%s5512 + $0x200] sm:$0xff]
        %v5578 = vld [vmem:[%s5512 + $0x208] sm:$0xff]
        %v5579 = vld [vmem:[%s5512 + $0x210] sm:$0xff]
        %v5580 = vld [vmem:[%s5512 + $0x218] sm:$0xff]
        %v5581 = vld [vmem:[%s5512 + $0x220] sm:$0xff]
        %v5582 = vld [vmem:[%s5512 + $0x228] sm:$0xff]
        %v5583 = vld [vmem:[%s5512 + $0x230] sm:$0xff]
        %v5584 = vld [vmem:[%s5512 + $0x238] sm:$0xff]
        %v5585 = vld [vmem:[%s5512 + $0x240] sm:$0xff]
        %v5586 = vld [vmem:[%s5512 + $0x248] sm:$0xff]
        %v5587 = vld [vmem:[%s5512 + $0x250] sm:$0xff]
        %v5588 = vld [vmem:[%s5512 + $0x258] sm:$0xff]
        %v5589 = vld [vmem:[%s5512 + $0x260] sm:$0xff]
        %v5590 = vld [vmem:[%s5512 + $0x268] sm:$0xff]
        %v5591 = vld [vmem:[%s5512 + $0x270] sm:$0xff]
        %v5592 = vld [vmem:[%s5512 + $0x278] sm:$0xff]
        %v5593 = vld [vmem:[%s5512 + $0x280] sm:$0xff]
        %v5594 = vld [vmem:[%s5512 + $0x288] sm:$0xff]
        %v5595 = vld [vmem:[%s5512 + $0x290] sm:$0xff]
        %v5596 = vld [vmem:[%s5512 + $0x298] sm:$0xff]
        %v5597 = vld [vmem:[%s5512 + $0x2a0] sm:$0xff]
        %v5598 = vld [vmem:[%s5512 + $0x2a8] sm:$0xff]
        %v5599 = vld [vmem:[%s5512 + $0x2b0] sm:$0xff]
        %v5600 = vld [vmem:[%s5512 + $0x2b8] sm:$0xff]
        %v5601 = vld [vmem:[%s5512 + $0x2c0] sm:$0xff]
        %v5602 = vld [vmem:[%s5512 + $0x2c8] sm:$0xff]
        %v5603 = vld [vmem:[%s5512 + $0x2d0] sm:$0xff]
        %v5604 = vld [vmem:[%s5512 + $0x2d8] sm:$0xff]
        %v5605 = vld [vmem:[%s5512 + $0x2e0] sm:$0xff]
        %v5606 = vld [vmem:[%s5512 + $0x2e8] sm:$0xff]
        %v5607 = vld [vmem:[%s5512 + $0x2f0] sm:$0xff]
        %v5608 = vld [vmem:[%s5512 + $0x2f8] sm:$0xff]
        %v5609 = vld [vmem:[%s5512 + $0x300] sm:$0xff]
        %v5610 = vld [vmem:[%s5512 + $0x308] sm:$0xff]
        %v5611 = vld [vmem:[%s5512 + $0x310] sm:$0xff]
        %v5612 = vld [vmem:[%s5512 + $0x318] sm:$0xff]
        %v5613 = vld [vmem:[%s5512 + $0x320] sm:$0xff]
        %v5614 = vld [vmem:[%s5512 + $0x328] sm:$0xff]
        %v5615 = vld [vmem:[%s5512 + $0x330] sm:$0xff]
        %v5616 = vld [vmem:[%s5512 + $0x338] sm:$0xff]
        %v5617 = vld [vmem:[%s5512 + $0x340] sm:$0xff]
        %v5618 = vld [vmem:[%s5512 + $0x348] sm:$0xff]
        %v5619 = vld [vmem:[%s5512 + $0x350] sm:$0xff]
        %v5620 = vld [vmem:[%s5512 + $0x358] sm:$0xff]
        %v5621 = vld [vmem:[%s5512 + $0x360] sm:$0xff]
        %v5622 = vld [vmem:[%s5512 + $0x368] sm:$0xff]
        %v5623 = vld [vmem:[%s5512 + $0x370] sm:$0xff]
        %v5624 = vld [vmem:[%s5512 + $0x378] sm:$0xff]
        %v5625 = vld [vmem:[%s5512 + $0x380] sm:$0xff]
        %v5626 = vld [vmem:[%s5512 + $0x388] sm:$0xff]
        %v5627 = vld [vmem:[%s5512 + $0x390] sm:$0xff]
        %v5628 = vld [vmem:[%s5512 + $0x398] sm:$0xff]
        %v5629 = vld [vmem:[%s5512 + $0x3a0] sm:$0xff]
        %v5630 = vld [vmem:[%s5512 + $0x3a8] sm:$0xff]
        %v5631 = vld [vmem:[%s5512 + $0x3b0] sm:$0xff]
        %v5632 = vld [vmem:[%s5512 + $0x3b8] sm:$0xff]
        %v5633 = vld [vmem:[%s5512 + $0x3c0] sm:$0xff]
        %v5634 = vld [vmem:[%s5512 + $0x3c8] sm:$0xff]
        %v5635 = vld [vmem:[%s5512 + $0x3d0] sm:$0xff]
        %v5636 = vld [vmem:[%s5512 + $0x3d8] sm:$0xff]
        %v5637 = vld [vmem:[%s5512 + $0x3e0] sm:$0xff]
        %v5638 = vld [vmem:[%s5512 + $0x3e8] sm:$0xff]
        %v5639 = vld [vmem:[%s5512 + $0x3f0] sm:$0xff]
        %v5640 = vld [vmem:[%s5512 + $0x3f8] sm:$0xff]
        %5641 = vmatprep.subr.mxu0 %v5574
        %5642 = vmatpush1.msra.mxu0 %v5573
        %5643 = vmatprep.subr.mxu0 %v5570
        %5644 = vmatpush1.msra.mxu0 %v5569
        %5645 = vmatprep.subr.mxu0 %v5566
        %5646 = vmatpush1.msra.mxu0 %v5565
        %5647 = vmatprep.subr.mxu0 %v5562
        %5648 = vmatpush1.msra.mxu0 %v5561
        %5649 = vmatprep.subr.mxu0 %v5558
        %5650 = vmatpush1.msra.mxu0 %v5557
        %5651 = vmatprep.subr.mxu0 %v5554
        %5652 = vmatpush1.msra.mxu0 %v5553
        %5653 = vmatprep.subr.mxu0 %v5550
        %5654 = vmatpush1.msra.mxu0 %v5549
        %5655 = vmatprep.subr.mxu0 %v5546
        %5656 = vmatpush1.msra.mxu0 %v5545
        %5657 = vmatprep.subr.mxu0 %v5542
        %5658 = vmatpush1.msra.mxu0 %v5541
        %5659 = vmatprep.subr.mxu0 %v5538
        %5660 = vmatpush1.msra.mxu0 %v5537
        %5661 = vmatprep.subr.mxu0 %v5534
        %5662 = vmatpush1.msra.mxu0 %v5533
        %5663 = vmatprep.subr.mxu0 %v5530
        %5664 = vmatpush1.msra.mxu0 %v5529
        %5665 = vmatprep.subr.mxu0 %v5526
        %5666 = vmatpush1.msra.mxu0 %v5525
        %5667 = vmatprep.subr.mxu0 %v5522
        %5668 = vmatpush1.msra.mxu0 %v5521
        %5669 = vmatprep.subr.mxu0 %v5518
        %5670 = vmatpush1.msra.mxu0 %v5517
        %5671 = vmatprep.subr.mxu0 %v5514
        %5672 = vmatpush1.msra.mxu0 %v5513
        %5673 = vmatprep.subr.mxu0 %v5638
        %5674 = vmatpush2.msra.mxu0 %v5637
        %5675 = vmatprep.subr.mxu0 %v5634
        %5676 = vmatpush2.msra.mxu0 %v5633
        %5677 = vmatprep.subr.mxu0 %v5630
        %5678 = vmatpush2.msra.mxu0 %v5629
        %5679 = vmatprep.subr.mxu0 %v5626
        %5680 = vmatpush2.msra.mxu0 %v5625
        %5681 = vmatprep.subr.mxu0 %v5622
        %5682 = vmatpush2.msra.mxu0 %v5621
        %5683 = vmatprep.subr.mxu0 %v5618
        %5684 = vmatpush2.msra.mxu0 %v5617
        %5685 = vmatprep.subr.mxu0 %v5614
        %5686 = vmatpush2.msra.mxu0 %v5613
        %5687 = vmatprep.subr.mxu0 %v5610
        %5688 = vmatpush2.msra.mxu0 %v5609
        %5689 = vmatprep.subr.mxu0 %v5606
        %5690 = vmatpush2.msra.mxu0 %v5605
        %5691 = vmatprep.subr.mxu0 %v5602
        %5692 = vmatpush2.msra.mxu0 %v5601
        %5693 = vmatprep.subr.mxu0 %v5598
        %5694 = vmatpush2.msra.mxu0 %v5597
        %5695 = vmatprep.subr.mxu0 %v5594
        %5696 = vmatpush2.msra.mxu0 %v5593
        %5697 = vmatprep.subr.mxu0 %v5590
        %5698 = vmatpush2.msra.mxu0 %v5589
        %5699 = vmatprep.subr.mxu0 %v5586
        %5700 = vmatpush2.msra.mxu0 %v5585
        %5701 = vmatprep.subr.mxu0 %v5582
        %5702 = vmatpush2.msra.mxu0 %v5581
        %5703 = vmatprep.subr.mxu0 %v5578
        %5704 = vmatpush2.msra.mxu0 %v5577
        %5705 = vmatprep.mubr.f32.mxu0 %v5453
        %5706 = vmatmul.mubr.f32.gmra.mxu0 %v5450
        %v5707 = vpop.f32.mrf.mxu0
        %v5708 = vadd.f32 0.0, %v5707
        %v5709 = vpop.f32.mrf.mxu0
        %v5710 = vadd.f32 0.0, %v5709
        %5711 = vmatprep.mubr.f32.mxu0 %v5459
        %5712 = vmatmul.mubr.f32.gmra.mxu0 %v5456
        %v5713 = vpop.f32.mrf.mxu0
        %v5714 = vadd.f32 0.0, %v5713
        %v5715 = vpop.f32.mrf.mxu0
        %v5716 = vadd.f32 0.0, %v5715
        %5717 = vmatprep.mubr.f32.mxu0 %v5465
        %5718 = vmatmul.mubr.f32.gmra.mxu0 %v5462
        %v5719 = vpop.f32.mrf.mxu0
        %v5720 = vadd.f32 0.0, %v5719
        %v5721 = vpop.f32.mrf.mxu0
        %v5722 = vadd.f32 0.0, %v5721
        %5723 = vmatprep.mubr.f32.mxu0 %v5471
        %5724 = vmatmul.mubr.f32.gmra.mxu0 %v5468
        %v5725 = vpop.f32.mrf.mxu0
        %v5726 = vadd.f32 0.0, %v5725
        %v5727 = vpop.f32.mrf.mxu0
        %v5728 = vadd.f32 0.0, %v5727
        %5729 = vmatprep.mubr.f32.mxu0 %v5477
        %5730 = vmatmul.mubr.f32.gmra.mxu0 %v5474
        %v5731 = vpop.f32.mrf.mxu0
        %v5732 = vadd.f32 0.0, %v5731
        %v5733 = vpop.f32.mrf.mxu0
        %v5734 = vadd.f32 0.0, %v5733
        %5735 = vmatprep.mubr.f32.mxu0 %v5483
        %5736 = vmatmul.mubr.f32.gmra.mxu0 %v5480
        %v5737 = vpop.f32.mrf.mxu0
        %v5738 = vadd.f32 0.0, %v5737
        %v5739 = vpop.f32.mrf.mxu0
        %v5740 = vadd.f32 0.0, %v5739
        %5741 = vmatprep.mubr.f32.mxu0 %v5489
        %5742 = vmatmul.mubr.f32.gmra.mxu0 %v5486
        %v5743 = vpop.f32.mrf.mxu0
        %v5744 = vadd.f32 0.0, %v5743
        %v5745 = vpop.f32.mrf.mxu0
        %v5746 = vadd.f32 0.0, %v5745
        %5747 = vmatprep.mubr.f32.mxu0 %v5495
        %5748 = vmatmul.mubr.f32.gmra.mxu0 %v5492
        %v5749 = vpop.f32.mrf.mxu0
        %v5750 = vadd.f32 0.0, %v5749
        %v5751 = vpop.f32.mrf.mxu0
        %v5752 = vadd.f32 0.0, %v5751
        %5753 = vdwg.mxu0
        %5754 = vmatprep.subr.mxu0 %v5576
        %5755 = vmatpush1.msra.mxu0 %v5575
        %5756 = vmatprep.subr.mxu0 %v5572
        %5757 = vmatpush1.msra.mxu0 %v5571
        %5758 = vmatprep.subr.mxu0 %v5568
        %5759 = vmatpush1.msra.mxu0 %v5567
        %5760 = vmatprep.subr.mxu0 %v5564
        %5761 = vmatpush1.msra.mxu0 %v5563
        %5762 = vmatprep.subr.mxu0 %v5560
        %5763 = vmatpush1.msra.mxu0 %v5559
        %5764 = vmatprep.subr.mxu0 %v5556
        %5765 = vmatpush1.msra.mxu0 %v5555
        %5766 = vmatprep.subr.mxu0 %v5552
        %5767 = vmatpush1.msra.mxu0 %v5551
        %5768 = vmatprep.subr.mxu0 %v5548
        %5769 = vmatpush1.msra.mxu0 %v5547
        %5770 = vmatprep.subr.mxu0 %v5544
        %5771 = vmatpush1.msra.mxu0 %v5543
        %5772 = vmatprep.subr.mxu0 %v5540
        %5773 = vmatpush1.msra.mxu0 %v5539
        %5774 = vmatprep.subr.mxu0 %v5536
        %5775 = vmatpush1.msra.mxu0 %v5535
        %5776 = vmatprep.subr.mxu0 %v5532
        %5777 = vmatpush1.msra.mxu0 %v5531
        %5778 = vmatprep.subr.mxu0 %v5528
        %5779 = vmatpush1.msra.mxu0 %v5527
        %5780 = vmatprep.subr.mxu0 %v5524
        %5781 = vmatpush1.msra.mxu0 %v5523
        %5782 = vmatprep.subr.mxu0 %v5520
        %5783 = vmatpush1.msra.mxu0 %v5519
        %5784 = vmatprep.subr.mxu0 %v5516
        %5785 = vmatpush1.msra.mxu0 %v5515
        %5786 = vmatprep.subr.mxu0 %v5640
        %5787 = vmatpush2.msra.mxu0 %v5639
        %5788 = vmatprep.subr.mxu0 %v5636
        %5789 = vmatpush2.msra.mxu0 %v5635
        %5790 = vmatprep.subr.mxu0 %v5632
        %5791 = vmatpush2.msra.mxu0 %v5631
        %5792 = vmatprep.subr.mxu0 %v5628
        %5793 = vmatpush2.msra.mxu0 %v5627
        %5794 = vmatprep.subr.mxu0 %v5624
        %5795 = vmatpush2.msra.mxu0 %v5623
        %5796 = vmatprep.subr.mxu0 %v5620
        %5797 = vmatpush2.msra.mxu0 %v5619
        %5798 = vmatprep.subr.mxu0 %v5616
        %5799 = vmatpush2.msra.mxu0 %v5615
        %5800 = vmatprep.subr.mxu0 %v5612
        %5801 = vmatpush2.msra.mxu0 %v5611
        %5802 = vmatprep.subr.mxu0 %v5608
        %5803 = vmatpush2.msra.mxu0 %v5607
        %5804 = vmatprep.subr.mxu0 %v5604
        %5805 = vmatpush2.msra.mxu0 %v5603
        %5806 = vmatprep.subr.mxu0 %v5600
        %5807 = vmatpush2.msra.mxu0 %v5599
        %5808 = vmatprep.subr.mxu0 %v5596
        %5809 = vmatpush2.msra.mxu0 %v5595
        %5810 = vmatprep.subr.mxu0 %v5592
        %5811 = vmatpush2.msra.mxu0 %v5591
        %5812 = vmatprep.subr.mxu0 %v5588
        %5813 = vmatpush2.msra.mxu0 %v5587
        %5814 = vmatprep.subr.mxu0 %v5584
        %5815 = vmatpush2.msra.mxu0 %v5583
        %5816 = vmatprep.subr.mxu0 %v5580
        %5817 = vmatpush2.msra.mxu0 %v5579
        %5818 = vmatprep.mubr.f32.mxu0 %v5453
        %5819 = vmatmul.mubr.f32.gmra.mxu0 %v5450
        %v5820 = vpop.f32.mrf.mxu0
        %v5821 = vadd.f32 0.0, %v5820
        %v5822 = vpop.f32.mrf.mxu0
        %v5823 = vadd.f32 0.0, %v5822
        %5824 = vmatprep.mubr.f32.mxu0 %v5459
        %5825 = vmatmul.mubr.f32.gmra.mxu0 %v5456
        %v5826 = vpop.f32.mrf.mxu0
        %v5827 = vadd.f32 0.0, %v5826
        %v5828 = vpop.f32.mrf.mxu0
        %v5829 = vadd.f32 0.0, %v5828
        %5830 = vmatprep.mubr.f32.mxu0 %v5465
        %5831 = vmatmul.mubr.f32.gmra.mxu0 %v5462
        %v5832 = vpop.f32.mrf.mxu0
        %v5833 = vadd.f32 0.0, %v5832
        %v5834 = vpop.f32.mrf.mxu0
        %v5835 = vadd.f32 0.0, %v5834
        %5836 = vmatprep.mubr.f32.mxu0 %v5471
        %5837 = vmatmul.mubr.f32.gmra.mxu0 %v5468
        %v5838 = vpop.f32.mrf.mxu0
        %v5839 = vadd.f32 0.0, %v5838
        %v5840 = vpop.f32.mrf.mxu0
        %v5841 = vadd.f32 0.0, %v5840
        %5842 = vmatprep.mubr.f32.mxu0 %v5477
        %5843 = vmatmul.mubr.f32.gmra.mxu0 %v5474
        %v5844 = vpop.f32.mrf.mxu0
        %v5845 = vadd.f32 0.0, %v5844
        %v5846 = vpop.f32.mrf.mxu0
        %v5847 = vadd.f32 0.0, %v5846
        %5848 = vmatprep.mubr.f32.mxu0 %v5483
        %5849 = vmatmul.mubr.f32.gmra.mxu0 %v5480
        %v5850 = vpop.f32.mrf.mxu0
        %v5851 = vadd.f32 0.0, %v5850
        %v5852 = vpop.f32.mrf.mxu0
        %v5853 = vadd.f32 0.0, %v5852
        %5854 = vmatprep.mubr.f32.mxu0 %v5489
        %5855 = vmatmul.mubr.f32.gmra.mxu0 %v5486
        %v5856 = vpop.f32.mrf.mxu0
        %v5857 = vadd.f32 0.0, %v5856
        %v5858 = vpop.f32.mrf.mxu0
        %v5859 = vadd.f32 0.0, %v5858
        %5860 = vmatprep.mubr.f32.mxu0 %v5495
        %5861 = vmatmul.mubr.f32.gmra.mxu0 %v5492
        %v5862 = vpop.f32.mrf.mxu0
        %v5863 = vadd.f32 0.0, %v5862
        %v5864 = vpop.f32.mrf.mxu0
        %v5865 = vadd.f32 0.0, %v5864
        %5866 = vdwg.mxu0
        %v5867 = vadd.f32 %v5224, %v5708
        %v5868 = vadd.f32 %v5226, %v5710
        %v5869 = vadd.f32 %v5337, %v5821
        %v5870 = vadd.f32 %v5339, %v5823
        %v5871 = vadd.f32 %v5230, %v5714
        %v5872 = vadd.f32 %v5232, %v5716
        %v5873 = vadd.f32 %v5343, %v5827
        %v5874 = vadd.f32 %v5345, %v5829
        %v5875 = vadd.f32 %v5236, %v5720
        %v5876 = vadd.f32 %v5238, %v5722
        %v5877 = vadd.f32 %v5349, %v5833
        %v5878 = vadd.f32 %v5351, %v5835
        %v5879 = vadd.f32 %v5242, %v5726
        %v5880 = vadd.f32 %v5244, %v5728
        %v5881 = vadd.f32 %v5355, %v5839
        %v5882 = vadd.f32 %v5357, %v5841
        %v5883 = vadd.f32 %v5248, %v5732
        %v5884 = vadd.f32 %v5250, %v5734
        %v5885 = vadd.f32 %v5361, %v5845
        %v5886 = vadd.f32 %v5363, %v5847
        %v5887 = vadd.f32 %v5254, %v5738
        %v5888 = vadd.f32 %v5256, %v5740
        %v5889 = vadd.f32 %v5367, %v5851
        %v5890 = vadd.f32 %v5369, %v5853
        %v5891 = vadd.f32 %v5260, %v5744
        %v5892 = vadd.f32 %v5262, %v5746
        %v5893 = vadd.f32 %v5373, %v5857
        %v5894 = vadd.f32 %v5375, %v5859
        %v5895 = vadd.f32 %v5266, %v5750
        %v5896 = vadd.f32 %v5268, %v5752
        %v5897 = vadd.f32 %v5379, %v5863
        %v5898 = vadd.f32 %v5381, %v5865
        %v5899 = vld [vmem:[#allocation3] sm:$0xf8]
        %v5900 = vld [vmem:[#allocation3 + $0x8] sm:$0xf8]
        %v5901 = vld [vmem:[#allocation3 + $0x10] sm:$0x7]
        %v5902 = vld [vmem:[#allocation3 + $0x18] sm:$0x7]
        %v5903 = vld [vmem:[#allocation3 + $0x20] sm:$0xf8]
        %v5904 = vld [vmem:[#allocation3 + $0x28] sm:$0xf8]
        %v5905 = vld [vmem:[#allocation3 + $0x30] sm:$0x7]
        %v5906 = vld [vmem:[#allocation3 + $0x38] sm:$0x7]
        %v5907 = vld [vmem:[#allocation3 + $0x40] sm:$0xf8]
        %v5908 = vld [vmem:[#allocation3 + $0x48] sm:$0xf8]
        %v5909 = vld [vmem:[#allocation3 + $0x50] sm:$0x7]
        %v5910 = vld [vmem:[#allocation3 + $0x58] sm:$0x7]
        %v5911 = vld [vmem:[#allocation3 + $0x60] sm:$0xf8]
        %v5912 = vld [vmem:[#allocation3 + $0x68] sm:$0xf8]
        %v5913 = vld [vmem:[#allocation3 + $0x70] sm:$0x7]
        %v5914 = vld [vmem:[#allocation3 + $0x78] sm:$0x7]
        %v5915 = vld [vmem:[#allocation3 + $0x80] sm:$0xf8]
        %v5916 = vld [vmem:[#allocation3 + $0x88] sm:$0xf8]
        %v5917 = vld [vmem:[#allocation3 + $0x90] sm:$0x7]
        %v5918 = vld [vmem:[#allocation3 + $0x98] sm:$0x7]
        %v5919 = vld [vmem:[#allocation3 + $0xa0] sm:$0xf8]
        %v5920 = vld [vmem:[#allocation3 + $0xa8] sm:$0xf8]
        %v5921 = vld [vmem:[#allocation3 + $0xb0] sm:$0x7]
        %v5922 = vld [vmem:[#allocation3 + $0xb8] sm:$0x7]
        %v5923 = vld [vmem:[#allocation3 + $0xc0] sm:$0xf8]
        %v5924 = vld [vmem:[#allocation3 + $0xc8] sm:$0xf8]
        %v5925 = vld [vmem:[#allocation3 + $0xd0] sm:$0x7]
        %v5926 = vld [vmem:[#allocation3 + $0xd8] sm:$0x7]
        %v5927 = vld [vmem:[#allocation3 + $0xe0] sm:$0xf8]
        %v5928 = vld [vmem:[#allocation3 + $0xe8] sm:$0xf8]
        %v5929 = vld [vmem:[#allocation3 + $0xf0] sm:$0x7]
        %v5930 = vld [vmem:[#allocation3 + $0xf8] sm:$0x7]
        %vm5963 = vcmask 1044480
        %v5964 = vrot.slane %v5899, 3
        %v5965 = vrot.slane %v5901, 3
        %v5966 = vsel %vm5963, %v5964, %v5965
        %v5967 = vrot.slane %v5900, 3
        %v5968 = vrot.slane %v5902, 3
        %v5969 = vsel %vm5963, %v5967, %v5968
        %v5970 = vrot.slane %v5903, 3
        %v5971 = vrot.slane %v5905, 3
        %v5972 = vsel %vm5963, %v5970, %v5971
        %v5973 = vrot.slane %v5904, 3
        %v5974 = vrot.slane %v5906, 3
        %v5975 = vsel %vm5963, %v5973, %v5974
        %v5976 = vrot.slane %v5907, 3
        %v5977 = vrot.slane %v5909, 3
        %v5978 = vsel %vm5963, %v5976, %v5977
        %v5979 = vrot.slane %v5908, 3
        %v5980 = vrot.slane %v5910, 3
        %v5981 = vsel %vm5963, %v5979, %v5980
        %v5982 = vrot.slane %v5911, 3
        %v5983 = vrot.slane %v5913, 3
        %v5984 = vsel %vm5963, %v5982, %v5983
        %v5985 = vrot.slane %v5912, 3
        %v5986 = vrot.slane %v5914, 3
        %v5987 = vsel %vm5963, %v5985, %v5986
        %v5988 = vrot.slane %v5915, 3
        %v5989 = vrot.slane %v5917, 3
        %v5990 = vsel %vm5963, %v5988, %v5989
        %v5991 = vrot.slane %v5916, 3
        %v5992 = vrot.slane %v5918, 3
        %v5993 = vsel %vm5963, %v5991, %v5992
        %v5994 = vrot.slane %v5919, 3
        %v5995 = vrot.slane %v5921, 3
        %v5996 = vsel %vm5963, %v5994, %v5995
        %v5997 = vrot.slane %v5920, 3
        %v5998 = vrot.slane %v5922, 3
        %v5999 = vsel %vm5963, %v5997, %v5998
        %v6000 = vrot.slane %v5923, 3
        %v6001 = vrot.slane %v5925, 3
        %v6002 = vsel %vm5963, %v6000, %v6001
        %v6003 = vrot.slane %v5924, 3
        %v6004 = vrot.slane %v5926, 3
        %v6005 = vsel %vm5963, %v6003, %v6004
        %v6006 = vrot.slane %v5927, 3
        %v6007 = vrot.slane %v5929, 3
        %v6008 = vsel %vm5963, %v6006, %v6007
        %v6009 = vrot.slane %v5928, 3
        %v6010 = vrot.slane %v5930, 3
        %v6011 = vsel %vm5963, %v6009, %v6010
        %s6028 = scalar_lea.vmem [#allocation10], 3072
        %v6029 = vld [vmem:[%s6028] sm:$0xff]
        %v6030 = vld [vmem:[%s6028 + $0x8] sm:$0xff]
        %v6031 = vld [vmem:[%s6028 + $0x10] sm:$0xff]
        %v6032 = vld [vmem:[%s6028 + $0x18] sm:$0xff]
        %v6033 = vld [vmem:[%s6028 + $0x20] sm:$0xff]
        %v6034 = vld [vmem:[%s6028 + $0x28] sm:$0xff]
        %v6035 = vld [vmem:[%s6028 + $0x30] sm:$0xff]
        %v6036 = vld [vmem:[%s6028 + $0x38] sm:$0xff]
        %v6037 = vld [vmem:[%s6028 + $0x40] sm:$0xff]
        %v6038 = vld [vmem:[%s6028 + $0x48] sm:$0xff]
        %v6039 = vld [vmem:[%s6028 + $0x50] sm:$0xff]
        %v6040 = vld [vmem:[%s6028 + $0x58] sm:$0xff]
        %v6041 = vld [vmem:[%s6028 + $0x60] sm:$0xff]
        %v6042 = vld [vmem:[%s6028 + $0x68] sm:$0xff]
        %v6043 = vld [vmem:[%s6028 + $0x70] sm:$0xff]
        %v6044 = vld [vmem:[%s6028 + $0x78] sm:$0xff]
        %v6045 = vld [vmem:[%s6028 + $0x80] sm:$0xff]
        %v6046 = vld [vmem:[%s6028 + $0x88] sm:$0xff]
        %v6047 = vld [vmem:[%s6028 + $0x90] sm:$0xff]
        %v6048 = vld [vmem:[%s6028 + $0x98] sm:$0xff]
        %v6049 = vld [vmem:[%s6028 + $0xa0] sm:$0xff]
        %v6050 = vld [vmem:[%s6028 + $0xa8] sm:$0xff]
        %v6051 = vld [vmem:[%s6028 + $0xb0] sm:$0xff]
        %v6052 = vld [vmem:[%s6028 + $0xb8] sm:$0xff]
        %v6053 = vld [vmem:[%s6028 + $0xc0] sm:$0xff]
        %v6054 = vld [vmem:[%s6028 + $0xc8] sm:$0xff]
        %v6055 = vld [vmem:[%s6028 + $0xd0] sm:$0xff]
        %v6056 = vld [vmem:[%s6028 + $0xd8] sm:$0xff]
        %v6057 = vld [vmem:[%s6028 + $0xe0] sm:$0xff]
        %v6058 = vld [vmem:[%s6028 + $0xe8] sm:$0xff]
        %v6059 = vld [vmem:[%s6028 + $0xf0] sm:$0xff]
        %v6060 = vld [vmem:[%s6028 + $0xf8] sm:$0xff]
        %v6061 = vld [vmem:[%s6028 + $0x100] sm:$0xff]
        %v6062 = vld [vmem:[%s6028 + $0x108] sm:$0xff]
        %v6063 = vld [vmem:[%s6028 + $0x110] sm:$0xff]
        %v6064 = vld [vmem:[%s6028 + $0x118] sm:$0xff]
        %v6065 = vld [vmem:[%s6028 + $0x120] sm:$0xff]
        %v6066 = vld [vmem:[%s6028 + $0x128] sm:$0xff]
        %v6067 = vld [vmem:[%s6028 + $0x130] sm:$0xff]
        %v6068 = vld [vmem:[%s6028 + $0x138] sm:$0xff]
        %v6069 = vld [vmem:[%s6028 + $0x140] sm:$0xff]
        %v6070 = vld [vmem:[%s6028 + $0x148] sm:$0xff]
        %v6071 = vld [vmem:[%s6028 + $0x150] sm:$0xff]
        %v6072 = vld [vmem:[%s6028 + $0x158] sm:$0xff]
        %v6073 = vld [vmem:[%s6028 + $0x160] sm:$0xff]
        %v6074 = vld [vmem:[%s6028 + $0x168] sm:$0xff]
        %v6075 = vld [vmem:[%s6028 + $0x170] sm:$0xff]
        %v6076 = vld [vmem:[%s6028 + $0x178] sm:$0xff]
        %v6077 = vld [vmem:[%s6028 + $0x180] sm:$0xff]
        %v6078 = vld [vmem:[%s6028 + $0x188] sm:$0xff]
        %v6079 = vld [vmem:[%s6028 + $0x190] sm:$0xff]
        %v6080 = vld [vmem:[%s6028 + $0x198] sm:$0xff]
        %v6081 = vld [vmem:[%s6028 + $0x1a0] sm:$0xff]
        %v6082 = vld [vmem:[%s6028 + $0x1a8] sm:$0xff]
        %v6083 = vld [vmem:[%s6028 + $0x1b0] sm:$0xff]
        %v6084 = vld [vmem:[%s6028 + $0x1b8] sm:$0xff]
        %v6085 = vld [vmem:[%s6028 + $0x1c0] sm:$0xff]
        %v6086 = vld [vmem:[%s6028 + $0x1c8] sm:$0xff]
        %v6087 = vld [vmem:[%s6028 + $0x1d0] sm:$0xff]
        %v6088 = vld [vmem:[%s6028 + $0x1d8] sm:$0xff]
        %v6089 = vld [vmem:[%s6028 + $0x1e0] sm:$0xff]
        %v6090 = vld [vmem:[%s6028 + $0x1e8] sm:$0xff]
        %v6091 = vld [vmem:[%s6028 + $0x1f0] sm:$0xff]
        %v6092 = vld [vmem:[%s6028 + $0x1f8] sm:$0xff]
        %v6093 = vld [vmem:[%s6028 + $0x200] sm:$0xff]
        %v6094 = vld [vmem:[%s6028 + $0x208] sm:$0xff]
        %v6095 = vld [vmem:[%s6028 + $0x210] sm:$0xff]
        %v6096 = vld [vmem:[%s6028 + $0x218] sm:$0xff]
        %v6097 = vld [vmem:[%s6028 + $0x220] sm:$0xff]
        %v6098 = vld [vmem:[%s6028 + $0x228] sm:$0xff]
        %v6099 = vld [vmem:[%s6028 + $0x230] sm:$0xff]
        %v6100 = vld [vmem:[%s6028 + $0x238] sm:$0xff]
        %v6101 = vld [vmem:[%s6028 + $0x240] sm:$0xff]
        %v6102 = vld [vmem:[%s6028 + $0x248] sm:$0xff]
        %v6103 = vld [vmem:[%s6028 + $0x250] sm:$0xff]
        %v6104 = vld [vmem:[%s6028 + $0x258] sm:$0xff]
        %v6105 = vld [vmem:[%s6028 + $0x260] sm:$0xff]
        %v6106 = vld [vmem:[%s6028 + $0x268] sm:$0xff]
        %v6107 = vld [vmem:[%s6028 + $0x270] sm:$0xff]
        %v6108 = vld [vmem:[%s6028 + $0x278] sm:$0xff]
        %v6109 = vld [vmem:[%s6028 + $0x280] sm:$0xff]
        %v6110 = vld [vmem:[%s6028 + $0x288] sm:$0xff]
        %v6111 = vld [vmem:[%s6028 + $0x290] sm:$0xff]
        %v6112 = vld [vmem:[%s6028 + $0x298] sm:$0xff]
        %v6113 = vld [vmem:[%s6028 + $0x2a0] sm:$0xff]
        %v6114 = vld [vmem:[%s6028 + $0x2a8] sm:$0xff]
        %v6115 = vld [vmem:[%s6028 + $0x2b0] sm:$0xff]
        %v6116 = vld [vmem:[%s6028 + $0x2b8] sm:$0xff]
        %v6117 = vld [vmem:[%s6028 + $0x2c0] sm:$0xff]
        %v6118 = vld [vmem:[%s6028 + $0x2c8] sm:$0xff]
        %v6119 = vld [vmem:[%s6028 + $0x2d0] sm:$0xff]
        %v6120 = vld [vmem:[%s6028 + $0x2d8] sm:$0xff]
        %v6121 = vld [vmem:[%s6028 + $0x2e0] sm:$0xff]
        %v6122 = vld [vmem:[%s6028 + $0x2e8] sm:$0xff]
        %v6123 = vld [vmem:[%s6028 + $0x2f0] sm:$0xff]
        %v6124 = vld [vmem:[%s6028 + $0x2f8] sm:$0xff]
        %v6125 = vld [vmem:[%s6028 + $0x300] sm:$0xff]
        %v6126 = vld [vmem:[%s6028 + $0x308] sm:$0xff]
        %v6127 = vld [vmem:[%s6028 + $0x310] sm:$0xff]
        %v6128 = vld [vmem:[%s6028 + $0x318] sm:$0xff]
        %v6129 = vld [vmem:[%s6028 + $0x320] sm:$0xff]
        %v6130 = vld [vmem:[%s6028 + $0x328] sm:$0xff]
        %v6131 = vld [vmem:[%s6028 + $0x330] sm:$0xff]
        %v6132 = vld [vmem:[%s6028 + $0x338] sm:$0xff]
        %v6133 = vld [vmem:[%s6028 + $0x340] sm:$0xff]
        %v6134 = vld [vmem:[%s6028 + $0x348] sm:$0xff]
        %v6135 = vld [vmem:[%s6028 + $0x350] sm:$0xff]
        %v6136 = vld [vmem:[%s6028 + $0x358] sm:$0xff]
        %v6137 = vld [vmem:[%s6028 + $0x360] sm:$0xff]
        %v6138 = vld [vmem:[%s6028 + $0x368] sm:$0xff]
        %v6139 = vld [vmem:[%s6028 + $0x370] sm:$0xff]
        %v6140 = vld [vmem:[%s6028 + $0x378] sm:$0xff]
        %v6141 = vld [vmem:[%s6028 + $0x380] sm:$0xff]
        %v6142 = vld [vmem:[%s6028 + $0x388] sm:$0xff]
        %v6143 = vld [vmem:[%s6028 + $0x390] sm:$0xff]
        %v6144 = vld [vmem:[%s6028 + $0x398] sm:$0xff]
        %v6145 = vld [vmem:[%s6028 + $0x3a0] sm:$0xff]
        %v6146 = vld [vmem:[%s6028 + $0x3a8] sm:$0xff]
        %v6147 = vld [vmem:[%s6028 + $0x3b0] sm:$0xff]
        %v6148 = vld [vmem:[%s6028 + $0x3b8] sm:$0xff]
        %v6149 = vld [vmem:[%s6028 + $0x3c0] sm:$0xff]
        %v6150 = vld [vmem:[%s6028 + $0x3c8] sm:$0xff]
        %v6151 = vld [vmem:[%s6028 + $0x3d0] sm:$0xff]
        %v6152 = vld [vmem:[%s6028 + $0x3d8] sm:$0xff]
        %v6153 = vld [vmem:[%s6028 + $0x3e0] sm:$0xff]
        %v6154 = vld [vmem:[%s6028 + $0x3e8] sm:$0xff]
        %v6155 = vld [vmem:[%s6028 + $0x3f0] sm:$0xff]
        %v6156 = vld [vmem:[%s6028 + $0x3f8] sm:$0xff]
        %6157 = vmatprep.subr.mxu0 %v6090
        %6158 = vmatpush1.msra.mxu0 %v6089
        %6159 = vmatprep.subr.mxu0 %v6086
        %6160 = vmatpush1.msra.mxu0 %v6085
        %6161 = vmatprep.subr.mxu0 %v6082
        %6162 = vmatpush1.msra.mxu0 %v6081
        %6163 = vmatprep.subr.mxu0 %v6078
        %6164 = vmatpush1.msra.mxu0 %v6077
        %6165 = vmatprep.subr.mxu0 %v6074
        %6166 = vmatpush1.msra.mxu0 %v6073
        %6167 = vmatprep.subr.mxu0 %v6070
        %6168 = vmatpush1.msra.mxu0 %v6069
        %6169 = vmatprep.subr.mxu0 %v6066
        %6170 = vmatpush1.msra.mxu0 %v6065
        %6171 = vmatprep.subr.mxu0 %v6062
        %6172 = vmatpush1.msra.mxu0 %v6061
        %6173 = vmatprep.subr.mxu0 %v6058
        %6174 = vmatpush1.msra.mxu0 %v6057
        %6175 = vmatprep.subr.mxu0 %v6054
        %6176 = vmatpush1.msra.mxu0 %v6053
        %6177 = vmatprep.subr.mxu0 %v6050
        %6178 = vmatpush1.msra.mxu0 %v6049
        %6179 = vmatprep.subr.mxu0 %v6046
        %6180 = vmatpush1.msra.mxu0 %v6045
        %6181 = vmatprep.subr.mxu0 %v6042
        %6182 = vmatpush1.msra.mxu0 %v6041
        %6183 = vmatprep.subr.mxu0 %v6038
        %6184 = vmatpush1.msra.mxu0 %v6037
        %6185 = vmatprep.subr.mxu0 %v6034
        %6186 = vmatpush1.msra.mxu0 %v6033
        %6187 = vmatprep.subr.mxu0 %v6030
        %6188 = vmatpush1.msra.mxu0 %v6029
        %6189 = vmatprep.subr.mxu0 %v6154
        %6190 = vmatpush2.msra.mxu0 %v6153
        %6191 = vmatprep.subr.mxu0 %v6150
        %6192 = vmatpush2.msra.mxu0 %v6149
        %6193 = vmatprep.subr.mxu0 %v6146
        %6194 = vmatpush2.msra.mxu0 %v6145
        %6195 = vmatprep.subr.mxu0 %v6142
        %6196 = vmatpush2.msra.mxu0 %v6141
        %6197 = vmatprep.subr.mxu0 %v6138
        %6198 = vmatpush2.msra.mxu0 %v6137
        %6199 = vmatprep.subr.mxu0 %v6134
        %6200 = vmatpush2.msra.mxu0 %v6133
        %6201 = vmatprep.subr.mxu0 %v6130
        %6202 = vmatpush2.msra.mxu0 %v6129
        %6203 = vmatprep.subr.mxu0 %v6126
        %6204 = vmatpush2.msra.mxu0 %v6125
        %6205 = vmatprep.subr.mxu0 %v6122
        %6206 = vmatpush2.msra.mxu0 %v6121
        %6207 = vmatprep.subr.mxu0 %v6118
        %6208 = vmatpush2.msra.mxu0 %v6117
        %6209 = vmatprep.subr.mxu0 %v6114
        %6210 = vmatpush2.msra.mxu0 %v6113
        %6211 = vmatprep.subr.mxu0 %v6110
        %6212 = vmatpush2.msra.mxu0 %v6109
        %6213 = vmatprep.subr.mxu0 %v6106
        %6214 = vmatpush2.msra.mxu0 %v6105
        %6215 = vmatprep.subr.mxu0 %v6102
        %6216 = vmatpush2.msra.mxu0 %v6101
        %6217 = vmatprep.subr.mxu0 %v6098
        %6218 = vmatpush2.msra.mxu0 %v6097
        %6219 = vmatprep.subr.mxu0 %v6094
        %6220 = vmatpush2.msra.mxu0 %v6093
        %6221 = vmatprep.mubr.f32.mxu0 %v5969
        %6222 = vmatmul.mubr.f32.gmra.mxu0 %v5966
        %v6223 = vpop.f32.mrf.mxu0
        %v6224 = vadd.f32 0.0, %v6223
        %v6225 = vpop.f32.mrf.mxu0
        %v6226 = vadd.f32 0.0, %v6225
        %6227 = vmatprep.mubr.f32.mxu0 %v5975
        %6228 = vmatmul.mubr.f32.gmra.mxu0 %v5972
        %v6229 = vpop.f32.mrf.mxu0
        %v6230 = vadd.f32 0.0, %v6229
        %v6231 = vpop.f32.mrf.mxu0
        %v6232 = vadd.f32 0.0, %v6231
        %6233 = vmatprep.mubr.f32.mxu0 %v5981
        %6234 = vmatmul.mubr.f32.gmra.mxu0 %v5978
        %v6235 = vpop.f32.mrf.mxu0
        %v6236 = vadd.f32 0.0, %v6235
        %v6237 = vpop.f32.mrf.mxu0
        %v6238 = vadd.f32 0.0, %v6237
        %6239 = vmatprep.mubr.f32.mxu0 %v5987
        %6240 = vmatmul.mubr.f32.gmra.mxu0 %v5984
        %v6241 = vpop.f32.mrf.mxu0
        %v6242 = vadd.f32 0.0, %v6241
        %v6243 = vpop.f32.mrf.mxu0
        %v6244 = vadd.f32 0.0, %v6243
        %6245 = vmatprep.mubr.f32.mxu0 %v5993
        %6246 = vmatmul.mubr.f32.gmra.mxu0 %v5990
        %v6247 = vpop.f32.mrf.mxu0
        %v6248 = vadd.f32 0.0, %v6247
        %v6249 = vpop.f32.mrf.mxu0
        %v6250 = vadd.f32 0.0, %v6249
        %6251 = vmatprep.mubr.f32.mxu0 %v5999
        %6252 = vmatmul.mubr.f32.gmra.mxu0 %v5996
        %v6253 = vpop.f32.mrf.mxu0
        %v6254 = vadd.f32 0.0, %v6253
        %v6255 = vpop.f32.mrf.mxu0
        %v6256 = vadd.f32 0.0, %v6255
        %6257 = vmatprep.mubr.f32.mxu0 %v6005
        %6258 = vmatmul.mubr.f32.gmra.mxu0 %v6002
        %v6259 = vpop.f32.mrf.mxu0
        %v6260 = vadd.f32 0.0, %v6259
        %v6261 = vpop.f32.mrf.mxu0
        %v6262 = vadd.f32 0.0, %v6261
        %6263 = vmatprep.mubr.f32.mxu0 %v6011
        %6264 = vmatmul.mubr.f32.gmra.mxu0 %v6008
        %v6265 = vpop.f32.mrf.mxu0
        %v6266 = vadd.f32 0.0, %v6265
        %v6267 = vpop.f32.mrf.mxu0
        %v6268 = vadd.f32 0.0, %v6267
        %6269 = vdwg.mxu0
        %6270 = vmatprep.subr.mxu0 %v6092
        %6271 = vmatpush1.msra.mxu0 %v6091
        %6272 = vmatprep.subr.mxu0 %v6088
        %6273 = vmatpush1.msra.mxu0 %v6087
        %6274 = vmatprep.subr.mxu0 %v6084
        %6275 = vmatpush1.msra.mxu0 %v6083
        %6276 = vmatprep.subr.mxu0 %v6080
        %6277 = vmatpush1.msra.mxu0 %v6079
        %6278 = vmatprep.subr.mxu0 %v6076
        %6279 = vmatpush1.msra.mxu0 %v6075
        %6280 = vmatprep.subr.mxu0 %v6072
        %6281 = vmatpush1.msra.mxu0 %v6071
        %6282 = vmatprep.subr.mxu0 %v6068
        %6283 = vmatpush1.msra.mxu0 %v6067
        %6284 = vmatprep.subr.mxu0 %v6064
        %6285 = vmatpush1.msra.mxu0 %v6063
        %6286 = vmatprep.subr.mxu0 %v6060
        %6287 = vmatpush1.msra.mxu0 %v6059
        %6288 = vmatprep.subr.mxu0 %v6056
        %6289 = vmatpush1.msra.mxu0 %v6055
        %6290 = vmatprep.subr.mxu0 %v6052
        %6291 = vmatpush1.msra.mxu0 %v6051
        %6292 = vmatprep.subr.mxu0 %v6048
        %6293 = vmatpush1.msra.mxu0 %v6047
        %6294 = vmatprep.subr.mxu0 %v6044
        %6295 = vmatpush1.msra.mxu0 %v6043
        %6296 = vmatprep.subr.mxu0 %v6040
        %6297 = vmatpush1.msra.mxu0 %v6039
        %6298 = vmatprep.subr.mxu0 %v6036
        %6299 = vmatpush1.msra.mxu0 %v6035
        %6300 = vmatprep.subr.mxu0 %v6032
        %6301 = vmatpush1.msra.mxu0 %v6031
        %6302 = vmatprep.subr.mxu0 %v6156
        %6303 = vmatpush2.msra.mxu0 %v6155
        %6304 = vmatprep.subr.mxu0 %v6152
        %6305 = vmatpush2.msra.mxu0 %v6151
        %6306 = vmatprep.subr.mxu0 %v6148
        %6307 = vmatpush2.msra.mxu0 %v6147
        %6308 = vmatprep.subr.mxu0 %v6144
        %6309 = vmatpush2.msra.mxu0 %v6143
        %6310 = vmatprep.subr.mxu0 %v6140
        %6311 = vmatpush2.msra.mxu0 %v6139
        %6312 = vmatprep.subr.mxu0 %v6136
        %6313 = vmatpush2.msra.mxu0 %v6135
        %6314 = vmatprep.subr.mxu0 %v6132
        %6315 = vmatpush2.msra.mxu0 %v6131
        %6316 = vmatprep.subr.mxu0 %v6128
        %6317 = vmatpush2.msra.mxu0 %v6127
        %6318 = vmatprep.subr.mxu0 %v6124
        %6319 = vmatpush2.msra.mxu0 %v6123
        %6320 = vmatprep.subr.mxu0 %v6120
        %6321 = vmatpush2.msra.mxu0 %v6119
        %6322 = vmatprep.subr.mxu0 %v6116
        %6323 = vmatpush2.msra.mxu0 %v6115
        %6324 = vmatprep.subr.mxu0 %v6112
        %6325 = vmatpush2.msra.mxu0 %v6111
        %6326 = vmatprep.subr.mxu0 %v6108
        %6327 = vmatpush2.msra.mxu0 %v6107
        %6328 = vmatprep.subr.mxu0 %v6104
        %6329 = vmatpush2.msra.mxu0 %v6103
        %6330 = vmatprep.subr.mxu0 %v6100
        %6331 = vmatpush2.msra.mxu0 %v6099
        %6332 = vmatprep.subr.mxu0 %v6096
        %6333 = vmatpush2.msra.mxu0 %v6095
        %6334 = vmatprep.mubr.f32.mxu0 %v5969
        %6335 = vmatmul.mubr.f32.gmra.mxu0 %v5966
        %v6336 = vpop.f32.mrf.mxu0
        %v6337 = vadd.f32 0.0, %v6336
        %v6338 = vpop.f32.mrf.mxu0
        %v6339 = vadd.f32 0.0, %v6338
        %6340 = vmatprep.mubr.f32.mxu0 %v5975
        %6341 = vmatmul.mubr.f32.gmra.mxu0 %v5972
        %v6342 = vpop.f32.mrf.mxu0
        %v6343 = vadd.f32 0.0, %v6342
        %v6344 = vpop.f32.mrf.mxu0
        %v6345 = vadd.f32 0.0, %v6344
        %6346 = vmatprep.mubr.f32.mxu0 %v5981
        %6347 = vmatmul.mubr.f32.gmra.mxu0 %v5978
        %v6348 = vpop.f32.mrf.mxu0
        %v6349 = vadd.f32 0.0, %v6348
        %v6350 = vpop.f32.mrf.mxu0
        %v6351 = vadd.f32 0.0, %v6350
        %6352 = vmatprep.mubr.f32.mxu0 %v5987
        %6353 = vmatmul.mubr.f32.gmra.mxu0 %v5984
        %v6354 = vpop.f32.mrf.mxu0
        %v6355 = vadd.f32 0.0, %v6354
        %v6356 = vpop.f32.mrf.mxu0
        %v6357 = vadd.f32 0.0, %v6356
        %6358 = vmatprep.mubr.f32.mxu0 %v5993
        %6359 = vmatmul.mubr.f32.gmra.mxu0 %v5990
        %v6360 = vpop.f32.mrf.mxu0
        %v6361 = vadd.f32 0.0, %v6360
        %v6362 = vpop.f32.mrf.mxu0
        %v6363 = vadd.f32 0.0, %v6362
        %6364 = vmatprep.mubr.f32.mxu0 %v5999
        %6365 = vmatmul.mubr.f32.gmra.mxu0 %v5996
        %v6366 = vpop.f32.mrf.mxu0
        %v6367 = vadd.f32 0.0, %v6366
        %v6368 = vpop.f32.mrf.mxu0
        %v6369 = vadd.f32 0.0, %v6368
        %6370 = vmatprep.mubr.f32.mxu0 %v6005
        %6371 = vmatmul.mubr.f32.gmra.mxu0 %v6002
        %v6372 = vpop.f32.mrf.mxu0
        %v6373 = vadd.f32 0.0, %v6372
        %v6374 = vpop.f32.mrf.mxu0
        %v6375 = vadd.f32 0.0, %v6374
        %6376 = vmatprep.mubr.f32.mxu0 %v6011
        %6377 = vmatmul.mubr.f32.gmra.mxu0 %v6008
        %v6378 = vpop.f32.mrf.mxu0
        %v6379 = vadd.f32 0.0, %v6378
        %v6380 = vpop.f32.mrf.mxu0
        %v6381 = vadd.f32 0.0, %v6380
        %6382 = vdwg.mxu0
        %v6383 = vadd.f32 %v5867, %v6224
        %v6384 = vadd.f32 %v5868, %v6226
        %v6385 = vadd.f32 %v5869, %v6337
        %v6386 = vadd.f32 %v5870, %v6339
        %v6387 = vadd.f32 %v5871, %v6230
        %v6388 = vadd.f32 %v5872, %v6232
        %v6389 = vadd.f32 %v5873, %v6343
        %v6390 = vadd.f32 %v5874, %v6345
        %v6391 = vadd.f32 %v5875, %v6236
        %v6392 = vadd.f32 %v5876, %v6238
        %v6393 = vadd.f32 %v5877, %v6349
        %v6394 = vadd.f32 %v5878, %v6351
        %v6395 = vadd.f32 %v5879, %v6242
        %v6396 = vadd.f32 %v5880, %v6244
        %v6397 = vadd.f32 %v5881, %v6355
        %v6398 = vadd.f32 %v5882, %v6357
        %v6399 = vadd.f32 %v5883, %v6248
        %v6400 = vadd.f32 %v5884, %v6250
        %v6401 = vadd.f32 %v5885, %v6361
        %v6402 = vadd.f32 %v5886, %v6363
        %v6403 = vadd.f32 %v5887, %v6254
        %v6404 = vadd.f32 %v5888, %v6256
        %v6405 = vadd.f32 %v5889, %v6367
        %v6406 = vadd.f32 %v5890, %v6369
        %v6407 = vadd.f32 %v5891, %v6260
        %v6408 = vadd.f32 %v5892, %v6262
        %v6409 = vadd.f32 %v5893, %v6373
        %v6410 = vadd.f32 %v5894, %v6375
        %v6411 = vadd.f32 %v5895, %v6266
        %v6412 = vadd.f32 %v5896, %v6268
        %v6413 = vadd.f32 %v5897, %v6379
        %v6414 = vadd.f32 %v5898, %v6381
        %v6415 = vld [vmem:[#allocation3] sm:$0xf0]
        %v6416 = vld [vmem:[#allocation3 + $0x8] sm:$0xf0]
        %v6417 = vld [vmem:[#allocation3 + $0x10] sm:$0xf]
        %v6418 = vld [vmem:[#allocation3 + $0x18] sm:$0xf]
        %v6419 = vld [vmem:[#allocation3 + $0x20] sm:$0xf0]
        %v6420 = vld [vmem:[#allocation3 + $0x28] sm:$0xf0]
        %v6421 = vld [vmem:[#allocation3 + $0x30] sm:$0xf]
        %v6422 = vld [vmem:[#allocation3 + $0x38] sm:$0xf]
        %v6423 = vld [vmem:[#allocation3 + $0x40] sm:$0xf0]
        %v6424 = vld [vmem:[#allocation3 + $0x48] sm:$0xf0]
        %v6425 = vld [vmem:[#allocation3 + $0x50] sm:$0xf]
        %v6426 = vld [vmem:[#allocation3 + $0x58] sm:$0xf]
        %v6427 = vld [vmem:[#allocation3 + $0x60] sm:$0xf0]
        %v6428 = vld [vmem:[#allocation3 + $0x68] sm:$0xf0]
        %v6429 = vld [vmem:[#allocation3 + $0x70] sm:$0xf]
        %v6430 = vld [vmem:[#allocation3 + $0x78] sm:$0xf]
        %v6431 = vld [vmem:[#allocation3 + $0x80] sm:$0xf0]
        %v6432 = vld [vmem:[#allocation3 + $0x88] sm:$0xf0]
        %v6433 = vld [vmem:[#allocation3 + $0x90] sm:$0xf]
        %v6434 = vld [vmem:[#allocation3 + $0x98] sm:$0xf]
        %v6435 = vld [vmem:[#allocation3 + $0xa0] sm:$0xf0]
        %v6436 = vld [vmem:[#allocation3 + $0xa8] sm:$0xf0]
        %v6437 = vld [vmem:[#allocation3 + $0xb0] sm:$0xf]
        %v6438 = vld [vmem:[#allocation3 + $0xb8] sm:$0xf]
        %v6439 = vld [vmem:[#allocation3 + $0xc0] sm:$0xf0]
        %v6440 = vld [vmem:[#allocation3 + $0xc8] sm:$0xf0]
        %v6441 = vld [vmem:[#allocation3 + $0xd0] sm:$0xf]
        %v6442 = vld [vmem:[#allocation3 + $0xd8] sm:$0xf]
        %v6443 = vld [vmem:[#allocation3 + $0xe0] sm:$0xf0]
        %v6444 = vld [vmem:[#allocation3 + $0xe8] sm:$0xf0]
        %v6445 = vld [vmem:[#allocation3 + $0xf0] sm:$0xf]
        %v6446 = vld [vmem:[#allocation3 + $0xf8] sm:$0xf]
        %v6479 = vrot.slane %v6415, 4
        %v6480 = vrot.slane %v6417, 4
        %v6481 = vsel %vm599, %v6479, %v6480
        %v6482 = vrot.slane %v6416, 4
        %v6483 = vrot.slane %v6418, 4
        %v6484 = vsel %vm599, %v6482, %v6483
        %v6485 = vrot.slane %v6419, 4
        %v6486 = vrot.slane %v6421, 4
        %v6487 = vsel %vm599, %v6485, %v6486
        %v6488 = vrot.slane %v6420, 4
        %v6489 = vrot.slane %v6422, 4
        %v6490 = vsel %vm599, %v6488, %v6489
        %v6491 = vrot.slane %v6423, 4
        %v6492 = vrot.slane %v6425, 4
        %v6493 = vsel %vm599, %v6491, %v6492
        %v6494 = vrot.slane %v6424, 4
        %v6495 = vrot.slane %v6426, 4
        %v6496 = vsel %vm599, %v6494, %v6495
        %v6497 = vrot.slane %v6427, 4
        %v6498 = vrot.slane %v6429, 4
        %v6499 = vsel %vm599, %v6497, %v6498
        %v6500 = vrot.slane %v6428, 4
        %v6501 = vrot.slane %v6430, 4
        %v6502 = vsel %vm599, %v6500, %v6501
        %v6503 = vrot.slane %v6431, 4
        %v6504 = vrot.slane %v6433, 4
        %v6505 = vsel %vm599, %v6503, %v6504
        %v6506 = vrot.slane %v6432, 4
        %v6507 = vrot.slane %v6434, 4
        %v6508 = vsel %vm599, %v6506, %v6507
        %v6509 = vrot.slane %v6435, 4
        %v6510 = vrot.slane %v6437, 4
        %v6511 = vsel %vm599, %v6509, %v6510
        %v6512 = vrot.slane %v6436, 4
        %v6513 = vrot.slane %v6438, 4
        %v6514 = vsel %vm599, %v6512, %v6513
        %v6515 = vrot.slane %v6439, 4
        %v6516 = vrot.slane %v6441, 4
        %v6517 = vsel %vm599, %v6515, %v6516
        %v6518 = vrot.slane %v6440, 4
        %v6519 = vrot.slane %v6442, 4
        %v6520 = vsel %vm599, %v6518, %v6519
        %v6521 = vrot.slane %v6443, 4
        %v6522 = vrot.slane %v6445, 4
        %v6523 = vsel %vm599, %v6521, %v6522
        %v6524 = vrot.slane %v6444, 4
        %v6525 = vrot.slane %v6446, 4
        %v6526 = vsel %vm599, %v6524, %v6525
        %s6543 = scalar_lea.vmem [#allocation10], 4096
        %v6544 = vld [vmem:[%s6543] sm:$0xff]
        %v6545 = vld [vmem:[%s6543 + $0x8] sm:$0xff]
        %v6546 = vld [vmem:[%s6543 + $0x10] sm:$0xff]
        %v6547 = vld [vmem:[%s6543 + $0x18] sm:$0xff]
        %v6548 = vld [vmem:[%s6543 + $0x20] sm:$0xff]
        %v6549 = vld [vmem:[%s6543 + $0x28] sm:$0xff]
        %v6550 = vld [vmem:[%s6543 + $0x30] sm:$0xff]
        %v6551 = vld [vmem:[%s6543 + $0x38] sm:$0xff]
        %v6552 = vld [vmem:[%s6543 + $0x40] sm:$0xff]
        %v6553 = vld [vmem:[%s6543 + $0x48] sm:$0xff]
        %v6554 = vld [vmem:[%s6543 + $0x50] sm:$0xff]
        %v6555 = vld [vmem:[%s6543 + $0x58] sm:$0xff]
        %v6556 = vld [vmem:[%s6543 + $0x60] sm:$0xff]
        %v6557 = vld [vmem:[%s6543 + $0x68] sm:$0xff]
        %v6558 = vld [vmem:[%s6543 + $0x70] sm:$0xff]
        %v6559 = vld [vmem:[%s6543 + $0x78] sm:$0xff]
        %v6560 = vld [vmem:[%s6543 + $0x80] sm:$0xff]
        %v6561 = vld [vmem:[%s6543 + $0x88] sm:$0xff]
        %v6562 = vld [vmem:[%s6543 + $0x90] sm:$0xff]
        %v6563 = vld [vmem:[%s6543 + $0x98] sm:$0xff]
        %v6564 = vld [vmem:[%s6543 + $0xa0] sm:$0xff]
        %v6565 = vld [vmem:[%s6543 + $0xa8] sm:$0xff]
        %v6566 = vld [vmem:[%s6543 + $0xb0] sm:$0xff]
        %v6567 = vld [vmem:[%s6543 + $0xb8] sm:$0xff]
        %v6568 = vld [vmem:[%s6543 + $0xc0] sm:$0xff]
        %v6569 = vld [vmem:[%s6543 + $0xc8] sm:$0xff]
        %v6570 = vld [vmem:[%s6543 + $0xd0] sm:$0xff]
        %v6571 = vld [vmem:[%s6543 + $0xd8] sm:$0xff]
        %v6572 = vld [vmem:[%s6543 + $0xe0] sm:$0xff]
        %v6573 = vld [vmem:[%s6543 + $0xe8] sm:$0xff]
        %v6574 = vld [vmem:[%s6543 + $0xf0] sm:$0xff]
        %v6575 = vld [vmem:[%s6543 + $0xf8] sm:$0xff]
        %v6576 = vld [vmem:[%s6543 + $0x100] sm:$0xff]
        %v6577 = vld [vmem:[%s6543 + $0x108] sm:$0xff]
        %v6578 = vld [vmem:[%s6543 + $0x110] sm:$0xff]
        %v6579 = vld [vmem:[%s6543 + $0x118] sm:$0xff]
        %v6580 = vld [vmem:[%s6543 + $0x120] sm:$0xff]
        %v6581 = vld [vmem:[%s6543 + $0x128] sm:$0xff]
        %v6582 = vld [vmem:[%s6543 + $0x130] sm:$0xff]
        %v6583 = vld [vmem:[%s6543 + $0x138] sm:$0xff]
        %v6584 = vld [vmem:[%s6543 + $0x140] sm:$0xff]
        %v6585 = vld [vmem:[%s6543 + $0x148] sm:$0xff]
        %v6586 = vld [vmem:[%s6543 + $0x150] sm:$0xff]
        %v6587 = vld [vmem:[%s6543 + $0x158] sm:$0xff]
        %v6588 = vld [vmem:[%s6543 + $0x160] sm:$0xff]
        %v6589 = vld [vmem:[%s6543 + $0x168] sm:$0xff]
        %v6590 = vld [vmem:[%s6543 + $0x170] sm:$0xff]
        %v6591 = vld [vmem:[%s6543 + $0x178] sm:$0xff]
        %v6592 = vld [vmem:[%s6543 + $0x180] sm:$0xff]
        %v6593 = vld [vmem:[%s6543 + $0x188] sm:$0xff]
        %v6594 = vld [vmem:[%s6543 + $0x190] sm:$0xff]
        %v6595 = vld [vmem:[%s6543 + $0x198] sm:$0xff]
        %v6596 = vld [vmem:[%s6543 + $0x1a0] sm:$0xff]
        %v6597 = vld [vmem:[%s6543 + $0x1a8] sm:$0xff]
        %v6598 = vld [vmem:[%s6543 + $0x1b0] sm:$0xff]
        %v6599 = vld [vmem:[%s6543 + $0x1b8] sm:$0xff]
        %v6600 = vld [vmem:[%s6543 + $0x1c0] sm:$0xff]
        %v6601 = vld [vmem:[%s6543 + $0x1c8] sm:$0xff]
        %v6602 = vld [vmem:[%s6543 + $0x1d0] sm:$0xff]
        %v6603 = vld [vmem:[%s6543 + $0x1d8] sm:$0xff]
        %v6604 = vld [vmem:[%s6543 + $0x1e0] sm:$0xff]
        %v6605 = vld [vmem:[%s6543 + $0x1e8] sm:$0xff]
        %v6606 = vld [vmem:[%s6543 + $0x1f0] sm:$0xff]
        %v6607 = vld [vmem:[%s6543 + $0x1f8] sm:$0xff]
        %v6608 = vld [vmem:[%s6543 + $0x200] sm:$0xff]
        %v6609 = vld [vmem:[%s6543 + $0x208] sm:$0xff]
        %v6610 = vld [vmem:[%s6543 + $0x210] sm:$0xff]
        %v6611 = vld [vmem:[%s6543 + $0x218] sm:$0xff]
        %v6612 = vld [vmem:[%s6543 + $0x220] sm:$0xff]
        %v6613 = vld [vmem:[%s6543 + $0x228] sm:$0xff]
        %v6614 = vld [vmem:[%s6543 + $0x230] sm:$0xff]
        %v6615 = vld [vmem:[%s6543 + $0x238] sm:$0xff]
        %v6616 = vld [vmem:[%s6543 + $0x240] sm:$0xff]
        %v6617 = vld [vmem:[%s6543 + $0x248] sm:$0xff]
        %v6618 = vld [vmem:[%s6543 + $0x250] sm:$0xff]
        %v6619 = vld [vmem:[%s6543 + $0x258] sm:$0xff]
        %v6620 = vld [vmem:[%s6543 + $0x260] sm:$0xff]
        %v6621 = vld [vmem:[%s6543 + $0x268] sm:$0xff]
        %v6622 = vld [vmem:[%s6543 + $0x270] sm:$0xff]
        %v6623 = vld [vmem:[%s6543 + $0x278] sm:$0xff]
        %v6624 = vld [vmem:[%s6543 + $0x280] sm:$0xff]
        %v6625 = vld [vmem:[%s6543 + $0x288] sm:$0xff]
        %v6626 = vld [vmem:[%s6543 + $0x290] sm:$0xff]
        %v6627 = vld [vmem:[%s6543 + $0x298] sm:$0xff]
        %v6628 = vld [vmem:[%s6543 + $0x2a0] sm:$0xff]
        %v6629 = vld [vmem:[%s6543 + $0x2a8] sm:$0xff]
        %v6630 = vld [vmem:[%s6543 + $0x2b0] sm:$0xff]
        %v6631 = vld [vmem:[%s6543 + $0x2b8] sm:$0xff]
        %v6632 = vld [vmem:[%s6543 + $0x2c0] sm:$0xff]
        %v6633 = vld [vmem:[%s6543 + $0x2c8] sm:$0xff]
        %v6634 = vld [vmem:[%s6543 + $0x2d0] sm:$0xff]
        %v6635 = vld [vmem:[%s6543 + $0x2d8] sm:$0xff]
        %v6636 = vld [vmem:[%s6543 + $0x2e0] sm:$0xff]
        %v6637 = vld [vmem:[%s6543 + $0x2e8] sm:$0xff]
        %v6638 = vld [vmem:[%s6543 + $0x2f0] sm:$0xff]
        %v6639 = vld [vmem:[%s6543 + $0x2f8] sm:$0xff]
        %v6640 = vld [vmem:[%s6543 + $0x300] sm:$0xff]
        %v6641 = vld [vmem:[%s6543 + $0x308] sm:$0xff]
        %v6642 = vld [vmem:[%s6543 + $0x310] sm:$0xff]
        %v6643 = vld [vmem:[%s6543 + $0x318] sm:$0xff]
        %v6644 = vld [vmem:[%s6543 + $0x320] sm:$0xff]
        %v6645 = vld [vmem:[%s6543 + $0x328] sm:$0xff]
        %v6646 = vld [vmem:[%s6543 + $0x330] sm:$0xff]
        %v6647 = vld [vmem:[%s6543 + $0x338] sm:$0xff]
        %v6648 = vld [vmem:[%s6543 + $0x340] sm:$0xff]
        %v6649 = vld [vmem:[%s6543 + $0x348] sm:$0xff]
        %v6650 = vld [vmem:[%s6543 + $0x350] sm:$0xff]
        %v6651 = vld [vmem:[%s6543 + $0x358] sm:$0xff]
        %v6652 = vld [vmem:[%s6543 + $0x360] sm:$0xff]
        %v6653 = vld [vmem:[%s6543 + $0x368] sm:$0xff]
        %v6654 = vld [vmem:[%s6543 + $0x370] sm:$0xff]
        %v6655 = vld [vmem:[%s6543 + $0x378] sm:$0xff]
        %v6656 = vld [vmem:[%s6543 + $0x380] sm:$0xff]
        %v6657 = vld [vmem:[%s6543 + $0x388] sm:$0xff]
        %v6658 = vld [vmem:[%s6543 + $0x390] sm:$0xff]
        %v6659 = vld [vmem:[%s6543 + $0x398] sm:$0xff]
        %v6660 = vld [vmem:[%s6543 + $0x3a0] sm:$0xff]
        %v6661 = vld [vmem:[%s6543 + $0x3a8] sm:$0xff]
        %v6662 = vld [vmem:[%s6543 + $0x3b0] sm:$0xff]
        %v6663 = vld [vmem:[%s6543 + $0x3b8] sm:$0xff]
        %v6664 = vld [vmem:[%s6543 + $0x3c0] sm:$0xff]
        %v6665 = vld [vmem:[%s6543 + $0x3c8] sm:$0xff]
        %v6666 = vld [vmem:[%s6543 + $0x3d0] sm:$0xff]
        %v6667 = vld [vmem:[%s6543 + $0x3d8] sm:$0xff]
        %v6668 = vld [vmem:[%s6543 + $0x3e0] sm:$0xff]
        %v6669 = vld [vmem:[%s6543 + $0x3e8] sm:$0xff]
        %v6670 = vld [vmem:[%s6543 + $0x3f0] sm:$0xff]
        %v6671 = vld [vmem:[%s6543 + $0x3f8] sm:$0xff]
        %6672 = vmatprep.subr.mxu0 %v6605
        %6673 = vmatpush1.msra.mxu0 %v6604
        %6674 = vmatprep.subr.mxu0 %v6601
        %6675 = vmatpush1.msra.mxu0 %v6600
        %6676 = vmatprep.subr.mxu0 %v6597
        %6677 = vmatpush1.msra.mxu0 %v6596
        %6678 = vmatprep.subr.mxu0 %v6593
        %6679 = vmatpush1.msra.mxu0 %v6592
        %6680 = vmatprep.subr.mxu0 %v6589
        %6681 = vmatpush1.msra.mxu0 %v6588
        %6682 = vmatprep.subr.mxu0 %v6585
        %6683 = vmatpush1.msra.mxu0 %v6584
        %6684 = vmatprep.subr.mxu0 %v6581
        %6685 = vmatpush1.msra.mxu0 %v6580
        %6686 = vmatprep.subr.mxu0 %v6577
        %6687 = vmatpush1.msra.mxu0 %v6576
        %6688 = vmatprep.subr.mxu0 %v6573
        %6689 = vmatpush1.msra.mxu0 %v6572
        %6690 = vmatprep.subr.mxu0 %v6569
        %6691 = vmatpush1.msra.mxu0 %v6568
        %6692 = vmatprep.subr.mxu0 %v6565
        %6693 = vmatpush1.msra.mxu0 %v6564
        %6694 = vmatprep.subr.mxu0 %v6561
        %6695 = vmatpush1.msra.mxu0 %v6560
        %6696 = vmatprep.subr.mxu0 %v6557
        %6697 = vmatpush1.msra.mxu0 %v6556
        %6698 = vmatprep.subr.mxu0 %v6553
        %6699 = vmatpush1.msra.mxu0 %v6552
        %6700 = vmatprep.subr.mxu0 %v6549
        %6701 = vmatpush1.msra.mxu0 %v6548
        %6702 = vmatprep.subr.mxu0 %v6545
        %6703 = vmatpush1.msra.mxu0 %v6544
        %6704 = vmatprep.subr.mxu0 %v6669
        %6705 = vmatpush2.msra.mxu0 %v6668
        %6706 = vmatprep.subr.mxu0 %v6665
        %6707 = vmatpush2.msra.mxu0 %v6664
        %6708 = vmatprep.subr.mxu0 %v6661
        %6709 = vmatpush2.msra.mxu0 %v6660
        %6710 = vmatprep.subr.mxu0 %v6657
        %6711 = vmatpush2.msra.mxu0 %v6656
        %6712 = vmatprep.subr.mxu0 %v6653
        %6713 = vmatpush2.msra.mxu0 %v6652
        %6714 = vmatprep.subr.mxu0 %v6649
        %6715 = vmatpush2.msra.mxu0 %v6648
        %6716 = vmatprep.subr.mxu0 %v6645
        %6717 = vmatpush2.msra.mxu0 %v6644
        %6718 = vmatprep.subr.mxu0 %v6641
        %6719 = vmatpush2.msra.mxu0 %v6640
        %6720 = vmatprep.subr.mxu0 %v6637
        %6721 = vmatpush2.msra.mxu0 %v6636
        %6722 = vmatprep.subr.mxu0 %v6633
        %6723 = vmatpush2.msra.mxu0 %v6632
        %6724 = vmatprep.subr.mxu0 %v6629
        %6725 = vmatpush2.msra.mxu0 %v6628
        %6726 = vmatprep.subr.mxu0 %v6625
        %6727 = vmatpush2.msra.mxu0 %v6624
        %6728 = vmatprep.subr.mxu0 %v6621
        %6729 = vmatpush2.msra.mxu0 %v6620
        %6730 = vmatprep.subr.mxu0 %v6617
        %6731 = vmatpush2.msra.mxu0 %v6616
        %6732 = vmatprep.subr.mxu0 %v6613
        %6733 = vmatpush2.msra.mxu0 %v6612
        %6734 = vmatprep.subr.mxu0 %v6609
        %6735 = vmatpush2.msra.mxu0 %v6608
        %6736 = vmatprep.mubr.f32.mxu0 %v6484
        %6737 = vmatmul.mubr.f32.gmra.mxu0 %v6481
        %v6738 = vpop.f32.mrf.mxu0
        %v6739 = vadd.f32 0.0, %v6738
        %v6740 = vpop.f32.mrf.mxu0
        %v6741 = vadd.f32 0.0, %v6740
        %6742 = vmatprep.mubr.f32.mxu0 %v6490
        %6743 = vmatmul.mubr.f32.gmra.mxu0 %v6487
        %v6744 = vpop.f32.mrf.mxu0
        %v6745 = vadd.f32 0.0, %v6744
        %v6746 = vpop.f32.mrf.mxu0
        %v6747 = vadd.f32 0.0, %v6746
        %6748 = vmatprep.mubr.f32.mxu0 %v6496
        %6749 = vmatmul.mubr.f32.gmra.mxu0 %v6493
        %v6750 = vpop.f32.mrf.mxu0
        %v6751 = vadd.f32 0.0, %v6750
        %v6752 = vpop.f32.mrf.mxu0
        %v6753 = vadd.f32 0.0, %v6752
        %6754 = vmatprep.mubr.f32.mxu0 %v6502
        %6755 = vmatmul.mubr.f32.gmra.mxu0 %v6499
        %v6756 = vpop.f32.mrf.mxu0
        %v6757 = vadd.f32 0.0, %v6756
        %v6758 = vpop.f32.mrf.mxu0
        %v6759 = vadd.f32 0.0, %v6758
        %6760 = vmatprep.mubr.f32.mxu0 %v6508
        %6761 = vmatmul.mubr.f32.gmra.mxu0 %v6505
        %v6762 = vpop.f32.mrf.mxu0
        %v6763 = vadd.f32 0.0, %v6762
        %v6764 = vpop.f32.mrf.mxu0
        %v6765 = vadd.f32 0.0, %v6764
        %6766 = vmatprep.mubr.f32.mxu0 %v6514
        %6767 = vmatmul.mubr.f32.gmra.mxu0 %v6511
        %v6768 = vpop.f32.mrf.mxu0
        %v6769 = vadd.f32 0.0, %v6768
        %v6770 = vpop.f32.mrf.mxu0
        %v6771 = vadd.f32 0.0, %v6770
        %6772 = vmatprep.mubr.f32.mxu0 %v6520
        %6773 = vmatmul.mubr.f32.gmra.mxu0 %v6517
        %v6774 = vpop.f32.mrf.mxu0
        %v6775 = vadd.f32 0.0, %v6774
        %v6776 = vpop.f32.mrf.mxu0
        %v6777 = vadd.f32 0.0, %v6776
        %6778 = vmatprep.mubr.f32.mxu0 %v6526
        %6779 = vmatmul.mubr.f32.gmra.mxu0 %v6523
        %v6780 = vpop.f32.mrf.mxu0
        %v6781 = vadd.f32 0.0, %v6780
        %v6782 = vpop.f32.mrf.mxu0
        %v6783 = vadd.f32 0.0, %v6782
        %6784 = vdwg.mxu0
        %6785 = vmatprep.subr.mxu0 %v6607
        %6786 = vmatpush1.msra.mxu0 %v6606
        %6787 = vmatprep.subr.mxu0 %v6603
        %6788 = vmatpush1.msra.mxu0 %v6602
        %6789 = vmatprep.subr.mxu0 %v6599
        %6790 = vmatpush1.msra.mxu0 %v6598
        %6791 = vmatprep.subr.mxu0 %v6595
        %6792 = vmatpush1.msra.mxu0 %v6594
        %6793 = vmatprep.subr.mxu0 %v6591
        %6794 = vmatpush1.msra.mxu0 %v6590
        %6795 = vmatprep.subr.mxu0 %v6587
        %6796 = vmatpush1.msra.mxu0 %v6586
        %6797 = vmatprep.subr.mxu0 %v6583
        %6798 = vmatpush1.msra.mxu0 %v6582
        %6799 = vmatprep.subr.mxu0 %v6579
        %6800 = vmatpush1.msra.mxu0 %v6578
        %6801 = vmatprep.subr.mxu0 %v6575
        %6802 = vmatpush1.msra.mxu0 %v6574
        %6803 = vmatprep.subr.mxu0 %v6571
        %6804 = vmatpush1.msra.mxu0 %v6570
        %6805 = vmatprep.subr.mxu0 %v6567
        %6806 = vmatpush1.msra.mxu0 %v6566
        %6807 = vmatprep.subr.mxu0 %v6563
        %6808 = vmatpush1.msra.mxu0 %v6562
        %6809 = vmatprep.subr.mxu0 %v6559
        %6810 = vmatpush1.msra.mxu0 %v6558
        %6811 = vmatprep.subr.mxu0 %v6555
        %6812 = vmatpush1.msra.mxu0 %v6554
        %6813 = vmatprep.subr.mxu0 %v6551
        %6814 = vmatpush1.msra.mxu0 %v6550
        %6815 = vmatprep.subr.mxu0 %v6547
        %6816 = vmatpush1.msra.mxu0 %v6546
        %6817 = vmatprep.subr.mxu0 %v6671
        %6818 = vmatpush2.msra.mxu0 %v6670
        %6819 = vmatprep.subr.mxu0 %v6667
        %6820 = vmatpush2.msra.mxu0 %v6666
        %6821 = vmatprep.subr.mxu0 %v6663
        %6822 = vmatpush2.msra.mxu0 %v6662
        %6823 = vmatprep.subr.mxu0 %v6659
        %6824 = vmatpush2.msra.mxu0 %v6658
        %6825 = vmatprep.subr.mxu0 %v6655
        %6826 = vmatpush2.msra.mxu0 %v6654
        %6827 = vmatprep.subr.mxu0 %v6651
        %6828 = vmatpush2.msra.mxu0 %v6650
        %6829 = vmatprep.subr.mxu0 %v6647
        %6830 = vmatpush2.msra.mxu0 %v6646
        %6831 = vmatprep.subr.mxu0 %v6643
        %6832 = vmatpush2.msra.mxu0 %v6642
        %6833 = vmatprep.subr.mxu0 %v6639
        %6834 = vmatpush2.msra.mxu0 %v6638
        %6835 = vmatprep.subr.mxu0 %v6635
        %6836 = vmatpush2.msra.mxu0 %v6634
        %6837 = vmatprep.subr.mxu0 %v6631
        %6838 = vmatpush2.msra.mxu0 %v6630
        %6839 = vmatprep.subr.mxu0 %v6627
        %6840 = vmatpush2.msra.mxu0 %v6626
        %6841 = vmatprep.subr.mxu0 %v6623
        %6842 = vmatpush2.msra.mxu0 %v6622
        %6843 = vmatprep.subr.mxu0 %v6619
        %6844 = vmatpush2.msra.mxu0 %v6618
        %6845 = vmatprep.subr.mxu0 %v6615
        %6846 = vmatpush2.msra.mxu0 %v6614
        %6847 = vmatprep.subr.mxu0 %v6611
        %6848 = vmatpush2.msra.mxu0 %v6610
        %6849 = vmatprep.mubr.f32.mxu0 %v6484
        %6850 = vmatmul.mubr.f32.gmra.mxu0 %v6481
        %v6851 = vpop.f32.mrf.mxu0
        %v6852 = vadd.f32 0.0, %v6851
        %v6853 = vpop.f32.mrf.mxu0
        %v6854 = vadd.f32 0.0, %v6853
        %6855 = vmatprep.mubr.f32.mxu0 %v6490
        %6856 = vmatmul.mubr.f32.gmra.mxu0 %v6487
        %v6857 = vpop.f32.mrf.mxu0
        %v6858 = vadd.f32 0.0, %v6857
        %v6859 = vpop.f32.mrf.mxu0
        %v6860 = vadd.f32 0.0, %v6859
        %6861 = vmatprep.mubr.f32.mxu0 %v6496
        %6862 = vmatmul.mubr.f32.gmra.mxu0 %v6493
        %v6863 = vpop.f32.mrf.mxu0
        %v6864 = vadd.f32 0.0, %v6863
        %v6865 = vpop.f32.mrf.mxu0
        %v6866 = vadd.f32 0.0, %v6865
        %6867 = vmatprep.mubr.f32.mxu0 %v6502
        %6868 = vmatmul.mubr.f32.gmra.mxu0 %v6499
        %v6869 = vpop.f32.mrf.mxu0
        %v6870 = vadd.f32 0.0, %v6869
        %v6871 = vpop.f32.mrf.mxu0
        %v6872 = vadd.f32 0.0, %v6871
        %6873 = vmatprep.mubr.f32.mxu0 %v6508
        %6874 = vmatmul.mubr.f32.gmra.mxu0 %v6505
        %v6875 = vpop.f32.mrf.mxu0
        %v6876 = vadd.f32 0.0, %v6875
        %v6877 = vpop.f32.mrf.mxu0
        %v6878 = vadd.f32 0.0, %v6877
        %6879 = vmatprep.mubr.f32.mxu0 %v6514
        %6880 = vmatmul.mubr.f32.gmra.mxu0 %v6511
        %v6881 = vpop.f32.mrf.mxu0
        %v6882 = vadd.f32 0.0, %v6881
        %v6883 = vpop.f32.mrf.mxu0
        %v6884 = vadd.f32 0.0, %v6883
        %6885 = vmatprep.mubr.f32.mxu0 %v6520
        %6886 = vmatmul.mubr.f32.gmra.mxu0 %v6517
        %v6887 = vpop.f32.mrf.mxu0
        %v6888 = vadd.f32 0.0, %v6887
        %v6889 = vpop.f32.mrf.mxu0
        %v6890 = vadd.f32 0.0, %v6889
        %6891 = vmatprep.mubr.f32.mxu0 %v6526
        %6892 = vmatmul.mubr.f32.gmra.mxu0 %v6523
        %v6893 = vpop.f32.mrf.mxu0
        %v6894 = vadd.f32 0.0, %v6893
        %v6895 = vpop.f32.mrf.mxu0
        %v6896 = vadd.f32 0.0, %v6895
        %6897 = vdwg.mxu0
        %v6898 = vadd.f32 %v6383, %v6739
        %v6899 = vadd.f32 %v6384, %v6741
        %v6900 = vadd.f32 %v6385, %v6852
        %v6901 = vadd.f32 %v6386, %v6854
        %v6902 = vadd.f32 %v6387, %v6745
        %v6903 = vadd.f32 %v6388, %v6747
        %v6904 = vadd.f32 %v6389, %v6858
        %v6905 = vadd.f32 %v6390, %v6860
        %v6906 = vadd.f32 %v6391, %v6751
        %v6907 = vadd.f32 %v6392, %v6753
        %v6908 = vadd.f32 %v6393, %v6864
        %v6909 = vadd.f32 %v6394, %v6866
        %v6910 = vadd.f32 %v6395, %v6757
        %v6911 = vadd.f32 %v6396, %v6759
        %v6912 = vadd.f32 %v6397, %v6870
        %v6913 = vadd.f32 %v6398, %v6872
        %v6914 = vadd.f32 %v6399, %v6763
        %v6915 = vadd.f32 %v6400, %v6765
        %v6916 = vadd.f32 %v6401, %v6876
        %v6917 = vadd.f32 %v6402, %v6878
        %v6918 = vadd.f32 %v6403, %v6769
        %v6919 = vadd.f32 %v6404, %v6771
        %v6920 = vadd.f32 %v6405, %v6882
        %v6921 = vadd.f32 %v6406, %v6884
        %v6922 = vadd.f32 %v6407, %v6775
        %v6923 = vadd.f32 %v6408, %v6777
        %v6924 = vadd.f32 %v6409, %v6888
        %v6925 = vadd.f32 %v6410, %v6890
        %v6926 = vadd.f32 %v6411, %v6781
        %v6927 = vadd.f32 %v6412, %v6783
        %v6928 = vadd.f32 %v6413, %v6894
        %v6929 = vadd.f32 %v6414, %v6896
        %v6930 = vld [vmem:[#allocation11] sm:$0xf]
        %v6932 = vlaneseq
        %v6933 = vshrl.u32 %v6932, 7
        %v6934 = vsub.s32 0, %v6933
        %v6935 = vrot.slane %v6930, %v6934
        %v6936 = vlaneseq
        %v6937 = vshrl.u32 %v6936, 7
        %v6938 = vsub.s32 1, %v6937
        %v6939 = vrot.slane %v6930, %v6938
        %v6940 = vlaneseq
        %v6941 = vshrl.u32 %v6940, 7
        %v6942 = vsub.s32 2, %v6941
        %v6943 = vrot.slane %v6930, %v6942
        %v6944 = vlaneseq
        %v6945 = vshrl.u32 %v6944, 7
        %v6946 = vsub.s32 3, %v6945
        %v6947 = vrot.slane %v6930, %v6946
        %v6952 = vadd.f32 %v6898, %v6935
        %v6953 = vadd.f32 %v6899, %v6939
        %v6954 = vadd.f32 %v6900, %v6943
        %v6955 = vadd.f32 %v6901, %v6947
        %v6956 = vadd.f32 %v6902, %v6935
        %v6957 = vadd.f32 %v6903, %v6939
        %v6958 = vadd.f32 %v6904, %v6943
        %v6959 = vadd.f32 %v6905, %v6947
        %v6960 = vadd.f32 %v6906, %v6935
        %v6961 = vadd.f32 %v6907, %v6939
        %v6962 = vadd.f32 %v6908, %v6943
        %v6963 = vadd.f32 %v6909, %v6947
        %v6964 = vadd.f32 %v6910, %v6935
        %v6965 = vadd.f32 %v6911, %v6939
        %v6966 = vadd.f32 %v6912, %v6943
        %v6967 = vadd.f32 %v6913, %v6947
        %v6968 = vadd.f32 %v6914, %v6935
        %v6969 = vadd.f32 %v6915, %v6939
        %v6970 = vadd.f32 %v6916, %v6943
        %v6971 = vadd.f32 %v6917, %v6947
        %v6972 = vadd.f32 %v6918, %v6935
        %v6973 = vadd.f32 %v6919, %v6939
        %v6974 = vadd.f32 %v6920, %v6943
        %v6975 = vadd.f32 %v6921, %v6947
        %v6976 = vadd.f32 %v6922, %v6935
        %v6977 = vadd.f32 %v6923, %v6939
        %v6978 = vadd.f32 %v6924, %v6943
        %v6979 = vadd.f32 %v6925, %v6947
        %v6980 = vadd.f32 %v6926, %v6935
        %v6981 = vadd.f32 %v6927, %v6939
        %v6982 = vadd.f32 %v6928, %v6943
        %v6983 = vadd.f32 %v6929, %v6947
        %v6984 = vmax.f32 %v6952, 0.0
        %v6985 = vmax.f32 %v6953, 0.0
        %v6986 = vmax.f32 %v6954, 0.0
        %v6987 = vmax.f32 %v6955, 0.0
        %v6988 = vmax.f32 %v6956, 0.0
        %v6989 = vmax.f32 %v6957, 0.0
        %v6990 = vmax.f32 %v6958, 0.0
        %v6991 = vmax.f32 %v6959, 0.0
        %v6992 = vmax.f32 %v6960, 0.0
        %v6993 = vmax.f32 %v6961, 0.0
        %v6994 = vmax.f32 %v6962, 0.0
        %v6995 = vmax.f32 %v6963, 0.0
        %v6996 = vmax.f32 %v6964, 0.0
        %v6997 = vmax.f32 %v6965, 0.0
        %v6998 = vmax.f32 %v6966, 0.0
        %v6999 = vmax.f32 %v6967, 0.0
        %v7000 = vmax.f32 %v6968, 0.0
        %v7001 = vmax.f32 %v6969, 0.0
        %v7002 = vmax.f32 %v6970, 0.0
        %v7003 = vmax.f32 %v6971, 0.0
        %v7004 = vmax.f32 %v6972, 0.0
        %v7005 = vmax.f32 %v6973, 0.0
        %v7006 = vmax.f32 %v6974, 0.0
        %v7007 = vmax.f32 %v6975, 0.0
        %v7008 = vmax.f32 %v6976, 0.0
        %v7009 = vmax.f32 %v6977, 0.0
        %v7010 = vmax.f32 %v6978, 0.0
        %v7011 = vmax.f32 %v6979, 0.0
        %v7012 = vmax.f32 %v6980, 0.0
        %v7013 = vmax.f32 %v6981, 0.0
        %v7014 = vmax.f32 %v6982, 0.0
        %v7015 = vmax.f32 %v6983, 0.0
        %v7016 = vmax.f32 %v6984, %v6986
        %v7017 = vmax.f32 %v6985, %v6987
        %v7018 = vmax.f32 %v6988, %v6990
        %v7019 = vmax.f32 %v6989, %v6991
        %v7020 = vmax.f32 %v6992, %v6994
        %v7021 = vmax.f32 %v6993, %v6995
        %v7022 = vmax.f32 %v6996, %v6998
        %v7023 = vmax.f32 %v6997, %v6999
        %v7024 = vmax.f32 %v7000, %v7002
        %v7025 = vmax.f32 %v7001, %v7003
        %v7026 = vmax.f32 %v7004, %v7006
        %v7027 = vmax.f32 %v7005, %v7007
        %v7028 = vmax.f32 %v7008, %v7010
        %v7029 = vmax.f32 %v7009, %v7011
        %v7030 = vmax.f32 %v7012, %v7014
        %v7031 = vmax.f32 %v7013, %v7015
        %7032 = vst [vmem:[#allocation4] sm:$0xff] %v7016
        %7033 = vst [vmem:[#allocation4 + $0x8] sm:$0xff] %v7017
        %7034 = vst [vmem:[#allocation4 + $0x10] sm:$0xff] %v7018
        %7035 = vst [vmem:[#allocation4 + $0x18] sm:$0xff] %v7019
        %7036 = vst [vmem:[#allocation4 + $0x20] sm:$0xff] %v7020
        %7037 = vst [vmem:[#allocation4 + $0x28] sm:$0xff] %v7021
        %7038 = vst [vmem:[#allocation4 + $0x30] sm:$0xff] %v7022
        %7039 = vst [vmem:[#allocation4 + $0x38] sm:$0xff] %v7023
        %7040 = vst [vmem:[#allocation4 + $0x40] sm:$0xff] %v7024
        %7041 = vst [vmem:[#allocation4 + $0x48] sm:$0xff] %v7025
        %7042 = vst [vmem:[#allocation4 + $0x50] sm:$0xff] %v7026
        %7043 = vst [vmem:[#allocation4 + $0x58] sm:$0xff] %v7027
        %7044 = vst [vmem:[#allocation4 + $0x60] sm:$0xff] %v7028
        %7045 = vst [vmem:[#allocation4 + $0x68] sm:$0xff] %v7029
        %7046 = vst [vmem:[#allocation4 + $0x70] sm:$0xff] %v7030
        %7047 = vst [vmem:[#allocation4 + $0x78] sm:$0xff] %v7031
        %v7048 = vld [vmem:[#allocation4] ss:$8 sm:$0x3]
        %s7049 = scalar_lea.vmem [#allocation4], 16
        %v7050 = vld [vmem:[%s7049] ss:$8 sm:$0x3]
        %s7051 = scalar_lea.vmem [#allocation4], 32
        %v7052 = vld [vmem:[%s7051] ss:$8 sm:$0x3]
        %s7053 = scalar_lea.vmem [#allocation4], 48
        %v7054 = vld [vmem:[%s7053] ss:$8 sm:$0x3]
        %s7055 = scalar_lea.vmem [#allocation4], 64
        %v7056 = vld [vmem:[%s7055] ss:$8 sm:$0x3]
        %s7057 = scalar_lea.vmem [#allocation4], 80
        %v7058 = vld [vmem:[%s7057] ss:$8 sm:$0x3]
        %s7059 = scalar_lea.vmem [#allocation4], 96
        %v7060 = vld [vmem:[%s7059] ss:$8 sm:$0x3]
        %s7061 = scalar_lea.vmem [#allocation4], 112
        %v7062 = vld [vmem:[%s7061] ss:$8 sm:$0x3]
        %s7063 = scalar_lea.vmem [#allocation4], 1
        %v7064 = vld [vmem:[%s7063] ss:$8 sm:$0x3]
        %s7065 = scalar_lea.vmem [#allocation4], 17
        %v7066 = vld [vmem:[%s7065] ss:$8 sm:$0x3]
        %s7067 = scalar_lea.vmem [#allocation4], 33
        %v7068 = vld [vmem:[%s7067] ss:$8 sm:$0x3]
        %s7069 = scalar_lea.vmem [#allocation4], 49
        %v7070 = vld [vmem:[%s7069] ss:$8 sm:$0x3]
        %s7071 = scalar_lea.vmem [#allocation4], 65
        %v7072 = vld [vmem:[%s7071] ss:$8 sm:$0x3]
        %s7073 = scalar_lea.vmem [#allocation4], 81
        %v7074 = vld [vmem:[%s7073] ss:$8 sm:$0x3]
        %s7075 = scalar_lea.vmem [#allocation4], 97
        %v7076 = vld [vmem:[%s7075] ss:$8 sm:$0x3]
        %s7077 = scalar_lea.vmem [#allocation4], 113
        %v7078 = vld [vmem:[%s7077] ss:$8 sm:$0x3]
        %v7079 = vmax.f32 %v7048, %v7064
        %v7080 = vmax.f32 %v7050, %v7066
        %v7081 = vmax.f32 %v7052, %v7068
        %v7082 = vmax.f32 %v7054, %v7070
        %v7083 = vmax.f32 %v7056, %v7072
        %v7084 = vmax.f32 %v7058, %v7074
        %v7085 = vmax.f32 %v7060, %v7076
        %v7086 = vmax.f32 %v7062, %v7078
        %s7087 = scalar_lea.vmem [#allocation4], 2
        %v7088 = vld [vmem:[%s7087] ss:$8 sm:$0x3]
        %s7089 = scalar_lea.vmem [#allocation4], 18
        %v7090 = vld [vmem:[%s7089] ss:$8 sm:$0x3]
        %s7091 = scalar_lea.vmem [#allocation4], 34
        %v7092 = vld [vmem:[%s7091] ss:$8 sm:$0x3]
        %s7093 = scalar_lea.vmem [#allocation4], 50
        %v7094 = vld [vmem:[%s7093] ss:$8 sm:$0x3]
        %s7095 = scalar_lea.vmem [#allocation4], 66
        %v7096 = vld [vmem:[%s7095] ss:$8 sm:$0x3]
        %s7097 = scalar_lea.vmem [#allocation4], 82
        %v7098 = vld [vmem:[%s7097] ss:$8 sm:$0x3]
        %s7099 = scalar_lea.vmem [#allocation4], 98
        %v7100 = vld [vmem:[%s7099] ss:$8 sm:$0x3]
        %s7101 = scalar_lea.vmem [#allocation4], 114
        %v7102 = vld [vmem:[%s7101] ss:$8 sm:$0x3]
        %s7103 = scalar_lea.vmem [#allocation4], 3
        %v7104 = vld [vmem:[%s7103] ss:$8 sm:$0x3]
        %s7105 = scalar_lea.vmem [#allocation4], 19
        %v7106 = vld [vmem:[%s7105] ss:$8 sm:$0x3]
        %s7107 = scalar_lea.vmem [#allocation4], 35
        %v7108 = vld [vmem:[%s7107] ss:$8 sm:$0x3]
        %s7109 = scalar_lea.vmem [#allocation4], 51
        %v7110 = vld [vmem:[%s7109] ss:$8 sm:$0x3]
        %s7111 = scalar_lea.vmem [#allocation4], 67
        %v7112 = vld [vmem:[%s7111] ss:$8 sm:$0x3]
        %s7113 = scalar_lea.vmem [#allocation4], 83
        %v7114 = vld [vmem:[%s7113] ss:$8 sm:$0x3]
        %s7115 = scalar_lea.vmem [#allocation4], 99
        %v7116 = vld [vmem:[%s7115] ss:$8 sm:$0x3]
        %s7117 = scalar_lea.vmem [#allocation4], 115
        %v7118 = vld [vmem:[%s7117] ss:$8 sm:$0x3]
        %v7119 = vmax.f32 %v7088, %v7104
        %v7120 = vmax.f32 %v7090, %v7106
        %v7121 = vmax.f32 %v7092, %v7108
        %v7122 = vmax.f32 %v7094, %v7110
        %v7123 = vmax.f32 %v7096, %v7112
        %v7124 = vmax.f32 %v7098, %v7114
        %v7125 = vmax.f32 %v7100, %v7116
        %v7126 = vmax.f32 %v7102, %v7118
        %s7127 = scalar_lea.vmem [#allocation4], 4
        %v7128 = vld [vmem:[%s7127] ss:$8 sm:$0x3]
        %s7129 = scalar_lea.vmem [#allocation4], 20
        %v7130 = vld [vmem:[%s7129] ss:$8 sm:$0x3]
        %s7131 = scalar_lea.vmem [#allocation4], 36
        %v7132 = vld [vmem:[%s7131] ss:$8 sm:$0x3]
        %s7133 = scalar_lea.vmem [#allocation4], 52
        %v7134 = vld [vmem:[%s7133] ss:$8 sm:$0x3]
        %s7135 = scalar_lea.vmem [#allocation4], 68
        %v7136 = vld [vmem:[%s7135] ss:$8 sm:$0x3]
        %s7137 = scalar_lea.vmem [#allocation4], 84
        %v7138 = vld [vmem:[%s7137] ss:$8 sm:$0x3]
        %s7139 = scalar_lea.vmem [#allocation4], 100
        %v7140 = vld [vmem:[%s7139] ss:$8 sm:$0x3]
        %s7141 = scalar_lea.vmem [#allocation4], 116
        %v7142 = vld [vmem:[%s7141] ss:$8 sm:$0x3]
        %s7143 = scalar_lea.vmem [#allocation4], 5
        %v7144 = vld [vmem:[%s7143] ss:$8 sm:$0x3]
        %s7145 = scalar_lea.vmem [#allocation4], 21
        %v7146 = vld [vmem:[%s7145] ss:$8 sm:$0x3]
        %s7147 = scalar_lea.vmem [#allocation4], 37
        %v7148 = vld [vmem:[%s7147] ss:$8 sm:$0x3]
        %s7149 = scalar_lea.vmem [#allocation4], 53
        %v7150 = vld [vmem:[%s7149] ss:$8 sm:$0x3]
        %s7151 = scalar_lea.vmem [#allocation4], 69
        %v7152 = vld [vmem:[%s7151] ss:$8 sm:$0x3]
        %s7153 = scalar_lea.vmem [#allocation4], 85
        %v7154 = vld [vmem:[%s7153] ss:$8 sm:$0x3]
        %s7155 = scalar_lea.vmem [#allocation4], 101
        %v7156 = vld [vmem:[%s7155] ss:$8 sm:$0x3]
        %s7157 = scalar_lea.vmem [#allocation4], 117
        %v7158 = vld [vmem:[%s7157] ss:$8 sm:$0x3]
        %v7159 = vmax.f32 %v7128, %v7144
        %v7160 = vmax.f32 %v7130, %v7146
        %v7161 = vmax.f32 %v7132, %v7148
        %v7162 = vmax.f32 %v7134, %v7150
        %v7163 = vmax.f32 %v7136, %v7152
        %v7164 = vmax.f32 %v7138, %v7154
        %v7165 = vmax.f32 %v7140, %v7156
        %v7166 = vmax.f32 %v7142, %v7158
        %s7167 = scalar_lea.vmem [#allocation4], 6
        %v7168 = vld [vmem:[%s7167] ss:$8 sm:$0x3]
        %s7169 = scalar_lea.vmem [#allocation4], 22
        %v7170 = vld [vmem:[%s7169] ss:$8 sm:$0x3]
        %s7171 = scalar_lea.vmem [#allocation4], 38
        %v7172 = vld [vmem:[%s7171] ss:$8 sm:$0x3]
        %s7173 = scalar_lea.vmem [#allocation4], 54
        %v7174 = vld [vmem:[%s7173] ss:$8 sm:$0x3]
        %s7175 = scalar_lea.vmem [#allocation4], 70
        %v7176 = vld [vmem:[%s7175] ss:$8 sm:$0x3]
        %s7177 = scalar_lea.vmem [#allocation4], 86
        %v7178 = vld [vmem:[%s7177] ss:$8 sm:$0x3]
        %s7179 = scalar_lea.vmem [#allocation4], 102
        %v7180 = vld [vmem:[%s7179] ss:$8 sm:$0x3]
        %s7181 = scalar_lea.vmem [#allocation4], 118
        %v7182 = vld [vmem:[%s7181] ss:$8 sm:$0x3]
        %s7183 = scalar_lea.vmem [#allocation4], 7
        %v7184 = vld [vmem:[%s7183] ss:$8 sm:$0x3]
        %s7185 = scalar_lea.vmem [#allocation4], 23
        %v7186 = vld [vmem:[%s7185] ss:$8 sm:$0x3]
        %s7187 = scalar_lea.vmem [#allocation4], 39
        %v7188 = vld [vmem:[%s7187] ss:$8 sm:$0x3]
        %s7189 = scalar_lea.vmem [#allocation4], 55
        %v7190 = vld [vmem:[%s7189] ss:$8 sm:$0x3]
        %s7191 = scalar_lea.vmem [#allocation4], 71
        %v7192 = vld [vmem:[%s7191] ss:$8 sm:$0x3]
        %s7193 = scalar_lea.vmem [#allocation4], 87
        %v7194 = vld [vmem:[%s7193] ss:$8 sm:$0x3]
        %s7195 = scalar_lea.vmem [#allocation4], 103
        %v7196 = vld [vmem:[%s7195] ss:$8 sm:$0x3]
        %s7197 = scalar_lea.vmem [#allocation4], 119
        %v7198 = vld [vmem:[%s7197] ss:$8 sm:$0x3]
        %v7199 = vmax.f32 %v7168, %v7184
        %v7200 = vmax.f32 %v7170, %v7186
        %v7201 = vmax.f32 %v7172, %v7188
        %v7202 = vmax.f32 %v7174, %v7190
        %v7203 = vmax.f32 %v7176, %v7192
        %v7204 = vmax.f32 %v7178, %v7194
        %v7205 = vmax.f32 %v7180, %v7196
        %v7206 = vmax.f32 %v7182, %v7198
        %v7215 = vlaneseq
        %v7216 = vshrl.u32 %v7215, 7
        %v7217 = vsub.s32 0, %v7216
        %v7218 = vrot.slane %v7079, %v7217
        %v7219 = vlaneseq
        %v7220 = vshrl.u32 %v7219, 7
        %v7221 = vsub.s32 1, %v7220
        %v7222 = vrot.slane %v7079, %v7221
        %v7223 = vlaneseq
        %v7224 = vshrl.u32 %v7223, 7
        %v7225 = vsub.s32 0, %v7224
        %v7226 = vrot.slane %v7080, %v7225
        %v7227 = vlaneseq
        %v7228 = vshrl.u32 %v7227, 7
        %v7229 = vsub.s32 1, %v7228
        %v7230 = vrot.slane %v7080, %v7229
        %v7231 = vlaneseq
        %v7232 = vshrl.u32 %v7231, 7
        %v7233 = vsub.s32 0, %v7232
        %v7234 = vrot.slane %v7081, %v7233
        %v7235 = vlaneseq
        %v7236 = vshrl.u32 %v7235, 7
        %v7237 = vsub.s32 1, %v7236
        %v7238 = vrot.slane %v7081, %v7237
        %v7239 = vlaneseq
        %v7240 = vshrl.u32 %v7239, 7
        %v7241 = vsub.s32 0, %v7240
        %v7242 = vrot.slane %v7082, %v7241
        %v7243 = vlaneseq
        %v7244 = vshrl.u32 %v7243, 7
        %v7245 = vsub.s32 1, %v7244
        %v7246 = vrot.slane %v7082, %v7245
        %v7247 = vlaneseq
        %v7248 = vshrl.u32 %v7247, 7
        %v7249 = vsub.s32 0, %v7248
        %v7250 = vrot.slane %v7083, %v7249
        %v7251 = vlaneseq
        %v7252 = vshrl.u32 %v7251, 7
        %v7253 = vsub.s32 1, %v7252
        %v7254 = vrot.slane %v7083, %v7253
        %v7255 = vlaneseq
        %v7256 = vshrl.u32 %v7255, 7
        %v7257 = vsub.s32 0, %v7256
        %v7258 = vrot.slane %v7084, %v7257
        %v7259 = vlaneseq
        %v7260 = vshrl.u32 %v7259, 7
        %v7261 = vsub.s32 1, %v7260
        %v7262 = vrot.slane %v7084, %v7261
        %v7263 = vlaneseq
        %v7264 = vshrl.u32 %v7263, 7
        %v7265 = vsub.s32 0, %v7264
        %v7266 = vrot.slane %v7085, %v7265
        %v7267 = vlaneseq
        %v7268 = vshrl.u32 %v7267, 7
        %v7269 = vsub.s32 1, %v7268
        %v7270 = vrot.slane %v7085, %v7269
        %v7271 = vlaneseq
        %v7272 = vshrl.u32 %v7271, 7
        %v7273 = vsub.s32 0, %v7272
        %v7274 = vrot.slane %v7086, %v7273
        %v7275 = vlaneseq
        %v7276 = vshrl.u32 %v7275, 7
        %v7277 = vsub.s32 1, %v7276
        %v7278 = vrot.slane %v7086, %v7277
        %v7287 = vlaneseq
        %v7288 = vshrl.u32 %v7287, 7
        %v7289 = vsub.s32 0, %v7288
        %v7290 = vrot.slane %v7119, %v7289
        %v7291 = vlaneseq
        %v7292 = vshrl.u32 %v7291, 7
        %v7293 = vsub.s32 1, %v7292
        %v7294 = vrot.slane %v7119, %v7293
        %v7295 = vlaneseq
        %v7296 = vshrl.u32 %v7295, 7
        %v7297 = vsub.s32 0, %v7296
        %v7298 = vrot.slane %v7120, %v7297
        %v7299 = vlaneseq
        %v7300 = vshrl.u32 %v7299, 7
        %v7301 = vsub.s32 1, %v7300
        %v7302 = vrot.slane %v7120, %v7301
        %v7303 = vlaneseq
        %v7304 = vshrl.u32 %v7303, 7
        %v7305 = vsub.s32 0, %v7304
        %v7306 = vrot.slane %v7121, %v7305
        %v7307 = vlaneseq
        %v7308 = vshrl.u32 %v7307, 7
        %v7309 = vsub.s32 1, %v7308
        %v7310 = vrot.slane %v7121, %v7309
        %v7311 = vlaneseq
        %v7312 = vshrl.u32 %v7311, 7
        %v7313 = vsub.s32 0, %v7312
        %v7314 = vrot.slane %v7122, %v7313
        %v7315 = vlaneseq
        %v7316 = vshrl.u32 %v7315, 7
        %v7317 = vsub.s32 1, %v7316
        %v7318 = vrot.slane %v7122, %v7317
        %v7319 = vlaneseq
        %v7320 = vshrl.u32 %v7319, 7
        %v7321 = vsub.s32 0, %v7320
        %v7322 = vrot.slane %v7123, %v7321
        %v7323 = vlaneseq
        %v7324 = vshrl.u32 %v7323, 7
        %v7325 = vsub.s32 1, %v7324
        %v7326 = vrot.slane %v7123, %v7325
        %v7327 = vlaneseq
        %v7328 = vshrl.u32 %v7327, 7
        %v7329 = vsub.s32 0, %v7328
        %v7330 = vrot.slane %v7124, %v7329
        %v7331 = vlaneseq
        %v7332 = vshrl.u32 %v7331, 7
        %v7333 = vsub.s32 1, %v7332
        %v7334 = vrot.slane %v7124, %v7333
        %v7335 = vlaneseq
        %v7336 = vshrl.u32 %v7335, 7
        %v7337 = vsub.s32 0, %v7336
        %v7338 = vrot.slane %v7125, %v7337
        %v7339 = vlaneseq
        %v7340 = vshrl.u32 %v7339, 7
        %v7341 = vsub.s32 1, %v7340
        %v7342 = vrot.slane %v7125, %v7341
        %v7343 = vlaneseq
        %v7344 = vshrl.u32 %v7343, 7
        %v7345 = vsub.s32 0, %v7344
        %v7346 = vrot.slane %v7126, %v7345
        %v7347 = vlaneseq
        %v7348 = vshrl.u32 %v7347, 7
        %v7349 = vsub.s32 1, %v7348
        %v7350 = vrot.slane %v7126, %v7349
        %v7359 = vlaneseq
        %v7360 = vshrl.u32 %v7359, 7
        %v7361 = vsub.s32 0, %v7360
        %v7362 = vrot.slane %v7159, %v7361
        %v7363 = vlaneseq
        %v7364 = vshrl.u32 %v7363, 7
        %v7365 = vsub.s32 1, %v7364
        %v7366 = vrot.slane %v7159, %v7365
        %v7367 = vlaneseq
        %v7368 = vshrl.u32 %v7367, 7
        %v7369 = vsub.s32 0, %v7368
        %v7370 = vrot.slane %v7160, %v7369
        %v7371 = vlaneseq
        %v7372 = vshrl.u32 %v7371, 7
        %v7373 = vsub.s32 1, %v7372
        %v7374 = vrot.slane %v7160, %v7373
        %v7375 = vlaneseq
        %v7376 = vshrl.u32 %v7375, 7
        %v7377 = vsub.s32 0, %v7376
        %v7378 = vrot.slane %v7161, %v7377
        %v7379 = vlaneseq
        %v7380 = vshrl.u32 %v7379, 7
        %v7381 = vsub.s32 1, %v7380
        %v7382 = vrot.slane %v7161, %v7381
        %v7383 = vlaneseq
        %v7384 = vshrl.u32 %v7383, 7
        %v7385 = vsub.s32 0, %v7384
        %v7386 = vrot.slane %v7162, %v7385
        %v7387 = vlaneseq
        %v7388 = vshrl.u32 %v7387, 7
        %v7389 = vsub.s32 1, %v7388
        %v7390 = vrot.slane %v7162, %v7389
        %v7391 = vlaneseq
        %v7392 = vshrl.u32 %v7391, 7
        %v7393 = vsub.s32 0, %v7392
        %v7394 = vrot.slane %v7163, %v7393
        %v7395 = vlaneseq
        %v7396 = vshrl.u32 %v7395, 7
        %v7397 = vsub.s32 1, %v7396
        %v7398 = vrot.slane %v7163, %v7397
        %v7399 = vlaneseq
        %v7400 = vshrl.u32 %v7399, 7
        %v7401 = vsub.s32 0, %v7400
        %v7402 = vrot.slane %v7164, %v7401
        %v7403 = vlaneseq
        %v7404 = vshrl.u32 %v7403, 7
        %v7405 = vsub.s32 1, %v7404
        %v7406 = vrot.slane %v7164, %v7405
        %v7407 = vlaneseq
        %v7408 = vshrl.u32 %v7407, 7
        %v7409 = vsub.s32 0, %v7408
        %v7410 = vrot.slane %v7165, %v7409
        %v7411 = vlaneseq
        %v7412 = vshrl.u32 %v7411, 7
        %v7413 = vsub.s32 1, %v7412
        %v7414 = vrot.slane %v7165, %v7413
        %v7415 = vlaneseq
        %v7416 = vshrl.u32 %v7415, 7
        %v7417 = vsub.s32 0, %v7416
        %v7418 = vrot.slane %v7166, %v7417
        %v7419 = vlaneseq
        %v7420 = vshrl.u32 %v7419, 7
        %v7421 = vsub.s32 1, %v7420
        %v7422 = vrot.slane %v7166, %v7421
        %v7431 = vlaneseq
        %v7432 = vshrl.u32 %v7431, 7
        %v7433 = vsub.s32 0, %v7432
        %v7434 = vrot.slane %v7199, %v7433
        %v7435 = vlaneseq
        %v7436 = vshrl.u32 %v7435, 7
        %v7437 = vsub.s32 1, %v7436
        %v7438 = vrot.slane %v7199, %v7437
        %v7439 = vlaneseq
        %v7440 = vshrl.u32 %v7439, 7
        %v7441 = vsub.s32 0, %v7440
        %v7442 = vrot.slane %v7200, %v7441
        %v7443 = vlaneseq
        %v7444 = vshrl.u32 %v7443, 7
        %v7445 = vsub.s32 1, %v7444
        %v7446 = vrot.slane %v7200, %v7445
        %v7447 = vlaneseq
        %v7448 = vshrl.u32 %v7447, 7
        %v7449 = vsub.s32 0, %v7448
        %v7450 = vrot.slane %v7201, %v7449
        %v7451 = vlaneseq
        %v7452 = vshrl.u32 %v7451, 7
        %v7453 = vsub.s32 1, %v7452
        %v7454 = vrot.slane %v7201, %v7453
        %v7455 = vlaneseq
        %v7456 = vshrl.u32 %v7455, 7
        %v7457 = vsub.s32 0, %v7456
        %v7458 = vrot.slane %v7202, %v7457
        %v7459 = vlaneseq
        %v7460 = vshrl.u32 %v7459, 7
        %v7461 = vsub.s32 1, %v7460
        %v7462 = vrot.slane %v7202, %v7461
        %v7463 = vlaneseq
        %v7464 = vshrl.u32 %v7463, 7
        %v7465 = vsub.s32 0, %v7464
        %v7466 = vrot.slane %v7203, %v7465
        %v7467 = vlaneseq
        %v7468 = vshrl.u32 %v7467, 7
        %v7469 = vsub.s32 1, %v7468
        %v7470 = vrot.slane %v7203, %v7469
        %v7471 = vlaneseq
        %v7472 = vshrl.u32 %v7471, 7
        %v7473 = vsub.s32 0, %v7472
        %v7474 = vrot.slane %v7204, %v7473
        %v7475 = vlaneseq
        %v7476 = vshrl.u32 %v7475, 7
        %v7477 = vsub.s32 1, %v7476
        %v7478 = vrot.slane %v7204, %v7477
        %v7479 = vlaneseq
        %v7480 = vshrl.u32 %v7479, 7
        %v7481 = vsub.s32 0, %v7480
        %v7482 = vrot.slane %v7205, %v7481
        %v7483 = vlaneseq
        %v7484 = vshrl.u32 %v7483, 7
        %v7485 = vsub.s32 1, %v7484
        %v7486 = vrot.slane %v7205, %v7485
        %v7487 = vlaneseq
        %v7488 = vshrl.u32 %v7487, 7
        %v7489 = vsub.s32 0, %v7488
        %v7490 = vrot.slane %v7206, %v7489
        %v7491 = vlaneseq
        %v7492 = vshrl.u32 %v7491, 7
        %v7493 = vsub.s32 1, %v7492
        %v7494 = vrot.slane %v7206, %v7493
        %v7495 = vld [vmem:[#allocation13] sm:$0xff]
        %v7496 = vld [vmem:[#allocation13 + $0x8] sm:$0xff]
        %v7497 = vld [vmem:[#allocation13 + $0x10] sm:$0xff]
        %v7498 = vld [vmem:[#allocation13 + $0x18] sm:$0xff]
        %v7499 = vld [vmem:[#allocation13 + $0x20] sm:$0xff]
        %v7500 = vld [vmem:[#allocation13 + $0x28] sm:$0xff]
        %v7501 = vld [vmem:[#allocation13 + $0x30] sm:$0xff]
        %v7502 = vld [vmem:[#allocation13 + $0x38] sm:$0xff]
        %v7503 = vld [vmem:[#allocation13 + $0x40] sm:$0xff]
        %v7504 = vld [vmem:[#allocation13 + $0x48] sm:$0xff]
        %v7505 = vld [vmem:[#allocation13 + $0x50] sm:$0xff]
        %v7506 = vld [vmem:[#allocation13 + $0x58] sm:$0xff]
        %v7507 = vld [vmem:[#allocation13 + $0x60] sm:$0xff]
        %v7508 = vld [vmem:[#allocation13 + $0x68] sm:$0xff]
        %v7509 = vld [vmem:[#allocation13 + $0x70] sm:$0xff]
        %v7510 = vld [vmem:[#allocation13 + $0x78] sm:$0xff]
        %v7511 = vld [vmem:[#allocation13 + $0x80] sm:$0xff]
        %v7512 = vld [vmem:[#allocation13 + $0x88] sm:$0xff]
        %v7513 = vld [vmem:[#allocation13 + $0x90] sm:$0xff]
        %v7514 = vld [vmem:[#allocation13 + $0x98] sm:$0xff]
        %v7515 = vld [vmem:[#allocation13 + $0xa0] sm:$0xff]
        %v7516 = vld [vmem:[#allocation13 + $0xa8] sm:$0xff]
        %v7517 = vld [vmem:[#allocation13 + $0xb0] sm:$0xff]
        %v7518 = vld [vmem:[#allocation13 + $0xb8] sm:$0xff]
        %v7519 = vld [vmem:[#allocation13 + $0xc0] sm:$0xff]
        %v7520 = vld [vmem:[#allocation13 + $0xc8] sm:$0xff]
        %v7521 = vld [vmem:[#allocation13 + $0xd0] sm:$0xff]
        %v7522 = vld [vmem:[#allocation13 + $0xd8] sm:$0xff]
        %v7523 = vld [vmem:[#allocation13 + $0xe0] sm:$0xff]
        %v7524 = vld [vmem:[#allocation13 + $0xe8] sm:$0xff]
        %v7525 = vld [vmem:[#allocation13 + $0xf0] sm:$0xff]
        %v7526 = vld [vmem:[#allocation13 + $0xf8] sm:$0xff]
        %v7527 = vld [vmem:[#allocation13 + $0x100] sm:$0xff]
        %v7528 = vld [vmem:[#allocation13 + $0x108] sm:$0xff]
        %v7529 = vld [vmem:[#allocation13 + $0x110] sm:$0xff]
        %v7530 = vld [vmem:[#allocation13 + $0x118] sm:$0xff]
        %v7531 = vld [vmem:[#allocation13 + $0x120] sm:$0xff]
        %v7532 = vld [vmem:[#allocation13 + $0x128] sm:$0xff]
        %v7533 = vld [vmem:[#allocation13 + $0x130] sm:$0xff]
        %v7534 = vld [vmem:[#allocation13 + $0x138] sm:$0xff]
        %v7535 = vld [vmem:[#allocation13 + $0x140] sm:$0xff]
        %v7536 = vld [vmem:[#allocation13 + $0x148] sm:$0xff]
        %v7537 = vld [vmem:[#allocation13 + $0x150] sm:$0xff]
        %v7538 = vld [vmem:[#allocation13 + $0x158] sm:$0xff]
        %v7539 = vld [vmem:[#allocation13 + $0x160] sm:$0xff]
        %v7540 = vld [vmem:[#allocation13 + $0x168] sm:$0xff]
        %v7541 = vld [vmem:[#allocation13 + $0x170] sm:$0xff]
        %v7542 = vld [vmem:[#allocation13 + $0x178] sm:$0xff]
        %v7543 = vld [vmem:[#allocation13 + $0x180] sm:$0xff]
        %v7544 = vld [vmem:[#allocation13 + $0x188] sm:$0xff]
        %v7545 = vld [vmem:[#allocation13 + $0x190] sm:$0xff]
        %v7546 = vld [vmem:[#allocation13 + $0x198] sm:$0xff]
        %v7547 = vld [vmem:[#allocation13 + $0x1a0] sm:$0xff]
        %v7548 = vld [vmem:[#allocation13 + $0x1a8] sm:$0xff]
        %v7549 = vld [vmem:[#allocation13 + $0x1b0] sm:$0xff]
        %v7550 = vld [vmem:[#allocation13 + $0x1b8] sm:$0xff]
        %v7551 = vld [vmem:[#allocation13 + $0x1c0] sm:$0xff]
        %v7552 = vld [vmem:[#allocation13 + $0x1c8] sm:$0xff]
        %v7553 = vld [vmem:[#allocation13 + $0x1d0] sm:$0xff]
        %v7554 = vld [vmem:[#allocation13 + $0x1d8] sm:$0xff]
        %v7555 = vld [vmem:[#allocation13 + $0x1e0] sm:$0xff]
        %v7556 = vld [vmem:[#allocation13 + $0x1e8] sm:$0xff]
        %v7557 = vld [vmem:[#allocation13 + $0x1f0] sm:$0xff]
        %v7558 = vld [vmem:[#allocation13 + $0x1f8] sm:$0xff]
        %v7559 = vld [vmem:[#allocation13 + $0x200] sm:$0xff]
        %v7560 = vld [vmem:[#allocation13 + $0x208] sm:$0xff]
        %v7561 = vld [vmem:[#allocation13 + $0x210] sm:$0xff]
        %v7562 = vld [vmem:[#allocation13 + $0x218] sm:$0xff]
        %v7563 = vld [vmem:[#allocation13 + $0x220] sm:$0xff]
        %v7564 = vld [vmem:[#allocation13 + $0x228] sm:$0xff]
        %v7565 = vld [vmem:[#allocation13 + $0x230] sm:$0xff]
        %v7566 = vld [vmem:[#allocation13 + $0x238] sm:$0xff]
        %v7567 = vld [vmem:[#allocation13 + $0x240] sm:$0xff]
        %v7568 = vld [vmem:[#allocation13 + $0x248] sm:$0xff]
        %v7569 = vld [vmem:[#allocation13 + $0x250] sm:$0xff]
        %v7570 = vld [vmem:[#allocation13 + $0x258] sm:$0xff]
        %v7571 = vld [vmem:[#allocation13 + $0x260] sm:$0xff]
        %v7572 = vld [vmem:[#allocation13 + $0x268] sm:$0xff]
        %v7573 = vld [vmem:[#allocation13 + $0x270] sm:$0xff]
        %v7574 = vld [vmem:[#allocation13 + $0x278] sm:$0xff]
        %v7575 = vld [vmem:[#allocation13 + $0x280] sm:$0xff]
        %v7576 = vld [vmem:[#allocation13 + $0x288] sm:$0xff]
        %v7577 = vld [vmem:[#allocation13 + $0x290] sm:$0xff]
        %v7578 = vld [vmem:[#allocation13 + $0x298] sm:$0xff]
        %v7579 = vld [vmem:[#allocation13 + $0x2a0] sm:$0xff]
        %v7580 = vld [vmem:[#allocation13 + $0x2a8] sm:$0xff]
        %v7581 = vld [vmem:[#allocation13 + $0x2b0] sm:$0xff]
        %v7582 = vld [vmem:[#allocation13 + $0x2b8] sm:$0xff]
        %v7583 = vld [vmem:[#allocation13 + $0x2c0] sm:$0xff]
        %v7584 = vld [vmem:[#allocation13 + $0x2c8] sm:$0xff]
        %v7585 = vld [vmem:[#allocation13 + $0x2d0] sm:$0xff]
        %v7586 = vld [vmem:[#allocation13 + $0x2d8] sm:$0xff]
        %v7587 = vld [vmem:[#allocation13 + $0x2e0] sm:$0xff]
        %v7588 = vld [vmem:[#allocation13 + $0x2e8] sm:$0xff]
        %v7589 = vld [vmem:[#allocation13 + $0x2f0] sm:$0xff]
        %v7590 = vld [vmem:[#allocation13 + $0x2f8] sm:$0xff]
        %v7591 = vld [vmem:[#allocation13 + $0x300] sm:$0xff]
        %v7592 = vld [vmem:[#allocation13 + $0x308] sm:$0xff]
        %v7593 = vld [vmem:[#allocation13 + $0x310] sm:$0xff]
        %v7594 = vld [vmem:[#allocation13 + $0x318] sm:$0xff]
        %v7595 = vld [vmem:[#allocation13 + $0x320] sm:$0xff]
        %v7596 = vld [vmem:[#allocation13 + $0x328] sm:$0xff]
        %v7597 = vld [vmem:[#allocation13 + $0x330] sm:$0xff]
        %v7598 = vld [vmem:[#allocation13 + $0x338] sm:$0xff]
        %v7599 = vld [vmem:[#allocation13 + $0x340] sm:$0xff]
        %v7600 = vld [vmem:[#allocation13 + $0x348] sm:$0xff]
        %v7601 = vld [vmem:[#allocation13 + $0x350] sm:$0xff]
        %v7602 = vld [vmem:[#allocation13 + $0x358] sm:$0xff]
        %v7603 = vld [vmem:[#allocation13 + $0x360] sm:$0xff]
        %v7604 = vld [vmem:[#allocation13 + $0x368] sm:$0xff]
        %v7605 = vld [vmem:[#allocation13 + $0x370] sm:$0xff]
        %v7606 = vld [vmem:[#allocation13 + $0x378] sm:$0xff]
        %v7607 = vld [vmem:[#allocation13 + $0x380] sm:$0xff]
        %v7608 = vld [vmem:[#allocation13 + $0x388] sm:$0xff]
        %v7609 = vld [vmem:[#allocation13 + $0x390] sm:$0xff]
        %v7610 = vld [vmem:[#allocation13 + $0x398] sm:$0xff]
        %v7611 = vld [vmem:[#allocation13 + $0x3a0] sm:$0xff]
        %v7612 = vld [vmem:[#allocation13 + $0x3a8] sm:$0xff]
        %v7613 = vld [vmem:[#allocation13 + $0x3b0] sm:$0xff]
        %v7614 = vld [vmem:[#allocation13 + $0x3b8] sm:$0xff]
        %v7615 = vld [vmem:[#allocation13 + $0x3c0] sm:$0xff]
        %v7616 = vld [vmem:[#allocation13 + $0x3c8] sm:$0xff]
        %v7617 = vld [vmem:[#allocation13 + $0x3d0] sm:$0xff]
        %v7618 = vld [vmem:[#allocation13 + $0x3d8] sm:$0xff]
        %v7619 = vld [vmem:[#allocation13 + $0x3e0] sm:$0xff]
        %v7620 = vld [vmem:[#allocation13 + $0x3e8] sm:$0xff]
        %v7621 = vld [vmem:[#allocation13 + $0x3f0] sm:$0xff]
        %v7622 = vld [vmem:[#allocation13 + $0x3f8] sm:$0xff]
        %v7623 = vld [vmem:[#allocation13 + $0x400] sm:$0xff]
        %v7624 = vld [vmem:[#allocation13 + $0x408] sm:$0xff]
        %v7625 = vld [vmem:[#allocation13 + $0x410] sm:$0xff]
        %v7626 = vld [vmem:[#allocation13 + $0x418] sm:$0xff]
        %v7627 = vld [vmem:[#allocation13 + $0x420] sm:$0xff]
        %v7628 = vld [vmem:[#allocation13 + $0x428] sm:$0xff]
        %v7629 = vld [vmem:[#allocation13 + $0x430] sm:$0xff]
        %v7630 = vld [vmem:[#allocation13 + $0x438] sm:$0xff]
        %v7631 = vld [vmem:[#allocation13 + $0x440] sm:$0xff]
        %v7632 = vld [vmem:[#allocation13 + $0x448] sm:$0xff]
        %v7633 = vld [vmem:[#allocation13 + $0x450] sm:$0xff]
        %v7634 = vld [vmem:[#allocation13 + $0x458] sm:$0xff]
        %v7635 = vld [vmem:[#allocation13 + $0x460] sm:$0xff]
        %v7636 = vld [vmem:[#allocation13 + $0x468] sm:$0xff]
        %v7637 = vld [vmem:[#allocation13 + $0x470] sm:$0xff]
        %v7638 = vld [vmem:[#allocation13 + $0x478] sm:$0xff]
        %v7639 = vld [vmem:[#allocation13 + $0x480] sm:$0xff]
        %v7640 = vld [vmem:[#allocation13 + $0x488] sm:$0xff]
        %v7641 = vld [vmem:[#allocation13 + $0x490] sm:$0xff]
        %v7642 = vld [vmem:[#allocation13 + $0x498] sm:$0xff]
        %v7643 = vld [vmem:[#allocation13 + $0x4a0] sm:$0xff]
        %v7644 = vld [vmem:[#allocation13 + $0x4a8] sm:$0xff]
        %v7645 = vld [vmem:[#allocation13 + $0x4b0] sm:$0xff]
        %v7646 = vld [vmem:[#allocation13 + $0x4b8] sm:$0xff]
        %v7647 = vld [vmem:[#allocation13 + $0x4c0] sm:$0xff]
        %v7648 = vld [vmem:[#allocation13 + $0x4c8] sm:$0xff]
        %v7649 = vld [vmem:[#allocation13 + $0x4d0] sm:$0xff]
        %v7650 = vld [vmem:[#allocation13 + $0x4d8] sm:$0xff]
        %v7651 = vld [vmem:[#allocation13 + $0x4e0] sm:$0xff]
        %v7652 = vld [vmem:[#allocation13 + $0x4e8] sm:$0xff]
        %v7653 = vld [vmem:[#allocation13 + $0x4f0] sm:$0xff]
        %v7654 = vld [vmem:[#allocation13 + $0x4f8] sm:$0xff]
        %v7655 = vld [vmem:[#allocation13 + $0x500] sm:$0xff]
        %v7656 = vld [vmem:[#allocation13 + $0x508] sm:$0xff]
        %v7657 = vld [vmem:[#allocation13 + $0x510] sm:$0xff]
        %v7658 = vld [vmem:[#allocation13 + $0x518] sm:$0xff]
        %v7659 = vld [vmem:[#allocation13 + $0x520] sm:$0xff]
        %v7660 = vld [vmem:[#allocation13 + $0x528] sm:$0xff]
        %v7661 = vld [vmem:[#allocation13 + $0x530] sm:$0xff]
        %v7662 = vld [vmem:[#allocation13 + $0x538] sm:$0xff]
        %v7663 = vld [vmem:[#allocation13 + $0x540] sm:$0xff]
        %v7664 = vld [vmem:[#allocation13 + $0x548] sm:$0xff]
        %v7665 = vld [vmem:[#allocation13 + $0x550] sm:$0xff]
        %v7666 = vld [vmem:[#allocation13 + $0x558] sm:$0xff]
        %v7667 = vld [vmem:[#allocation13 + $0x560] sm:$0xff]
        %v7668 = vld [vmem:[#allocation13 + $0x568] sm:$0xff]
        %v7669 = vld [vmem:[#allocation13 + $0x570] sm:$0xff]
        %v7670 = vld [vmem:[#allocation13 + $0x578] sm:$0xff]
        %v7671 = vld [vmem:[#allocation13 + $0x580] sm:$0xff]
        %v7672 = vld [vmem:[#allocation13 + $0x588] sm:$0xff]
        %v7673 = vld [vmem:[#allocation13 + $0x590] sm:$0xff]
        %v7674 = vld [vmem:[#allocation13 + $0x598] sm:$0xff]
        %v7675 = vld [vmem:[#allocation13 + $0x5a0] sm:$0xff]
        %v7676 = vld [vmem:[#allocation13 + $0x5a8] sm:$0xff]
        %v7677 = vld [vmem:[#allocation13 + $0x5b0] sm:$0xff]
        %v7678 = vld [vmem:[#allocation13 + $0x5b8] sm:$0xff]
        %v7679 = vld [vmem:[#allocation13 + $0x5c0] sm:$0xff]
        %v7680 = vld [vmem:[#allocation13 + $0x5c8] sm:$0xff]
        %v7681 = vld [vmem:[#allocation13 + $0x5d0] sm:$0xff]
        %v7682 = vld [vmem:[#allocation13 + $0x5d8] sm:$0xff]
        %v7683 = vld [vmem:[#allocation13 + $0x5e0] sm:$0xff]
        %v7684 = vld [vmem:[#allocation13 + $0x5e8] sm:$0xff]
        %v7685 = vld [vmem:[#allocation13 + $0x5f0] sm:$0xff]
        %v7686 = vld [vmem:[#allocation13 + $0x5f8] sm:$0xff]
        %v7687 = vld [vmem:[#allocation13 + $0x600] sm:$0xff]
        %v7688 = vld [vmem:[#allocation13 + $0x608] sm:$0xff]
        %v7689 = vld [vmem:[#allocation13 + $0x610] sm:$0xff]
        %v7690 = vld [vmem:[#allocation13 + $0x618] sm:$0xff]
        %v7691 = vld [vmem:[#allocation13 + $0x620] sm:$0xff]
        %v7692 = vld [vmem:[#allocation13 + $0x628] sm:$0xff]
        %v7693 = vld [vmem:[#allocation13 + $0x630] sm:$0xff]
        %v7694 = vld [vmem:[#allocation13 + $0x638] sm:$0xff]
        %v7695 = vld [vmem:[#allocation13 + $0x640] sm:$0xff]
        %v7696 = vld [vmem:[#allocation13 + $0x648] sm:$0xff]
        %v7697 = vld [vmem:[#allocation13 + $0x650] sm:$0xff]
        %v7698 = vld [vmem:[#allocation13 + $0x658] sm:$0xff]
        %v7699 = vld [vmem:[#allocation13 + $0x660] sm:$0xff]
        %v7700 = vld [vmem:[#allocation13 + $0x668] sm:$0xff]
        %v7701 = vld [vmem:[#allocation13 + $0x670] sm:$0xff]
        %v7702 = vld [vmem:[#allocation13 + $0x678] sm:$0xff]
        %v7703 = vld [vmem:[#allocation13 + $0x680] sm:$0xff]
        %v7704 = vld [vmem:[#allocation13 + $0x688] sm:$0xff]
        %v7705 = vld [vmem:[#allocation13 + $0x690] sm:$0xff]
        %v7706 = vld [vmem:[#allocation13 + $0x698] sm:$0xff]
        %v7707 = vld [vmem:[#allocation13 + $0x6a0] sm:$0xff]
        %v7708 = vld [vmem:[#allocation13 + $0x6a8] sm:$0xff]
        %v7709 = vld [vmem:[#allocation13 + $0x6b0] sm:$0xff]
        %v7710 = vld [vmem:[#allocation13 + $0x6b8] sm:$0xff]
        %v7711 = vld [vmem:[#allocation13 + $0x6c0] sm:$0xff]
        %v7712 = vld [vmem:[#allocation13 + $0x6c8] sm:$0xff]
        %v7713 = vld [vmem:[#allocation13 + $0x6d0] sm:$0xff]
        %v7714 = vld [vmem:[#allocation13 + $0x6d8] sm:$0xff]
        %v7715 = vld [vmem:[#allocation13 + $0x6e0] sm:$0xff]
        %v7716 = vld [vmem:[#allocation13 + $0x6e8] sm:$0xff]
        %v7717 = vld [vmem:[#allocation13 + $0x6f0] sm:$0xff]
        %v7718 = vld [vmem:[#allocation13 + $0x6f8] sm:$0xff]
        %v7719 = vld [vmem:[#allocation13 + $0x700] sm:$0xff]
        %v7720 = vld [vmem:[#allocation13 + $0x708] sm:$0xff]
        %v7721 = vld [vmem:[#allocation13 + $0x710] sm:$0xff]
        %v7722 = vld [vmem:[#allocation13 + $0x718] sm:$0xff]
        %v7723 = vld [vmem:[#allocation13 + $0x720] sm:$0xff]
        %v7724 = vld [vmem:[#allocation13 + $0x728] sm:$0xff]
        %v7725 = vld [vmem:[#allocation13 + $0x730] sm:$0xff]
        %v7726 = vld [vmem:[#allocation13 + $0x738] sm:$0xff]
        %v7727 = vld [vmem:[#allocation13 + $0x740] sm:$0xff]
        %v7728 = vld [vmem:[#allocation13 + $0x748] sm:$0xff]
        %v7729 = vld [vmem:[#allocation13 + $0x750] sm:$0xff]
        %v7730 = vld [vmem:[#allocation13 + $0x758] sm:$0xff]
        %v7731 = vld [vmem:[#allocation13 + $0x760] sm:$0xff]
        %v7732 = vld [vmem:[#allocation13 + $0x768] sm:$0xff]
        %v7733 = vld [vmem:[#allocation13 + $0x770] sm:$0xff]
        %v7734 = vld [vmem:[#allocation13 + $0x778] sm:$0xff]
        %v7735 = vld [vmem:[#allocation13 + $0x780] sm:$0xff]
        %v7736 = vld [vmem:[#allocation13 + $0x788] sm:$0xff]
        %v7737 = vld [vmem:[#allocation13 + $0x790] sm:$0xff]
        %v7738 = vld [vmem:[#allocation13 + $0x798] sm:$0xff]
        %v7739 = vld [vmem:[#allocation13 + $0x7a0] sm:$0xff]
        %v7740 = vld [vmem:[#allocation13 + $0x7a8] sm:$0xff]
        %v7741 = vld [vmem:[#allocation13 + $0x7b0] sm:$0xff]
        %v7742 = vld [vmem:[#allocation13 + $0x7b8] sm:$0xff]
        %v7743 = vld [vmem:[#allocation13 + $0x7c0] sm:$0xff]
        %v7744 = vld [vmem:[#allocation13 + $0x7c8] sm:$0xff]
        %v7745 = vld [vmem:[#allocation13 + $0x7d0] sm:$0xff]
        %v7746 = vld [vmem:[#allocation13 + $0x7d8] sm:$0xff]
        %v7747 = vld [vmem:[#allocation13 + $0x7e0] sm:$0xff]
        %v7748 = vld [vmem:[#allocation13 + $0x7e8] sm:$0xff]
        %v7749 = vld [vmem:[#allocation13 + $0x7f0] sm:$0xff]
        %v7750 = vld [vmem:[#allocation13 + $0x7f8] sm:$0xff]
        %v7751 = vld [vmem:[#allocation13 + $0x800] sm:$0xff]
        %v7752 = vld [vmem:[#allocation13 + $0x808] sm:$0xff]
        %v7753 = vld [vmem:[#allocation13 + $0x810] sm:$0xff]
        %v7754 = vld [vmem:[#allocation13 + $0x818] sm:$0xff]
        %v7755 = vld [vmem:[#allocation13 + $0x820] sm:$0xff]
        %v7756 = vld [vmem:[#allocation13 + $0x828] sm:$0xff]
        %v7757 = vld [vmem:[#allocation13 + $0x830] sm:$0xff]
        %v7758 = vld [vmem:[#allocation13 + $0x838] sm:$0xff]
        %v7759 = vld [vmem:[#allocation13 + $0x840] sm:$0xff]
        %v7760 = vld [vmem:[#allocation13 + $0x848] sm:$0xff]
        %v7761 = vld [vmem:[#allocation13 + $0x850] sm:$0xff]
        %v7762 = vld [vmem:[#allocation13 + $0x858] sm:$0xff]
        %v7763 = vld [vmem:[#allocation13 + $0x860] sm:$0xff]
        %v7764 = vld [vmem:[#allocation13 + $0x868] sm:$0xff]
        %v7765 = vld [vmem:[#allocation13 + $0x870] sm:$0xff]
        %v7766 = vld [vmem:[#allocation13 + $0x878] sm:$0xff]
        %v7767 = vld [vmem:[#allocation13 + $0x880] sm:$0xff]
        %v7768 = vld [vmem:[#allocation13 + $0x888] sm:$0xff]
        %v7769 = vld [vmem:[#allocation13 + $0x890] sm:$0xff]
        %v7770 = vld [vmem:[#allocation13 + $0x898] sm:$0xff]
        %v7771 = vld [vmem:[#allocation13 + $0x8a0] sm:$0xff]
        %v7772 = vld [vmem:[#allocation13 + $0x8a8] sm:$0xff]
        %v7773 = vld [vmem:[#allocation13 + $0x8b0] sm:$0xff]
        %v7774 = vld [vmem:[#allocation13 + $0x8b8] sm:$0xff]
        %v7775 = vld [vmem:[#allocation13 + $0x8c0] sm:$0xff]
        %v7776 = vld [vmem:[#allocation13 + $0x8c8] sm:$0xff]
        %v7777 = vld [vmem:[#allocation13 + $0x8d0] sm:$0xff]
        %v7778 = vld [vmem:[#allocation13 + $0x8d8] sm:$0xff]
        %v7779 = vld [vmem:[#allocation13 + $0x8e0] sm:$0xff]
        %v7780 = vld [vmem:[#allocation13 + $0x8e8] sm:$0xff]
        %v7781 = vld [vmem:[#allocation13 + $0x8f0] sm:$0xff]
        %v7782 = vld [vmem:[#allocation13 + $0x8f8] sm:$0xff]
        %v7783 = vld [vmem:[#allocation13 + $0x900] sm:$0xff]
        %v7784 = vld [vmem:[#allocation13 + $0x908] sm:$0xff]
        %v7785 = vld [vmem:[#allocation13 + $0x910] sm:$0xff]
        %v7786 = vld [vmem:[#allocation13 + $0x918] sm:$0xff]
        %v7787 = vld [vmem:[#allocation13 + $0x920] sm:$0xff]
        %v7788 = vld [vmem:[#allocation13 + $0x928] sm:$0xff]
        %v7789 = vld [vmem:[#allocation13 + $0x930] sm:$0xff]
        %v7790 = vld [vmem:[#allocation13 + $0x938] sm:$0xff]
        %v7791 = vld [vmem:[#allocation13 + $0x940] sm:$0xff]
        %v7792 = vld [vmem:[#allocation13 + $0x948] sm:$0xff]
        %v7793 = vld [vmem:[#allocation13 + $0x950] sm:$0xff]
        %v7794 = vld [vmem:[#allocation13 + $0x958] sm:$0xff]
        %v7795 = vld [vmem:[#allocation13 + $0x960] sm:$0xff]
        %v7796 = vld [vmem:[#allocation13 + $0x968] sm:$0xff]
        %v7797 = vld [vmem:[#allocation13 + $0x970] sm:$0xff]
        %v7798 = vld [vmem:[#allocation13 + $0x978] sm:$0xff]
        %v7799 = vld [vmem:[#allocation13 + $0x980] sm:$0xff]
        %v7800 = vld [vmem:[#allocation13 + $0x988] sm:$0xff]
        %v7801 = vld [vmem:[#allocation13 + $0x990] sm:$0xff]
        %v7802 = vld [vmem:[#allocation13 + $0x998] sm:$0xff]
        %v7803 = vld [vmem:[#allocation13 + $0x9a0] sm:$0xff]
        %v7804 = vld [vmem:[#allocation13 + $0x9a8] sm:$0xff]
        %v7805 = vld [vmem:[#allocation13 + $0x9b0] sm:$0xff]
        %v7806 = vld [vmem:[#allocation13 + $0x9b8] sm:$0xff]
        %v7807 = vld [vmem:[#allocation13 + $0x9c0] sm:$0xff]
        %v7808 = vld [vmem:[#allocation13 + $0x9c8] sm:$0xff]
        %v7809 = vld [vmem:[#allocation13 + $0x9d0] sm:$0xff]
        %v7810 = vld [vmem:[#allocation13 + $0x9d8] sm:$0xff]
        %v7811 = vld [vmem:[#allocation13 + $0x9e0] sm:$0xff]
        %v7812 = vld [vmem:[#allocation13 + $0x9e8] sm:$0xff]
        %v7813 = vld [vmem:[#allocation13 + $0x9f0] sm:$0xff]
        %v7814 = vld [vmem:[#allocation13 + $0x9f8] sm:$0xff]
        %v7815 = vld [vmem:[#allocation13 + $0xa00] sm:$0xff]
        %v7816 = vld [vmem:[#allocation13 + $0xa08] sm:$0xff]
        %v7817 = vld [vmem:[#allocation13 + $0xa10] sm:$0xff]
        %v7818 = vld [vmem:[#allocation13 + $0xa18] sm:$0xff]
        %v7819 = vld [vmem:[#allocation13 + $0xa20] sm:$0xff]
        %v7820 = vld [vmem:[#allocation13 + $0xa28] sm:$0xff]
        %v7821 = vld [vmem:[#allocation13 + $0xa30] sm:$0xff]
        %v7822 = vld [vmem:[#allocation13 + $0xa38] sm:$0xff]
        %v7823 = vld [vmem:[#allocation13 + $0xa40] sm:$0xff]
        %v7824 = vld [vmem:[#allocation13 + $0xa48] sm:$0xff]
        %v7825 = vld [vmem:[#allocation13 + $0xa50] sm:$0xff]
        %v7826 = vld [vmem:[#allocation13 + $0xa58] sm:$0xff]
        %v7827 = vld [vmem:[#allocation13 + $0xa60] sm:$0xff]
        %v7828 = vld [vmem:[#allocation13 + $0xa68] sm:$0xff]
        %v7829 = vld [vmem:[#allocation13 + $0xa70] sm:$0xff]
        %v7830 = vld [vmem:[#allocation13 + $0xa78] sm:$0xff]
        %v7831 = vld [vmem:[#allocation13 + $0xa80] sm:$0xff]
        %v7832 = vld [vmem:[#allocation13 + $0xa88] sm:$0xff]
        %v7833 = vld [vmem:[#allocation13 + $0xa90] sm:$0xff]
        %v7834 = vld [vmem:[#allocation13 + $0xa98] sm:$0xff]
        %v7835 = vld [vmem:[#allocation13 + $0xaa0] sm:$0xff]
        %v7836 = vld [vmem:[#allocation13 + $0xaa8] sm:$0xff]
        %v7837 = vld [vmem:[#allocation13 + $0xab0] sm:$0xff]
        %v7838 = vld [vmem:[#allocation13 + $0xab8] sm:$0xff]
        %v7839 = vld [vmem:[#allocation13 + $0xac0] sm:$0xff]
        %v7840 = vld [vmem:[#allocation13 + $0xac8] sm:$0xff]
        %v7841 = vld [vmem:[#allocation13 + $0xad0] sm:$0xff]
        %v7842 = vld [vmem:[#allocation13 + $0xad8] sm:$0xff]
        %v7843 = vld [vmem:[#allocation13 + $0xae0] sm:$0xff]
        %v7844 = vld [vmem:[#allocation13 + $0xae8] sm:$0xff]
        %v7845 = vld [vmem:[#allocation13 + $0xaf0] sm:$0xff]
        %v7846 = vld [vmem:[#allocation13 + $0xaf8] sm:$0xff]
        %v7847 = vld [vmem:[#allocation13 + $0xb00] sm:$0xff]
        %v7848 = vld [vmem:[#allocation13 + $0xb08] sm:$0xff]
        %v7849 = vld [vmem:[#allocation13 + $0xb10] sm:$0xff]
        %v7850 = vld [vmem:[#allocation13 + $0xb18] sm:$0xff]
        %v7851 = vld [vmem:[#allocation13 + $0xb20] sm:$0xff]
        %v7852 = vld [vmem:[#allocation13 + $0xb28] sm:$0xff]
        %v7853 = vld [vmem:[#allocation13 + $0xb30] sm:$0xff]
        %v7854 = vld [vmem:[#allocation13 + $0xb38] sm:$0xff]
        %v7855 = vld [vmem:[#allocation13 + $0xb40] sm:$0xff]
        %v7856 = vld [vmem:[#allocation13 + $0xb48] sm:$0xff]
        %v7857 = vld [vmem:[#allocation13 + $0xb50] sm:$0xff]
        %v7858 = vld [vmem:[#allocation13 + $0xb58] sm:$0xff]
        %v7859 = vld [vmem:[#allocation13 + $0xb60] sm:$0xff]
        %v7860 = vld [vmem:[#allocation13 + $0xb68] sm:$0xff]
        %v7861 = vld [vmem:[#allocation13 + $0xb70] sm:$0xff]
        %v7862 = vld [vmem:[#allocation13 + $0xb78] sm:$0xff]
        %v7863 = vld [vmem:[#allocation13 + $0xb80] sm:$0xff]
        %v7864 = vld [vmem:[#allocation13 + $0xb88] sm:$0xff]
        %v7865 = vld [vmem:[#allocation13 + $0xb90] sm:$0xff]
        %v7866 = vld [vmem:[#allocation13 + $0xb98] sm:$0xff]
        %v7867 = vld [vmem:[#allocation13 + $0xba0] sm:$0xff]
        %v7868 = vld [vmem:[#allocation13 + $0xba8] sm:$0xff]
        %v7869 = vld [vmem:[#allocation13 + $0xbb0] sm:$0xff]
        %v7870 = vld [vmem:[#allocation13 + $0xbb8] sm:$0xff]
        %v7871 = vld [vmem:[#allocation13 + $0xbc0] sm:$0xff]
        %v7872 = vld [vmem:[#allocation13 + $0xbc8] sm:$0xff]
        %v7873 = vld [vmem:[#allocation13 + $0xbd0] sm:$0xff]
        %v7874 = vld [vmem:[#allocation13 + $0xbd8] sm:$0xff]
        %v7875 = vld [vmem:[#allocation13 + $0xbe0] sm:$0xff]
        %v7876 = vld [vmem:[#allocation13 + $0xbe8] sm:$0xff]
        %v7877 = vld [vmem:[#allocation13 + $0xbf0] sm:$0xff]
        %v7878 = vld [vmem:[#allocation13 + $0xbf8] sm:$0xff]
        %v7879 = vld [vmem:[#allocation13 + $0xc00] sm:$0xff]
        %v7880 = vld [vmem:[#allocation13 + $0xc08] sm:$0xff]
        %v7881 = vld [vmem:[#allocation13 + $0xc10] sm:$0xff]
        %v7882 = vld [vmem:[#allocation13 + $0xc18] sm:$0xff]
        %v7883 = vld [vmem:[#allocation13 + $0xc20] sm:$0xff]
        %v7884 = vld [vmem:[#allocation13 + $0xc28] sm:$0xff]
        %v7885 = vld [vmem:[#allocation13 + $0xc30] sm:$0xff]
        %v7886 = vld [vmem:[#allocation13 + $0xc38] sm:$0xff]
        %v7887 = vld [vmem:[#allocation13 + $0xc40] sm:$0xff]
        %v7888 = vld [vmem:[#allocation13 + $0xc48] sm:$0xff]
        %v7889 = vld [vmem:[#allocation13 + $0xc50] sm:$0xff]
        %v7890 = vld [vmem:[#allocation13 + $0xc58] sm:$0xff]
        %v7891 = vld [vmem:[#allocation13 + $0xc60] sm:$0xff]
        %v7892 = vld [vmem:[#allocation13 + $0xc68] sm:$0xff]
        %v7893 = vld [vmem:[#allocation13 + $0xc70] sm:$0xff]
        %v7894 = vld [vmem:[#allocation13 + $0xc78] sm:$0xff]
        %v7895 = vld [vmem:[#allocation13 + $0xc80] sm:$0xff]
        %v7896 = vld [vmem:[#allocation13 + $0xc88] sm:$0xff]
        %v7897 = vld [vmem:[#allocation13 + $0xc90] sm:$0xff]
        %v7898 = vld [vmem:[#allocation13 + $0xc98] sm:$0xff]
        %v7899 = vld [vmem:[#allocation13 + $0xca0] sm:$0xff]
        %v7900 = vld [vmem:[#allocation13 + $0xca8] sm:$0xff]
        %v7901 = vld [vmem:[#allocation13 + $0xcb0] sm:$0xff]
        %v7902 = vld [vmem:[#allocation13 + $0xcb8] sm:$0xff]
        %v7903 = vld [vmem:[#allocation13 + $0xcc0] sm:$0xff]
        %v7904 = vld [vmem:[#allocation13 + $0xcc8] sm:$0xff]
        %v7905 = vld [vmem:[#allocation13 + $0xcd0] sm:$0xff]
        %v7906 = vld [vmem:[#allocation13 + $0xcd8] sm:$0xff]
        %v7907 = vld [vmem:[#allocation13 + $0xce0] sm:$0xff]
        %v7908 = vld [vmem:[#allocation13 + $0xce8] sm:$0xff]
        %v7909 = vld [vmem:[#allocation13 + $0xcf0] sm:$0xff]
        %v7910 = vld [vmem:[#allocation13 + $0xcf8] sm:$0xff]
        %v7911 = vld [vmem:[#allocation13 + $0xd00] sm:$0xff]
        %v7912 = vld [vmem:[#allocation13 + $0xd08] sm:$0xff]
        %v7913 = vld [vmem:[#allocation13 + $0xd10] sm:$0xff]
        %v7914 = vld [vmem:[#allocation13 + $0xd18] sm:$0xff]
        %v7915 = vld [vmem:[#allocation13 + $0xd20] sm:$0xff]
        %v7916 = vld [vmem:[#allocation13 + $0xd28] sm:$0xff]
        %v7917 = vld [vmem:[#allocation13 + $0xd30] sm:$0xff]
        %v7918 = vld [vmem:[#allocation13 + $0xd38] sm:$0xff]
        %v7919 = vld [vmem:[#allocation13 + $0xd40] sm:$0xff]
        %v7920 = vld [vmem:[#allocation13 + $0xd48] sm:$0xff]
        %v7921 = vld [vmem:[#allocation13 + $0xd50] sm:$0xff]
        %v7922 = vld [vmem:[#allocation13 + $0xd58] sm:$0xff]
        %v7923 = vld [vmem:[#allocation13 + $0xd60] sm:$0xff]
        %v7924 = vld [vmem:[#allocation13 + $0xd68] sm:$0xff]
        %v7925 = vld [vmem:[#allocation13 + $0xd70] sm:$0xff]
        %v7926 = vld [vmem:[#allocation13 + $0xd78] sm:$0xff]
        %v7927 = vld [vmem:[#allocation13 + $0xd80] sm:$0xff]
        %v7928 = vld [vmem:[#allocation13 + $0xd88] sm:$0xff]
        %v7929 = vld [vmem:[#allocation13 + $0xd90] sm:$0xff]
        %v7930 = vld [vmem:[#allocation13 + $0xd98] sm:$0xff]
        %v7931 = vld [vmem:[#allocation13 + $0xda0] sm:$0xff]
        %v7932 = vld [vmem:[#allocation13 + $0xda8] sm:$0xff]
        %v7933 = vld [vmem:[#allocation13 + $0xdb0] sm:$0xff]
        %v7934 = vld [vmem:[#allocation13 + $0xdb8] sm:$0xff]
        %v7935 = vld [vmem:[#allocation13 + $0xdc0] sm:$0xff]
        %v7936 = vld [vmem:[#allocation13 + $0xdc8] sm:$0xff]
        %v7937 = vld [vmem:[#allocation13 + $0xdd0] sm:$0xff]
        %v7938 = vld [vmem:[#allocation13 + $0xdd8] sm:$0xff]
        %v7939 = vld [vmem:[#allocation13 + $0xde0] sm:$0xff]
        %v7940 = vld [vmem:[#allocation13 + $0xde8] sm:$0xff]
        %v7941 = vld [vmem:[#allocation13 + $0xdf0] sm:$0xff]
        %v7942 = vld [vmem:[#allocation13 + $0xdf8] sm:$0xff]
        %v7943 = vld [vmem:[#allocation13 + $0xe00] sm:$0xff]
        %v7944 = vld [vmem:[#allocation13 + $0xe08] sm:$0xff]
        %v7945 = vld [vmem:[#allocation13 + $0xe10] sm:$0xff]
        %v7946 = vld [vmem:[#allocation13 + $0xe18] sm:$0xff]
        %v7947 = vld [vmem:[#allocation13 + $0xe20] sm:$0xff]
        %v7948 = vld [vmem:[#allocation13 + $0xe28] sm:$0xff]
        %v7949 = vld [vmem:[#allocation13 + $0xe30] sm:$0xff]
        %v7950 = vld [vmem:[#allocation13 + $0xe38] sm:$0xff]
        %v7951 = vld [vmem:[#allocation13 + $0xe40] sm:$0xff]
        %v7952 = vld [vmem:[#allocation13 + $0xe48] sm:$0xff]
        %v7953 = vld [vmem:[#allocation13 + $0xe50] sm:$0xff]
        %v7954 = vld [vmem:[#allocation13 + $0xe58] sm:$0xff]
        %v7955 = vld [vmem:[#allocation13 + $0xe60] sm:$0xff]
        %v7956 = vld [vmem:[#allocation13 + $0xe68] sm:$0xff]
        %v7957 = vld [vmem:[#allocation13 + $0xe70] sm:$0xff]
        %v7958 = vld [vmem:[#allocation13 + $0xe78] sm:$0xff]
        %v7959 = vld [vmem:[#allocation13 + $0xe80] sm:$0xff]
        %v7960 = vld [vmem:[#allocation13 + $0xe88] sm:$0xff]
        %v7961 = vld [vmem:[#allocation13 + $0xe90] sm:$0xff]
        %v7962 = vld [vmem:[#allocation13 + $0xe98] sm:$0xff]
        %v7963 = vld [vmem:[#allocation13 + $0xea0] sm:$0xff]
        %v7964 = vld [vmem:[#allocation13 + $0xea8] sm:$0xff]
        %v7965 = vld [vmem:[#allocation13 + $0xeb0] sm:$0xff]
        %v7966 = vld [vmem:[#allocation13 + $0xeb8] sm:$0xff]
        %v7967 = vld [vmem:[#allocation13 + $0xec0] sm:$0xff]
        %v7968 = vld [vmem:[#allocation13 + $0xec8] sm:$0xff]
        %v7969 = vld [vmem:[#allocation13 + $0xed0] sm:$0xff]
        %v7970 = vld [vmem:[#allocation13 + $0xed8] sm:$0xff]
        %v7971 = vld [vmem:[#allocation13 + $0xee0] sm:$0xff]
        %v7972 = vld [vmem:[#allocation13 + $0xee8] sm:$0xff]
        %v7973 = vld [vmem:[#allocation13 + $0xef0] sm:$0xff]
        %v7974 = vld [vmem:[#allocation13 + $0xef8] sm:$0xff]
        %v7975 = vld [vmem:[#allocation13 + $0xf00] sm:$0xff]
        %v7976 = vld [vmem:[#allocation13 + $0xf08] sm:$0xff]
        %v7977 = vld [vmem:[#allocation13 + $0xf10] sm:$0xff]
        %v7978 = vld [vmem:[#allocation13 + $0xf18] sm:$0xff]
        %v7979 = vld [vmem:[#allocation13 + $0xf20] sm:$0xff]
        %v7980 = vld [vmem:[#allocation13 + $0xf28] sm:$0xff]
        %v7981 = vld [vmem:[#allocation13 + $0xf30] sm:$0xff]
        %v7982 = vld [vmem:[#allocation13 + $0xf38] sm:$0xff]
        %v7983 = vld [vmem:[#allocation13 + $0xf40] sm:$0xff]
        %v7984 = vld [vmem:[#allocation13 + $0xf48] sm:$0xff]
        %v7985 = vld [vmem:[#allocation13 + $0xf50] sm:$0xff]
        %v7986 = vld [vmem:[#allocation13 + $0xf58] sm:$0xff]
        %v7987 = vld [vmem:[#allocation13 + $0xf60] sm:$0xff]
        %v7988 = vld [vmem:[#allocation13 + $0xf68] sm:$0xff]
        %v7989 = vld [vmem:[#allocation13 + $0xf70] sm:$0xff]
        %v7990 = vld [vmem:[#allocation13 + $0xf78] sm:$0xff]
        %v7991 = vld [vmem:[#allocation13 + $0xf80] sm:$0xff]
        %v7992 = vld [vmem:[#allocation13 + $0xf88] sm:$0xff]
        %v7993 = vld [vmem:[#allocation13 + $0xf90] sm:$0xff]
        %v7994 = vld [vmem:[#allocation13 + $0xf98] sm:$0xff]
        %v7995 = vld [vmem:[#allocation13 + $0xfa0] sm:$0xff]
        %v7996 = vld [vmem:[#allocation13 + $0xfa8] sm:$0xff]
        %v7997 = vld [vmem:[#allocation13 + $0xfb0] sm:$0xff]
        %v7998 = vld [vmem:[#allocation13 + $0xfb8] sm:$0xff]
        %v7999 = vld [vmem:[#allocation13 + $0xfc0] sm:$0xff]
        %v8000 = vld [vmem:[#allocation13 + $0xfc8] sm:$0xff]
        %v8001 = vld [vmem:[#allocation13 + $0xfd0] sm:$0xff]
        %v8002 = vld [vmem:[#allocation13 + $0xfd8] sm:$0xff]
        %v8003 = vld [vmem:[#allocation13 + $0xfe0] sm:$0xff]
        %v8004 = vld [vmem:[#allocation13 + $0xfe8] sm:$0xff]
        %v8005 = vld [vmem:[#allocation13 + $0xff0] sm:$0xff]
        %v8006 = vld [vmem:[#allocation13 + $0xff8] sm:$0xff]
        %v8007 = vld [vmem:[#allocation14] sm:$0xf]
        %v8009 = vlaneseq
        %v8010 = vshrl.u32 %v8009, 7
        %v8011 = vsub.s32 0, %v8010
        %v8012 = vrot.slane %v8007, %v8011
        %v8013 = vlaneseq
        %v8014 = vshrl.u32 %v8013, 7
        %v8015 = vsub.s32 1, %v8014
        %v8016 = vrot.slane %v8007, %v8015
        %v8017 = vlaneseq
        %v8018 = vshrl.u32 %v8017, 7
        %v8019 = vsub.s32 2, %v8018
        %v8020 = vrot.slane %v8007, %v8019
        %v8021 = vlaneseq
        %v8022 = vshrl.u32 %v8021, 7
        %v8023 = vsub.s32 3, %v8022
        %v8024 = vrot.slane %v8007, %v8023
        %v8029 = vrot.slane %v7226, 7
        %vm8030 = vcmask 1041409
        %v8031 = vsel %vm8030, %v8029, %v7218
        %v8032 = vrot.slane %v7234, 6
        %vm8033 = vcmask 1042434
        %v8034 = vsel %vm8033, %v8032, %v8031
        %v8035 = vrot.slane %v7242, 5
        %vm8036 = vcmask 1043459
        %v8037 = vsel %vm8036, %v8035, %v8034
        %v8038 = vrot.slane %v7250, 4
        %vm8039 = vcmask 1044484
        %v8040 = vsel %vm8039, %v8038, %v8037
        %v8041 = vrot.slane %v7258, 3
        %vm8042 = vcmask 1045509
        %v8043 = vsel %vm8042, %v8041, %v8040
        %v8044 = vrot.slane %v7266, 2
        %vm8045 = vcmask 1046534
        %v8046 = vsel %vm8045, %v8044, %v8043
        %v8047 = vrot.slane %v7274, 1
        %vm8048 = vcmask 1047559
        %v8049 = vsel %vm8048, %v8047, %v8046
        %v8050 = vrot.slane %v7230, 7
        %v8051 = vsel %vm8030, %v8050, %v7222
        %v8052 = vrot.slane %v7238, 6
        %v8053 = vsel %vm8033, %v8052, %v8051
        %v8054 = vrot.slane %v7246, 5
        %v8055 = vsel %vm8036, %v8054, %v8053
        %v8056 = vrot.slane %v7254, 4
        %v8057 = vsel %vm8039, %v8056, %v8055
        %v8058 = vrot.slane %v7262, 3
        %v8059 = vsel %vm8042, %v8058, %v8057
        %v8060 = vrot.slane %v7270, 2
        %v8061 = vsel %vm8045, %v8060, %v8059
        %v8062 = vrot.slane %v7278, 1
        %v8063 = vsel %vm8048, %v8062, %v8061
        %v8064 = vrot.slane %v7298, 7
        %v8065 = vsel %vm8030, %v8064, %v7290
        %v8066 = vrot.slane %v7306, 6
        %v8067 = vsel %vm8033, %v8066, %v8065
        %v8068 = vrot.slane %v7314, 5
        %v8069 = vsel %vm8036, %v8068, %v8067
        %v8070 = vrot.slane %v7322, 4
        %v8071 = vsel %vm8039, %v8070, %v8069
        %v8072 = vrot.slane %v7330, 3
        %v8073 = vsel %vm8042, %v8072, %v8071
        %v8074 = vrot.slane %v7338, 2
        %v8075 = vsel %vm8045, %v8074, %v8073
        %v8076 = vrot.slane %v7346, 1
        %v8077 = vsel %vm8048, %v8076, %v8075
        %v8078 = vrot.slane %v7302, 7
        %v8079 = vsel %vm8030, %v8078, %v7294
        %v8080 = vrot.slane %v7310, 6
        %v8081 = vsel %vm8033, %v8080, %v8079
        %v8082 = vrot.slane %v7318, 5
        %v8083 = vsel %vm8036, %v8082, %v8081
        %v8084 = vrot.slane %v7326, 4
        %v8085 = vsel %vm8039, %v8084, %v8083
        %v8086 = vrot.slane %v7334, 3
        %v8087 = vsel %vm8042, %v8086, %v8085
        %v8088 = vrot.slane %v7342, 2
        %v8089 = vsel %vm8045, %v8088, %v8087
        %v8090 = vrot.slane %v7350, 1
        %v8091 = vsel %vm8048, %v8090, %v8089
        %v8092 = vrot.slane %v7370, 7
        %v8093 = vsel %vm8030, %v8092, %v7362
        %v8094 = vrot.slane %v7378, 6
        %v8095 = vsel %vm8033, %v8094, %v8093
        %v8096 = vrot.slane %v7386, 5
        %v8097 = vsel %vm8036, %v8096, %v8095
        %v8098 = vrot.slane %v7394, 4
        %v8099 = vsel %vm8039, %v8098, %v8097
        %v8100 = vrot.slane %v7402, 3
        %v8101 = vsel %vm8042, %v8100, %v8099
        %v8102 = vrot.slane %v7410, 2
        %v8103 = vsel %vm8045, %v8102, %v8101
        %v8104 = vrot.slane %v7418, 1
        %v8105 = vsel %vm8048, %v8104, %v8103
        %v8106 = vrot.slane %v7374, 7
        %v8107 = vsel %vm8030, %v8106, %v7366
        %v8108 = vrot.slane %v7382, 6
        %v8109 = vsel %vm8033, %v8108, %v8107
        %v8110 = vrot.slane %v7390, 5
        %v8111 = vsel %vm8036, %v8110, %v8109
        %v8112 = vrot.slane %v7398, 4
        %v8113 = vsel %vm8039, %v8112, %v8111
        %v8114 = vrot.slane %v7406, 3
        %v8115 = vsel %vm8042, %v8114, %v8113
        %v8116 = vrot.slane %v7414, 2
        %v8117 = vsel %vm8045, %v8116, %v8115
        %v8118 = vrot.slane %v7422, 1
        %v8119 = vsel %vm8048, %v8118, %v8117
        %v8120 = vrot.slane %v7442, 7
        %v8121 = vsel %vm8030, %v8120, %v7434
        %v8122 = vrot.slane %v7450, 6
        %v8123 = vsel %vm8033, %v8122, %v8121
        %v8124 = vrot.slane %v7458, 5
        %v8125 = vsel %vm8036, %v8124, %v8123
        %v8126 = vrot.slane %v7466, 4
        %v8127 = vsel %vm8039, %v8126, %v8125
        %v8128 = vrot.slane %v7474, 3
        %v8129 = vsel %vm8042, %v8128, %v8127
        %v8130 = vrot.slane %v7482, 2
        %v8131 = vsel %vm8045, %v8130, %v8129
        %v8132 = vrot.slane %v7490, 1
        %v8133 = vsel %vm8048, %v8132, %v8131
        %v8134 = vrot.slane %v7446, 7
        %v8135 = vsel %vm8030, %v8134, %v7438
        %v8136 = vrot.slane %v7454, 6
        %v8137 = vsel %vm8033, %v8136, %v8135
        %v8138 = vrot.slane %v7462, 5
        %v8139 = vsel %vm8036, %v8138, %v8137
        %v8140 = vrot.slane %v7470, 4
        %v8141 = vsel %vm8039, %v8140, %v8139
        %v8142 = vrot.slane %v7478, 3
        %v8143 = vsel %vm8042, %v8142, %v8141
        %v8144 = vrot.slane %v7486, 2
        %v8145 = vsel %vm8045, %v8144, %v8143
        %v8146 = vrot.slane %v7494, 1
        %v8147 = vsel %vm8048, %v8146, %v8145
        %8156 = vmatprep.subr.mxu0 %v7556
        %8157 = vmatpush1.msra.mxu0 %v7555
        %8158 = vmatprep.subr.mxu0 %v7552
        %8159 = vmatpush1.msra.mxu0 %v7551
        %8160 = vmatprep.subr.mxu0 %v7548
        %8161 = vmatpush1.msra.mxu0 %v7547
        %8162 = vmatprep.subr.mxu0 %v7544
        %8163 = vmatpush1.msra.mxu0 %v7543
        %8164 = vmatprep.subr.mxu0 %v7540
        %8165 = vmatpush1.msra.mxu0 %v7539
        %8166 = vmatprep.subr.mxu0 %v7536
        %8167 = vmatpush1.msra.mxu0 %v7535
        %8168 = vmatprep.subr.mxu0 %v7532
        %8169 = vmatpush1.msra.mxu0 %v7531
        %8170 = vmatprep.subr.mxu0 %v7528
        %8171 = vmatpush1.msra.mxu0 %v7527
        %8172 = vmatprep.subr.mxu0 %v7524
        %8173 = vmatpush1.msra.mxu0 %v7523
        %8174 = vmatprep.subr.mxu0 %v7520
        %8175 = vmatpush1.msra.mxu0 %v7519
        %8176 = vmatprep.subr.mxu0 %v7516
        %8177 = vmatpush1.msra.mxu0 %v7515
        %8178 = vmatprep.subr.mxu0 %v7512
        %8179 = vmatpush1.msra.mxu0 %v7511
        %8180 = vmatprep.subr.mxu0 %v7508
        %8181 = vmatpush1.msra.mxu0 %v7507
        %8182 = vmatprep.subr.mxu0 %v7504
        %8183 = vmatpush1.msra.mxu0 %v7503
        %8184 = vmatprep.subr.mxu0 %v7500
        %8185 = vmatpush1.msra.mxu0 %v7499
        %8186 = vmatprep.subr.mxu0 %v7496
        %8187 = vmatpush1.msra.mxu0 %v7495
        %8188 = vmatprep.subr.mxu0 %v7620
        %8189 = vmatpush2.msra.mxu0 %v7619
        %8190 = vmatprep.subr.mxu0 %v7616
        %8191 = vmatpush2.msra.mxu0 %v7615
        %8192 = vmatprep.subr.mxu0 %v7612
        %8193 = vmatpush2.msra.mxu0 %v7611
        %8194 = vmatprep.subr.mxu0 %v7608
        %8195 = vmatpush2.msra.mxu0 %v7607
        %8196 = vmatprep.subr.mxu0 %v7604
        %8197 = vmatpush2.msra.mxu0 %v7603
        %8198 = vmatprep.subr.mxu0 %v7600
        %8199 = vmatpush2.msra.mxu0 %v7599
        %8200 = vmatprep.subr.mxu0 %v7596
        %8201 = vmatpush2.msra.mxu0 %v7595
        %8202 = vmatprep.subr.mxu0 %v7592
        %8203 = vmatpush2.msra.mxu0 %v7591
        %8204 = vmatprep.subr.mxu0 %v7588
        %8205 = vmatpush2.msra.mxu0 %v7587
        %8206 = vmatprep.subr.mxu0 %v7584
        %8207 = vmatpush2.msra.mxu0 %v7583
        %8208 = vmatprep.subr.mxu0 %v7580
        %8209 = vmatpush2.msra.mxu0 %v7579
        %8210 = vmatprep.subr.mxu0 %v7576
        %8211 = vmatpush2.msra.mxu0 %v7575
        %8212 = vmatprep.subr.mxu0 %v7572
        %8213 = vmatpush2.msra.mxu0 %v7571
        %8214 = vmatprep.subr.mxu0 %v7568
        %8215 = vmatpush2.msra.mxu0 %v7567
        %8216 = vmatprep.subr.mxu0 %v7564
        %8217 = vmatpush2.msra.mxu0 %v7563
        %8218 = vmatprep.subr.mxu0 %v7560
        %8219 = vmatpush2.msra.mxu0 %v7559
        %8220 = vmatprep.mubr.f32.mxu0 %v8063
        %8221 = vmatmul.mubr.f32.gmra.mxu0 %v8049
        %v8222 = vpop.f32.mrf.mxu0
        %v8223 = vadd.f32 %v8012, %v8222
        %v8224 = vpop.f32.mrf.mxu0
        %v8225 = vadd.f32 %v8016, %v8224
        %8226 = vdwg.mxu0
        %8227 = vmatprep.subr.mxu0 %v7684
        %8228 = vmatpush1.msra.mxu0 %v7683
        %8229 = vmatprep.subr.mxu0 %v7680
        %8230 = vmatpush1.msra.mxu0 %v7679
        %8231 = vmatprep.subr.mxu0 %v7676
        %8232 = vmatpush1.msra.mxu0 %v7675
        %8233 = vmatprep.subr.mxu0 %v7672
        %8234 = vmatpush1.msra.mxu0 %v7671
        %8235 = vmatprep.subr.mxu0 %v7668
        %8236 = vmatpush1.msra.mxu0 %v7667
        %8237 = vmatprep.subr.mxu0 %v7664
        %8238 = vmatpush1.msra.mxu0 %v7663
        %8239 = vmatprep.subr.mxu0 %v7660
        %8240 = vmatpush1.msra.mxu0 %v7659
        %8241 = vmatprep.subr.mxu0 %v7656
        %8242 = vmatpush1.msra.mxu0 %v7655
        %8243 = vmatprep.subr.mxu0 %v7652
        %8244 = vmatpush1.msra.mxu0 %v7651
        %8245 = vmatprep.subr.mxu0 %v7648
        %8246 = vmatpush1.msra.mxu0 %v7647
        %8247 = vmatprep.subr.mxu0 %v7644
        %8248 = vmatpush1.msra.mxu0 %v7643
        %8249 = vmatprep.subr.mxu0 %v7640
        %8250 = vmatpush1.msra.mxu0 %v7639
        %8251 = vmatprep.subr.mxu0 %v7636
        %8252 = vmatpush1.msra.mxu0 %v7635
        %8253 = vmatprep.subr.mxu0 %v7632
        %8254 = vmatpush1.msra.mxu0 %v7631
        %8255 = vmatprep.subr.mxu0 %v7628
        %8256 = vmatpush1.msra.mxu0 %v7627
        %8257 = vmatprep.subr.mxu0 %v7624
        %8258 = vmatpush1.msra.mxu0 %v7623
        %8259 = vmatprep.subr.mxu0 %v7748
        %8260 = vmatpush2.msra.mxu0 %v7747
        %8261 = vmatprep.subr.mxu0 %v7744
        %8262 = vmatpush2.msra.mxu0 %v7743
        %8263 = vmatprep.subr.mxu0 %v7740
        %8264 = vmatpush2.msra.mxu0 %v7739
        %8265 = vmatprep.subr.mxu0 %v7736
        %8266 = vmatpush2.msra.mxu0 %v7735
        %8267 = vmatprep.subr.mxu0 %v7732
        %8268 = vmatpush2.msra.mxu0 %v7731
        %8269 = vmatprep.subr.mxu0 %v7728
        %8270 = vmatpush2.msra.mxu0 %v7727
        %8271 = vmatprep.subr.mxu0 %v7724
        %8272 = vmatpush2.msra.mxu0 %v7723
        %8273 = vmatprep.subr.mxu0 %v7720
        %8274 = vmatpush2.msra.mxu0 %v7719
        %8275 = vmatprep.subr.mxu0 %v7716
        %8276 = vmatpush2.msra.mxu0 %v7715
        %8277 = vmatprep.subr.mxu0 %v7712
        %8278 = vmatpush2.msra.mxu0 %v7711
        %8279 = vmatprep.subr.mxu0 %v7708
        %8280 = vmatpush2.msra.mxu0 %v7707
        %8281 = vmatprep.subr.mxu0 %v7704
        %8282 = vmatpush2.msra.mxu0 %v7703
        %8283 = vmatprep.subr.mxu0 %v7700
        %8284 = vmatpush2.msra.mxu0 %v7699
        %8285 = vmatprep.subr.mxu0 %v7696
        %8286 = vmatpush2.msra.mxu0 %v7695
        %8287 = vmatprep.subr.mxu0 %v7692
        %8288 = vmatpush2.msra.mxu0 %v7691
        %8289 = vmatprep.subr.mxu0 %v7688
        %8290 = vmatpush2.msra.mxu0 %v7687
        %8291 = vmatprep.mubr.f32.mxu0 %v8091
        %8292 = vmatmul.mubr.f32.gmra.mxu0 %v8077
        %v8293 = vpop.f32.mrf.mxu0
        %v8294 = vadd.f32 %v8223, %v8293
        %v8295 = vpop.f32.mrf.mxu0
        %v8296 = vadd.f32 %v8225, %v8295
        %8297 = vdwg.mxu0
        %8298 = vmatprep.subr.mxu0 %v7812
        %8299 = vmatpush1.msra.mxu0 %v7811
        %8300 = vmatprep.subr.mxu0 %v7808
        %8301 = vmatpush1.msra.mxu0 %v7807
        %8302 = vmatprep.subr.mxu0 %v7804
        %8303 = vmatpush1.msra.mxu0 %v7803
        %8304 = vmatprep.subr.mxu0 %v7800
        %8305 = vmatpush1.msra.mxu0 %v7799
        %8306 = vmatprep.subr.mxu0 %v7796
        %8307 = vmatpush1.msra.mxu0 %v7795
        %8308 = vmatprep.subr.mxu0 %v7792
        %8309 = vmatpush1.msra.mxu0 %v7791
        %8310 = vmatprep.subr.mxu0 %v7788
        %8311 = vmatpush1.msra.mxu0 %v7787
        %8312 = vmatprep.subr.mxu0 %v7784
        %8313 = vmatpush1.msra.mxu0 %v7783
        %8314 = vmatprep.subr.mxu0 %v7780
        %8315 = vmatpush1.msra.mxu0 %v7779
        %8316 = vmatprep.subr.mxu0 %v7776
        %8317 = vmatpush1.msra.mxu0 %v7775
        %8318 = vmatprep.subr.mxu0 %v7772
        %8319 = vmatpush1.msra.mxu0 %v7771
        %8320 = vmatprep.subr.mxu0 %v7768
        %8321 = vmatpush1.msra.mxu0 %v7767
        %8322 = vmatprep.subr.mxu0 %v7764
        %8323 = vmatpush1.msra.mxu0 %v7763
        %8324 = vmatprep.subr.mxu0 %v7760
        %8325 = vmatpush1.msra.mxu0 %v7759
        %8326 = vmatprep.subr.mxu0 %v7756
        %8327 = vmatpush1.msra.mxu0 %v7755
        %8328 = vmatprep.subr.mxu0 %v7752
        %8329 = vmatpush1.msra.mxu0 %v7751
        %8330 = vmatprep.subr.mxu0 %v7876
        %8331 = vmatpush2.msra.mxu0 %v7875
        %8332 = vmatprep.subr.mxu0 %v7872
        %8333 = vmatpush2.msra.mxu0 %v7871
        %8334 = vmatprep.subr.mxu0 %v7868
        %8335 = vmatpush2.msra.mxu0 %v7867
        %8336 = vmatprep.subr.mxu0 %v7864
        %8337 = vmatpush2.msra.mxu0 %v7863
        %8338 = vmatprep.subr.mxu0 %v7860
        %8339 = vmatpush2.msra.mxu0 %v7859
        %8340 = vmatprep.subr.mxu0 %v7856
        %8341 = vmatpush2.msra.mxu0 %v7855
        %8342 = vmatprep.subr.mxu0 %v7852
        %8343 = vmatpush2.msra.mxu0 %v7851
        %8344 = vmatprep.subr.mxu0 %v7848
        %8345 = vmatpush2.msra.mxu0 %v7847
        %8346 = vmatprep.subr.mxu0 %v7844
        %8347 = vmatpush2.msra.mxu0 %v7843
        %8348 = vmatprep.subr.mxu0 %v7840
        %8349 = vmatpush2.msra.mxu0 %v7839
        %8350 = vmatprep.subr.mxu0 %v7836
        %8351 = vmatpush2.msra.mxu0 %v7835
        %8352 = vmatprep.subr.mxu0 %v7832
        %8353 = vmatpush2.msra.mxu0 %v7831
        %8354 = vmatprep.subr.mxu0 %v7828
        %8355 = vmatpush2.msra.mxu0 %v7827
        %8356 = vmatprep.subr.mxu0 %v7824
        %8357 = vmatpush2.msra.mxu0 %v7823
        %8358 = vmatprep.subr.mxu0 %v7820
        %8359 = vmatpush2.msra.mxu0 %v7819
        %8360 = vmatprep.subr.mxu0 %v7816
        %8361 = vmatpush2.msra.mxu0 %v7815
        %8362 = vmatprep.mubr.f32.mxu0 %v8119
        %8363 = vmatmul.mubr.f32.gmra.mxu0 %v8105
        %v8364 = vpop.f32.mrf.mxu0
        %v8365 = vadd.f32 %v8294, %v8364
        %v8366 = vpop.f32.mrf.mxu0
        %v8367 = vadd.f32 %v8296, %v8366
        %8368 = vdwg.mxu0
        %8369 = vmatprep.subr.mxu0 %v7940
        %8370 = vmatpush1.msra.mxu0 %v7939
        %8371 = vmatprep.subr.mxu0 %v7936
        %8372 = vmatpush1.msra.mxu0 %v7935
        %8373 = vmatprep.subr.mxu0 %v7932
        %8374 = vmatpush1.msra.mxu0 %v7931
        %8375 = vmatprep.subr.mxu0 %v7928
        %8376 = vmatpush1.msra.mxu0 %v7927
        %8377 = vmatprep.subr.mxu0 %v7924
        %8378 = vmatpush1.msra.mxu0 %v7923
        %8379 = vmatprep.subr.mxu0 %v7920
        %8380 = vmatpush1.msra.mxu0 %v7919
        %8381 = vmatprep.subr.mxu0 %v7916
        %8382 = vmatpush1.msra.mxu0 %v7915
        %8383 = vmatprep.subr.mxu0 %v7912
        %8384 = vmatpush1.msra.mxu0 %v7911
        %8385 = vmatprep.subr.mxu0 %v7908
        %8386 = vmatpush1.msra.mxu0 %v7907
        %8387 = vmatprep.subr.mxu0 %v7904
        %8388 = vmatpush1.msra.mxu0 %v7903
        %8389 = vmatprep.subr.mxu0 %v7900
        %8390 = vmatpush1.msra.mxu0 %v7899
        %8391 = vmatprep.subr.mxu0 %v7896
        %8392 = vmatpush1.msra.mxu0 %v7895
        %8393 = vmatprep.subr.mxu0 %v7892
        %8394 = vmatpush1.msra.mxu0 %v7891
        %8395 = vmatprep.subr.mxu0 %v7888
        %8396 = vmatpush1.msra.mxu0 %v7887
        %8397 = vmatprep.subr.mxu0 %v7884
        %8398 = vmatpush1.msra.mxu0 %v7883
        %8399 = vmatprep.subr.mxu0 %v7880
        %8400 = vmatpush1.msra.mxu0 %v7879
        %8401 = vmatprep.subr.mxu0 %v8004
        %8402 = vmatpush2.msra.mxu0 %v8003
        %8403 = vmatprep.subr.mxu0 %v8000
        %8404 = vmatpush2.msra.mxu0 %v7999
        %8405 = vmatprep.subr.mxu0 %v7996
        %8406 = vmatpush2.msra.mxu0 %v7995
        %8407 = vmatprep.subr.mxu0 %v7992
        %8408 = vmatpush2.msra.mxu0 %v7991
        %8409 = vmatprep.subr.mxu0 %v7988
        %8410 = vmatpush2.msra.mxu0 %v7987
        %8411 = vmatprep.subr.mxu0 %v7984
        %8412 = vmatpush2.msra.mxu0 %v7983
        %8413 = vmatprep.subr.mxu0 %v7980
        %8414 = vmatpush2.msra.mxu0 %v7979
        %8415 = vmatprep.subr.mxu0 %v7976
        %8416 = vmatpush2.msra.mxu0 %v7975
        %8417 = vmatprep.subr.mxu0 %v7972
        %8418 = vmatpush2.msra.mxu0 %v7971
        %8419 = vmatprep.subr.mxu0 %v7968
        %8420 = vmatpush2.msra.mxu0 %v7967
        %8421 = vmatprep.subr.mxu0 %v7964
        %8422 = vmatpush2.msra.mxu0 %v7963
        %8423 = vmatprep.subr.mxu0 %v7960
        %8424 = vmatpush2.msra.mxu0 %v7959
        %8425 = vmatprep.subr.mxu0 %v7956
        %8426 = vmatpush2.msra.mxu0 %v7955
        %8427 = vmatprep.subr.mxu0 %v7952
        %8428 = vmatpush2.msra.mxu0 %v7951
        %8429 = vmatprep.subr.mxu0 %v7948
        %8430 = vmatpush2.msra.mxu0 %v7947
        %8431 = vmatprep.subr.mxu0 %v7944
        %8432 = vmatpush2.msra.mxu0 %v7943
        %8433 = vmatprep.mubr.f32.mxu0 %v8147
        %8434 = vmatmul.mubr.f32.gmra.mxu0 %v8133
        %v8435 = vpop.f32.mrf.mxu0
        %v8436 = vadd.f32 %v8365, %v8435
        %v8437 = vpop.f32.mrf.mxu0
        %v8438 = vadd.f32 %v8367, %v8437
        %8439 = vdwg.mxu0
        %8440 = vmatprep.subr.mxu0 %v7558
        %8441 = vmatpush1.msra.mxu0 %v7557
        %8442 = vmatprep.subr.mxu0 %v7554
        %8443 = vmatpush1.msra.mxu0 %v7553
        %8444 = vmatprep.subr.mxu0 %v7550
        %8445 = vmatpush1.msra.mxu0 %v7549
        %8446 = vmatprep.subr.mxu0 %v7546
        %8447 = vmatpush1.msra.mxu0 %v7545
        %8448 = vmatprep.subr.mxu0 %v7542
        %8449 = vmatpush1.msra.mxu0 %v7541
        %8450 = vmatprep.subr.mxu0 %v7538
        %8451 = vmatpush1.msra.mxu0 %v7537
        %8452 = vmatprep.subr.mxu0 %v7534
        %8453 = vmatpush1.msra.mxu0 %v7533
        %8454 = vmatprep.subr.mxu0 %v7530
        %8455 = vmatpush1.msra.mxu0 %v7529
        %8456 = vmatprep.subr.mxu0 %v7526
        %8457 = vmatpush1.msra.mxu0 %v7525
        %8458 = vmatprep.subr.mxu0 %v7522
        %8459 = vmatpush1.msra.mxu0 %v7521
        %8460 = vmatprep.subr.mxu0 %v7518
        %8461 = vmatpush1.msra.mxu0 %v7517
        %8462 = vmatprep.subr.mxu0 %v7514
        %8463 = vmatpush1.msra.mxu0 %v7513
        %8464 = vmatprep.subr.mxu0 %v7510
        %8465 = vmatpush1.msra.mxu0 %v7509
        %8466 = vmatprep.subr.mxu0 %v7506
        %8467 = vmatpush1.msra.mxu0 %v7505
        %8468 = vmatprep.subr.mxu0 %v7502
        %8469 = vmatpush1.msra.mxu0 %v7501
        %8470 = vmatprep.subr.mxu0 %v7498
        %8471 = vmatpush1.msra.mxu0 %v7497
        %8472 = vmatprep.subr.mxu0 %v7622
        %8473 = vmatpush2.msra.mxu0 %v7621
        %8474 = vmatprep.subr.mxu0 %v7618
        %8475 = vmatpush2.msra.mxu0 %v7617
        %8476 = vmatprep.subr.mxu0 %v7614
        %8477 = vmatpush2.msra.mxu0 %v7613
        %8478 = vmatprep.subr.mxu0 %v7610
        %8479 = vmatpush2.msra.mxu0 %v7609
        %8480 = vmatprep.subr.mxu0 %v7606
        %8481 = vmatpush2.msra.mxu0 %v7605
        %8482 = vmatprep.subr.mxu0 %v7602
        %8483 = vmatpush2.msra.mxu0 %v7601
        %8484 = vmatprep.subr.mxu0 %v7598
        %8485 = vmatpush2.msra.mxu0 %v7597
        %8486 = vmatprep.subr.mxu0 %v7594
        %8487 = vmatpush2.msra.mxu0 %v7593
        %8488 = vmatprep.subr.mxu0 %v7590
        %8489 = vmatpush2.msra.mxu0 %v7589
        %8490 = vmatprep.subr.mxu0 %v7586
        %8491 = vmatpush2.msra.mxu0 %v7585
        %8492 = vmatprep.subr.mxu0 %v7582
        %8493 = vmatpush2.msra.mxu0 %v7581
        %8494 = vmatprep.subr.mxu0 %v7578
        %8495 = vmatpush2.msra.mxu0 %v7577
        %8496 = vmatprep.subr.mxu0 %v7574
        %8497 = vmatpush2.msra.mxu0 %v7573
        %8498 = vmatprep.subr.mxu0 %v7570
        %8499 = vmatpush2.msra.mxu0 %v7569
        %8500 = vmatprep.subr.mxu0 %v7566
        %8501 = vmatpush2.msra.mxu0 %v7565
        %8502 = vmatprep.subr.mxu0 %v7562
        %8503 = vmatpush2.msra.mxu0 %v7561
        %8504 = vmatprep.mubr.f32.mxu0 %v8063
        %8505 = vmatmul.mubr.f32.gmra.mxu0 %v8049
        %v8506 = vpop.f32.mrf.mxu0
        %v8507 = vadd.f32 %v8020, %v8506
        %v8508 = vpop.f32.mrf.mxu0
        %v8509 = vadd.f32 %v8024, %v8508
        %8510 = vdwg.mxu0
        %8511 = vmatprep.subr.mxu0 %v7686
        %8512 = vmatpush1.msra.mxu0 %v7685
        %8513 = vmatprep.subr.mxu0 %v7682
        %8514 = vmatpush1.msra.mxu0 %v7681
        %8515 = vmatprep.subr.mxu0 %v7678
        %8516 = vmatpush1.msra.mxu0 %v7677
        %8517 = vmatprep.subr.mxu0 %v7674
        %8518 = vmatpush1.msra.mxu0 %v7673
        %8519 = vmatprep.subr.mxu0 %v7670
        %8520 = vmatpush1.msra.mxu0 %v7669
        %8521 = vmatprep.subr.mxu0 %v7666
        %8522 = vmatpush1.msra.mxu0 %v7665
        %8523 = vmatprep.subr.mxu0 %v7662
        %8524 = vmatpush1.msra.mxu0 %v7661
        %8525 = vmatprep.subr.mxu0 %v7658
        %8526 = vmatpush1.msra.mxu0 %v7657
        %8527 = vmatprep.subr.mxu0 %v7654
        %8528 = vmatpush1.msra.mxu0 %v7653
        %8529 = vmatprep.subr.mxu0 %v7650
        %8530 = vmatpush1.msra.mxu0 %v7649
        %8531 = vmatprep.subr.mxu0 %v7646
        %8532 = vmatpush1.msra.mxu0 %v7645
        %8533 = vmatprep.subr.mxu0 %v7642
        %8534 = vmatpush1.msra.mxu0 %v7641
        %8535 = vmatprep.subr.mxu0 %v7638
        %8536 = vmatpush1.msra.mxu0 %v7637
        %8537 = vmatprep.subr.mxu0 %v7634
        %8538 = vmatpush1.msra.mxu0 %v7633
        %8539 = vmatprep.subr.mxu0 %v7630
        %8540 = vmatpush1.msra.mxu0 %v7629
        %8541 = vmatprep.subr.mxu0 %v7626
        %8542 = vmatpush1.msra.mxu0 %v7625
        %8543 = vmatprep.subr.mxu0 %v7750
        %8544 = vmatpush2.msra.mxu0 %v7749
        %8545 = vmatprep.subr.mxu0 %v7746
        %8546 = vmatpush2.msra.mxu0 %v7745
        %8547 = vmatprep.subr.mxu0 %v7742
        %8548 = vmatpush2.msra.mxu0 %v7741
        %8549 = vmatprep.subr.mxu0 %v7738
        %8550 = vmatpush2.msra.mxu0 %v7737
        %8551 = vmatprep.subr.mxu0 %v7734
        %8552 = vmatpush2.msra.mxu0 %v7733
        %8553 = vmatprep.subr.mxu0 %v7730
        %8554 = vmatpush2.msra.mxu0 %v7729
        %8555 = vmatprep.subr.mxu0 %v7726
        %8556 = vmatpush2.msra.mxu0 %v7725
        %8557 = vmatprep.subr.mxu0 %v7722
        %8558 = vmatpush2.msra.mxu0 %v7721
        %8559 = vmatprep.subr.mxu0 %v7718
        %8560 = vmatpush2.msra.mxu0 %v7717
        %8561 = vmatprep.subr.mxu0 %v7714
        %8562 = vmatpush2.msra.mxu0 %v7713
        %8563 = vmatprep.subr.mxu0 %v7710
        %8564 = vmatpush2.msra.mxu0 %v7709
        %8565 = vmatprep.subr.mxu0 %v7706
        %8566 = vmatpush2.msra.mxu0 %v7705
        %8567 = vmatprep.subr.mxu0 %v7702
        %8568 = vmatpush2.msra.mxu0 %v7701
        %8569 = vmatprep.subr.mxu0 %v7698
        %8570 = vmatpush2.msra.mxu0 %v7697
        %8571 = vmatprep.subr.mxu0 %v7694
        %8572 = vmatpush2.msra.mxu0 %v7693
        %8573 = vmatprep.subr.mxu0 %v7690
        %8574 = vmatpush2.msra.mxu0 %v7689
        %8575 = vmatprep.mubr.f32.mxu0 %v8091
        %8576 = vmatmul.mubr.f32.gmra.mxu0 %v8077
        %v8577 = vpop.f32.mrf.mxu0
        %v8578 = vadd.f32 %v8507, %v8577
        %v8579 = vpop.f32.mrf.mxu0
        %v8580 = vadd.f32 %v8509, %v8579
        %8581 = vdwg.mxu0
        %8582 = vmatprep.subr.mxu0 %v7814
        %8583 = vmatpush1.msra.mxu0 %v7813
        %8584 = vmatprep.subr.mxu0 %v7810
        %8585 = vmatpush1.msra.mxu0 %v7809
        %8586 = vmatprep.subr.mxu0 %v7806
        %8587 = vmatpush1.msra.mxu0 %v7805
        %8588 = vmatprep.subr.mxu0 %v7802
        %8589 = vmatpush1.msra.mxu0 %v7801
        %8590 = vmatprep.subr.mxu0 %v7798
        %8591 = vmatpush1.msra.mxu0 %v7797
        %8592 = vmatprep.subr.mxu0 %v7794
        %8593 = vmatpush1.msra.mxu0 %v7793
        %8594 = vmatprep.subr.mxu0 %v7790
        %8595 = vmatpush1.msra.mxu0 %v7789
        %8596 = vmatprep.subr.mxu0 %v7786
        %8597 = vmatpush1.msra.mxu0 %v7785
        %8598 = vmatprep.subr.mxu0 %v7782
        %8599 = vmatpush1.msra.mxu0 %v7781
        %8600 = vmatprep.subr.mxu0 %v7778
        %8601 = vmatpush1.msra.mxu0 %v7777
        %8602 = vmatprep.subr.mxu0 %v7774
        %8603 = vmatpush1.msra.mxu0 %v7773
        %8604 = vmatprep.subr.mxu0 %v7770
        %8605 = vmatpush1.msra.mxu0 %v7769
        %8606 = vmatprep.subr.mxu0 %v7766
        %8607 = vmatpush1.msra.mxu0 %v7765
        %8608 = vmatprep.subr.mxu0 %v7762
        %8609 = vmatpush1.msra.mxu0 %v7761
        %8610 = vmatprep.subr.mxu0 %v7758
        %8611 = vmatpush1.msra.mxu0 %v7757
        %8612 = vmatprep.subr.mxu0 %v7754
        %8613 = vmatpush1.msra.mxu0 %v7753
        %8614 = vmatprep.subr.mxu0 %v7878
        %8615 = vmatpush2.msra.mxu0 %v7877
        %8616 = vmatprep.subr.mxu0 %v7874
        %8617 = vmatpush2.msra.mxu0 %v7873
        %8618 = vmatprep.subr.mxu0 %v7870
        %8619 = vmatpush2.msra.mxu0 %v7869
        %8620 = vmatprep.subr.mxu0 %v7866
        %8621 = vmatpush2.msra.mxu0 %v7865
        %8622 = vmatprep.subr.mxu0 %v7862
        %8623 = vmatpush2.msra.mxu0 %v7861
        %8624 = vmatprep.subr.mxu0 %v7858
        %8625 = vmatpush2.msra.mxu0 %v7857
        %8626 = vmatprep.subr.mxu0 %v7854
        %8627 = vmatpush2.msra.mxu0 %v7853
        %8628 = vmatprep.subr.mxu0 %v7850
        %8629 = vmatpush2.msra.mxu0 %v7849
        %8630 = vmatprep.subr.mxu0 %v7846
        %8631 = vmatpush2.msra.mxu0 %v7845
        %8632 = vmatprep.subr.mxu0 %v7842
        %8633 = vmatpush2.msra.mxu0 %v7841
        %8634 = vmatprep.subr.mxu0 %v7838
        %8635 = vmatpush2.msra.mxu0 %v7837
        %8636 = vmatprep.subr.mxu0 %v7834
        %8637 = vmatpush2.msra.mxu0 %v7833
        %8638 = vmatprep.subr.mxu0 %v7830
        %8639 = vmatpush2.msra.mxu0 %v7829
        %8640 = vmatprep.subr.mxu0 %v7826
        %8641 = vmatpush2.msra.mxu0 %v7825
        %8642 = vmatprep.subr.mxu0 %v7822
        %8643 = vmatpush2.msra.mxu0 %v7821
        %8644 = vmatprep.subr.mxu0 %v7818
        %8645 = vmatpush2.msra.mxu0 %v7817
        %8646 = vmatprep.mubr.f32.mxu0 %v8119
        %8647 = vmatmul.mubr.f32.gmra.mxu0 %v8105
        %v8648 = vpop.f32.mrf.mxu0
        %v8649 = vadd.f32 %v8578, %v8648
        %v8650 = vpop.f32.mrf.mxu0
        %v8651 = vadd.f32 %v8580, %v8650
        %8652 = vdwg.mxu0
        %8653 = vmatprep.subr.mxu0 %v7942
        %8654 = vmatpush1.msra.mxu0 %v7941
        %8655 = vmatprep.subr.mxu0 %v7938
        %8656 = vmatpush1.msra.mxu0 %v7937
        %8657 = vmatprep.subr.mxu0 %v7934
        %8658 = vmatpush1.msra.mxu0 %v7933
        %8659 = vmatprep.subr.mxu0 %v7930
        %8660 = vmatpush1.msra.mxu0 %v7929
        %8661 = vmatprep.subr.mxu0 %v7926
        %8662 = vmatpush1.msra.mxu0 %v7925
        %8663 = vmatprep.subr.mxu0 %v7922
        %8664 = vmatpush1.msra.mxu0 %v7921
        %8665 = vmatprep.subr.mxu0 %v7918
        %8666 = vmatpush1.msra.mxu0 %v7917
        %8667 = vmatprep.subr.mxu0 %v7914
        %8668 = vmatpush1.msra.mxu0 %v7913
        %8669 = vmatprep.subr.mxu0 %v7910
        %8670 = vmatpush1.msra.mxu0 %v7909
        %8671 = vmatprep.subr.mxu0 %v7906
        %8672 = vmatpush1.msra.mxu0 %v7905
        %8673 = vmatprep.subr.mxu0 %v7902
        %8674 = vmatpush1.msra.mxu0 %v7901
        %8675 = vmatprep.subr.mxu0 %v7898
        %8676 = vmatpush1.msra.mxu0 %v7897
        %8677 = vmatprep.subr.mxu0 %v7894
        %8678 = vmatpush1.msra.mxu0 %v7893
        %8679 = vmatprep.subr.mxu0 %v7890
        %8680 = vmatpush1.msra.mxu0 %v7889
        %8681 = vmatprep.subr.mxu0 %v7886
        %8682 = vmatpush1.msra.mxu0 %v7885
        %8683 = vmatprep.subr.mxu0 %v7882
        %8684 = vmatpush1.msra.mxu0 %v7881
        %8685 = vmatprep.subr.mxu0 %v8006
        %8686 = vmatpush2.msra.mxu0 %v8005
        %8687 = vmatprep.subr.mxu0 %v8002
        %8688 = vmatpush2.msra.mxu0 %v8001
        %8689 = vmatprep.subr.mxu0 %v7998
        %8690 = vmatpush2.msra.mxu0 %v7997
        %8691 = vmatprep.subr.mxu0 %v7994
        %8692 = vmatpush2.msra.mxu0 %v7993
        %8693 = vmatprep.subr.mxu0 %v7990
        %8694 = vmatpush2.msra.mxu0 %v7989
        %8695 = vmatprep.subr.mxu0 %v7986
        %8696 = vmatpush2.msra.mxu0 %v7985
        %8697 = vmatprep.subr.mxu0 %v7982
        %8698 = vmatpush2.msra.mxu0 %v7981
        %8699 = vmatprep.subr.mxu0 %v7978
        %8700 = vmatpush2.msra.mxu0 %v7977
        %8701 = vmatprep.subr.mxu0 %v7974
        %8702 = vmatpush2.msra.mxu0 %v7973
        %8703 = vmatprep.subr.mxu0 %v7970
        %8704 = vmatpush2.msra.mxu0 %v7969
        %8705 = vmatprep.subr.mxu0 %v7966
        %8706 = vmatpush2.msra.mxu0 %v7965
        %8707 = vmatprep.subr.mxu0 %v7962
        %8708 = vmatpush2.msra.mxu0 %v7961
        %8709 = vmatprep.subr.mxu0 %v7958
        %8710 = vmatpush2.msra.mxu0 %v7957
        %8711 = vmatprep.subr.mxu0 %v7954
        %8712 = vmatpush2.msra.mxu0 %v7953
        %8713 = vmatprep.subr.mxu0 %v7950
        %8714 = vmatpush2.msra.mxu0 %v7949
        %8715 = vmatprep.subr.mxu0 %v7946
        %8716 = vmatpush2.msra.mxu0 %v7945
        %8717 = vmatprep.mubr.f32.mxu0 %v8147
        %8718 = vmatmul.mubr.f32.gmra.mxu0 %v8133
        %v8719 = vpop.f32.mrf.mxu0
        %v8720 = vadd.f32 %v8649, %v8719
        %v8721 = vpop.f32.mrf.mxu0
        %v8722 = vadd.f32 %v8651, %v8721
        %8723 = vdwg.mxu0
        %v8724 = vmax.f32 %v8436, 0.0
        %v8725 = vmax.f32 %v8438, 0.0
        %v8726 = vmax.f32 %v8720, 0.0
        %v8727 = vmax.f32 %v8722, 0.0
        %v8728 = vld [vmem:[#allocation16] sm:$0xff]
        %v8729 = vld [vmem:[#allocation16 + $0x8] sm:$0xff]
        %v8730 = vld [vmem:[#allocation16 + $0x10] sm:$0xff]
        %v8731 = vld [vmem:[#allocation16 + $0x18] sm:$0xff]
        %v8732 = vld [vmem:[#allocation16 + $0x20] sm:$0xff]
        %v8733 = vld [vmem:[#allocation16 + $0x28] sm:$0xff]
        %v8734 = vld [vmem:[#allocation16 + $0x30] sm:$0xff]
        %v8735 = vld [vmem:[#allocation16 + $0x38] sm:$0xff]
        %v8736 = vld [vmem:[#allocation16 + $0x40] sm:$0xff]
        %v8737 = vld [vmem:[#allocation16 + $0x48] sm:$0xff]
        %v8738 = vld [vmem:[#allocation16 + $0x50] sm:$0xff]
        %v8739 = vld [vmem:[#allocation16 + $0x58] sm:$0xff]
        %v8740 = vld [vmem:[#allocation16 + $0x60] sm:$0xff]
        %v8741 = vld [vmem:[#allocation16 + $0x68] sm:$0xff]
        %v8742 = vld [vmem:[#allocation16 + $0x70] sm:$0xff]
        %v8743 = vld [vmem:[#allocation16 + $0x78] sm:$0xff]
        %v8744 = vld [vmem:[#allocation16 + $0x80] sm:$0xff]
        %v8745 = vld [vmem:[#allocation16 + $0x88] sm:$0xff]
        %v8746 = vld [vmem:[#allocation16 + $0x90] sm:$0xff]
        %v8747 = vld [vmem:[#allocation16 + $0x98] sm:$0xff]
        %v8748 = vld [vmem:[#allocation16 + $0xa0] sm:$0xff]
        %v8749 = vld [vmem:[#allocation16 + $0xa8] sm:$0xff]
        %v8750 = vld [vmem:[#allocation16 + $0xb0] sm:$0xff]
        %v8751 = vld [vmem:[#allocation16 + $0xb8] sm:$0xff]
        %v8752 = vld [vmem:[#allocation16 + $0xc0] sm:$0xff]
        %v8753 = vld [vmem:[#allocation16 + $0xc8] sm:$0xff]
        %v8754 = vld [vmem:[#allocation16 + $0xd0] sm:$0xff]
        %v8755 = vld [vmem:[#allocation16 + $0xd8] sm:$0xff]
        %v8756 = vld [vmem:[#allocation16 + $0xe0] sm:$0xff]
        %v8757 = vld [vmem:[#allocation16 + $0xe8] sm:$0xff]
        %v8758 = vld [vmem:[#allocation16 + $0xf0] sm:$0xff]
        %v8759 = vld [vmem:[#allocation16 + $0xf8] sm:$0xff]
        %v8760 = vld [vmem:[#allocation16 + $0x100] sm:$0xff]
        %v8761 = vld [vmem:[#allocation16 + $0x108] sm:$0xff]
        %v8762 = vld [vmem:[#allocation16 + $0x110] sm:$0xff]
        %v8763 = vld [vmem:[#allocation16 + $0x118] sm:$0xff]
        %v8764 = vld [vmem:[#allocation16 + $0x120] sm:$0xff]
        %v8765 = vld [vmem:[#allocation16 + $0x128] sm:$0xff]
        %v8766 = vld [vmem:[#allocation16 + $0x130] sm:$0xff]
        %v8767 = vld [vmem:[#allocation16 + $0x138] sm:$0xff]
        %v8768 = vld [vmem:[#allocation16 + $0x140] sm:$0xff]
        %v8769 = vld [vmem:[#allocation16 + $0x148] sm:$0xff]
        %v8770 = vld [vmem:[#allocation16 + $0x150] sm:$0xff]
        %v8771 = vld [vmem:[#allocation16 + $0x158] sm:$0xff]
        %v8772 = vld [vmem:[#allocation16 + $0x160] sm:$0xff]
        %v8773 = vld [vmem:[#allocation16 + $0x168] sm:$0xff]
        %v8774 = vld [vmem:[#allocation16 + $0x170] sm:$0xff]
        %v8775 = vld [vmem:[#allocation16 + $0x178] sm:$0xff]
        %v8776 = vld [vmem:[#allocation16 + $0x180] sm:$0xff]
        %v8777 = vld [vmem:[#allocation16 + $0x188] sm:$0xff]
        %v8778 = vld [vmem:[#allocation16 + $0x190] sm:$0xff]
        %v8779 = vld [vmem:[#allocation16 + $0x198] sm:$0xff]
        %v8780 = vld [vmem:[#allocation16 + $0x1a0] sm:$0xff]
        %v8781 = vld [vmem:[#allocation16 + $0x1a8] sm:$0xff]
        %v8782 = vld [vmem:[#allocation16 + $0x1b0] sm:$0xff]
        %v8783 = vld [vmem:[#allocation16 + $0x1b8] sm:$0xff]
        %v8784 = vld [vmem:[#allocation16 + $0x1c0] sm:$0xff]
        %v8785 = vld [vmem:[#allocation16 + $0x1c8] sm:$0xff]
        %v8786 = vld [vmem:[#allocation16 + $0x1d0] sm:$0xff]
        %v8787 = vld [vmem:[#allocation16 + $0x1d8] sm:$0xff]
        %v8788 = vld [vmem:[#allocation16 + $0x1e0] sm:$0xff]
        %v8789 = vld [vmem:[#allocation16 + $0x1e8] sm:$0xff]
        %v8790 = vld [vmem:[#allocation16 + $0x1f0] sm:$0xff]
        %v8791 = vld [vmem:[#allocation16 + $0x1f8] sm:$0xff]
        %v8792 = vld [vmem:[#allocation17] sm:$0x1]
        %v8794 = vlaneseq
        %v8795 = vshrl.u32 %v8794, 7
        %v8796 = vsub.s32 0, %v8795
        %v8797 = vrot.slane %v8792, %v8796
        %8799 = vmatprep.subr.mxu0 0.0
        %8800 = vmatpush1.msra.mxu0 %v8743
        %8801 = vmatprep.subr.mxu0 0.0
        %8802 = vmatpush1.msra.mxu0 %v8742
        %8803 = vmatprep.subr.mxu0 0.0
        %8804 = vmatpush1.msra.mxu0 %v8741
        %8805 = vmatprep.subr.mxu0 0.0
        %8806 = vmatpush1.msra.mxu0 %v8740
        %8807 = vmatprep.subr.mxu0 0.0
        %8808 = vmatpush1.msra.mxu0 %v8739
        %8809 = vmatprep.subr.mxu0 0.0
        %8810 = vmatpush1.msra.mxu0 %v8738
        %8811 = vmatprep.subr.mxu0 0.0
        %8812 = vmatpush1.msra.mxu0 %v8737
        %8813 = vmatprep.subr.mxu0 0.0
        %8814 = vmatpush1.msra.mxu0 %v8736
        %8815 = vmatprep.subr.mxu0 0.0
        %8816 = vmatpush1.msra.mxu0 %v8735
        %8817 = vmatprep.subr.mxu0 0.0
        %8818 = vmatpush1.msra.mxu0 %v8734
        %8819 = vmatprep.subr.mxu0 0.0
        %8820 = vmatpush1.msra.mxu0 %v8733
        %8821 = vmatprep.subr.mxu0 0.0
        %8822 = vmatpush1.msra.mxu0 %v8732
        %8823 = vmatprep.subr.mxu0 0.0
        %8824 = vmatpush1.msra.mxu0 %v8731
        %8825 = vmatprep.subr.mxu0 0.0
        %8826 = vmatpush1.msra.mxu0 %v8730
        %8827 = vmatprep.subr.mxu0 0.0
        %8828 = vmatpush1.msra.mxu0 %v8729
        %8829 = vmatprep.subr.mxu0 0.0
        %8830 = vmatpush1.msra.mxu0 %v8728
        %8831 = vmatprep.subr.mxu0 0.0
        %8832 = vmatpush2.msra.mxu0 %v8759
        %8833 = vmatprep.subr.mxu0 0.0
        %8834 = vmatpush2.msra.mxu0 %v8758
        %8835 = vmatprep.subr.mxu0 0.0
        %8836 = vmatpush2.msra.mxu0 %v8757
        %8837 = vmatprep.subr.mxu0 0.0
        %8838 = vmatpush2.msra.mxu0 %v8756
        %8839 = vmatprep.subr.mxu0 0.0
        %8840 = vmatpush2.msra.mxu0 %v8755
        %8841 = vmatprep.subr.mxu0 0.0
        %8842 = vmatpush2.msra.mxu0 %v8754
        %8843 = vmatprep.subr.mxu0 0.0
        %8844 = vmatpush2.msra.mxu0 %v8753
        %8845 = vmatprep.subr.mxu0 0.0
        %8846 = vmatpush2.msra.mxu0 %v8752
        %8847 = vmatprep.subr.mxu0 0.0
        %8848 = vmatpush2.msra.mxu0 %v8751
        %8849 = vmatprep.subr.mxu0 0.0
        %8850 = vmatpush2.msra.mxu0 %v8750
        %8851 = vmatprep.subr.mxu0 0.0
        %8852 = vmatpush2.msra.mxu0 %v8749
        %8853 = vmatprep.subr.mxu0 0.0
        %8854 = vmatpush2.msra.mxu0 %v8748
        %8855 = vmatprep.subr.mxu0 0.0
        %8856 = vmatpush2.msra.mxu0 %v8747
        %8857 = vmatprep.subr.mxu0 0.0
        %8858 = vmatpush2.msra.mxu0 %v8746
        %8859 = vmatprep.subr.mxu0 0.0
        %8860 = vmatpush2.msra.mxu0 %v8745
        %8861 = vmatprep.subr.mxu0 0.0
        %8862 = vmatpush2.msra.mxu0 %v8744
        %8863 = vmatprep.mubr.f32.mxu0 %v8725
        %8864 = vmatmul.mubr.f32.gmra.mxu0 %v8724
        %v8865 = vpop.f32.mrf.mxu0
        %v8866 = vadd.f32 %v8797, %v8865
        %v8867 = vpop.f32.mrf.mxu0
        %8868 = vdwg.mxu0
        %8869 = vmatprep.subr.mxu0 0.0
        %8870 = vmatpush1.msra.mxu0 %v8775
        %8871 = vmatprep.subr.mxu0 0.0
        %8872 = vmatpush1.msra.mxu0 %v8774
        %8873 = vmatprep.subr.mxu0 0.0
        %8874 = vmatpush1.msra.mxu0 %v8773
        %8875 = vmatprep.subr.mxu0 0.0
        %8876 = vmatpush1.msra.mxu0 %v8772
        %8877 = vmatprep.subr.mxu0 0.0
        %8878 = vmatpush1.msra.mxu0 %v8771
        %8879 = vmatprep.subr.mxu0 0.0
        %8880 = vmatpush1.msra.mxu0 %v8770
        %8881 = vmatprep.subr.mxu0 0.0
        %8882 = vmatpush1.msra.mxu0 %v8769
        %8883 = vmatprep.subr.mxu0 0.0
        %8884 = vmatpush1.msra.mxu0 %v8768
        %8885 = vmatprep.subr.mxu0 0.0
        %8886 = vmatpush1.msra.mxu0 %v8767
        %8887 = vmatprep.subr.mxu0 0.0
        %8888 = vmatpush1.msra.mxu0 %v8766
        %8889 = vmatprep.subr.mxu0 0.0
        %8890 = vmatpush1.msra.mxu0 %v8765
        %8891 = vmatprep.subr.mxu0 0.0
        %8892 = vmatpush1.msra.mxu0 %v8764
        %8893 = vmatprep.subr.mxu0 0.0
        %8894 = vmatpush1.msra.mxu0 %v8763
        %8895 = vmatprep.subr.mxu0 0.0
        %8896 = vmatpush1.msra.mxu0 %v8762
        %8897 = vmatprep.subr.mxu0 0.0
        %8898 = vmatpush1.msra.mxu0 %v8761
        %8899 = vmatprep.subr.mxu0 0.0
        %8900 = vmatpush1.msra.mxu0 %v8760
        %8901 = vmatprep.subr.mxu0 0.0
        %8902 = vmatpush2.msra.mxu0 %v8791
        %8903 = vmatprep.subr.mxu0 0.0
        %8904 = vmatpush2.msra.mxu0 %v8790
        %8905 = vmatprep.subr.mxu0 0.0
        %8906 = vmatpush2.msra.mxu0 %v8789
        %8907 = vmatprep.subr.mxu0 0.0
        %8908 = vmatpush2.msra.mxu0 %v8788
        %8909 = vmatprep.subr.mxu0 0.0
        %8910 = vmatpush2.msra.mxu0 %v8787
        %8911 = vmatprep.subr.mxu0 0.0
        %8912 = vmatpush2.msra.mxu0 %v8786
        %8913 = vmatprep.subr.mxu0 0.0
        %8914 = vmatpush2.msra.mxu0 %v8785
        %8915 = vmatprep.subr.mxu0 0.0
        %8916 = vmatpush2.msra.mxu0 %v8784
        %8917 = vmatprep.subr.mxu0 0.0
        %8918 = vmatpush2.msra.mxu0 %v8783
        %8919 = vmatprep.subr.mxu0 0.0
        %8920 = vmatpush2.msra.mxu0 %v8782
        %8921 = vmatprep.subr.mxu0 0.0
        %8922 = vmatpush2.msra.mxu0 %v8781
        %8923 = vmatprep.subr.mxu0 0.0
        %8924 = vmatpush2.msra.mxu0 %v8780
        %8925 = vmatprep.subr.mxu0 0.0
        %8926 = vmatpush2.msra.mxu0 %v8779
        %8927 = vmatprep.subr.mxu0 0.0
        %8928 = vmatpush2.msra.mxu0 %v8778
        %8929 = vmatprep.subr.mxu0 0.0
        %8930 = vmatpush2.msra.mxu0 %v8777
        %8931 = vmatprep.subr.mxu0 0.0
        %8932 = vmatpush2.msra.mxu0 %v8776
        %8933 = vmatprep.mubr.f32.mxu0 %v8727
        %8934 = vmatmul.mubr.f32.gmra.mxu0 %v8726
        %v8935 = vpop.f32.mrf.mxu0
        %v8936 = vadd.f32 %v8866, %v8935
        %v8937 = vpop.f32.mrf.mxu0
        %8938 = vdwg.mxu0
        %8939 = vmax.xlane.f32.xlu0 %v8936
        %v8940 = vpop.xlane.xlu0 %8939
        %v8941 = vsub.f32 %v8936, %v8940
        %v8942 = vmul.f32 %v8941, 1.442695
        %v8943 = vpow.pop %v8942
        %8944 = vadd.xlane.f32.xlu0 %v8943
        %v8945 = vpop.xlane.xlu0 %8944
        %v8946 = vlog2.pop %v8945
        %v8947 = vmul.f32 %v8946, 0.6931472
        %v8948 = vsub.f32 %v8941, %v8947
        %8949 = vst [vmem:[%s437] sm:$0xff] %v8948
        %s8950 = sand.u32 %s230, 1
        %s8951 = scalar_lea.sflag [#allocation7], %s8950
        %s8952 = sand.u32 %s230, 1
        %s8953 = smul.addr %s8952, 8
        %s8954 = scalar_lea.vmem [#allocation19], %s8953
        // Predicated region
        $region89: #{cnn_forward.1} parent=55 // pred_check
          %p8955 = pneg %p240
        $region90: #{cnn_forward.1} parent=55 // pred_check_branch
          %8957 = sbr.rel (%p8955) target = $region92
        $region91: #{cnn_forward.1} parent=55 // pred_region
          %s8959 = ssub.s32 128, 128
          %8960 = vsyncadd %s8951, %s8959
          %s8961 = smul.addr %s28, 128
          %s8962 = scalar_lea.hbm %s9, %s8961
          %s8964 = sshll.u32 %s8954, 4
          %s8965 = int_to_ptr.vmem [resolvable:$true] %s8964
          %8967 = dma.vmem_to_hbm [thread:$0]  %s8965, 128, %s8962, %s8951
        $region92: #{cnn_forward.1} parent=55 // pred_fallthru
          _
      $region56: #{cnn_forward.1} parent=5 // pred_fallthru
        _
      %p8968 = scmp.le.s32.totalorder 2, %s23
      // Predicated region
      $region93: #{cnn_forward.1} parent=5 // pred_check
        %p8969 = pneg %p8968
      $region94: #{cnn_forward.1} parent=5 // pred_check_branch
        %8971 = sbr.rel (%p8969) target = $region96
      $region95: #{cnn_forward.1} parent=5 // pred_region
        %s8972 = ssub.s32 %s23, 2
        // Predicated region
        $region97: #{cnn_forward.1} parent=95 // pred_check
          %p8973 = pneg %p246
        $region98: #{cnn_forward.1} parent=95 // pred_check_branch
          %8975 = sbr.rel (%p8973) target = $region100
        $region99: #{cnn_forward.1} parent=95 // pred_region
          %s8976 = sand.u32 %s231, 1
          %s8977 = scalar_lea.sflag [#allocation7], %s8976
          %s8978 = sand.u32 %s231, 1
          %s8979 = smul.addr %s8978, 8
          %s8980 = scalar_lea.vmem [#allocation19], %s8979
          %8981 = dma.done %s8977, 128
        $region100: #{cnn_forward.1} parent=95 // pred_fallthru
          _
      $region96: #{cnn_forward.1} parent=5 // pred_fallthru
        _
    $region6: #{cnn_forward.1} parent=1 // loop_footer
      %s27 = sadd.s32 1, %s23
    $region7: #{cnn_forward.1} parent=1 // loop_footer_branch
      %22 = sbr.rel target = $region3
    $region8: #{cnn_forward.1} parent=1 // loop_exit
      _
    %8982 = vsyncpa [#allocation6], 1
    %s8983 = scalar_lea.sflag [#allocation6], 1
    %8984 = vsyncpa %s8983, 1
    %8985 = vsyncpa [#allocation9], 1
    %8986 = vsyncpa [#allocation12], 1
    %8987 = vsyncpa [#allocation15], 1
    %8988 = vsyncpa [#allocation18], 1
    %8989 = vsyncpa [#allocation7], 1
    %s8990 = scalar_lea.sflag [#allocation7], 1
    %8991 = vsyncpa %s8990, 1

</llo_original>
